<compile_context>
chip_gen: v5e
topology: v5e:2x2
jax: 0.10.0
libtpu: 0.0.40
codegen_flags: <defaults>
</compile_context>

<pallas_src>
import functools

import jax
import jax.numpy as jnp
import numpy as np
from jax.experimental import pallas as pl
from jax.experimental.pallas import tpu as pltpu

EPS = 1e-5      # nn.BatchNorm2d default
LANE = 128


def _round_up(x, m):
    return (x + m - 1) // m * m


def _default_vmem_limit():
    # Generation-aware scoped-VMEM limit: ~3/4 of physical, capped at 96 MiB
    # (v5e/v6e: 96 MiB of 128 MiB; v7x: 48 MiB of 64 MiB).  Falls back to the
    # previously-working 32 MiB if the query is unavailable.
    try:
        info = pltpu.get_tpu_info()
        cap = getattr(info, "vmem_capacity_bytes", None)
        if cap:
            return int(min(cap * 3 // 4, 96 * 1024 * 1024))
    except Exception:
        pass
    return 32 * 1024 * 1024


VMEM_LIMIT = _default_vmem_limit()


def _sum_and_sumsq(y):
    """y: (M, C) f32 -> (2, C) [sum; sum of squares] in one fused pass."""
    return jnp.concatenate(
        [jnp.sum(y, axis=0, keepdims=True),
         jnp.sum(y * y, axis=0, keepdims=True)], axis=0)


def _conv3x3_accum(xpad, w_ref, Nb, H, W, Ci, n_out):
    """3x3 conv as 3 per-kh partial matmuls.

    xpad:  (Nb, H+2, W+2, Ci) bf16 (spatially haloed, channel padded)
    w_ref: (3, 3*Ci, n_out) bf16 Ref (per-kh im2col weights)
    returns (Nb*H*W, n_out) f32 accumulator.
    """
    M = Nb * H * W
    acc = jnp.zeros((M, n_out), jnp.float32)
    for kh in range(3):
        pat = jnp.concatenate(
            [xpad[:, kh:kh + H, kw:kw + W, :] for kw in range(3)],
            axis=-1).reshape(M, 3 * Ci)
        acc += jnp.dot(pat, w_ref[kh], preferred_element_type=jnp.float32)
    return acc


# --------------------------- phase 1: conv1 (+ fused shortcut) ------------------

def _phase1_proj_kernel(Nb, H, W, CPi, CPo,
                        xp_ref, w_ref,
                        y1_ref, ysc_ref, st1_ref, stsc_ref):
    @pl.when(pl.program_id(1) == 0)        # once per core (inner index)
    def _():
        st1_ref[...] = jnp.zeros_like(st1_ref)
        stsc_ref[...] = jnp.zeros_like(stsc_ref)

    # One matmul per kh produces [conv1 | 1x1-shortcut] (shortcut weights live
    # in the centre tap only); split with lane-aligned slices.
    acc = _conv3x3_accum(xp_ref[...], w_ref, Nb, H, W, CPi, 2 * CPo)
    y1 = acc[:, :CPo]
    ysc = acc[:, CPo:]
    y1_ref[...] = y1.reshape(Nb, H, W, CPo).astype(jnp.bfloat16)
    ysc_ref[...] = ysc.reshape(Nb, H, W, CPo).astype(jnp.bfloat16)
    st1_ref[...] += _sum_and_sumsq(y1).reshape(1, 2, CPo)
    stsc_ref[...] += _sum_and_sumsq(ysc).reshape(1, 2, CPo)


def _phase1_id_kernel(Nb, H, W, CPi, CPo, xp_ref, w_ref, y1_ref, st1_ref):
    @pl.when(pl.program_id(1) == 0)
    def _():
        st1_ref[...] = jnp.zeros_like(st1_ref)

    acc = _conv3x3_accum(xp_ref[...], w_ref, Nb, H, W, CPi, CPo)
    y1_ref[...] = acc.reshape(Nb, H, W, CPo).astype(jnp.bfloat16)
    st1_ref[...] += _sum_and_sumsq(acc).reshape(1, 2, CPo)


# --------------------------- phase 2: bn1 + relu + conv2 ------------------------

def _phase2_kernel(Nb, H, W, CPo,
                   y1_ref, s1_ref, h1_ref, w2_ref,
                   y2_ref, st2_ref, pad_ref):
    @pl.when(pl.program_id(1) == 0)
    def _():
        st2_ref[...] = jnp.zeros_like(st2_ref)
        pad_ref[...] = jnp.zeros_like(pad_ref)   # zero the halo border once per core

    a1 = jnp.maximum(
        y1_ref[...].astype(jnp.float32) * s1_ref[...] + h1_ref[...], 0.0)
    pad_ref[:, 1:H + 1, 1:W + 1, :] = a1.astype(jnp.bfloat16)   # interior only

    acc = _conv3x3_accum(pad_ref[...], w2_ref, Nb, H, W, CPo, CPo)
    y2_ref[...] = acc.reshape(Nb, H, W, CPo).astype(jnp.bfloat16)
    st2_ref[...] += _sum_and_sumsq(acc).reshape(1, 2, CPo)


# --------------------------- phase 3: bn2 (+ bn_sc) + add + relu ----------------

def _phase3_proj_kernel(y2_ref, s2_ref, h2_ref, ysc_ref, ss_ref, hs_ref, out_ref):
    o = y2_ref[...].astype(jnp.float32) * s2_ref[...] + h2_ref[...]
    sc = ysc_ref[...].astype(jnp.float32) * ss_ref[...] + hs_ref[...]
    out_ref[...] = jnp.maximum(o + sc, 0.0)


def _phase3_id_kernel(y2_ref, s2_ref, h2_ref, xres_ref, out_ref):
    o = y2_ref[...].astype(jnp.float32) * s2_ref[...] + h2_ref[...]
    out_ref[...] = jnp.maximum(o + xres_ref[...], 0.0)   # exact f32 residual


# --------------------------------- wrapper --------------------------------------

def _pick_batch_block(n, H, W, CPi, CPo, budget):
    """Largest divisor Nb of n whose per-step VMEM footprint fits the budget."""
    cmax = max(CPi, CPo)
    best = 1
    for nb in range(1, n + 1):
        if n % nb:
            continue
        m = nb * H * W
        per_step = (
            2 * nb * (H + 2) * (W + 2) * cmax * 2      # input block, double-buffered bf16
            + 2 * 2 * m * CPo * 2                      # <=2 bf16 output blocks, double-buffered
            + m * 3 * cmax * 2                         # per-kh bf16 patch
            + m * 2 * CPo * 4                          # f32 matmul accumulator
            + 3 * 3 * cmax * 2 * CPo * 2               # bf16 weights
            + nb * (H + 2) * (W + 2) * CPo * 2         # phase-2 halo scratch
        )
        if per_step <= budget:
            best = nb
    return best


@functools.partial(jax.jit, static_argnames=("stride",))
def basic_block_forward(x_nchw, params, stride=1):
    assert stride == 1  # TODO(synk): stride > 1 not implemented in the kernels.
    N, Cin, H, W = x_nchw.shape
    Cout = params["w1"].shape[-1]
    has_proj = (stride != 1) or (Cin != Cout)
    CPi = _round_up(Cin, LANE)
    CPo = _round_up(Cout, LANE)
    M = N * H * W

    x = jnp.transpose(x_nchw, (0, 2, 3, 1)).astype(jnp.float32)             # NHWC
    # Lane-dense channel padding + 1-pixel spatial halo; bf16 conv operand.
    xp = jnp.pad(x, ((0, 0), (1, 1), (1, 1), (0, CPi - Cin))).astype(jnp.bfloat16)

    # ---- grid: (G, Ninner) with Nb samples per step --------------------------
    G = 2 if N % 2 == 0 else 1                 # outer "parallel" axis (megacore)
    Nb = _pick_batch_block(N // G, H, W, CPi, CPo, budget=int(VMEM_LIMIT * 0.6))
    Nsteps = N // Nb
    Ninner = Nsteps // G
    grid = (G, Ninner)

    # ---- weights: per-kh im2col layout; shortcut fused into conv1 centre tap --
    C2 = 2 * CPo if has_proj else CPo
    w1c = (jnp.zeros((3, 3, CPi, C2), jnp.float32)
           .at[:, :, :Cin, :Cout].set(params["w1"]))
    if has_proj:
        w1c = w1c.at[1, 1, :Cin, CPo:CPo + Cout].set(params["ws"])
    w1col = w1c.reshape(3, 3 * CPi, C2).astype(jnp.bfloat16)

    w2c = (jnp.zeros((3, 3, CPo, CPo), jnp.float32)
           .at[:, :, :Cout, :Cout].set(params["w2"]))
    w2col = w2c.reshape(3, 3 * CPo, CPo).astype(jnp.bfloat16)

    def pad_vec(v):          # gamma/beta padded with zeros so padded channels stay 0
        return jnp.zeros((1, CPo), jnp.float32).at[0, :v.shape[0]].set(v)

    g1, b1 = pad_vec(params["g1"]), pad_vec(params["b1"])
    g2, b2 = pad_vec(params["g2"]), pad_vec(params["b2"])

    # ---- specs ----------------------------------------------------------------
    img_in_spec = pl.BlockSpec((Nb, H + 2, W + 2, CPi),
                               lambda c, n: (c * Ninner + n, 0, 0, 0))
    img_out_spec = pl.BlockSpec((Nb, H, W, CPo),
                                lambda c, n: (c * Ninner + n, 0, 0, 0))
    st_spec = pl.BlockSpec((1, 2, CPo), lambda c, n: (c, 0, 0))
    vec_spec = pl.BlockSpec((1, CPo), lambda c, n: (0, 0))

    def full_spec(shape):
        nd = len(shape)
        return pl.BlockSpec(shape, lambda c, n, _nd=nd: (0,) * _nd)

    img_bf16 = jax.ShapeDtypeStruct((N, H, W, CPo), jnp.bfloat16)
    img_f32 = jax.ShapeDtypeStruct((N, H, W, CPo), jnp.float32)
    st_shape = jax.ShapeDtypeStruct((G, 2, CPo), jnp.float32)

    cp_acc = pltpu.CompilerParams(dimension_semantics=("parallel", "arbitrary"),
                                  vmem_limit_bytes=VMEM_LIMIT)
    cp_par = pltpu.CompilerParams(dimension_semantics=("parallel", "parallel"),
                                  vmem_limit_bytes=VMEM_LIMIT)

    def scale_shift(st, g, b):
        # Reduce per-core partial sums, then BN affine (biased variance, eps=1e-5).
        s = jnp.sum(st, axis=0)                 # (2, CPo)
        mean = s[0:1] / M
        var = s[1:2] / M - mean * mean
        scale = g * jax.lax.rsqrt(var + EPS)
        return scale, b - mean * scale

    # ---- phase 1: conv1 (+ fused projection shortcut), accumulate sum/sumsq ----
    if has_proj:
        y1, ysc, st1, stsc = pl.pallas_call(
            functools.partial(_phase1_proj_kernel, Nb, H, W, CPi, CPo),
            grid=grid,
            in_specs=[img_in_spec, full_spec((3, 3 * CPi, C2))],
            out_specs=(img_out_spec, img_out_spec, st_spec, st_spec),
            out_shape=(img_bf16, img_bf16, st_shape, st_shape),
            compiler_params=cp_acc,
        )(xp, w1col)
    else:
        y1, st1 = pl.pallas_call(
            functools.partial(_phase1_id_kernel, Nb, H, W, CPi, CPo),
            grid=grid,
            in_specs=[img_in_spec, full_spec((3, 3 * CPi, C2))],
            out_specs=(img_out_spec, st_spec),
            out_shape=(img_bf16, st_shape),
            compiler_params=cp_acc,
        )(xp, w1col)

    s1, h1 = scale_shift(st1, g1, b1)

    # ---- phase 2: bn1 + relu + conv2, accumulate sum/sumsq ----
    y2, st2 = pl.pallas_call(
        functools.partial(_phase2_kernel, Nb, H, W, CPo),
        grid=grid,
        in_specs=[img_out_spec, vec_spec, vec_spec, full_spec((3, 3 * CPo, CPo))],
        out_specs=(img_out_spec, st_spec),
        out_shape=(img_bf16, st_shape),
        scratch_shapes=[pltpu.VMEM((Nb, H + 2, W + 2, CPo), jnp.bfloat16)],
        compiler_params=cp_acc,
    )(y1, s1, h1, w2col)

    s2, h2 = scale_shift(st2, g2, b2)

    # ---- phase 3: bn2 (+ shortcut bn) + residual add + relu ----
    if has_proj:
        gs, bs = pad_vec(params["gs"]), pad_vec(params["bs"])
        ss, hs = scale_shift(stsc, gs, bs)
        out_nhwc = pl.pallas_call(
            _phase3_proj_kernel,
            grid=grid,
            in_specs=[img_out_spec, vec_spec, vec_spec,
                      img_out_spec, vec_spec, vec_spec],
            out_specs=img_out_spec,
            out_shape=img_f32,
            compiler_params=cp_par,
        )(y2, s2, h2, ysc, ss, hs)
    else:
        # Identity shortcut uses the original f32, channel-padded x (no halo).
        xres = jnp.pad(x, ((0, 0), (0, 0), (0, 0), (0, CPo - Cin)))
        out_nhwc = pl.pallas_call(
            _phase3_id_kernel,
            grid=grid,
            in_specs=[img_out_spec, vec_spec, vec_spec, img_out_spec],
            out_specs=img_out_spec,
            out_shape=img_f32,
            compiler_params=cp_par,
        )(y2, s2, h2, xres)

    return jnp.transpose(out_nhwc[..., :Cout], (0, 3, 1, 2))                # NCHW


# ------------------------------ params & reference ------------------------------

def init_params(key, in_planes, planes):
    k1, k2, k3 = jax.random.split(key, 3)
    ones = jnp.ones((planes,), jnp.float32)
    zeros = jnp.zeros((planes,), jnp.float32)
    return dict(
        w1=0.1 * jax.random.normal(k1, (3, 3, in_planes, planes), jnp.float32),  # HWIO
        g1=ones, b1=zeros,
        w2=0.1 * jax.random.normal(k2, (3, 3, planes, planes), jnp.float32),
        g2=ones, b2=zeros,
        ws=0.1 * jax.random.normal(k3, (in_planes, planes), jnp.float32),         # 1x1 conv
        gs=ones, bs=zeros,
    )


def ref_forward(x_nchw, params, stride=1):
    # Pure-JAX f32 reference (mirrors the PyTorch forward).
    x = jnp.transpose(x_nchw, (0, 2, 3, 1)).astype(jnp.float32)
    dn = ("NHWC", "HWIO", "NHWC")
    in_planes, planes = x.shape[-1], params["w1"].shape[-1]

    def bn(y, g, b):
        m = jnp.mean(y, axis=(0, 1, 2), keepdims=True)
        v = jnp.mean((y - m) ** 2, axis=(0, 1, 2), keepdims=True)
        return (y - m) * jax.lax.rsqrt(v + EPS) * g + b

    out = jax.lax.conv_general_dilated(x, params["w1"], (stride, stride),
                                       ((1, 1), (1, 1)), dimension_numbers=dn)
    out = jax.nn.relu(bn(out, params["g1"], params["b1"]))
    out = jax.lax.conv_general_dilated(out, params["w2"], (1, 1), ((1, 1), (1, 1)),
                                       dimension_numbers=dn)
    out = bn(out, params["g2"], params["b2"])
    if stride != 1 or in_planes != planes:
        sc = jax.lax.conv_general_dilated(x, params["ws"][None, None], (stride, stride),
                                          ((0, 0), (0, 0)), dimension_numbers=dn)
        sc = bn(sc, params["gs"], params["bs"])
    else:
        sc = x
    out = jax.nn.relu(out + sc)
    return jnp.transpose(out, (0, 3, 1, 2))


if __name__ == "__main__":
    key = jax.random.PRNGKey(0)
    kx, kp, kx2, kp2 = jax.random.split(key, 4)

    # Projection-shortcut block (in_planes != planes).
    N, in_planes, planes, H, W = 2, 4, 8, 16, 16
    x = jax.random.normal(kx, (N, in_planes, H, W), jnp.float32)
    params = init_params(kp, in_planes, planes)
    out = jax.block_until_ready(basic_block_forward(x, params, stride=1))
    ref = ref_forward(x, params, stride=1)
    assert out.shape == (N, planes, H, W)
    # bf16 MXU operands + bf16 inter-phase intermediates (f32 accumulation /
    # f32 BN stats) -> loosened tolerance vs the pure-f32 reference.
    np.testing.assert_allclose(np.asarray(out), np.asarray(ref), rtol=4e-2, atol=4e-2)

    # Identity-shortcut block (in_planes == planes).
    x2 = jax.random.normal(kx2, (N, planes, H, W), jnp.float32)
    params2 = init_params(kp2, planes, planes)
    out2 = jax.block_until_ready(basic_block_forward(x2, params2, stride=1))
    ref2 = ref_forward(x2, params2, stride=1)
    np.testing.assert_allclose(np.asarray(out2), np.asarray(ref2), rtol=4e-2, atol=4e-2)

    print("KERNEL_OK")
</pallas_src>

<mosaic_0001>
module attributes {stable_mosaic.version = 11 : i64} {
  func.func @_phase1_proj_kernel(%arg0: i32, %arg1: i32, %arg2: memref<1x18x18x128xbf16, #tpu.memory_space<vmem>>, %arg3: memref<3x384x256xbf16, #tpu.memory_space<vmem>>, %arg4: memref<1x16x16x128xbf16, #tpu.memory_space<vmem>>, %arg5: memref<1x16x16x128xbf16, #tpu.memory_space<vmem>>, %arg6: memref<1x2x128xf32, #tpu.memory_space<vmem>>, %arg7: memref<1x2x128xf32, #tpu.memory_space<vmem>>) attributes {dimension_semantics = [#tpu.dimension_semantics<parallel>, #tpu.dimension_semantics<arbitrary>], iteration_bounds = array<i64: 2, 1>, scalar_prefetch = 0 : i64, scratch_operands = 0 : i64, tpu.core_type = #tpu.core_type<tc>, window_params = [{transform_indices = @transform_0, window_bounds = array<i64: 1, 18, 18, 128>}, {pipeline_mode = #tpu.pipeline_mode<synchronous>, transform_indices = @transform_1, window_bounds = array<i64: 3, 384, 256>}, {transform_indices = @transform_2, window_bounds = array<i64: 1, 16, 16, 128>}, {transform_indices = @transform_3, window_bounds = array<i64: 1, 16, 16, 128>}, {transform_indices = @transform_4, window_bounds = array<i64: 1, 2, 128>}, {transform_indices = @transform_5, window_bounds = array<i64: 1, 2, 128>}]} {
    %c0_i32 = arith.constant 0 : i32
    %0 = arith.cmpi eq, %arg1, %c0_i32 : i32
    %1 = arith.extui %0 : i1 to i32
    %c0_i32_0 = arith.constant 0 : i32
    %2 = arith.cmpi ne, %1, %c0_i32_0 : i32
    scf.if %2 {
      %cst_38 = arith.constant 0.000000e+00 : f32
      %60 = vector.broadcast %cst_38 : f32 to vector<1x2x128xf32>
      %c0_39 = arith.constant 0 : index
      %c0_40 = arith.constant 0 : index
      %c0_41 = arith.constant 0 : index
      %61 = vector.load %arg6[%c0_39, %c0_40, %c0_41] : memref<1x2x128xf32, #tpu.memory_space<vmem>>, vector<1x2x128xf32>
      tpu.vector_store %arg6[%c0_39, %c0_40, %c0_41], %60 {strides = array<i32>} : memref<1x2x128xf32, #tpu.memory_space<vmem>>, vector<1x2x128xf32>,
      %cst_42 = arith.constant 0.000000e+00 : f32
      %62 = vector.broadcast %cst_42 : f32 to vector<1x2x128xf32>
      %c0_43 = arith.constant 0 : index
      %c0_44 = arith.constant 0 : index
      %c0_45 = arith.constant 0 : index
      %63 = vector.load %arg7[%c0_43, %c0_44, %c0_45] : memref<1x2x128xf32, #tpu.memory_space<vmem>>, vector<1x2x128xf32>
      tpu.vector_store %arg7[%c0_43, %c0_44, %c0_45], %62 {strides = array<i32>} : memref<1x2x128xf32, #tpu.memory_space<vmem>>, vector<1x2x128xf32>,
    } else {
    }
    %c0 = arith.constant 0 : index
    %c0_1 = arith.constant 0 : index
    %c0_2 = arith.constant 0 : index
    %c0_3 = arith.constant 0 : index
    %3 = vector.load %arg2[%c0, %c0_1, %c0_2, %c0_3] : memref<1x18x18x128xbf16, #tpu.memory_space<vmem>>, vector<1x18x18x128xbf16>
    %cst = arith.constant 0.000000e+00 : f32
    %4 = vector.broadcast %cst : f32 to vector<256x256xf32>
    %5 = vector.extract_strided_slice %3 {offsets = [0, 0, 0, 0], sizes = [1, 16, 16, 128], strides = [1, 1, 1, 1]} : vector<1x18x18x128xbf16> to vector<1x16x16x128xbf16>
    %6 = vector.extract_strided_slice %3 {offsets = [0, 0, 1, 0], sizes = [1, 16, 16, 128], strides = [1, 1, 1, 1]} : vector<1x18x18x128xbf16> to vector<1x16x16x128xbf16>
    %7 = vector.extract_strided_slice %3 {offsets = [0, 0, 2, 0], sizes = [1, 16, 16, 128], strides = [1, 1, 1, 1]} : vector<1x18x18x128xbf16> to vector<1x16x16x128xbf16>
    %8 = tpu.concatenate %5, %6, %7 in 3 : vector<1x16x16x128xbf16>, vector<1x16x16x128xbf16>, vector<1x16x16x128xbf16> -> vector<1x16x16x384xbf16>
    %9 = vector.shape_cast %8 : vector<1x16x16x384xbf16> to vector<256x384xbf16>
    %c0_4 = arith.constant 0 : index
    %c0_5 = arith.constant 0 : index
    %c0_6 = arith.constant 0 : index
    %10 = vector.load %arg3[%c0_4, %c0_5, %c0_6] : memref<3x384x256xbf16, #tpu.memory_space<vmem>>, vector<1x384x256xbf16>
    %11 = vector.shape_cast %10 : vector<1x384x256xbf16> to vector<384x256xbf16>
    %cst_7 = arith.constant dense<0.000000e+00> : vector<256x256xf32>
    %12 = tpu.matmul %9, %11, %cst_7 {dimension_numbers = #tpu.dot_dimension_numbers<[1], [0], [0], [1], [0, 0, 1, 1], [], []>} : vector<256x384xbf16>, vector<384x256xbf16>, vector<256x256xf32> -> vector<256x256xf32>
    %13 = arith.addf %4, %12 : vector<256x256xf32>
    %14 = vector.extract_strided_slice %3 {offsets = [0, 1, 0, 0], sizes = [1, 16, 16, 128], strides = [1, 1, 1, 1]} : vector<1x18x18x128xbf16> to vector<1x16x16x128xbf16>
    %15 = vector.extract_strided_slice %3 {offsets = [0, 1, 1, 0], sizes = [1, 16, 16, 128], strides = [1, 1, 1, 1]} : vector<1x18x18x128xbf16> to vector<1x16x16x128xbf16>
    %16 = vector.extract_strided_slice %3 {offsets = [0, 1, 2, 0], sizes = [1, 16, 16, 128], strides = [1, 1, 1, 1]} : vector<1x18x18x128xbf16> to vector<1x16x16x128xbf16>
    %17 = tpu.concatenate %14, %15, %16 in 3 : vector<1x16x16x128xbf16>, vector<1x16x16x128xbf16>, vector<1x16x16x128xbf16> -> vector<1x16x16x384xbf16>
    %18 = vector.shape_cast %17 : vector<1x16x16x384xbf16> to vector<256x384xbf16>
    %c1 = arith.constant 1 : index
    %c0_8 = arith.constant 0 : index
    %c0_9 = arith.constant 0 : index
    %19 = vector.load %arg3[%c1, %c0_8, %c0_9] : memref<3x384x256xbf16, #tpu.memory_space<vmem>>, vector<1x384x256xbf16>
    %20 = vector.shape_cast %19 : vector<1x384x256xbf16> to vector<384x256xbf16>
    %cst_10 = arith.constant dense<0.000000e+00> : vector<256x256xf32>
    %21 = tpu.matmul %18, %20, %cst_10 {dimension_numbers = #tpu.dot_dimension_numbers<[1], [0], [0], [1], [0, 0, 1, 1], [], []>} : vector<256x384xbf16>, vector<384x256xbf16>, vector<256x256xf32> -> vector<256x256xf32>
    %22 = arith.addf %13, %21 : vector<256x256xf32>
    %23 = vector.extract_strided_slice %3 {offsets = [0, 2, 0, 0], sizes = [1, 16, 16, 128], strides = [1, 1, 1, 1]} : vector<1x18x18x128xbf16> to vector<1x16x16x128xbf16>
    %24 = vector.extract_strided_slice %3 {offsets = [0, 2, 1, 0], sizes = [1, 16, 16, 128], strides = [1, 1, 1, 1]} : vector<1x18x18x128xbf16> to vector<1x16x16x128xbf16>
    %25 = vector.extract_strided_slice %3 {offsets = [0, 2, 2, 0], sizes = [1, 16, 16, 128], strides = [1, 1, 1, 1]} : vector<1x18x18x128xbf16> to vector<1x16x16x128xbf16>
    %26 = tpu.concatenate %23, %24, %25 in 3 : vector<1x16x16x128xbf16>, vector<1x16x16x128xbf16>, vector<1x16x16x128xbf16> -> vector<1x16x16x384xbf16>
    %27 = vector.shape_cast %26 : vector<1x16x16x384xbf16> to vector<256x384xbf16>
    %c2 = arith.constant 2 : index
    %c0_11 = arith.constant 0 : index
    %c0_12 = arith.constant 0 : index
    %28 = vector.load %arg3[%c2, %c0_11, %c0_12] : memref<3x384x256xbf16, #tpu.memory_space<vmem>>, vector<1x384x256xbf16>
    %29 = vector.shape_cast %28 : vector<1x384x256xbf16> to vector<384x256xbf16>
    %cst_13 = arith.constant dense<0.000000e+00> : vector<256x256xf32>
    %30 = tpu.matmul %27, %29, %cst_13 {dimension_numbers = #tpu.dot_dimension_numbers<[1], [0], [0], [1], [0, 0, 1, 1], [], []>} : vector<256x384xbf16>, vector<384x256xbf16>, vector<256x256xf32> -> vector<256x256xf32>
    %31 = arith.addf %22, %30 : vector<256x256xf32>
    %32 = vector.extract_strided_slice %31 {offsets = [0, 0], sizes = [256, 128], strides = [1, 1]} : vector<256x256xf32> to vector<256x128xf32>
    %33 = vector.extract_strided_slice %31 {offsets = [0, 128], sizes = [256, 128], strides = [1, 1]} : vector<256x256xf32> to vector<256x128xf32>
    %34 = vector.shape_cast %32 : vector<256x128xf32> to vector<1x16x16x128xf32>
    %35 = arith.truncf %34 : vector<1x16x16x128xf32> to vector<1x16x16x128xbf16>
    %c0_14 = arith.constant 0 : index
    %c0_15 = arith.constant 0 : index
    %c0_16 = arith.constant 0 : index
    %c0_17 = arith.constant 0 : index
    %36 = vector.load %arg4[%c0_14, %c0_15, %c0_16, %c0_17] : memref<1x16x16x128xbf16, #tpu.memory_space<vmem>>, vector<1x16x16x128xbf16>
    tpu.vector_store %arg4[%c0_14, %c0_15, %c0_16, %c0_17], %35 {strides = array<i32>} : memref<1x16x16x128xbf16, #tpu.memory_space<vmem>>, vector<1x16x16x128xbf16>,
    %37 = vector.shape_cast %33 : vector<256x128xf32> to vector<1x16x16x128xf32>
    %38 = arith.truncf %37 : vector<1x16x16x128xf32> to vector<1x16x16x128xbf16>
    %c0_18 = arith.constant 0 : index
    %c0_19 = arith.constant 0 : index
    %c0_20 = arith.constant 0 : index
    %c0_21 = arith.constant 0 : index
    %39 = vector.load %arg5[%c0_18, %c0_19, %c0_20, %c0_21] : memref<1x16x16x128xbf16, #tpu.memory_space<vmem>>, vector<1x16x16x128xbf16>
    tpu.vector_store %arg5[%c0_18, %c0_19, %c0_20, %c0_21], %38 {strides = array<i32>} : memref<1x16x16x128xbf16, #tpu.memory_space<vmem>>, vector<1x16x16x128xbf16>,
    %c0_22 = arith.constant 0 : index
    %c0_23 = arith.constant 0 : index
    %c0_24 = arith.constant 0 : index
    %40 = vector.load %arg6[%c0_22, %c0_23, %c0_24] : memref<1x2x128xf32, #tpu.memory_space<vmem>>, vector<1x2x128xf32>
    %cst_25 = arith.constant dense<0.000000e+00> : vector<128xf32>
    %41 = vector.multi_reduction <add>, %32, %cst_25 [0] : vector<256x128xf32> to vector<128xf32>
    %42 = vector.shape_cast %41 : vector<128xf32> to vector<1x128xf32>
    %43 = arith.mulf %32, %32 : vector<256x128xf32>
    %cst_26 = arith.constant dense<0.000000e+00> : vector<128xf32>
    %44 = vector.multi_reduction <add>, %43, %cst_26 [0] : vector<256x128xf32> to vector<128xf32>
    %45 = vector.shape_cast %44 : vector<128xf32> to vector<1x128xf32>
    %46 = tpu.concatenate %42, %45 in 0 : vector<1x128xf32>, vector<1x128xf32> -> vector<2x128xf32>
    %47 = vector.shape_cast %46 : vector<2x128xf32> to vector<1x2x128xf32>
    %48 = arith.addf %40, %47 : vector<1x2x128xf32>
    %c0_27 = arith.constant 0 : index
    %c0_28 = arith.constant 0 : index
    %c0_29 = arith.constant 0 : index
    %49 = vector.load %arg6[%c0_27, %c0_28, %c0_29] : memref<1x2x128xf32, #tpu.memory_space<vmem>>, vector<1x2x128xf32>
    tpu.vector_store %arg6[%c0_27, %c0_28, %c0_29], %48 {strides = array<i32>} : memref<1x2x128xf32, #tpu.memory_space<vmem>>, vector<1x2x128xf32>,
    %c0_30 = arith.constant 0 : index
    %c0_31 = arith.constant 0 : index
    %c0_32 = arith.constant 0 : index
    %50 = vector.load %arg7[%c0_30, %c0_31, %c0_32] : memref<1x2x128xf32, #tpu.memory_space<vmem>>, vector<1x2x128xf32>
    %cst_33 = arith.constant dense<0.000000e+00> : vector<128xf32>
    %51 = vector.multi_reduction <add>, %33, %cst_33 [0] : vector<256x128xf32> to vector<128xf32>
    %52 = vector.shape_cast %51 : vector<128xf32> to vector<1x128xf32>
    %53 = arith.mulf %33, %33 : vector<256x128xf32>
    %cst_34 = arith.constant dense<0.000000e+00> : vector<128xf32>
    %54 = vector.multi_reduction <add>, %53, %cst_34 [0] : vector<256x128xf32> to vector<128xf32>
    %55 = vector.shape_cast %54 : vector<128xf32> to vector<1x128xf32>
    %56 = tpu.concatenate %52, %55 in 0 : vector<1x128xf32>, vector<1x128xf32> -> vector<2x128xf32>
    %57 = vector.shape_cast %56 : vector<2x128xf32> to vector<1x2x128xf32>
    %58 = arith.addf %50, %57 : vector<1x2x128xf32>
    %c0_35 = arith.constant 0 : index
    %c0_36 = arith.constant 0 : index
    %c0_37 = arith.constant 0 : index
    %59 = vector.load %arg7[%c0_35, %c0_36, %c0_37] : memref<1x2x128xf32, #tpu.memory_space<vmem>>, vector<1x2x128xf32>
    tpu.vector_store %arg7[%c0_35, %c0_36, %c0_37], %58 {strides = array<i32>} : memref<1x2x128xf32, #tpu.memory_space<vmem>>, vector<1x2x128xf32>,
    return
  }
  func.func @transform_0(%arg0: i32, %arg1: i32) -> (i32, i32, i32, i32) {
    %c1_i32 = arith.constant 1 : i32
    %0 = arith.muli %arg0, %c1_i32 : i32
    %1 = arith.addi %0, %arg1 : i32
    %c0_i32 = arith.constant 0 : i32
    %c0_i32_0 = arith.constant 0 : i32
    %c0_i32_1 = arith.constant 0 : i32
    %c0_i32_2 = arith.constant 0 : i32
    return %1, %c0_i32, %c0_i32_0, %c0_i32_1 : i32, i32, i32, i32
  }
  func.func @transform_1(%arg0: i32, %arg1: i32) -> (i32, i32, i32) {
    %c0_i32 = arith.constant 0 : i32
    %c0_i32_0 = arith.constant 0 : i32
    %c0_i32_1 = arith.constant 0 : i32
    %c0_i32_2 = arith.constant 0 : i32
    return %c0_i32, %c0_i32_0, %c0_i32_1 : i32, i32, i32
  }
  func.func @transform_2(%arg0: i32, %arg1: i32) -> (i32, i32, i32, i32) {
    %c1_i32 = arith.constant 1 : i32
    %0 = arith.muli %arg0, %c1_i32 : i32
    %1 = arith.addi %0, %arg1 : i32
    %c0_i32 = arith.constant 0 : i32
    %c0_i32_0 = arith.constant 0 : i32
    %c0_i32_1 = arith.constant 0 : i32
    %c0_i32_2 = arith.constant 0 : i32
    return %1, %c0_i32, %c0_i32_0, %c0_i32_1 : i32, i32, i32, i32
  }
  func.func @transform_3(%arg0: i32, %arg1: i32) -> (i32, i32, i32, i32) {
    %c1_i32 = arith.constant 1 : i32
    %0 = arith.muli %arg0, %c1_i32 : i32
    %1 = arith.addi %0, %arg1 : i32
    %c0_i32 = arith.constant 0 : i32
    %c0_i32_0 = arith.constant 0 : i32
    %c0_i32_1 = arith.constant 0 : i32
    %c0_i32_2 = arith.constant 0 : i32
    return %1, %c0_i32, %c0_i32_0, %c0_i32_1 : i32, i32, i32, i32
  }
  func.func @transform_4(%arg0: i32, %arg1: i32) -> (i32, i32, i32) {
    %c0_i32 = arith.constant 0 : i32
    %c0_i32_0 = arith.constant 0 : i32
    %c0_i32_1 = arith.constant 0 : i32
    return %arg0, %c0_i32, %c0_i32_0 : i32, i32, i32
  }
  func.func @transform_5(%arg0: i32, %arg1: i32) -> (i32, i32, i32) {
    %c0_i32 = arith.constant 0 : i32
    %c0_i32_0 = arith.constant 0 : i32
    %c0_i32_1 = arith.constant 0 : i32
    return %arg0, %c0_i32, %c0_i32_0 : i32, i32, i32
  }
}

module attributes {stable_mosaic.version = 11 : i64} {
  func.func @_phase2_kernel(%arg0: i32, %arg1: i32, %arg2: memref<1x16x16x128xbf16, #tpu.memory_space<vmem>>, %arg3: memref<1x128xf32, #tpu.memory_space<vmem>>, %arg4: memref<1x128xf32, #tpu.memory_space<vmem>>, %arg5: memref<3x384x128xbf16, #tpu.memory_space<vmem>>, %arg6: memref<1x16x16x128xbf16, #tpu.memory_space<vmem>>, %arg7: memref<1x2x128xf32, #tpu.memory_space<vmem>>, %arg8: memref<1x18x18x128xbf16, #tpu.memory_space<vmem>>) attributes {dimension_semantics = [#tpu.dimension_semantics<parallel>, #tpu.dimension_semantics<arbitrary>], iteration_bounds = array<i64: 2, 1>, scalar_prefetch = 0 : i64, scratch_operands = 1 : i64, tpu.core_type = #tpu.core_type<tc>, window_params = [{transform_indices = @transform_0, window_bounds = array<i64: 1, 16, 16, 128>}, {pipeline_mode = #tpu.pipeline_mode<synchronous>, transform_indices = @transform_1, window_bounds = array<i64: 1, 128>}, {pipeline_mode = #tpu.pipeline_mode<synchronous>, transform_indices = @transform_2, window_bounds = array<i64: 1, 128>}, {pipeline_mode = #tpu.pipeline_mode<synchronous>, transform_indices = @transform_3, window_bounds = array<i64: 3, 384, 128>}, {transform_indices = @transform_4, window_bounds = array<i64: 1, 16, 16, 128>}, {transform_indices = @transform_5, window_bounds = array<i64: 1, 2, 128>}]} {
    %c0_i32 = arith.constant 0 : i32
    %0 = arith.cmpi eq, %arg1, %c0_i32 : i32
    %1 = arith.extui %0 : i1 to i32
    %c0_i32_0 = arith.constant 0 : i32
    %2 = arith.cmpi ne, %1, %c0_i32_0 : i32
    scf.if %2 {
      %cst_39 = arith.constant 0.000000e+00 : f32
      %59 = vector.broadcast %cst_39 : f32 to vector<1x2x128xf32>
      %c0_40 = arith.constant 0 : index
      %c0_41 = arith.constant 0 : index
      %c0_42 = arith.constant 0 : index
      %60 = vector.load %arg7[%c0_40, %c0_41, %c0_42] : memref<1x2x128xf32, #tpu.memory_space<vmem>>, vector<1x2x128xf32>
      tpu.vector_store %arg7[%c0_40, %c0_41, %c0_42], %59 {strides = array<i32>} : memref<1x2x128xf32, #tpu.memory_space<vmem>>, vector<1x2x128xf32>,
      %cst_43 = arith.constant 0.000000e+00 : bf16
      %61 = vector.broadcast %cst_43 : bf16 to vector<1x18x18x128xbf16>
      %c0_44 = arith.constant 0 : index
      %c0_45 = arith.constant 0 : index
      %c0_46 = arith.constant 0 : index
      %c0_47 = arith.constant 0 : index
      %62 = vector.load %arg8[%c0_44, %c0_45, %c0_46, %c0_47] : memref<1x18x18x128xbf16, #tpu.memory_space<vmem>>, vector<1x18x18x128xbf16>
      tpu.vector_store %arg8[%c0_44, %c0_45, %c0_46, %c0_47], %61 {strides = array<i32>} : memref<1x18x18x128xbf16, #tpu.memory_space<vmem>>, vector<1x18x18x128xbf16>,
    } else {
    }
    %c0 = arith.constant 0 : index
    %c0_1 = arith.constant 0 : index
    %c0_2 = arith.constant 0 : index
    %c0_3 = arith.constant 0 : index
    %3 = vector.load %arg2[%c0, %c0_1, %c0_2, %c0_3] : memref<1x16x16x128xbf16, #tpu.memory_space<vmem>>, vector<1x16x16x128xbf16>
    %4 = arith.extf %3 : vector<1x16x16x128xbf16> to vector<1x16x16x128xf32>
    %c0_4 = arith.constant 0 : index
    %c0_5 = arith.constant 0 : index
    %5 = vector.load %arg3[%c0_4, %c0_5] : memref<1x128xf32, #tpu.memory_space<vmem>>, vector<1x128xf32>
    %6 = vector.shape_cast %5 : vector<1x128xf32> to vector<1x1x1x128xf32>
    %7 = vector.broadcast %6 : vector<1x1x1x128xf32> to vector<1x16x16x128xf32>
    %8 = arith.mulf %4, %7 : vector<1x16x16x128xf32>
    %c0_6 = arith.constant 0 : index
    %c0_7 = arith.constant 0 : index
    %9 = vector.load %arg4[%c0_6, %c0_7] : memref<1x128xf32, #tpu.memory_space<vmem>>, vector<1x128xf32>
    %10 = vector.shape_cast %9 : vector<1x128xf32> to vector<1x1x1x128xf32>
    %11 = vector.broadcast %10 : vector<1x1x1x128xf32> to vector<1x16x16x128xf32>
    %12 = arith.addf %8, %11 : vector<1x16x16x128xf32>
    %cst = arith.constant 0.000000e+00 : f32
    %13 = vector.broadcast %cst : f32 to vector<1x16x16x128xf32>
    %14 = arith.maximumf %12, %13 : vector<1x16x16x128xf32>
    %15 = arith.truncf %14 : vector<1x16x16x128xf32> to vector<1x16x16x128xbf16>
    %c0_8 = arith.constant 0 : index
    %c1 = arith.constant 1 : index
    %c1_9 = arith.constant 1 : index
    %c0_10 = arith.constant 0 : index
    %16 = vector.load %arg8[%c0_8, %c1, %c1_9, %c0_10] : memref<1x18x18x128xbf16, #tpu.memory_space<vmem>>, vector<1x16x16x128xbf16>
    tpu.vector_store %arg8[%c0_8, %c1, %c1_9, %c0_10], %15 {strides = array<i32>} : memref<1x18x18x128xbf16, #tpu.memory_space<vmem>>, vector<1x16x16x128xbf16>,
    %c0_11 = arith.constant 0 : index
    %c0_12 = arith.constant 0 : index
    %c0_13 = arith.constant 0 : index
    %c0_14 = arith.constant 0 : index
    %17 = vector.load %arg8[%c0_11, %c0_12, %c0_13, %c0_14] : memref<1x18x18x128xbf16, #tpu.memory_space<vmem>>, vector<1x18x18x128xbf16>
    %cst_15 = arith.constant 0.000000e+00 : f32
    %18 = vector.broadcast %cst_15 : f32 to vector<256x128xf32>
    %19 = vector.extract_strided_slice %17 {offsets = [0, 0, 0, 0], sizes = [1, 16, 16, 128], strides = [1, 1, 1, 1]} : vector<1x18x18x128xbf16> to vector<1x16x16x128xbf16>
    %20 = vector.extract_strided_slice %17 {offsets = [0, 0, 1, 0], sizes = [1, 16, 16, 128], strides = [1, 1, 1, 1]} : vector<1x18x18x128xbf16> to vector<1x16x16x128xbf16>
    %21 = vector.extract_strided_slice %17 {offsets = [0, 0, 2, 0], sizes = [1, 16, 16, 128], strides = [1, 1, 1, 1]} : vector<1x18x18x128xbf16> to vector<1x16x16x128xbf16>
    %22 = tpu.concatenate %19, %20, %21 in 3 : vector<1x16x16x128xbf16>, vector<1x16x16x128xbf16>, vector<1x16x16x128xbf16> -> vector<1x16x16x384xbf16>
    %23 = vector.shape_cast %22 : vector<1x16x16x384xbf16> to vector<256x384xbf16>
    %c0_16 = arith.constant 0 : index
    %c0_17 = arith.constant 0 : index
    %c0_18 = arith.constant 0 : index
    %24 = vector.load %arg5[%c0_16, %c0_17, %c0_18] : memref<3x384x128xbf16, #tpu.memory_space<vmem>>, vector<1x384x128xbf16>
    %25 = vector.shape_cast %24 : vector<1x384x128xbf16> to vector<384x128xbf16>
    %cst_19 = arith.constant dense<0.000000e+00> : vector<256x128xf32>
    %26 = tpu.matmul %23, %25, %cst_19 {dimension_numbers = #tpu.dot_dimension_numbers<[1], [0], [0], [1], [0, 0, 1, 1], [], []>} : vector<256x384xbf16>, vector<384x128xbf16>, vector<256x128xf32> -> vector<256x128xf32>
    %27 = arith.addf %18, %26 : vector<256x128xf32>
    %28 = vector.extract_strided_slice %17 {offsets = [0, 1, 0, 0], sizes = [1, 16, 16, 128], strides = [1, 1, 1, 1]} : vector<1x18x18x128xbf16> to vector<1x16x16x128xbf16>
    %29 = vector.extract_strided_slice %17 {offsets = [0, 1, 1, 0], sizes = [1, 16, 16, 128], strides = [1, 1, 1, 1]} : vector<1x18x18x128xbf16> to vector<1x16x16x128xbf16>
    %30 = vector.extract_strided_slice %17 {offsets = [0, 1, 2, 0], sizes = [1, 16, 16, 128], strides = [1, 1, 1, 1]} : vector<1x18x18x128xbf16> to vector<1x16x16x128xbf16>
    %31 = tpu.concatenate %28, %29, %30 in 3 : vector<1x16x16x128xbf16>, vector<1x16x16x128xbf16>, vector<1x16x16x128xbf16> -> vector<1x16x16x384xbf16>
    %32 = vector.shape_cast %31 : vector<1x16x16x384xbf16> to vector<256x384xbf16>
    %c1_20 = arith.constant 1 : index
    %c0_21 = arith.constant 0 : index
    %c0_22 = arith.constant 0 : index
    %33 = vector.load %arg5[%c1_20, %c0_21, %c0_22] : memref<3x384x128xbf16, #tpu.memory_space<vmem>>, vector<1x384x128xbf16>
    %34 = vector.shape_cast %33 : vector<1x384x128xbf16> to vector<384x128xbf16>
    %cst_23 = arith.constant dense<0.000000e+00> : vector<256x128xf32>
    %35 = tpu.matmul %32, %34, %cst_23 {dimension_numbers = #tpu.dot_dimension_numbers<[1], [0], [0], [1], [0, 0, 1, 1], [], []>} : vector<256x384xbf16>, vector<384x128xbf16>, vector<256x128xf32> -> vector<256x128xf32>
    %36 = arith.addf %27, %35 : vector<256x128xf32>
    %37 = vector.extract_strided_slice %17 {offsets = [0, 2, 0, 0], sizes = [1, 16, 16, 128], strides = [1, 1, 1, 1]} : vector<1x18x18x128xbf16> to vector<1x16x16x128xbf16>
    %38 = vector.extract_strided_slice %17 {offsets = [0, 2, 1, 0], sizes = [1, 16, 16, 128], strides = [1, 1, 1, 1]} : vector<1x18x18x128xbf16> to vector<1x16x16x128xbf16>
    %39 = vector.extract_strided_slice %17 {offsets = [0, 2, 2, 0], sizes = [1, 16, 16, 128], strides = [1, 1, 1, 1]} : vector<1x18x18x128xbf16> to vector<1x16x16x128xbf16>
    %40 = tpu.concatenate %37, %38, %39 in 3 : vector<1x16x16x128xbf16>, vector<1x16x16x128xbf16>, vector<1x16x16x128xbf16> -> vector<1x16x16x384xbf16>
    %41 = vector.shape_cast %40 : vector<1x16x16x384xbf16> to vector<256x384xbf16>
    %c2 = arith.constant 2 : index
    %c0_24 = arith.constant 0 : index
    %c0_25 = arith.constant 0 : index
    %42 = vector.load %arg5[%c2, %c0_24, %c0_25] : memref<3x384x128xbf16, #tpu.memory_space<vmem>>, vector<1x384x128xbf16>
    %43 = vector.shape_cast %42 : vector<1x384x128xbf16> to vector<384x128xbf16>
    %cst_26 = arith.constant dense<0.000000e+00> : vector<256x128xf32>
    %44 = tpu.matmul %41, %43, %cst_26 {dimension_numbers = #tpu.dot_dimension_numbers<[1], [0], [0], [1], [0, 0, 1, 1], [], []>} : vector<256x384xbf16>, vector<384x128xbf16>, vector<256x128xf32> -> vector<256x128xf32>
    %45 = arith.addf %36, %44 : vector<256x128xf32>
    %46 = vector.shape_cast %45 : vector<256x128xf32> to vector<1x16x16x128xf32>
    %47 = arith.truncf %46 : vector<1x16x16x128xf32> to vector<1x16x16x128xbf16>
    %c0_27 = arith.constant 0 : index
    %c0_28 = arith.constant 0 : index
    %c0_29 = arith.constant 0 : index
    %c0_30 = arith.constant 0 : index
    %48 = vector.load %arg6[%c0_27, %c0_28, %c0_29, %c0_30] : memref<1x16x16x128xbf16, #tpu.memory_space<vmem>>, vector<1x16x16x128xbf16>
    tpu.vector_store %arg6[%c0_27, %c0_28, %c0_29, %c0_30], %47 {strides = array<i32>} : memref<1x16x16x128xbf16, #tpu.memory_space<vmem>>, vector<1x16x16x128xbf16>,
    %c0_31 = arith.constant 0 : index
    %c0_32 = arith.constant 0 : index
    %c0_33 = arith.constant 0 : index
    %49 = vector.load %arg7[%c0_31, %c0_32, %c0_33] : memref<1x2x128xf32, #tpu.memory_space<vmem>>, vector<1x2x128xf32>
    %cst_34 = arith.constant dense<0.000000e+00> : vector<128xf32>
    %50 = vector.multi_reduction <add>, %45, %cst_34 [0] : vector<256x128xf32> to vector<128xf32>
    %51 = vector.shape_cast %50 : vector<128xf32> to vector<1x128xf32>
    %52 = arith.mulf %45, %45 : vector<256x128xf32>
    %cst_35 = arith.constant dense<0.000000e+00> : vector<128xf32>
    %53 = vector.multi_reduction <add>, %52, %cst_35 [0] : vector<256x128xf32> to vector<128xf32>
    %54 = vector.shape_cast %53 : vector<128xf32> to vector<1x128xf32>
    %55 = tpu.concatenate %51, %54 in 0 : vector<1x128xf32>, vector<1x128xf32> -> vector<2x128xf32>
    %56 = vector.shape_cast %55 : vector<2x128xf32> to vector<1x2x128xf32>
    %57 = arith.addf %49, %56 : vector<1x2x128xf32>
    %c0_36 = arith.constant 0 : index
    %c0_37 = arith.constant 0 : index
    %c0_38 = arith.constant 0 : index
    %58 = vector.load %arg7[%c0_36, %c0_37, %c0_38] : memref<1x2x128xf32, #tpu.memory_space<vmem>>, vector<1x2x128xf32>
    tpu.vector_store %arg7[%c0_36, %c0_37, %c0_38], %57 {strides = array<i32>} : memref<1x2x128xf32, #tpu.memory_space<vmem>>, vector<1x2x128xf32>,
    return
  }
  func.func @transform_0(%arg0: i32, %arg1: i32) -> (i32, i32, i32, i32) {
    %c1_i32 = arith.constant 1 : i32
    %0 = arith.muli %arg0, %c1_i32 : i32
    %1 = arith.addi %0, %arg1 : i32
    %c0_i32 = arith.constant 0 : i32
    %c0_i32_0 = arith.constant 0 : i32
    %c0_i32_1 = arith.constant 0 : i32
    %c0_i32_2 = arith.constant 0 : i32
    return %1, %c0_i32, %c0_i32_0, %c0_i32_1 : i32, i32, i32, i32
  }
  func.func @transform_1(%arg0: i32, %arg1: i32) -> (i32, i32) {
    %c0_i32 = arith.constant 0 : i32
    %c0_i32_0 = arith.constant 0 : i32
    %c0_i32_1 = arith.constant 0 : i32
    return %c0_i32, %c0_i32_0 : i32, i32
  }
  func.func @transform_2(%arg0: i32, %arg1: i32) -> (i32, i32) {
    %c0_i32 = arith.constant 0 : i32
    %c0_i32_0 = arith.constant 0 : i32
    %c0_i32_1 = arith.constant 0 : i32
    return %c0_i32, %c0_i32_0 : i32, i32
  }
  func.func @transform_3(%arg0: i32, %arg1: i32) -> (i32, i32, i32) {
    %c0_i32 = arith.constant 0 : i32
    %c0_i32_0 = arith.constant 0 : i32
    %c0_i32_1 = arith.constant 0 : i32
    %c0_i32_2 = arith.constant 0 : i32
    return %c0_i32, %c0_i32_0, %c0_i32_1 : i32, i32, i32
  }
  func.func @transform_4(%arg0: i32, %arg1: i32) -> (i32, i32, i32, i32) {
    %c1_i32 = arith.constant 1 : i32
    %0 = arith.muli %arg0, %c1_i32 : i32
    %1 = arith.addi %0, %arg1 : i32
    %c0_i32 = arith.constant 0 : i32
    %c0_i32_0 = arith.constant 0 : i32
    %c0_i32_1 = arith.constant 0 : i32
    %c0_i32_2 = arith.constant 0 : i32
    return %1, %c0_i32, %c0_i32_0, %c0_i32_1 : i32, i32, i32, i32
  }
  func.func @transform_5(%arg0: i32, %arg1: i32) -> (i32, i32, i32) {
    %c0_i32 = arith.constant 0 : i32
    %c0_i32_0 = arith.constant 0 : i32
    %c0_i32_1 = arith.constant 0 : i32
    return %arg0, %c0_i32, %c0_i32_0 : i32, i32, i32
  }
}

module attributes {stable_mosaic.version = 11 : i64} {
  func.func @_phase3_proj_kernel(%arg0: i32, %arg1: i32, %arg2: memref<1x16x16x128xbf16, #tpu.memory_space<vmem>>, %arg3: memref<1x128xf32, #tpu.memory_space<vmem>>, %arg4: memref<1x128xf32, #tpu.memory_space<vmem>>, %arg5: memref<1x16x16x128xbf16, #tpu.memory_space<vmem>>, %arg6: memref<1x128xf32, #tpu.memory_space<vmem>>, %arg7: memref<1x128xf32, #tpu.memory_space<vmem>>, %arg8: memref<1x16x16x128xf32, #tpu.memory_space<vmem>>) attributes {dimension_semantics = [#tpu.dimension_semantics<parallel>, #tpu.dimension_semantics<parallel>], iteration_bounds = array<i64: 2, 1>, scalar_prefetch = 0 : i64, scratch_operands = 0 : i64, tpu.core_type = #tpu.core_type<tc>, window_params = [{transform_indices = @transform_0, window_bounds = array<i64: 1, 16, 16, 128>}, {pipeline_mode = #tpu.pipeline_mode<synchronous>, transform_indices = @transform_1, window_bounds = array<i64: 1, 128>}, {pipeline_mode = #tpu.pipeline_mode<synchronous>, transform_indices = @transform_2, window_bounds = array<i64: 1, 128>}, {transform_indices = @transform_3, window_bounds = array<i64: 1, 16, 16, 128>}, {pipeline_mode = #tpu.pipeline_mode<synchronous>, transform_indices = @transform_4, window_bounds = array<i64: 1, 128>}, {pipeline_mode = #tpu.pipeline_mode<synchronous>, transform_indices = @transform_5, window_bounds = array<i64: 1, 128>}, {transform_indices = @transform_6, window_bounds = array<i64: 1, 16, 16, 128>}]} {
    %c0 = arith.constant 0 : index
    %c0_0 = arith.constant 0 : index
    %c0_1 = arith.constant 0 : index
    %c0_2 = arith.constant 0 : index
    %0 = vector.load %arg2[%c0, %c0_0, %c0_1, %c0_2] : memref<1x16x16x128xbf16, #tpu.memory_space<vmem>>, vector<1x16x16x128xbf16>
    %1 = arith.extf %0 : vector<1x16x16x128xbf16> to vector<1x16x16x128xf32>
    %c0_3 = arith.constant 0 : index
    %c0_4 = arith.constant 0 : index
    %2 = vector.load %arg3[%c0_3, %c0_4] : memref<1x128xf32, #tpu.memory_space<vmem>>, vector<1x128xf32>
    %3 = vector.shape_cast %2 : vector<1x128xf32> to vector<1x1x1x128xf32>
    %4 = vector.broadcast %3 : vector<1x1x1x128xf32> to vector<1x16x16x128xf32>
    %5 = arith.mulf %1, %4 : vector<1x16x16x128xf32>
    %c0_5 = arith.constant 0 : index
    %c0_6 = arith.constant 0 : index
    %6 = vector.load %arg4[%c0_5, %c0_6] : memref<1x128xf32, #tpu.memory_space<vmem>>, vector<1x128xf32>
    %7 = vector.shape_cast %6 : vector<1x128xf32> to vector<1x1x1x128xf32>
    %8 = vector.broadcast %7 : vector<1x1x1x128xf32> to vector<1x16x16x128xf32>
    %9 = arith.addf %5, %8 : vector<1x16x16x128xf32>
    %c0_7 = arith.constant 0 : index
    %c0_8 = arith.constant 0 : index
    %c0_9 = arith.constant 0 : index
    %c0_10 = arith.constant 0 : index
    %10 = vector.load %arg5[%c0_7, %c0_8, %c0_9, %c0_10] : memref<1x16x16x128xbf16, #tpu.memory_space<vmem>>, vector<1x16x16x128xbf16>
    %11 = arith.extf %10 : vector<1x16x16x128xbf16> to vector<1x16x16x128xf32>
    %c0_11 = arith.constant 0 : index
    %c0_12 = arith.constant 0 : index
    %12 = vector.load %arg6[%c0_11, %c0_12] : memref<1x128xf32, #tpu.memory_space<vmem>>, vector<1x128xf32>
    %13 = vector.shape_cast %12 : vector<1x128xf32> to vector<1x1x1x128xf32>
    %14 = vector.broadcast %13 : vector<1x1x1x128xf32> to vector<1x16x16x128xf32>
    %15 = arith.mulf %11, %14 : vector<1x16x16x128xf32>
    %c0_13 = arith.constant 0 : index
    %c0_14 = arith.constant 0 : index
    %16 = vector.load %arg7[%c0_13, %c0_14] : memref<1x128xf32, #tpu.memory_space<vmem>>, vector<1x128xf32>
    %17 = vector.shape_cast %16 : vector<1x128xf32> to vector<1x1x1x128xf32>
    %18 = vector.broadcast %17 : vector<1x1x1x128xf32> to vector<1x16x16x128xf32>
    %19 = arith.addf %15, %18 : vector<1x16x16x128xf32>
    %20 = arith.addf %9, %19 : vector<1x16x16x128xf32>
    %cst = arith.constant 0.000000e+00 : f32
    %21 = vector.broadcast %cst : f32 to vector<1x16x16x128xf32>
    %22 = arith.maximumf %20, %21 : vector<1x16x16x128xf32>
    %c0_15 = arith.constant 0 : index
    %c0_16 = arith.constant 0 : index
    %c0_17 = arith.constant 0 : index
    %c0_18 = arith.constant 0 : index
    %23 = vector.load %arg8[%c0_15, %c0_16, %c0_17, %c0_18] : memref<1x16x16x128xf32, #tpu.memory_space<vmem>>, vector<1x16x16x128xf32>
    tpu.vector_store %arg8[%c0_15, %c0_16, %c0_17, %c0_18], %22 {strides = array<i32>} : memref<1x16x16x128xf32, #tpu.memory_space<vmem>>, vector<1x16x16x128xf32>,
    return
  }
  func.func @transform_0(%arg0: i32, %arg1: i32) -> (i32, i32, i32, i32) {
    %c1_i32 = arith.constant 1 : i32
    %0 = arith.muli %arg0, %c1_i32 : i32
    %1 = arith.addi %0, %arg1 : i32
    %c0_i32 = arith.constant 0 : i32
    %c0_i32_0 = arith.constant 0 : i32
    %c0_i32_1 = arith.constant 0 : i32
    %c0_i32_2 = arith.constant 0 : i32
    return %1, %c0_i32, %c0_i32_0, %c0_i32_1 : i32, i32, i32, i32
  }
  func.func @transform_1(%arg0: i32, %arg1: i32) -> (i32, i32) {
    %c0_i32 = arith.constant 0 : i32
    %c0_i32_0 = arith.constant 0 : i32
    %c0_i32_1 = arith.constant 0 : i32
    return %c0_i32, %c0_i32_0 : i32, i32
  }
  func.func @transform_2(%arg0: i32, %arg1: i32) -> (i32, i32) {
    %c0_i32 = arith.constant 0 : i32
    %c0_i32_0 = arith.constant 0 : i32
    %c0_i32_1 = arith.constant 0 : i32
    return %c0_i32, %c0_i32_0 : i32, i32
  }
  func.func @transform_3(%arg0: i32, %arg1: i32) -> (i32, i32, i32, i32) {
    %c1_i32 = arith.constant 1 : i32
    %0 = arith.muli %arg0, %c1_i32 : i32
    %1 = arith.addi %0, %arg1 : i32
    %c0_i32 = arith.constant 0 : i32
    %c0_i32_0 = arith.constant 0 : i32
    %c0_i32_1 = arith.constant 0 : i32
    %c0_i32_2 = arith.constant 0 : i32
    return %1, %c0_i32, %c0_i32_0, %c0_i32_1 : i32, i32, i32, i32
  }
  func.func @transform_4(%arg0: i32, %arg1: i32) -> (i32, i32) {
    %c0_i32 = arith.constant 0 : i32
    %c0_i32_0 = arith.constant 0 : i32
    %c0_i32_1 = arith.constant 0 : i32
    return %c0_i32, %c0_i32_0 : i32, i32
  }
  func.func @transform_5(%arg0: i32, %arg1: i32) -> (i32, i32) {
    %c0_i32 = arith.constant 0 : i32
    %c0_i32_0 = arith.constant 0 : i32
    %c0_i32_1 = arith.constant 0 : i32
    return %c0_i32, %c0_i32_0 : i32, i32
  }
  func.func @transform_6(%arg0: i32, %arg1: i32) -> (i32, i32, i32, i32) {
    %c1_i32 = arith.constant 1 : i32
    %0 = arith.muli %arg0, %c1_i32 : i32
    %1 = arith.addi %0, %arg1 : i32
    %c0_i32 = arith.constant 0 : i32
    %c0_i32_0 = arith.constant 0 : i32
    %c0_i32_1 = arith.constant 0 : i32
    %c0_i32_2 = arith.constant 0 : i32
    return %1, %c0_i32, %c0_i32_0, %c0_i32_1 : i32, i32, i32, i32
  }
}

</mosaic_0001>

<llo_original>
// kernel: basic_block_forward.5
$region0: #{basic_block_forward.5}
  #allocation0 [shape = 'u32[]', space=smem, size = 0x4, offset = 0x4, fixed_abs, tag = 'smem constant byte address 0x4 - core index']
  #allocation1 [shape = 'u32[72,128]{1,0:T(1,128)}', space=vmem, size = 0x9000, scoped, tag = 'internal scratch']
  %s0 = inlined_call_operand.vmem [shape: bf16[2,16,16,128], index: 0, kind: input, shape index: {}]
  %s1 = inlined_call_operand.vmem [shape: f32[1,128], index: 1, kind: input, shape index: {}]
  %s2 = inlined_call_operand.vmem [shape: f32[1,128], index: 2, kind: input, shape index: {}]
  %s3 = inlined_call_operand.vmem [shape: bf16[2,16,16,128], index: 3, kind: input, shape index: {}]
  %s4 = inlined_call_operand.vmem [shape: f32[1,128], index: 4, kind: input, shape index: {}]
  %s5 = inlined_call_operand.vmem [shape: f32[1,128], index: 5, kind: input, shape index: {}]
  %s6 = inlined_call_operand.vmem [shape: f32[2,16,16,128], index: 6, kind: output, shape index: {}]
  %s7 = sld [smem:[#allocation0]]
  $region57: #{basic_block_forward.5} parent=0
    _
  %s9 = ssub.s32 1, %s7
  %s10 = scalar_select 0, %s9, %s7
  loop: start=0, step=1, limit=4
  $region2: #{basic_block_forward.5} parent=0 // loop_pre_header
    _
  $region3: #{basic_block_forward.5} parent=0 // loop_header
    %s12 = sphi 0, %s16
    %p13 = scmp.ge.s32.totalorder %s12, 4
    %s19 = sphi 0, %s31
    %s20 = sphi 0, %s27
    %s21 = sphi 0, %s19
    %s22 = sphi 0, %s20
    %s23 = sphi 0, %s21
    %s24 = sphi 0, %s22
    %s36 = sphi 0, %s38
    %s39 = sphi 0, %s36
    %s40 = sphi 0, %s39
    %s56 = sphi 0, %s40
    %s60 = sphi 0, %s60
    %s62 = sphi 0, %s60
    %s63 = sphi 0, %s62
    %s77 = sphi 0, %s63
    %s81 = sphi 0, %s81
    %s83 = sphi 0, %s81
    %s84 = sphi 0, %s83
    %s98 = sphi 0, %s84
    %s106 = sphi 0, %s108
    %s109 = sphi 0, %s106
    %s110 = sphi 0, %s109
    %s126 = sphi 0, %s110
    %s130 = sphi 0, %s130
    %s132 = sphi 0, %s130
    %s133 = sphi 0, %s132
    %s147 = sphi 0, %s133
    %s151 = sphi 0, %s151
    %s153 = sphi 0, %s151
    %s154 = sphi 0, %s153
    %s168 = sphi 0, %s154
    %s176 = sphi 0, %s178
    %s179 = sphi 0, %s176
    %s180 = sphi 0, %s179
    %s196 = sphi 0, %s180
  $region4: #{basic_block_forward.5} parent=0 // loop_header_branch
    %15 = sbr.rel (%p13) target = $region8
  $region5: #{basic_block_forward.5} parent=0 // loop_body
    %s17 = ssub.s32 %s12, 1
    %s18 = ssub.s32 %s12, 2
    %s25 = sadd.s32 1, %s20
    %p26 = scmp.ge.s32.totalorder %s25, 1
    %s27 = scalar_select %p26, 0, %s25
    %s28 = sadd.s32 1, %s19
    %s29 = scalar_select %p26, %s28, %s19
    %p30 = scmp.ge.s32.totalorder %s29, 2
    %s31 = scalar_select %p30, 0, %s29
    %s32 = sadd.s32 %s19, %s20
    %s33 = sadd.s32 %s31, %s27
    %s34 = ssub.s32 %s32, %s33
    %p35 = scmp.eq.s32.totalorder %s34, 0
    %s37 = sadd.s32 %s36, 1
    %s38 = scalar_select %p35, %s36, %s37
    %p41 = pneg %p35
    %p42 = scmp.eq.s32.totalorder %s12, 1
    %p43 = por %p41, %p42
    %p44 = scmp.ne.s32.totalorder %s36, %s39
    %p45 = scmp.eq.s32.totalorder %s12, 0
    %p46 = por %p44, %p45
    %p47 = scmp.ne.s32.totalorder %s36, %s39
    %p48 = scmp.eq.s32.totalorder %s17, 1
    %p49 = por %p47, %p48
    %p50 = scmp.ne.s32.totalorder %s39, %s40
    %p51 = scmp.eq.s32.totalorder %s17, 0
    %p52 = por %p50, %p51
    %p53 = scmp.ne.s32.totalorder %s39, %s40
    %p54 = scmp.eq.s32.totalorder %s18, 1
    %p55 = por %p53, %p54
    %p57 = scmp.ne.s32.totalorder %s40, %s56
    %p58 = scmp.eq.s32.totalorder %s18, 0
    %p59 = por %p57, %p58
    %s61 = sadd.s32 %s60, 1
    %p64 = scmp.eq.s32.totalorder %s12, 1
    %p65 = scmp.ne.s32.totalorder %s60, %s62
    %p66 = scmp.eq.s32.totalorder %s12, 0
    %p67 = por %p65, %p66
    %p68 = scmp.ne.s32.totalorder %s60, %s62
    %p69 = scmp.eq.s32.totalorder %s17, 1
    %p70 = por %p68, %p69
    %p71 = scmp.ne.s32.totalorder %s62, %s63
    %p72 = scmp.eq.s32.totalorder %s17, 0
    %p73 = por %p71, %p72
    %p74 = scmp.ne.s32.totalorder %s62, %s63
    %p75 = scmp.eq.s32.totalorder %s18, 1
    %p76 = por %p74, %p75
    %p78 = scmp.ne.s32.totalorder %s63, %s77
    %p79 = scmp.eq.s32.totalorder %s18, 0
    %p80 = por %p78, %p79
    %s82 = sadd.s32 %s81, 1
    %p85 = scmp.eq.s32.totalorder %s12, 1
    %p86 = scmp.ne.s32.totalorder %s81, %s83
    %p87 = scmp.eq.s32.totalorder %s12, 0
    %p88 = por %p86, %p87
    %p89 = scmp.ne.s32.totalorder %s81, %s83
    %p90 = scmp.eq.s32.totalorder %s17, 1
    %p91 = por %p89, %p90
    %p92 = scmp.ne.s32.totalorder %s83, %s84
    %p93 = scmp.eq.s32.totalorder %s17, 0
    %p94 = por %p92, %p93
    %p95 = scmp.ne.s32.totalorder %s83, %s84
    %p96 = scmp.eq.s32.totalorder %s18, 1
    %p97 = por %p95, %p96
    %p99 = scmp.ne.s32.totalorder %s84, %s98
    %p100 = scmp.eq.s32.totalorder %s18, 0
    %p101 = por %p99, %p100
    %s102 = sadd.s32 %s19, %s20
    %s103 = sadd.s32 %s31, %s27
    %s104 = ssub.s32 %s102, %s103
    %p105 = scmp.eq.s32.totalorder %s104, 0
    %s107 = sadd.s32 %s106, 1
    %s108 = scalar_select %p105, %s106, %s107
    %p111 = pneg %p105
    %p112 = scmp.eq.s32.totalorder %s12, 1
    %p113 = por %p111, %p112
    %p114 = scmp.ne.s32.totalorder %s106, %s109
    %p115 = scmp.eq.s32.totalorder %s12, 0
    %p116 = por %p114, %p115
    %p117 = scmp.ne.s32.totalorder %s106, %s109
    %p118 = scmp.eq.s32.totalorder %s17, 1
    %p119 = por %p117, %p118
    %p120 = scmp.ne.s32.totalorder %s109, %s110
    %p121 = scmp.eq.s32.totalorder %s17, 0
    %p122 = por %p120, %p121
    %p123 = scmp.ne.s32.totalorder %s109, %s110
    %p124 = scmp.eq.s32.totalorder %s18, 1
    %p125 = por %p123, %p124
    %p127 = scmp.ne.s32.totalorder %s110, %s126
    %p128 = scmp.eq.s32.totalorder %s18, 0
    %p129 = por %p127, %p128
    %s131 = sadd.s32 %s130, 1
    %p134 = scmp.eq.s32.totalorder %s12, 1
    %p135 = scmp.ne.s32.totalorder %s130, %s132
    %p136 = scmp.eq.s32.totalorder %s12, 0
    %p137 = por %p135, %p136
    %p138 = scmp.ne.s32.totalorder %s130, %s132
    %p139 = scmp.eq.s32.totalorder %s17, 1
    %p140 = por %p138, %p139
    %p141 = scmp.ne.s32.totalorder %s132, %s133
    %p142 = scmp.eq.s32.totalorder %s17, 0
    %p143 = por %p141, %p142
    %p144 = scmp.ne.s32.totalorder %s132, %s133
    %p145 = scmp.eq.s32.totalorder %s18, 1
    %p146 = por %p144, %p145
    %p148 = scmp.ne.s32.totalorder %s133, %s147
    %p149 = scmp.eq.s32.totalorder %s18, 0
    %p150 = por %p148, %p149
    %s152 = sadd.s32 %s151, 1
    %p155 = scmp.eq.s32.totalorder %s12, 1
    %p156 = scmp.ne.s32.totalorder %s151, %s153
    %p157 = scmp.eq.s32.totalorder %s12, 0
    %p158 = por %p156, %p157
    %p159 = scmp.ne.s32.totalorder %s151, %s153
    %p160 = scmp.eq.s32.totalorder %s17, 1
    %p161 = por %p159, %p160
    %p162 = scmp.ne.s32.totalorder %s153, %s154
    %p163 = scmp.eq.s32.totalorder %s17, 0
    %p164 = por %p162, %p163
    %p165 = scmp.ne.s32.totalorder %s153, %s154
    %p166 = scmp.eq.s32.totalorder %s18, 1
    %p167 = por %p165, %p166
    %p169 = scmp.ne.s32.totalorder %s154, %s168
    %p170 = scmp.eq.s32.totalorder %s18, 0
    %p171 = por %p169, %p170
    %s172 = sadd.s32 %s19, %s20
    %s173 = sadd.s32 %s31, %s27
    %s174 = ssub.s32 %s172, %s173
    %p175 = scmp.eq.s32.totalorder %s174, 0
    %s177 = sadd.s32 %s176, 1
    %s178 = scalar_select %p175, %s176, %s177
    %p181 = pneg %p175
    %p182 = scmp.eq.s32.totalorder %s12, 1
    %p183 = por %p181, %p182
    %p184 = scmp.ne.s32.totalorder %s176, %s179
    %p185 = scmp.eq.s32.totalorder %s12, 0
    %p186 = por %p184, %p185
    %p187 = scmp.ne.s32.totalorder %s176, %s179
    %p188 = scmp.eq.s32.totalorder %s17, 1
    %p189 = por %p187, %p188
    %p190 = scmp.ne.s32.totalorder %s179, %s180
    %p191 = scmp.eq.s32.totalorder %s17, 0
    %p192 = por %p190, %p191
    %p193 = scmp.ne.s32.totalorder %s179, %s180
    %p194 = scmp.eq.s32.totalorder %s18, 1
    %p195 = por %p193, %p194
    %p197 = scmp.ne.s32.totalorder %s180, %s196
    %p198 = scmp.eq.s32.totalorder %s18, 0
    %p199 = por %p197, %p198
    %p200 = scmp.le.s32.totalorder 1, %s12
    %p201 = scmp.lt.s32.totalorder %s12, 3
    %p202 = pnand %p200, %p201
    %p203 = pneg %p202
    // Predicated region
    $region9: #{basic_block_forward.5} parent=5 // pred_check
      _
    $region10: #{basic_block_forward.5} parent=5 // pred_check_branch
      %205 = sbr.rel (%p202) target = $region12
    $region11: #{basic_block_forward.5} parent=5 // pred_region
      %s206 = ssub.s32 %s12, 1
      // Predicated region
      $region13: #{basic_block_forward.5} parent=11 // pred_check
        %p207 = pneg %p73
      $region14: #{basic_block_forward.5} parent=11 // pred_check_branch
        %209 = sbr.rel (%p207) target = $region16
      $region15: #{basic_block_forward.5} parent=11 // pred_region
        _
      $region16: #{basic_block_forward.5} parent=11 // pred_fallthru
        _
      // Predicated region
      $region17: #{basic_block_forward.5} parent=11 // pred_check
        %p210 = pneg %p94
      $region18: #{basic_block_forward.5} parent=11 // pred_check_branch
        %212 = sbr.rel (%p210) target = $region20
      $region19: #{basic_block_forward.5} parent=11 // pred_region
        _
      $region20: #{basic_block_forward.5} parent=11 // pred_fallthru
        _
      // Predicated region
      $region21: #{basic_block_forward.5} parent=11 // pred_check
        %p213 = pneg %p143
      $region22: #{basic_block_forward.5} parent=11 // pred_check_branch
        %215 = sbr.rel (%p213) target = $region24
      $region23: #{basic_block_forward.5} parent=11 // pred_region
        _
      $region24: #{basic_block_forward.5} parent=11 // pred_fallthru
        _
      // Predicated region
      $region25: #{basic_block_forward.5} parent=11 // pred_check
        %p216 = pneg %p164
      $region26: #{basic_block_forward.5} parent=11 // pred_check_branch
        %218 = sbr.rel (%p216) target = $region28
      $region27: #{basic_block_forward.5} parent=11 // pred_region
        _
      $region28: #{basic_block_forward.5} parent=11 // pred_fallthru
        _
    $region12: #{basic_block_forward.5} parent=5 // pred_fallthru
      _
    %p219 = scmp.lt.s32.totalorder %s12, 2
    // Predicated region
    $region29: #{basic_block_forward.5} parent=5 // pred_check
      %p220 = pneg %p219
    $region30: #{basic_block_forward.5} parent=5 // pred_check_branch
      %222 = sbr.rel (%p220) target = $region32
    $region31: #{basic_block_forward.5} parent=5 // pred_region
      // Predicated region
      $region33: #{basic_block_forward.5} parent=31 // pred_check
        %p223 = pneg %p46
      $region34: #{basic_block_forward.5} parent=31 // pred_check_branch
        %225 = sbr.rel (%p223) target = $region36
      $region35: #{basic_block_forward.5} parent=31 // pred_region
        %s226 = sadd.s32 %s19, %s20
        %p227 = scmp.lt.s32.totalorder %s226, 1
        %s228 = scalar_select %p227, %s226, 1
        %s229 = smul.addr %s228, 32
        %s230 = smul.addr %s229, 4
        %s231 = scalar_lea.vmem %s0, %s230
        %s232 = sadd.s32 %s19, %s20
      $region36: #{basic_block_forward.5} parent=31 // pred_fallthru
        _
      // Predicated region
      $region37: #{basic_block_forward.5} parent=31 // pred_check
        %p233 = pneg %p116
      $region38: #{basic_block_forward.5} parent=31 // pred_check_branch
        %235 = sbr.rel (%p233) target = $region40
      $region39: #{basic_block_forward.5} parent=31 // pred_region
        %s236 = sadd.s32 %s19, %s20
        %p237 = scmp.lt.s32.totalorder %s236, 1
        %s238 = scalar_select %p237, %s236, 1
        %s239 = smul.addr %s238, 32
        %s240 = smul.addr %s239, 4
        %s241 = scalar_lea.vmem %s3, %s240
        %s242 = sadd.s32 %s19, %s20
      $region40: #{basic_block_forward.5} parent=31 // pred_fallthru
        _
    $region32: #{basic_block_forward.5} parent=5 // pred_fallthru
      _
    %p243 = scmp.le.s32.totalorder 1, %s12
    %p244 = scmp.lt.s32.totalorder %s12, 3
    %p245 = pnand %p243, %p244
    %p246 = pneg %p245
    // Predicated region
    $region41: #{basic_block_forward.5} parent=5 // pred_check
      _
    $region42: #{basic_block_forward.5} parent=5 // pred_check_branch
      %248 = sbr.rel (%p245) target = $region44
    $region43: #{basic_block_forward.5} parent=5 // pred_region
      %s249 = ssub.s32 %s12, 1
      %s250 = sadd.s32 %s21, %s22
      %p251 = scmp.lt.s32.totalorder %s250, 1
      %s252 = scalar_select %p251, %s250, 1
      %s253 = smul.addr %s252, 32
      %s254 = smul.addr %s253, 4
      %s255 = scalar_lea.vmem %s0, %s254
      %p256 = pneg %p52
      %p257 = pneg %p49
      %p258 = pneg %p73
      %p259 = pneg %p70
      %p260 = pneg %p94
      %p261 = pneg %p91
      %s262 = sadd.s32 %s21, %s22
      %p263 = scmp.lt.s32.totalorder %s262, 1
      %s264 = scalar_select %p263, %s262, 1
      %s265 = smul.addr %s264, 32
      %s266 = smul.addr %s265, 4
      %s267 = scalar_lea.vmem %s3, %s266
      %p268 = pneg %p122
      %p269 = pneg %p119
      %p270 = pneg %p143
      %p271 = pneg %p140
      %p272 = pneg %p164
      %p273 = pneg %p161
      %p274 = pneg %p192
      %p275 = pneg %p189
      %s276 = sadd.s32 %s21, %s22
      %p277 = scmp.lt.s32.totalorder %s276, 1
      %s278 = scalar_select %p277, %s276, 1
      %s279 = smul.addr %s278, 32
      %s280 = smul.addr %s279, 8
      %s281 = scalar_lea.vmem %s6, %s280
      %s282 = sadd.s32 %s21, %s22
      %p283 = scmp.lt.s32.totalorder %s282, 1
      %s284 = scalar_select %p283, %s282, 1
      %s285 = smul.addr %s284, 32
      %s286 = smul.addr %s285, 4
      %s287 = scalar_lea.vmem %s0, %s286
      %s288 = sadd.s32 %s21, %s22
      %s289 = sadd.s32 %s21, %s22
      %p290 = scmp.lt.s32.totalorder %s289, 1
      %s291 = scalar_select %p290, %s289, 1
      %s292 = smul.addr %s291, 32
      %s293 = smul.addr %s292, 4
      %s294 = scalar_lea.vmem %s3, %s293
      %s295 = sadd.s32 %s21, %s22
      %s296 = sadd.s32 %s21, %s22
      %p297 = scmp.lt.s32.totalorder %s296, 1
      %s298 = scalar_select %p297, %s296, 1
      %s299 = smul.addr %s298, 32
      %s300 = smul.addr %s299, 8
      %s301 = scalar_lea.vmem %s6, %s300
      %s302 = sadd.s32 %s21, %s22
      %v303 = vld [vmem:[%s287] sm:$0xf]
      %v304 = vld [vmem:[%s287 + $0x4] sm:$0xf]
      %v305 = vld [vmem:[%s287 + $0x8] sm:$0xf]
      %v306 = vld [vmem:[%s287 + $0xc] sm:$0xf]
      %v307 = vld [vmem:[%s287 + $0x10] sm:$0xf]
      %v308 = vld [vmem:[%s287 + $0x14] sm:$0xf]
      %v309 = vld [vmem:[%s287 + $0x18] sm:$0xf]
      %v310 = vld [vmem:[%s287 + $0x1c] sm:$0xf]
      %v311 = vld [vmem:[%s287 + $0x20] sm:$0xf]
      %v312 = vld [vmem:[%s287 + $0x24] sm:$0xf]
      %v313 = vld [vmem:[%s287 + $0x28] sm:$0xf]
      %v314 = vld [vmem:[%s287 + $0x2c] sm:$0xf]
      %v315 = vld [vmem:[%s287 + $0x30] sm:$0xf]
      %v316 = vld [vmem:[%s287 + $0x34] sm:$0xf]
      %v317 = vld [vmem:[%s287 + $0x38] sm:$0xf]
      %v318 = vld [vmem:[%s287 + $0x3c] sm:$0xf]
      %v319 = vld [vmem:[%s287 + $0x40] sm:$0xf]
      %v320 = vld [vmem:[%s287 + $0x44] sm:$0xf]
      %v321 = vld [vmem:[%s287 + $0x48] sm:$0xf]
      %v322 = vld [vmem:[%s287 + $0x4c] sm:$0xf]
      %v323 = vld [vmem:[%s287 + $0x50] sm:$0xf]
      %v324 = vld [vmem:[%s287 + $0x54] sm:$0xf]
      %v325 = vld [vmem:[%s287 + $0x58] sm:$0xf]
      %v326 = vld [vmem:[%s287 + $0x5c] sm:$0xf]
      %v327 = vld [vmem:[%s287 + $0x60] sm:$0xf]
      %v328 = vld [vmem:[%s287 + $0x64] sm:$0xf]
      %v329 = vld [vmem:[%s287 + $0x68] sm:$0xf]
      %v330 = vld [vmem:[%s287 + $0x6c] sm:$0xf]
      %v331 = vld [vmem:[%s287 + $0x70] sm:$0xf]
      %v332 = vld [vmem:[%s287 + $0x74] sm:$0xf]
      %v333 = vld [vmem:[%s287 + $0x78] sm:$0xf]
      %v334 = vld [vmem:[%s287 + $0x7c] sm:$0xf]
      %v335 = vunpack.c.l.bf16 %v303
      %v336 = vunpack.c.l.bf16 %v304
      %v337 = vunpack.c.l.bf16 %v305
      %v338 = vunpack.c.l.bf16 %v306
      %v339 = vunpack.c.l.bf16 %v307
      %v340 = vunpack.c.l.bf16 %v308
      %v341 = vunpack.c.l.bf16 %v309
      %v342 = vunpack.c.l.bf16 %v310
      %v343 = vunpack.c.l.bf16 %v311
      %v344 = vunpack.c.l.bf16 %v312
      %v345 = vunpack.c.l.bf16 %v313
      %v346 = vunpack.c.l.bf16 %v314
      %v347 = vunpack.c.l.bf16 %v315
      %v348 = vunpack.c.l.bf16 %v316
      %v349 = vunpack.c.l.bf16 %v317
      %v350 = vunpack.c.l.bf16 %v318
      %v351 = vunpack.c.l.bf16 %v319
      %v352 = vunpack.c.l.bf16 %v320
      %v353 = vunpack.c.l.bf16 %v321
      %v354 = vunpack.c.l.bf16 %v322
      %v355 = vunpack.c.l.bf16 %v323
      %v356 = vunpack.c.l.bf16 %v324
      %v357 = vunpack.c.l.bf16 %v325
      %v358 = vunpack.c.l.bf16 %v326
      %v359 = vunpack.c.l.bf16 %v327
      %v360 = vunpack.c.l.bf16 %v328
      %v361 = vunpack.c.l.bf16 %v329
      %v362 = vunpack.c.l.bf16 %v330
      %v363 = vunpack.c.l.bf16 %v331
      %v364 = vunpack.c.l.bf16 %v332
      %v365 = vunpack.c.l.bf16 %v333
      %v366 = vunpack.c.l.bf16 %v334
      %v367 = vld [vmem:[%s1] sm:$0x1]
      %v369 = vperm.slane %v367, 0
      %v371 = vmul.f32 %v335, %v369
      %v372 = vmul.f32 %v336, %v369
      %v373 = vmul.f32 %v337, %v369
      %v374 = vmul.f32 %v338, %v369
      %v375 = vmul.f32 %v339, %v369
      %v376 = vmul.f32 %v340, %v369
      %v377 = vmul.f32 %v341, %v369
      %v378 = vmul.f32 %v342, %v369
      %v379 = vmul.f32 %v343, %v369
      %v380 = vmul.f32 %v344, %v369
      %v381 = vmul.f32 %v345, %v369
      %v382 = vmul.f32 %v346, %v369
      %v383 = vmul.f32 %v347, %v369
      %v384 = vmul.f32 %v348, %v369
      %v385 = vmul.f32 %v349, %v369
      %v386 = vmul.f32 %v350, %v369
      %v387 = vmul.f32 %v351, %v369
      %v388 = vmul.f32 %v352, %v369
      %v389 = vmul.f32 %v353, %v369
      %v390 = vmul.f32 %v354, %v369
      %v391 = vmul.f32 %v355, %v369
      %v392 = vmul.f32 %v356, %v369
      %v393 = vmul.f32 %v357, %v369
      %v394 = vmul.f32 %v358, %v369
      %v395 = vmul.f32 %v359, %v369
      %v396 = vmul.f32 %v360, %v369
      %v397 = vmul.f32 %v361, %v369
      %v398 = vmul.f32 %v362, %v369
      %v399 = vmul.f32 %v363, %v369
      %v400 = vmul.f32 %v364, %v369
      %v401 = vmul.f32 %v365, %v369
      %v402 = vmul.f32 %v366, %v369
      %v403 = vld [vmem:[%s2] sm:$0x1]
      %v405 = vperm.slane %v403, 0
      %v407 = vadd.f32 %v371, %v405
      %v408 = vadd.f32 %v372, %v405
      %v409 = vadd.f32 %v373, %v405
      %v410 = vadd.f32 %v374, %v405
      %v411 = vadd.f32 %v375, %v405
      %v412 = vadd.f32 %v376, %v405
      %v413 = vadd.f32 %v377, %v405
      %v414 = vadd.f32 %v378, %v405
      %v415 = vadd.f32 %v379, %v405
      %v416 = vadd.f32 %v380, %v405
      %v417 = vadd.f32 %v381, %v405
      %v418 = vadd.f32 %v382, %v405
      %v419 = vadd.f32 %v383, %v405
      %v420 = vadd.f32 %v384, %v405
      %v421 = vadd.f32 %v385, %v405
      %v422 = vadd.f32 %v386, %v405
      %v423 = vadd.f32 %v387, %v405
      %v424 = vadd.f32 %v388, %v405
      %v425 = vadd.f32 %v389, %v405
      %v426 = vadd.f32 %v390, %v405
      %v427 = vadd.f32 %v391, %v405
      %v428 = vadd.f32 %v392, %v405
      %v429 = vadd.f32 %v393, %v405
      %v430 = vadd.f32 %v394, %v405
      %v431 = vadd.f32 %v395, %v405
      %v432 = vadd.f32 %v396, %v405
      %v433 = vadd.f32 %v397, %v405
      %v434 = vadd.f32 %v398, %v405
      %v435 = vadd.f32 %v399, %v405
      %v436 = vadd.f32 %v400, %v405
      %v437 = vadd.f32 %v401, %v405
      %v438 = vadd.f32 %v402, %v405
      %v439 = vld [vmem:[%s294] sm:$0xf]
      %v440 = vld [vmem:[%s294 + $0x4] sm:$0xf]
      %v441 = vld [vmem:[%s294 + $0x8] sm:$0xf]
      %v442 = vld [vmem:[%s294 + $0xc] sm:$0xf]
      %v443 = vld [vmem:[%s294 + $0x10] sm:$0xf]
      %v444 = vld [vmem:[%s294 + $0x14] sm:$0xf]
      %v445 = vld [vmem:[%s294 + $0x18] sm:$0xf]
      %v446 = vld [vmem:[%s294 + $0x1c] sm:$0xf]
      %v447 = vld [vmem:[%s294 + $0x20] sm:$0xf]
      %v448 = vld [vmem:[%s294 + $0x24] sm:$0xf]
      %v449 = vld [vmem:[%s294 + $0x28] sm:$0xf]
      %v450 = vld [vmem:[%s294 + $0x2c] sm:$0xf]
      %v451 = vld [vmem:[%s294 + $0x30] sm:$0xf]
      %v452 = vld [vmem:[%s294 + $0x34] sm:$0xf]
      %v453 = vld [vmem:[%s294 + $0x38] sm:$0xf]
      %v454 = vld [vmem:[%s294 + $0x3c] sm:$0xf]
      %v455 = vld [vmem:[%s294 + $0x40] sm:$0xf]
      %v456 = vld [vmem:[%s294 + $0x44] sm:$0xf]
      %v457 = vld [vmem:[%s294 + $0x48] sm:$0xf]
      %v458 = vld [vmem:[%s294 + $0x4c] sm:$0xf]
      %v459 = vld [vmem:[%s294 + $0x50] sm:$0xf]
      %v460 = vld [vmem:[%s294 + $0x54] sm:$0xf]
      %v461 = vld [vmem:[%s294 + $0x58] sm:$0xf]
      %v462 = vld [vmem:[%s294 + $0x5c] sm:$0xf]
      %v463 = vld [vmem:[%s294 + $0x60] sm:$0xf]
      %v464 = vld [vmem:[%s294 + $0x64] sm:$0xf]
      %v465 = vld [vmem:[%s294 + $0x68] sm:$0xf]
      %v466 = vld [vmem:[%s294 + $0x6c] sm:$0xf]
      %v467 = vld [vmem:[%s294 + $0x70] sm:$0xf]
      %v468 = vld [vmem:[%s294 + $0x74] sm:$0xf]
      %v469 = vld [vmem:[%s294 + $0x78] sm:$0xf]
      %v470 = vld [vmem:[%s294 + $0x7c] sm:$0xf]
      %v471 = vunpack.c.l.bf16 %v439
      %v472 = vunpack.c.l.bf16 %v440
      %v473 = vunpack.c.l.bf16 %v441
      %v474 = vunpack.c.l.bf16 %v442
      %v475 = vunpack.c.l.bf16 %v443
      %v476 = vunpack.c.l.bf16 %v444
      %v477 = vunpack.c.l.bf16 %v445
      %v478 = vunpack.c.l.bf16 %v446
      %v479 = vunpack.c.l.bf16 %v447
      %v480 = vunpack.c.l.bf16 %v448
      %v481 = vunpack.c.l.bf16 %v449
      %v482 = vunpack.c.l.bf16 %v450
      %v483 = vunpack.c.l.bf16 %v451
      %v484 = vunpack.c.l.bf16 %v452
      %v485 = vunpack.c.l.bf16 %v453
      %v486 = vunpack.c.l.bf16 %v454
      %v487 = vunpack.c.l.bf16 %v455
      %v488 = vunpack.c.l.bf16 %v456
      %v489 = vunpack.c.l.bf16 %v457
      %v490 = vunpack.c.l.bf16 %v458
      %v491 = vunpack.c.l.bf16 %v459
      %v492 = vunpack.c.l.bf16 %v460
      %v493 = vunpack.c.l.bf16 %v461
      %v494 = vunpack.c.l.bf16 %v462
      %v495 = vunpack.c.l.bf16 %v463
      %v496 = vunpack.c.l.bf16 %v464
      %v497 = vunpack.c.l.bf16 %v465
      %v498 = vunpack.c.l.bf16 %v466
      %v499 = vunpack.c.l.bf16 %v467
      %v500 = vunpack.c.l.bf16 %v468
      %v501 = vunpack.c.l.bf16 %v469
      %v502 = vunpack.c.l.bf16 %v470
      %v503 = vld [vmem:[%s4] sm:$0x1]
      %v505 = vperm.slane %v503, 0
      %v507 = vmul.f32 %v471, %v505
      %v508 = vmul.f32 %v472, %v505
      %v509 = vmul.f32 %v473, %v505
      %v510 = vmul.f32 %v474, %v505
      %v511 = vmul.f32 %v475, %v505
      %v512 = vmul.f32 %v476, %v505
      %v513 = vmul.f32 %v477, %v505
      %v514 = vmul.f32 %v478, %v505
      %v515 = vmul.f32 %v479, %v505
      %v516 = vmul.f32 %v480, %v505
      %v517 = vmul.f32 %v481, %v505
      %v518 = vmul.f32 %v482, %v505
      %v519 = vmul.f32 %v483, %v505
      %v520 = vmul.f32 %v484, %v505
      %v521 = vmul.f32 %v485, %v505
      %v522 = vmul.f32 %v486, %v505
      %v523 = vmul.f32 %v487, %v505
      %v524 = vmul.f32 %v488, %v505
      %v525 = vmul.f32 %v489, %v505
      %v526 = vmul.f32 %v490, %v505
      %v527 = vmul.f32 %v491, %v505
      %v528 = vmul.f32 %v492, %v505
      %v529 = vmul.f32 %v493, %v505
      %v530 = vmul.f32 %v494, %v505
      %v531 = vmul.f32 %v495, %v505
      %v532 = vmul.f32 %v496, %v505
      %v533 = vmul.f32 %v497, %v505
      %v534 = vmul.f32 %v498, %v505
      %v535 = vmul.f32 %v499, %v505
      %v536 = vmul.f32 %v500, %v505
      %v537 = vmul.f32 %v501, %v505
      %v538 = vmul.f32 %v502, %v505
      %v539 = vld [vmem:[%s5] sm:$0x1]
      %v541 = vperm.slane %v539, 0
      %v543 = vadd.f32 %v507, %v541
      %v544 = vadd.f32 %v508, %v541
      %v545 = vadd.f32 %v509, %v541
      %v546 = vadd.f32 %v510, %v541
      %v547 = vadd.f32 %v511, %v541
      %v548 = vadd.f32 %v512, %v541
      %v549 = vadd.f32 %v513, %v541
      %v550 = vadd.f32 %v514, %v541
      %v551 = vadd.f32 %v515, %v541
      %v552 = vadd.f32 %v516, %v541
      %v553 = vadd.f32 %v517, %v541
      %v554 = vadd.f32 %v518, %v541
      %v555 = vadd.f32 %v519, %v541
      %v556 = vadd.f32 %v520, %v541
      %v557 = vadd.f32 %v521, %v541
      %v558 = vadd.f32 %v522, %v541
      %v559 = vadd.f32 %v523, %v541
      %v560 = vadd.f32 %v524, %v541
      %v561 = vadd.f32 %v525, %v541
      %v562 = vadd.f32 %v526, %v541
      %v563 = vadd.f32 %v527, %v541
      %v564 = vadd.f32 %v528, %v541
      %v565 = vadd.f32 %v529, %v541
      %v566 = vadd.f32 %v530, %v541
      %v567 = vadd.f32 %v531, %v541
      %v568 = vadd.f32 %v532, %v541
      %v569 = vadd.f32 %v533, %v541
      %v570 = vadd.f32 %v534, %v541
      %v571 = vadd.f32 %v535, %v541
      %v572 = vadd.f32 %v536, %v541
      %v573 = vadd.f32 %v537, %v541
      %v574 = vadd.f32 %v538, %v541
      %v575 = vadd.f32 %v407, %v543
      %v576 = vadd.f32 %v408, %v544
      %v577 = vadd.f32 %v409, %v545
      %v578 = vadd.f32 %v410, %v546
      %v579 = vadd.f32 %v411, %v547
      %v580 = vadd.f32 %v412, %v548
      %v581 = vadd.f32 %v413, %v549
      %v582 = vadd.f32 %v414, %v550
      %v583 = vadd.f32 %v415, %v551
      %v584 = vadd.f32 %v416, %v552
      %v585 = vadd.f32 %v417, %v553
      %v586 = vadd.f32 %v418, %v554
      %v587 = vadd.f32 %v419, %v555
      %v588 = vadd.f32 %v420, %v556
      %v589 = vadd.f32 %v421, %v557
      %v590 = vadd.f32 %v422, %v558
      %v591 = vadd.f32 %v423, %v559
      %v592 = vadd.f32 %v424, %v560
      %v593 = vadd.f32 %v425, %v561
      %v594 = vadd.f32 %v426, %v562
      %v595 = vadd.f32 %v427, %v563
      %v596 = vadd.f32 %v428, %v564
      %v597 = vadd.f32 %v429, %v565
      %v598 = vadd.f32 %v430, %v566
      %v599 = vadd.f32 %v431, %v567
      %v600 = vadd.f32 %v432, %v568
      %v601 = vadd.f32 %v433, %v569
      %v602 = vadd.f32 %v434, %v570
      %v603 = vadd.f32 %v435, %v571
      %v604 = vadd.f32 %v436, %v572
      %v605 = vadd.f32 %v437, %v573
      %v606 = vadd.f32 %v438, %v574
      %v607 = vmax.f32 %v575, 0.0
      %v608 = vmax.f32 %v576, 0.0
      %v609 = vmax.f32 %v577, 0.0
      %v610 = vmax.f32 %v578, 0.0
      %v611 = vmax.f32 %v579, 0.0
      %v612 = vmax.f32 %v580, 0.0
      %v613 = vmax.f32 %v581, 0.0
      %v614 = vmax.f32 %v582, 0.0
      %v615 = vmax.f32 %v583, 0.0
      %v616 = vmax.f32 %v584, 0.0
      %v617 = vmax.f32 %v585, 0.0
      %v618 = vmax.f32 %v586, 0.0
      %v619 = vmax.f32 %v587, 0.0
      %v620 = vmax.f32 %v588, 0.0
      %v621 = vmax.f32 %v589, 0.0
      %v622 = vmax.f32 %v590, 0.0
      %v623 = vmax.f32 %v591, 0.0
      %v624 = vmax.f32 %v592, 0.0
      %v625 = vmax.f32 %v593, 0.0
      %v626 = vmax.f32 %v594, 0.0
      %v627 = vmax.f32 %v595, 0.0
      %v628 = vmax.f32 %v596, 0.0
      %v629 = vmax.f32 %v597, 0.0
      %v630 = vmax.f32 %v598, 0.0
      %v631 = vmax.f32 %v599, 0.0
      %v632 = vmax.f32 %v600, 0.0
      %v633 = vmax.f32 %v601, 0.0
      %v634 = vmax.f32 %v602, 0.0
      %v635 = vmax.f32 %v603, 0.0
      %v636 = vmax.f32 %v604, 0.0
      %v637 = vmax.f32 %v605, 0.0
      %v638 = vmax.f32 %v606, 0.0
      %639 = vst [vmem:[%s301] sm:$0xff] %v607
      %640 = vst [vmem:[%s301 + $0x8] sm:$0xff] %v608
      %641 = vst [vmem:[%s301 + $0x10] sm:$0xff] %v609
      %642 = vst [vmem:[%s301 + $0x18] sm:$0xff] %v610
      %643 = vst [vmem:[%s301 + $0x20] sm:$0xff] %v611
      %644 = vst [vmem:[%s301 + $0x28] sm:$0xff] %v612
      %645 = vst [vmem:[%s301 + $0x30] sm:$0xff] %v613
      %646 = vst [vmem:[%s301 + $0x38] sm:$0xff] %v614
      %647 = vst [vmem:[%s301 + $0x40] sm:$0xff] %v615
      %648 = vst [vmem:[%s301 + $0x48] sm:$0xff] %v616
      %649 = vst [vmem:[%s301 + $0x50] sm:$0xff] %v617
      %650 = vst [vmem:[%s301 + $0x58] sm:$0xff] %v618
      %651 = vst [vmem:[%s301 + $0x60] sm:$0xff] %v619
      %652 = vst [vmem:[%s301 + $0x68] sm:$0xff] %v620
      %653 = vst [vmem:[%s301 + $0x70] sm:$0xff] %v621
      %654 = vst [vmem:[%s301 + $0x78] sm:$0xff] %v622
      %655 = vst [vmem:[%s301 + $0x80] sm:$0xff] %v623
      %656 = vst [vmem:[%s301 + $0x88] sm:$0xff] %v624
      %657 = vst [vmem:[%s301 + $0x90] sm:$0xff] %v625
      %658 = vst [vmem:[%s301 + $0x98] sm:$0xff] %v626
      %659 = vst [vmem:[%s301 + $0xa0] sm:$0xff] %v627
      %660 = vst [vmem:[%s301 + $0xa8] sm:$0xff] %v628
      %661 = vst [vmem:[%s301 + $0xb0] sm:$0xff] %v629
      %662 = vst [vmem:[%s301 + $0xb8] sm:$0xff] %v630
      %663 = vst [vmem:[%s301 + $0xc0] sm:$0xff] %v631
      %664 = vst [vmem:[%s301 + $0xc8] sm:$0xff] %v632
      %665 = vst [vmem:[%s301 + $0xd0] sm:$0xff] %v633
      %666 = vst [vmem:[%s301 + $0xd8] sm:$0xff] %v634
      %667 = vst [vmem:[%s301 + $0xe0] sm:$0xff] %v635
      %668 = vst [vmem:[%s301 + $0xe8] sm:$0xff] %v636
      %669 = vst [vmem:[%s301 + $0xf0] sm:$0xff] %v637
      %670 = vst [vmem:[%s301 + $0xf8] sm:$0xff] %v638
      %s671 = sadd.s32 %s21, %s22
      %p672 = scmp.lt.s32.totalorder %s671, 1
      %s673 = scalar_select %p672, %s671, 1
      %s674 = smul.addr %s673, 32
      %s675 = smul.addr %s674, 8
      %s676 = scalar_lea.vmem %s6, %s675
      // Predicated region
      $region45: #{basic_block_forward.5} parent=43 // pred_check
        %p677 = pneg %p189
      $region46: #{basic_block_forward.5} parent=43 // pred_check_branch
        %679 = sbr.rel (%p677) target = $region48
      $region47: #{basic_block_forward.5} parent=43 // pred_region
        %s680 = sadd.s32 %s21, %s22
      $region48: #{basic_block_forward.5} parent=43 // pred_fallthru
        _
    $region44: #{basic_block_forward.5} parent=5 // pred_fallthru
      _
    %p681 = scmp.le.s32.totalorder 2, %s12
    // Predicated region
    $region49: #{basic_block_forward.5} parent=5 // pred_check
      %p682 = pneg %p681
    $region50: #{basic_block_forward.5} parent=5 // pred_check_branch
      %684 = sbr.rel (%p682) target = $region52
    $region51: #{basic_block_forward.5} parent=5 // pred_region
      %s685 = ssub.s32 %s12, 2
      // Predicated region
      $region53: #{basic_block_forward.5} parent=51 // pred_check
        %p686 = pneg %p195
      $region54: #{basic_block_forward.5} parent=51 // pred_check_branch
        %688 = sbr.rel (%p686) target = $region56
      $region55: #{basic_block_forward.5} parent=51 // pred_region
        %s689 = sadd.s32 %s23, %s24
        %p690 = scmp.lt.s32.totalorder %s689, 1
        %s691 = scalar_select %p690, %s689, 1
        %s692 = smul.addr %s691, 32
        %s693 = smul.addr %s692, 8
        %s694 = scalar_lea.vmem %s6, %s693
      $region56: #{basic_block_forward.5} parent=51 // pred_fallthru
        _
    $region52: #{basic_block_forward.5} parent=5 // pred_fallthru
      _
  $region6: #{basic_block_forward.5} parent=0 // loop_footer
    %s16 = sadd.s32 1, %s12
  $region7: #{basic_block_forward.5} parent=0 // loop_footer_branch
    %11 = sbr.rel target = $region3
  $region8: #{basic_block_forward.5} parent=0 // loop_exit
    _

// kernel: basic_block_forward.3
$region0: #{basic_block_forward.3}
  #allocation0 [shape = 'u32[]', space=smem, size = 0x4, offset = 0x4, fixed_abs, tag = 'smem constant byte address 0x4 - core index']
  #allocation1 [shape = 'u32[72,128]{1,0:T(1,128)}', space=vmem, size = 0x9000, scoped, tag = 'internal scratch']
  %s0 = inlined_call_operand.vmem [shape: bf16[2,18,18,128], index: 0, kind: input, shape index: {}]
  %s1 = inlined_call_operand.vmem [shape: bf16[3,384,256], index: 1, kind: input, shape index: {}]
  %s2 = inlined_call_operand.vmem [shape: bf16[2,16,16,128], index: 2, kind: output, shape index: {0}]
  %s3 = inlined_call_operand.vmem [shape: bf16[2,16,16,128], index: 3, kind: output, shape index: {1}]
  %s4 = inlined_call_operand.vmem [shape: f32[2,2,128], index: 4, kind: output, shape index: {2}]
  %s5 = inlined_call_operand.vmem [shape: f32[2,2,128], index: 5, kind: output, shape index: {3}]
  %6 = xla_tuple %s2, %s3, %s4, %s5
  %s7 = sld [smem:[#allocation0]]
  $region69: #{basic_block_forward.3} parent=0
    _
  %s9 = ssub.s32 1, %s7
  %s10 = scalar_select 0, %s9, %s7
  loop: start=0, step=1, limit=4
  $region2: #{basic_block_forward.3} parent=0 // loop_pre_header
    _
  $region3: #{basic_block_forward.3} parent=0 // loop_header
    %s12 = sphi 0, %s16
    %p13 = scmp.ge.s32.totalorder %s12, 4
    %s19 = sphi 0, %s31
    %s20 = sphi 0, %s27
    %s21 = sphi 0, %s19
    %s22 = sphi 0, %s20
    %s23 = sphi 0, %s21
    %s24 = sphi 0, %s22
    %s36 = sphi 0, %s38
    %s39 = sphi 0, %s36
    %s40 = sphi 0, %s39
    %s56 = sphi 0, %s40
    %s60 = sphi 0, %s60
    %s62 = sphi 0, %s60
    %s63 = sphi 0, %s62
    %s77 = sphi 0, %s63
    %s85 = sphi 0, %s87
    %s88 = sphi 0, %s85
    %s89 = sphi 0, %s88
    %s105 = sphi 0, %s89
    %s113 = sphi 0, %s115
    %s116 = sphi 0, %s113
    %s117 = sphi 0, %s116
    %s133 = sphi 0, %s117
    %s139 = sphi 0, %s141
    %s142 = sphi 0, %s139
    %s143 = sphi 0, %s142
    %s159 = sphi 0, %s143
    %s165 = sphi 0, %s167
    %s168 = sphi 0, %s165
    %s169 = sphi 0, %s168
    %s185 = sphi 0, %s169
  $region4: #{basic_block_forward.3} parent=0 // loop_header_branch
    %15 = sbr.rel (%p13) target = $region8
  $region5: #{basic_block_forward.3} parent=0 // loop_body
    %s17 = ssub.s32 %s12, 1
    %s18 = ssub.s32 %s12, 2
    %s25 = sadd.s32 1, %s20
    %p26 = scmp.ge.s32.totalorder %s25, 1
    %s27 = scalar_select %p26, 0, %s25
    %s28 = sadd.s32 1, %s19
    %s29 = scalar_select %p26, %s28, %s19
    %p30 = scmp.ge.s32.totalorder %s29, 2
    %s31 = scalar_select %p30, 0, %s29
    %s32 = sadd.s32 %s19, %s20
    %s33 = sadd.s32 %s31, %s27
    %s34 = ssub.s32 %s32, %s33
    %p35 = scmp.eq.s32.totalorder %s34, 0
    %s37 = sadd.s32 %s36, 1
    %s38 = scalar_select %p35, %s36, %s37
    %p41 = pneg %p35
    %p42 = scmp.eq.s32.totalorder %s12, 1
    %p43 = por %p41, %p42
    %p44 = scmp.ne.s32.totalorder %s36, %s39
    %p45 = scmp.eq.s32.totalorder %s12, 0
    %p46 = por %p44, %p45
    %p47 = scmp.ne.s32.totalorder %s36, %s39
    %p48 = scmp.eq.s32.totalorder %s17, 1
    %p49 = por %p47, %p48
    %p50 = scmp.ne.s32.totalorder %s39, %s40
    %p51 = scmp.eq.s32.totalorder %s17, 0
    %p52 = por %p50, %p51
    %p53 = scmp.ne.s32.totalorder %s39, %s40
    %p54 = scmp.eq.s32.totalorder %s18, 1
    %p55 = por %p53, %p54
    %p57 = scmp.ne.s32.totalorder %s40, %s56
    %p58 = scmp.eq.s32.totalorder %s18, 0
    %p59 = por %p57, %p58
    %s61 = sadd.s32 %s60, 1
    %p64 = scmp.eq.s32.totalorder %s12, 1
    %p65 = scmp.ne.s32.totalorder %s60, %s62
    %p66 = scmp.eq.s32.totalorder %s12, 0
    %p67 = por %p65, %p66
    %p68 = scmp.ne.s32.totalorder %s60, %s62
    %p69 = scmp.eq.s32.totalorder %s17, 1
    %p70 = por %p68, %p69
    %p71 = scmp.ne.s32.totalorder %s62, %s63
    %p72 = scmp.eq.s32.totalorder %s17, 0
    %p73 = por %p71, %p72
    %p74 = scmp.ne.s32.totalorder %s62, %s63
    %p75 = scmp.eq.s32.totalorder %s18, 1
    %p76 = por %p74, %p75
    %p78 = scmp.ne.s32.totalorder %s63, %s77
    %p79 = scmp.eq.s32.totalorder %s18, 0
    %p80 = por %p78, %p79
    %s81 = sadd.s32 %s19, %s20
    %s82 = sadd.s32 %s31, %s27
    %s83 = ssub.s32 %s81, %s82
    %p84 = scmp.eq.s32.totalorder %s83, 0
    %s86 = sadd.s32 %s85, 1
    %s87 = scalar_select %p84, %s85, %s86
    %p90 = pneg %p84
    %p91 = scmp.eq.s32.totalorder %s12, 1
    %p92 = por %p90, %p91
    %p93 = scmp.ne.s32.totalorder %s85, %s88
    %p94 = scmp.eq.s32.totalorder %s12, 0
    %p95 = por %p93, %p94
    %p96 = scmp.ne.s32.totalorder %s85, %s88
    %p97 = scmp.eq.s32.totalorder %s17, 1
    %p98 = por %p96, %p97
    %p99 = scmp.ne.s32.totalorder %s88, %s89
    %p100 = scmp.eq.s32.totalorder %s17, 0
    %p101 = por %p99, %p100
    %p102 = scmp.ne.s32.totalorder %s88, %s89
    %p103 = scmp.eq.s32.totalorder %s18, 1
    %p104 = por %p102, %p103
    %p106 = scmp.ne.s32.totalorder %s89, %s105
    %p107 = scmp.eq.s32.totalorder %s18, 0
    %p108 = por %p106, %p107
    %s109 = sadd.s32 %s19, %s20
    %s110 = sadd.s32 %s31, %s27
    %s111 = ssub.s32 %s109, %s110
    %p112 = scmp.eq.s32.totalorder %s111, 0
    %s114 = sadd.s32 %s113, 1
    %s115 = scalar_select %p112, %s113, %s114
    %p118 = pneg %p112
    %p119 = scmp.eq.s32.totalorder %s12, 1
    %p120 = por %p118, %p119
    %p121 = scmp.ne.s32.totalorder %s113, %s116
    %p122 = scmp.eq.s32.totalorder %s12, 0
    %p123 = por %p121, %p122
    %p124 = scmp.ne.s32.totalorder %s113, %s116
    %p125 = scmp.eq.s32.totalorder %s17, 1
    %p126 = por %p124, %p125
    %p127 = scmp.ne.s32.totalorder %s116, %s117
    %p128 = scmp.eq.s32.totalorder %s17, 0
    %p129 = por %p127, %p128
    %p130 = scmp.ne.s32.totalorder %s116, %s117
    %p131 = scmp.eq.s32.totalorder %s18, 1
    %p132 = por %p130, %p131
    %p134 = scmp.ne.s32.totalorder %s117, %s133
    %p135 = scmp.eq.s32.totalorder %s18, 0
    %p136 = por %p134, %p135
    %s137 = ssub.s32 %s19, %s31
    %p138 = scmp.eq.s32.totalorder %s137, 0
    %s140 = sadd.s32 %s139, 1
    %s141 = scalar_select %p138, %s139, %s140
    %p144 = pneg %p138
    %p145 = scmp.eq.s32.totalorder %s12, 1
    %p146 = por %p144, %p145
    %p147 = scmp.ne.s32.totalorder %s139, %s142
    %p148 = scmp.eq.s32.totalorder %s12, 0
    %p149 = por %p147, %p148
    %p150 = scmp.ne.s32.totalorder %s139, %s142
    %p151 = scmp.eq.s32.totalorder %s17, 1
    %p152 = por %p150, %p151
    %p153 = scmp.ne.s32.totalorder %s142, %s143
    %p154 = scmp.eq.s32.totalorder %s17, 0
    %p155 = por %p153, %p154
    %p156 = scmp.ne.s32.totalorder %s142, %s143
    %p157 = scmp.eq.s32.totalorder %s18, 1
    %p158 = por %p156, %p157
    %p160 = scmp.ne.s32.totalorder %s143, %s159
    %p161 = scmp.eq.s32.totalorder %s18, 0
    %p162 = por %p160, %p161
    %s163 = ssub.s32 %s19, %s31
    %p164 = scmp.eq.s32.totalorder %s163, 0
    %s166 = sadd.s32 %s165, 1
    %s167 = scalar_select %p164, %s165, %s166
    %p170 = pneg %p164
    %p171 = scmp.eq.s32.totalorder %s12, 1
    %p172 = por %p170, %p171
    %p173 = scmp.ne.s32.totalorder %s165, %s168
    %p174 = scmp.eq.s32.totalorder %s12, 0
    %p175 = por %p173, %p174
    %p176 = scmp.ne.s32.totalorder %s165, %s168
    %p177 = scmp.eq.s32.totalorder %s17, 1
    %p178 = por %p176, %p177
    %p179 = scmp.ne.s32.totalorder %s168, %s169
    %p180 = scmp.eq.s32.totalorder %s17, 0
    %p181 = por %p179, %p180
    %p182 = scmp.ne.s32.totalorder %s168, %s169
    %p183 = scmp.eq.s32.totalorder %s18, 1
    %p184 = por %p182, %p183
    %p186 = scmp.ne.s32.totalorder %s169, %s185
    %p187 = scmp.eq.s32.totalorder %s18, 0
    %p188 = por %p186, %p187
    %p189 = scmp.le.s32.totalorder 1, %s12
    %p190 = scmp.lt.s32.totalorder %s12, 3
    %p191 = pnand %p189, %p190
    %p192 = pneg %p191
    // Predicated region
    $region9: #{basic_block_forward.3} parent=5 // pred_check
      _
    $region10: #{basic_block_forward.3} parent=5 // pred_check_branch
      %194 = sbr.rel (%p191) target = $region12
    $region11: #{basic_block_forward.3} parent=5 // pred_region
      %s195 = ssub.s32 %s12, 1
      // Predicated region
      $region13: #{basic_block_forward.3} parent=11 // pred_check
        %p196 = pneg %p73
      $region14: #{basic_block_forward.3} parent=11 // pred_check_branch
        %198 = sbr.rel (%p196) target = $region16
      $region15: #{basic_block_forward.3} parent=11 // pred_region
        _
      $region16: #{basic_block_forward.3} parent=11 // pred_fallthru
        _
    $region12: #{basic_block_forward.3} parent=5 // pred_fallthru
      _
    %p199 = scmp.lt.s32.totalorder %s12, 2
    // Predicated region
    $region17: #{basic_block_forward.3} parent=5 // pred_check
      %p200 = pneg %p199
    $region18: #{basic_block_forward.3} parent=5 // pred_check_branch
      %202 = sbr.rel (%p200) target = $region20
    $region19: #{basic_block_forward.3} parent=5 // pred_region
      // Predicated region
      $region21: #{basic_block_forward.3} parent=19 // pred_check
        %p203 = pneg %p46
      $region22: #{basic_block_forward.3} parent=19 // pred_check_branch
        %205 = sbr.rel (%p203) target = $region24
      $region23: #{basic_block_forward.3} parent=19 // pred_region
        %s206 = sadd.s32 %s19, %s20
        %p207 = scmp.lt.s32.totalorder %s206, 1
        %s208 = scalar_select %p207, %s206, 1
        %s209 = smul.addr %s208, 54
        %s210 = smul.addr %s209, 4
        %s211 = scalar_lea.vmem %s0, %s210
        %s212 = sadd.s32 %s19, %s20
      $region24: #{basic_block_forward.3} parent=19 // pred_fallthru
        _
    $region20: #{basic_block_forward.3} parent=5 // pred_fallthru
      _
    %p213 = scmp.le.s32.totalorder 1, %s12
    %p214 = scmp.lt.s32.totalorder %s12, 3
    %p215 = pnand %p213, %p214
    %p216 = pneg %p215
    // Predicated region
    $region25: #{basic_block_forward.3} parent=5 // pred_check
      _
    $region26: #{basic_block_forward.3} parent=5 // pred_check_branch
      %218 = sbr.rel (%p215) target = $region28
    $region27: #{basic_block_forward.3} parent=5 // pred_region
      %s219 = ssub.s32 %s12, 1
      %s220 = sadd.s32 %s21, %s22
      %p221 = scmp.lt.s32.totalorder %s220, 1
      %s222 = scalar_select %p221, %s220, 1
      %s223 = smul.addr %s222, 54
      %s224 = smul.addr %s223, 4
      %s225 = scalar_lea.vmem %s0, %s224
      %p226 = pneg %p52
      %p227 = pneg %p49
      %p228 = pneg %p73
      %p229 = pneg %p70
      %p230 = pneg %p101
      %p231 = pneg %p98
      %s232 = sadd.s32 %s21, %s22
      %p233 = scmp.lt.s32.totalorder %s232, 1
      %s234 = scalar_select %p233, %s232, 1
      %s235 = smul.addr %s234, 32
      %s236 = smul.addr %s235, 4
      %s237 = scalar_lea.vmem %s2, %s236
      %p238 = pneg %p129
      %p239 = pneg %p126
      %s240 = sadd.s32 %s21, %s22
      %p241 = scmp.lt.s32.totalorder %s240, 1
      %s242 = scalar_select %p241, %s240, 1
      %s243 = smul.addr %s242, 32
      %s244 = smul.addr %s243, 4
      %s245 = scalar_lea.vmem %s3, %s244
      %p246 = pneg %p155
      %p247 = pneg %p152
      %p248 = scmp.lt.s32.totalorder %s21, 1
      %s249 = scalar_select %p248, %s21, 1
      %s250 = smul.addr %s249, 2
      %s251 = scalar_lea.vmem %s4, %s250
      %p252 = pneg %p181
      %p253 = pneg %p178
      %p254 = scmp.lt.s32.totalorder %s21, 1
      %s255 = scalar_select %p254, %s21, 1
      %s256 = smul.addr %s255, 2
      %s257 = scalar_lea.vmem %s5, %s256
      %s258 = sadd.s32 %s21, %s22
      %p259 = scmp.lt.s32.totalorder %s258, 1
      %s260 = scalar_select %p259, %s258, 1
      %s261 = smul.addr %s260, 54
      %s262 = smul.addr %s261, 4
      %s263 = scalar_lea.vmem %s0, %s262
      %s264 = sadd.s32 %s21, %s22
      %s265 = sadd.s32 %s21, %s22
      %p266 = scmp.lt.s32.totalorder %s265, 1
      %s267 = scalar_select %p266, %s265, 1
      %s268 = smul.addr %s267, 32
      %s269 = smul.addr %s268, 4
      %s270 = scalar_lea.vmem %s2, %s269
      %s271 = sadd.s32 %s21, %s22
      %s272 = sadd.s32 %s21, %s22
      %p273 = scmp.lt.s32.totalorder %s272, 1
      %s274 = scalar_select %p273, %s272, 1
      %s275 = smul.addr %s274, 32
      %s276 = smul.addr %s275, 4
      %s277 = scalar_lea.vmem %s3, %s276
      %s278 = sadd.s32 %s21, %s22
      %p279 = scmp.lt.s32.totalorder %s21, 1
      %s280 = scalar_select %p279, %s21, 1
      %s281 = smul.addr %s280, 2
      %s282 = scalar_lea.vmem %s4, %s281
      %p283 = scmp.lt.s32.totalorder %s21, 1
      %s284 = scalar_select %p283, %s21, 1
      %s285 = smul.addr %s284, 2
      %s286 = scalar_lea.vmem %s5, %s285
      %p287 = scmp.eq.s32.totalorder %s22, 0
      // Predicated region
      $region29: #{basic_block_forward.3} parent=27 // pred_check
        %p288 = pneg %p287
      $region30: #{basic_block_forward.3} parent=27 // pred_check_branch
        %290 = sbr.rel (%p288) target = $region32
      $region31: #{basic_block_forward.3} parent=27 // pred_region
        %291 = vst [vmem:[%s282] sm:$0x3] 0.0
        %292 = vst [vmem:[%s286] sm:$0x3] 0.0
      $region32: #{basic_block_forward.3} parent=27 // pred_fallthru
        _
      %v293 = vld [vmem:[%s263] sm:$0xf]
      %v294 = vld [vmem:[%s263 + $0x4] sm:$0xf]
      %v295 = vld [vmem:[%s263 + $0x8] sm:$0x1]
      %v296 = vld [vmem:[%s263 + $0xc] sm:$0xf]
      %v297 = vld [vmem:[%s263 + $0x10] sm:$0xf]
      %v298 = vld [vmem:[%s263 + $0x14] sm:$0x1]
      %v299 = vld [vmem:[%s263 + $0x18] sm:$0xf]
      %v300 = vld [vmem:[%s263 + $0x1c] sm:$0xf]
      %v301 = vld [vmem:[%s263 + $0x20] sm:$0x1]
      %v302 = vld [vmem:[%s263 + $0x24] sm:$0xf]
      %v303 = vld [vmem:[%s263 + $0x28] sm:$0xf]
      %v304 = vld [vmem:[%s263 + $0x2c] sm:$0x1]
      %v305 = vld [vmem:[%s263 + $0x30] sm:$0xf]
      %v306 = vld [vmem:[%s263 + $0x34] sm:$0xf]
      %v307 = vld [vmem:[%s263 + $0x38] sm:$0x1]
      %v308 = vld [vmem:[%s263 + $0x3c] sm:$0xf]
      %v309 = vld [vmem:[%s263 + $0x40] sm:$0xf]
      %v310 = vld [vmem:[%s263 + $0x44] sm:$0x1]
      %v311 = vld [vmem:[%s263 + $0x48] sm:$0xf]
      %v312 = vld [vmem:[%s263 + $0x4c] sm:$0xf]
      %v313 = vld [vmem:[%s263 + $0x50] sm:$0x1]
      %v314 = vld [vmem:[%s263 + $0x54] sm:$0xf]
      %v315 = vld [vmem:[%s263 + $0x58] sm:$0xf]
      %v316 = vld [vmem:[%s263 + $0x5c] sm:$0x1]
      %v317 = vld [vmem:[%s263 + $0x60] sm:$0xf]
      %v318 = vld [vmem:[%s263 + $0x64] sm:$0xf]
      %v319 = vld [vmem:[%s263 + $0x68] sm:$0x1]
      %v320 = vld [vmem:[%s263 + $0x6c] sm:$0xf]
      %v321 = vld [vmem:[%s263 + $0x70] sm:$0xf]
      %v322 = vld [vmem:[%s263 + $0x74] sm:$0x1]
      %v323 = vld [vmem:[%s263 + $0x78] sm:$0xf]
      %v324 = vld [vmem:[%s263 + $0x7c] sm:$0xf]
      %v325 = vld [vmem:[%s263 + $0x80] sm:$0x1]
      %v326 = vld [vmem:[%s263 + $0x84] sm:$0xf]
      %v327 = vld [vmem:[%s263 + $0x88] sm:$0xf]
      %v328 = vld [vmem:[%s263 + $0x8c] sm:$0x1]
      %v329 = vld [vmem:[%s263 + $0x90] sm:$0xf]
      %v330 = vld [vmem:[%s263 + $0x94] sm:$0xf]
      %v331 = vld [vmem:[%s263 + $0x98] sm:$0x1]
      %v332 = vld [vmem:[%s263 + $0x9c] sm:$0xf]
      %v333 = vld [vmem:[%s263 + $0xa0] sm:$0xf]
      %v334 = vld [vmem:[%s263 + $0xa4] sm:$0x1]
      %v335 = vld [vmem:[%s263 + $0xa8] sm:$0xf]
      %v336 = vld [vmem:[%s263 + $0xac] sm:$0xf]
      %v337 = vld [vmem:[%s263 + $0xb0] sm:$0x1]
      %v338 = vld [vmem:[%s263 + $0xb4] sm:$0xf]
      %v339 = vld [vmem:[%s263 + $0xb8] sm:$0xf]
      %v340 = vld [vmem:[%s263 + $0xbc] sm:$0x1]
      %v341 = vld [vmem:[%s263 + $0xc0] sm:$0xf]
      %v342 = vld [vmem:[%s263 + $0xc4] sm:$0xf]
      %v343 = vld [vmem:[%s263 + $0xc8] sm:$0x1]
      %v344 = vld [vmem:[%s263 + $0xcc] sm:$0xf]
      %v345 = vld [vmem:[%s263 + $0xd0] sm:$0xf]
      %v346 = vld [vmem:[%s263 + $0xd4] sm:$0x1]
      %v379 = vunpack.c.l.b16 %v293
      %v380 = vunpack.c.l.b16 %v294
      %v381 = vunpack.c.l.b16 %v296
      %v382 = vunpack.c.l.b16 %v297
      %v383 = vunpack.c.l.b16 %v299
      %v384 = vunpack.c.l.b16 %v300
      %v385 = vunpack.c.l.b16 %v302
      %v386 = vunpack.c.l.b16 %v303
      %v387 = vunpack.c.l.b16 %v305
      %v388 = vunpack.c.l.b16 %v306
      %v389 = vunpack.c.l.b16 %v308
      %v390 = vunpack.c.l.b16 %v309
      %v391 = vunpack.c.l.b16 %v311
      %v392 = vunpack.c.l.b16 %v312
      %v393 = vunpack.c.l.b16 %v314
      %v394 = vunpack.c.l.b16 %v315
      %v395 = vunpack.c.l.b16 %v317
      %v396 = vunpack.c.l.b16 %v318
      %v397 = vunpack.c.l.b16 %v320
      %v398 = vunpack.c.l.b16 %v321
      %v399 = vunpack.c.l.b16 %v323
      %v400 = vunpack.c.l.b16 %v324
      %v401 = vunpack.c.l.b16 %v326
      %v402 = vunpack.c.l.b16 %v327
      %v403 = vunpack.c.l.b16 %v329
      %v404 = vunpack.c.l.b16 %v330
      %v405 = vunpack.c.l.b16 %v332
      %v406 = vunpack.c.l.b16 %v333
      %v407 = vunpack.c.l.b16 %v335
      %v408 = vunpack.c.l.b16 %v336
      %v409 = vunpack.c.l.b16 %v338
      %v410 = vunpack.c.l.b16 %v339
      %v411 = vpack.c.b16 %v380, %v379
      %v412 = vpack.c.b16 %v382, %v381
      %v413 = vpack.c.b16 %v384, %v383
      %v414 = vpack.c.b16 %v386, %v385
      %v415 = vpack.c.b16 %v388, %v387
      %v416 = vpack.c.b16 %v390, %v389
      %v417 = vpack.c.b16 %v392, %v391
      %v418 = vpack.c.b16 %v394, %v393
      %v419 = vpack.c.b16 %v396, %v395
      %v420 = vpack.c.b16 %v398, %v397
      %v421 = vpack.c.b16 %v400, %v399
      %v422 = vpack.c.b16 %v402, %v401
      %v423 = vpack.c.b16 %v404, %v403
      %v424 = vpack.c.b16 %v406, %v405
      %v425 = vpack.c.b16 %v408, %v407
      %v426 = vpack.c.b16 %v410, %v409
      %v459 = vunpack.c.l.b16 %v295
      %v460 = vunpack.c.l.b16 %v298
      %v461 = vunpack.c.l.b16 %v301
      %v462 = vunpack.c.l.b16 %v304
      %v463 = vunpack.c.l.b16 %v307
      %v464 = vunpack.c.l.b16 %v310
      %v465 = vunpack.c.l.b16 %v313
      %v466 = vunpack.c.l.b16 %v316
      %v467 = vunpack.c.l.b16 %v319
      %v468 = vunpack.c.l.b16 %v322
      %v469 = vunpack.c.l.b16 %v325
      %v470 = vunpack.c.l.b16 %v328
      %v471 = vunpack.c.l.b16 %v331
      %v472 = vunpack.c.l.b16 %v334
      %v473 = vunpack.c.l.b16 %v337
      %v474 = vunpack.c.l.b16 %v340
      %v475 = vpack.c.b16 %v459, %v459
      %v476 = vpack.c.b16 %v460, %v460
      %v477 = vpack.c.b16 %v461, %v461
      %v478 = vpack.c.b16 %v462, %v462
      %v479 = vpack.c.b16 %v463, %v463
      %v480 = vpack.c.b16 %v464, %v464
      %v481 = vpack.c.b16 %v465, %v465
      %v482 = vpack.c.b16 %v466, %v466
      %v483 = vpack.c.b16 %v467, %v467
      %v484 = vpack.c.b16 %v468, %v468
      %v485 = vpack.c.b16 %v469, %v469
      %v486 = vpack.c.b16 %v470, %v470
      %v487 = vpack.c.b16 %v471, %v471
      %v488 = vpack.c.b16 %v472, %v472
      %v489 = vpack.c.b16 %v473, %v473
      %v490 = vpack.c.b16 %v474, %v474
      %vm491 = vsmask.f32 7424
      %v493 = vshrl.u32 %v411, 16
      %v495 = vshll.u32 %v411, 16
      %v497 = vrot.slane %v495, 1
      %v498 = vor.u32 %v493, %v497
      %v500 = vshll.u32 %v475, 16
      %v502 = vrot.slane %v500, 1
      %v503 = vsel %vm491, %v498, %v502
      %v505 = vshrl.u32 %v412, 16
      %v507 = vshll.u32 %v412, 16
      %v509 = vrot.slane %v507, 1
      %v510 = vor.u32 %v505, %v509
      %v512 = vshll.u32 %v476, 16
      %v514 = vrot.slane %v512, 1
      %v515 = vsel %vm491, %v510, %v514
      %v517 = vshrl.u32 %v413, 16
      %v519 = vshll.u32 %v413, 16
      %v521 = vrot.slane %v519, 1
      %v522 = vor.u32 %v517, %v521
      %v524 = vshll.u32 %v477, 16
      %v526 = vrot.slane %v524, 1
      %v527 = vsel %vm491, %v522, %v526
      %v529 = vshrl.u32 %v414, 16
      %v531 = vshll.u32 %v414, 16
      %v533 = vrot.slane %v531, 1
      %v534 = vor.u32 %v529, %v533
      %v536 = vshll.u32 %v478, 16
      %v538 = vrot.slane %v536, 1
      %v539 = vsel %vm491, %v534, %v538
      %v541 = vshrl.u32 %v415, 16
      %v543 = vshll.u32 %v415, 16
      %v545 = vrot.slane %v543, 1
      %v546 = vor.u32 %v541, %v545
      %v548 = vshll.u32 %v479, 16
      %v550 = vrot.slane %v548, 1
      %v551 = vsel %vm491, %v546, %v550
      %v553 = vshrl.u32 %v416, 16
      %v555 = vshll.u32 %v416, 16
      %v557 = vrot.slane %v555, 1
      %v558 = vor.u32 %v553, %v557
      %v560 = vshll.u32 %v480, 16
      %v562 = vrot.slane %v560, 1
      %v563 = vsel %vm491, %v558, %v562
      %v565 = vshrl.u32 %v417, 16
      %v567 = vshll.u32 %v417, 16
      %v569 = vrot.slane %v567, 1
      %v570 = vor.u32 %v565, %v569
      %v572 = vshll.u32 %v481, 16
      %v574 = vrot.slane %v572, 1
      %v575 = vsel %vm491, %v570, %v574
      %v577 = vshrl.u32 %v418, 16
      %v579 = vshll.u32 %v418, 16
      %v581 = vrot.slane %v579, 1
      %v582 = vor.u32 %v577, %v581
      %v584 = vshll.u32 %v482, 16
      %v586 = vrot.slane %v584, 1
      %v587 = vsel %vm491, %v582, %v586
      %v589 = vshrl.u32 %v419, 16
      %v591 = vshll.u32 %v419, 16
      %v593 = vrot.slane %v591, 1
      %v594 = vor.u32 %v589, %v593
      %v596 = vshll.u32 %v483, 16
      %v598 = vrot.slane %v596, 1
      %v599 = vsel %vm491, %v594, %v598
      %v601 = vshrl.u32 %v420, 16
      %v603 = vshll.u32 %v420, 16
      %v605 = vrot.slane %v603, 1
      %v606 = vor.u32 %v601, %v605
      %v608 = vshll.u32 %v484, 16
      %v610 = vrot.slane %v608, 1
      %v611 = vsel %vm491, %v606, %v610
      %v613 = vshrl.u32 %v421, 16
      %v615 = vshll.u32 %v421, 16
      %v617 = vrot.slane %v615, 1
      %v618 = vor.u32 %v613, %v617
      %v620 = vshll.u32 %v485, 16
      %v622 = vrot.slane %v620, 1
      %v623 = vsel %vm491, %v618, %v622
      %v625 = vshrl.u32 %v422, 16
      %v627 = vshll.u32 %v422, 16
      %v629 = vrot.slane %v627, 1
      %v630 = vor.u32 %v625, %v629
      %v632 = vshll.u32 %v486, 16
      %v634 = vrot.slane %v632, 1
      %v635 = vsel %vm491, %v630, %v634
      %v637 = vshrl.u32 %v423, 16
      %v639 = vshll.u32 %v423, 16
      %v641 = vrot.slane %v639, 1
      %v642 = vor.u32 %v637, %v641
      %v644 = vshll.u32 %v487, 16
      %v646 = vrot.slane %v644, 1
      %v647 = vsel %vm491, %v642, %v646
      %v649 = vshrl.u32 %v424, 16
      %v651 = vshll.u32 %v424, 16
      %v653 = vrot.slane %v651, 1
      %v654 = vor.u32 %v649, %v653
      %v656 = vshll.u32 %v488, 16
      %v658 = vrot.slane %v656, 1
      %v659 = vsel %vm491, %v654, %v658
      %v661 = vshrl.u32 %v425, 16
      %v663 = vshll.u32 %v425, 16
      %v665 = vrot.slane %v663, 1
      %v666 = vor.u32 %v661, %v665
      %v668 = vshll.u32 %v489, 16
      %v670 = vrot.slane %v668, 1
      %v671 = vsel %vm491, %v666, %v670
      %v673 = vshrl.u32 %v426, 16
      %v675 = vshll.u32 %v426, 16
      %v677 = vrot.slane %v675, 1
      %v678 = vor.u32 %v673, %v677
      %v680 = vshll.u32 %v490, 16
      %v682 = vrot.slane %v680, 1
      %v683 = vsel %vm491, %v678, %v682
      %vm700 = vcmask 1046528
      %v701 = vrot.slane %v411, 1
      %v702 = vrot.slane %v475, 1
      %v703 = vsel %vm700, %v701, %v702
      %v704 = vrot.slane %v412, 1
      %v705 = vrot.slane %v476, 1
      %v706 = vsel %vm700, %v704, %v705
      %v707 = vrot.slane %v413, 1
      %v708 = vrot.slane %v477, 1
      %v709 = vsel %vm700, %v707, %v708
      %v710 = vrot.slane %v414, 1
      %v711 = vrot.slane %v478, 1
      %v712 = vsel %vm700, %v710, %v711
      %v713 = vrot.slane %v415, 1
      %v714 = vrot.slane %v479, 1
      %v715 = vsel %vm700, %v713, %v714
      %v716 = vrot.slane %v416, 1
      %v717 = vrot.slane %v480, 1
      %v718 = vsel %vm700, %v716, %v717
      %v719 = vrot.slane %v417, 1
      %v720 = vrot.slane %v481, 1
      %v721 = vsel %vm700, %v719, %v720
      %v722 = vrot.slane %v418, 1
      %v723 = vrot.slane %v482, 1
      %v724 = vsel %vm700, %v722, %v723
      %v725 = vrot.slane %v419, 1
      %v726 = vrot.slane %v483, 1
      %v727 = vsel %vm700, %v725, %v726
      %v728 = vrot.slane %v420, 1
      %v729 = vrot.slane %v484, 1
      %v730 = vsel %vm700, %v728, %v729
      %v731 = vrot.slane %v421, 1
      %v732 = vrot.slane %v485, 1
      %v733 = vsel %vm700, %v731, %v732
      %v734 = vrot.slane %v422, 1
      %v735 = vrot.slane %v486, 1
      %v736 = vsel %vm700, %v734, %v735
      %v737 = vrot.slane %v423, 1
      %v738 = vrot.slane %v487, 1
      %v739 = vsel %vm700, %v737, %v738
      %v740 = vrot.slane %v424, 1
      %v741 = vrot.slane %v488, 1
      %v742 = vsel %vm700, %v740, %v741
      %v743 = vrot.slane %v425, 1
      %v744 = vrot.slane %v489, 1
      %v745 = vsel %vm700, %v743, %v744
      %v746 = vrot.slane %v426, 1
      %v747 = vrot.slane %v490, 1
      %v748 = vsel %vm700, %v746, %v747
      %v765 = vld [vmem:[%s1] sm:$0xff]
      %v766 = vld [vmem:[%s1 + $0x8] sm:$0xff]
      %v767 = vld [vmem:[%s1 + $0x10] sm:$0xff]
      %v768 = vld [vmem:[%s1 + $0x18] sm:$0xff]
      %v769 = vld [vmem:[%s1 + $0x20] sm:$0xff]
      %v770 = vld [vmem:[%s1 + $0x28] sm:$0xff]
      %v771 = vld [vmem:[%s1 + $0x30] sm:$0xff]
      %v772 = vld [vmem:[%s1 + $0x38] sm:$0xff]
      %v773 = vld [vmem:[%s1 + $0x40] sm:$0xff]
      %v774 = vld [vmem:[%s1 + $0x48] sm:$0xff]
      %v775 = vld [vmem:[%s1 + $0x50] sm:$0xff]
      %v776 = vld [vmem:[%s1 + $0x58] sm:$0xff]
      %v777 = vld [vmem:[%s1 + $0x60] sm:$0xff]
      %v778 = vld [vmem:[%s1 + $0x68] sm:$0xff]
      %v779 = vld [vmem:[%s1 + $0x70] sm:$0xff]
      %v780 = vld [vmem:[%s1 + $0x78] sm:$0xff]
      %v781 = vld [vmem:[%s1 + $0x80] sm:$0xff]
      %v782 = vld [vmem:[%s1 + $0x88] sm:$0xff]
      %v783 = vld [vmem:[%s1 + $0x90] sm:$0xff]
      %v784 = vld [vmem:[%s1 + $0x98] sm:$0xff]
      %v785 = vld [vmem:[%s1 + $0xa0] sm:$0xff]
      %v786 = vld [vmem:[%s1 + $0xa8] sm:$0xff]
      %v787 = vld [vmem:[%s1 + $0xb0] sm:$0xff]
      %v788 = vld [vmem:[%s1 + $0xb8] sm:$0xff]
      %v789 = vld [vmem:[%s1 + $0xc0] sm:$0xff]
      %v790 = vld [vmem:[%s1 + $0xc8] sm:$0xff]
      %v791 = vld [vmem:[%s1 + $0xd0] sm:$0xff]
      %v792 = vld [vmem:[%s1 + $0xd8] sm:$0xff]
      %v793 = vld [vmem:[%s1 + $0xe0] sm:$0xff]
      %v794 = vld [vmem:[%s1 + $0xe8] sm:$0xff]
      %v795 = vld [vmem:[%s1 + $0xf0] sm:$0xff]
      %v796 = vld [vmem:[%s1 + $0xf8] sm:$0xff]
      %v797 = vld [vmem:[%s1 + $0x100] sm:$0xff]
      %v798 = vld [vmem:[%s1 + $0x108] sm:$0xff]
      %v799 = vld [vmem:[%s1 + $0x110] sm:$0xff]
      %v800 = vld [vmem:[%s1 + $0x118] sm:$0xff]
      %v801 = vld [vmem:[%s1 + $0x120] sm:$0xff]
      %v802 = vld [vmem:[%s1 + $0x128] sm:$0xff]
      %v803 = vld [vmem:[%s1 + $0x130] sm:$0xff]
      %v804 = vld [vmem:[%s1 + $0x138] sm:$0xff]
      %v805 = vld [vmem:[%s1 + $0x140] sm:$0xff]
      %v806 = vld [vmem:[%s1 + $0x148] sm:$0xff]
      %v807 = vld [vmem:[%s1 + $0x150] sm:$0xff]
      %v808 = vld [vmem:[%s1 + $0x158] sm:$0xff]
      %v809 = vld [vmem:[%s1 + $0x160] sm:$0xff]
      %v810 = vld [vmem:[%s1 + $0x168] sm:$0xff]
      %v811 = vld [vmem:[%s1 + $0x170] sm:$0xff]
      %v812 = vld [vmem:[%s1 + $0x178] sm:$0xff]
      %v815 = vunpack.c.l.b16 %v341
      %v816 = vunpack.c.l.b16 %v342
      %v817 = vpack.c.b16 %v816, %v815
      %v820 = vunpack.c.l.b16 %v343
      %v821 = vpack.c.b16 %v820, %v820
      %v823 = vshrl.u32 %v817, 16
      %v825 = vshll.u32 %v817, 16
      %v827 = vrot.slane %v825, 1
      %v828 = vor.u32 %v823, %v827
      %v830 = vshll.u32 %v821, 16
      %v832 = vrot.slane %v830, 1
      %v833 = vsel %vm491, %v828, %v832
      %v835 = vrot.slane %v817, 1
      %v836 = vrot.slane %v821, 1
      %v837 = vsel %vm700, %v835, %v836
      %s839 = scalar_lea.vmem %s1, 384
      %v840 = vld [vmem:[%s839] sm:$0xff]
      %v841 = vld [vmem:[%s839 + $0x8] sm:$0xff]
      %v842 = vld [vmem:[%s839 + $0x10] sm:$0xff]
      %v843 = vld [vmem:[%s839 + $0x18] sm:$0xff]
      %v844 = vld [vmem:[%s839 + $0x20] sm:$0xff]
      %v845 = vld [vmem:[%s839 + $0x28] sm:$0xff]
      %v846 = vld [vmem:[%s839 + $0x30] sm:$0xff]
      %v847 = vld [vmem:[%s839 + $0x38] sm:$0xff]
      %v848 = vld [vmem:[%s839 + $0x40] sm:$0xff]
      %v849 = vld [vmem:[%s839 + $0x48] sm:$0xff]
      %v850 = vld [vmem:[%s839 + $0x50] sm:$0xff]
      %v851 = vld [vmem:[%s839 + $0x58] sm:$0xff]
      %v852 = vld [vmem:[%s839 + $0x60] sm:$0xff]
      %v853 = vld [vmem:[%s839 + $0x68] sm:$0xff]
      %v854 = vld [vmem:[%s839 + $0x70] sm:$0xff]
      %v855 = vld [vmem:[%s839 + $0x78] sm:$0xff]
      %v856 = vld [vmem:[%s839 + $0x80] sm:$0xff]
      %v857 = vld [vmem:[%s839 + $0x88] sm:$0xff]
      %v858 = vld [vmem:[%s839 + $0x90] sm:$0xff]
      %v859 = vld [vmem:[%s839 + $0x98] sm:$0xff]
      %v860 = vld [vmem:[%s839 + $0xa0] sm:$0xff]
      %v861 = vld [vmem:[%s839 + $0xa8] sm:$0xff]
      %v862 = vld [vmem:[%s839 + $0xb0] sm:$0xff]
      %v863 = vld [vmem:[%s839 + $0xb8] sm:$0xff]
      %v864 = vld [vmem:[%s839 + $0xc0] sm:$0xff]
      %v865 = vld [vmem:[%s839 + $0xc8] sm:$0xff]
      %v866 = vld [vmem:[%s839 + $0xd0] sm:$0xff]
      %v867 = vld [vmem:[%s839 + $0xd8] sm:$0xff]
      %v868 = vld [vmem:[%s839 + $0xe0] sm:$0xff]
      %v869 = vld [vmem:[%s839 + $0xe8] sm:$0xff]
      %v870 = vld [vmem:[%s839 + $0xf0] sm:$0xff]
      %v871 = vld [vmem:[%s839 + $0xf8] sm:$0xff]
      %v872 = vld [vmem:[%s839 + $0x100] sm:$0xff]
      %v873 = vld [vmem:[%s839 + $0x108] sm:$0xff]
      %v874 = vld [vmem:[%s839 + $0x110] sm:$0xff]
      %v875 = vld [vmem:[%s839 + $0x118] sm:$0xff]
      %v876 = vld [vmem:[%s839 + $0x120] sm:$0xff]
      %v877 = vld [vmem:[%s839 + $0x128] sm:$0xff]
      %v878 = vld [vmem:[%s839 + $0x130] sm:$0xff]
      %v879 = vld [vmem:[%s839 + $0x138] sm:$0xff]
      %v880 = vld [vmem:[%s839 + $0x140] sm:$0xff]
      %v881 = vld [vmem:[%s839 + $0x148] sm:$0xff]
      %v882 = vld [vmem:[%s839 + $0x150] sm:$0xff]
      %v883 = vld [vmem:[%s839 + $0x158] sm:$0xff]
      %v884 = vld [vmem:[%s839 + $0x160] sm:$0xff]
      %v885 = vld [vmem:[%s839 + $0x168] sm:$0xff]
      %v886 = vld [vmem:[%s839 + $0x170] sm:$0xff]
      %v887 = vld [vmem:[%s839 + $0x178] sm:$0xff]
      %v936 = vunpack.c.l.b16 %v840
      %v937 = vunpack.c.h.b16 %v840
      %v938 = vunpack.c.l.b16 %v841
      %v939 = vunpack.c.h.b16 %v841
      %v940 = vunpack.c.l.b16 %v842
      %v941 = vunpack.c.h.b16 %v842
      %v942 = vunpack.c.l.b16 %v843
      %v943 = vunpack.c.h.b16 %v843
      %v944 = vunpack.c.l.b16 %v844
      %v945 = vunpack.c.h.b16 %v844
      %v946 = vunpack.c.l.b16 %v845
      %v947 = vunpack.c.h.b16 %v845
      %v948 = vunpack.c.l.b16 %v846
      %v949 = vunpack.c.h.b16 %v846
      %v950 = vunpack.c.l.b16 %v847
      %v951 = vunpack.c.h.b16 %v847
      %v952 = vunpack.c.l.b16 %v848
      %v953 = vunpack.c.h.b16 %v848
      %v954 = vunpack.c.l.b16 %v849
      %v955 = vunpack.c.h.b16 %v849
      %v956 = vunpack.c.l.b16 %v850
      %v957 = vunpack.c.h.b16 %v850
      %v958 = vunpack.c.l.b16 %v851
      %v959 = vunpack.c.h.b16 %v851
      %v960 = vunpack.c.l.b16 %v852
      %v961 = vunpack.c.h.b16 %v852
      %v962 = vunpack.c.l.b16 %v853
      %v963 = vunpack.c.h.b16 %v853
      %v964 = vunpack.c.l.b16 %v854
      %v965 = vunpack.c.h.b16 %v854
      %v966 = vunpack.c.l.b16 %v855
      %v967 = vunpack.c.h.b16 %v855
      %v968 = vunpack.c.l.b16 %v856
      %v969 = vunpack.c.h.b16 %v856
      %v970 = vunpack.c.l.b16 %v857
      %v971 = vunpack.c.h.b16 %v857
      %v972 = vunpack.c.l.b16 %v858
      %v973 = vunpack.c.h.b16 %v858
      %v974 = vunpack.c.l.b16 %v859
      %v975 = vunpack.c.h.b16 %v859
      %v976 = vunpack.c.l.b16 %v860
      %v977 = vunpack.c.h.b16 %v860
      %v978 = vunpack.c.l.b16 %v861
      %v979 = vunpack.c.h.b16 %v861
      %v980 = vunpack.c.l.b16 %v862
      %v981 = vunpack.c.h.b16 %v862
      %v982 = vunpack.c.l.b16 %v863
      %v983 = vunpack.c.h.b16 %v863
      %v984 = vunpack.c.l.b16 %v864
      %v985 = vunpack.c.h.b16 %v864
      %v986 = vunpack.c.l.b16 %v865
      %v987 = vunpack.c.h.b16 %v865
      %v988 = vunpack.c.l.b16 %v866
      %v989 = vunpack.c.h.b16 %v866
      %v990 = vunpack.c.l.b16 %v867
      %v991 = vunpack.c.h.b16 %v867
      %v992 = vunpack.c.l.b16 %v868
      %v993 = vunpack.c.h.b16 %v868
      %v994 = vunpack.c.l.b16 %v869
      %v995 = vunpack.c.h.b16 %v869
      %v996 = vunpack.c.l.b16 %v870
      %v997 = vunpack.c.h.b16 %v870
      %v998 = vunpack.c.l.b16 %v871
      %v999 = vunpack.c.h.b16 %v871
      %v1000 = vunpack.c.l.b16 %v872
      %v1001 = vunpack.c.h.b16 %v872
      %v1002 = vunpack.c.l.b16 %v873
      %v1003 = vunpack.c.h.b16 %v873
      %v1004 = vunpack.c.l.b16 %v874
      %v1005 = vunpack.c.h.b16 %v874
      %v1006 = vunpack.c.l.b16 %v875
      %v1007 = vunpack.c.h.b16 %v875
      %v1008 = vunpack.c.l.b16 %v876
      %v1009 = vunpack.c.h.b16 %v876
      %v1010 = vunpack.c.l.b16 %v877
      %v1011 = vunpack.c.h.b16 %v877
      %v1012 = vunpack.c.l.b16 %v878
      %v1013 = vunpack.c.h.b16 %v878
      %v1014 = vunpack.c.l.b16 %v879
      %v1015 = vunpack.c.h.b16 %v879
      %v1016 = vunpack.c.l.b16 %v880
      %v1017 = vunpack.c.h.b16 %v880
      %v1018 = vunpack.c.l.b16 %v881
      %v1019 = vunpack.c.h.b16 %v881
      %v1020 = vunpack.c.l.b16 %v882
      %v1021 = vunpack.c.h.b16 %v882
      %v1022 = vunpack.c.l.b16 %v883
      %v1023 = vunpack.c.h.b16 %v883
      %v1024 = vunpack.c.l.b16 %v884
      %v1025 = vunpack.c.h.b16 %v884
      %v1026 = vunpack.c.l.b16 %v885
      %v1027 = vunpack.c.h.b16 %v885
      %v1028 = vunpack.c.l.b16 %v886
      %v1029 = vunpack.c.h.b16 %v886
      %v1030 = vunpack.c.l.b16 %v887
      %v1031 = vunpack.c.h.b16 %v887
      %v1032 = vpack.c.b16 %v938, %v936
      %v1033 = vpack.c.b16 %v939, %v937
      %v1034 = vpack.c.b16 %v942, %v940
      %v1035 = vpack.c.b16 %v943, %v941
      %v1036 = vpack.c.b16 %v946, %v944
      %v1037 = vpack.c.b16 %v947, %v945
      %v1038 = vpack.c.b16 %v950, %v948
      %v1039 = vpack.c.b16 %v951, %v949
      %v1040 = vpack.c.b16 %v954, %v952
      %v1041 = vpack.c.b16 %v955, %v953
      %v1042 = vpack.c.b16 %v958, %v956
      %v1043 = vpack.c.b16 %v959, %v957
      %v1044 = vpack.c.b16 %v962, %v960
      %v1045 = vpack.c.b16 %v963, %v961
      %v1046 = vpack.c.b16 %v966, %v964
      %v1047 = vpack.c.b16 %v967, %v965
      %v1048 = vpack.c.b16 %v970, %v968
      %v1049 = vpack.c.b16 %v971, %v969
      %v1050 = vpack.c.b16 %v974, %v972
      %v1051 = vpack.c.b16 %v975, %v973
      %v1052 = vpack.c.b16 %v978, %v976
      %v1053 = vpack.c.b16 %v979, %v977
      %v1054 = vpack.c.b16 %v982, %v980
      %v1055 = vpack.c.b16 %v983, %v981
      %v1056 = vpack.c.b16 %v986, %v984
      %v1057 = vpack.c.b16 %v987, %v985
      %v1058 = vpack.c.b16 %v990, %v988
      %v1059 = vpack.c.b16 %v991, %v989
      %v1060 = vpack.c.b16 %v994, %v992
      %v1061 = vpack.c.b16 %v995, %v993
      %v1062 = vpack.c.b16 %v998, %v996
      %v1063 = vpack.c.b16 %v999, %v997
      %v1064 = vpack.c.b16 %v1002, %v1000
      %v1065 = vpack.c.b16 %v1003, %v1001
      %v1066 = vpack.c.b16 %v1006, %v1004
      %v1067 = vpack.c.b16 %v1007, %v1005
      %v1068 = vpack.c.b16 %v1010, %v1008
      %v1069 = vpack.c.b16 %v1011, %v1009
      %v1070 = vpack.c.b16 %v1014, %v1012
      %v1071 = vpack.c.b16 %v1015, %v1013
      %v1072 = vpack.c.b16 %v1018, %v1016
      %v1073 = vpack.c.b16 %v1019, %v1017
      %v1074 = vpack.c.b16 %v1022, %v1020
      %v1075 = vpack.c.b16 %v1023, %v1021
      %v1076 = vpack.c.b16 %v1026, %v1024
      %v1077 = vpack.c.b16 %v1027, %v1025
      %v1078 = vpack.c.b16 %v1030, %v1028
      %v1079 = vpack.c.b16 %v1031, %v1029
      %1128 = vmatpush.bf16.msra.mxu0 %v1046
      %1129 = vmatpush.bf16.msra.mxu0 %v1044
      %1130 = vmatpush.bf16.msra.mxu0 %v1042
      %1131 = vmatpush.bf16.msra.mxu0 %v1040
      %1132 = vmatpush.bf16.msra.mxu0 %v1038
      %1133 = vmatpush.bf16.msra.mxu0 %v1036
      %1134 = vmatpush.bf16.msra.mxu0 %v1034
      %1135 = vmatpush.bf16.msra.mxu0 %v1032
      %1136 = vmatmul.bf16.gmra.mxu0 %v412
      %v1137 = vpop.f32.mrf.mxu0
      %v1138 = vadd.f32 0.0, %v1137
      %v1139 = vpop.f32.mrf.mxu0
      %v1140 = vadd.f32 0.0, %v1139
      %1141 = vmatmul.bf16.gmra.mxu0 %v413
      %v1142 = vpop.f32.mrf.mxu0
      %v1143 = vadd.f32 0.0, %v1142
      %v1144 = vpop.f32.mrf.mxu0
      %v1145 = vadd.f32 0.0, %v1144
      %1146 = vmatmul.bf16.gmra.mxu0 %v414
      %v1147 = vpop.f32.mrf.mxu0
      %v1148 = vadd.f32 0.0, %v1147
      %v1149 = vpop.f32.mrf.mxu0
      %v1150 = vadd.f32 0.0, %v1149
      %1151 = vmatmul.bf16.gmra.mxu0 %v415
      %v1152 = vpop.f32.mrf.mxu0
      %v1153 = vadd.f32 0.0, %v1152
      %v1154 = vpop.f32.mrf.mxu0
      %v1155 = vadd.f32 0.0, %v1154
      %1156 = vmatmul.bf16.gmra.mxu0 %v416
      %v1157 = vpop.f32.mrf.mxu0
      %v1158 = vadd.f32 0.0, %v1157
      %v1159 = vpop.f32.mrf.mxu0
      %v1160 = vadd.f32 0.0, %v1159
      %1161 = vmatmul.bf16.gmra.mxu0 %v417
      %v1162 = vpop.f32.mrf.mxu0
      %v1163 = vadd.f32 0.0, %v1162
      %v1164 = vpop.f32.mrf.mxu0
      %v1165 = vadd.f32 0.0, %v1164
      %1166 = vmatmul.bf16.gmra.mxu0 %v418
      %v1167 = vpop.f32.mrf.mxu0
      %v1168 = vadd.f32 0.0, %v1167
      %v1169 = vpop.f32.mrf.mxu0
      %v1170 = vadd.f32 0.0, %v1169
      %1171 = vmatmul.bf16.gmra.mxu0 %v419
      %v1172 = vpop.f32.mrf.mxu0
      %v1173 = vadd.f32 0.0, %v1172
      %v1174 = vpop.f32.mrf.mxu0
      %v1175 = vadd.f32 0.0, %v1174
      %1176 = vmatmul.bf16.gmra.mxu0 %v420
      %v1177 = vpop.f32.mrf.mxu0
      %v1178 = vadd.f32 0.0, %v1177
      %v1179 = vpop.f32.mrf.mxu0
      %v1180 = vadd.f32 0.0, %v1179
      %1181 = vmatmul.bf16.gmra.mxu0 %v421
      %v1182 = vpop.f32.mrf.mxu0
      %v1183 = vadd.f32 0.0, %v1182
      %v1184 = vpop.f32.mrf.mxu0
      %v1185 = vadd.f32 0.0, %v1184
      %1186 = vmatmul.bf16.gmra.mxu0 %v422
      %v1187 = vpop.f32.mrf.mxu0
      %v1188 = vadd.f32 0.0, %v1187
      %v1189 = vpop.f32.mrf.mxu0
      %v1190 = vadd.f32 0.0, %v1189
      %1191 = vmatmul.bf16.gmra.mxu0 %v423
      %v1192 = vpop.f32.mrf.mxu0
      %v1193 = vadd.f32 0.0, %v1192
      %v1194 = vpop.f32.mrf.mxu0
      %v1195 = vadd.f32 0.0, %v1194
      %1196 = vmatmul.bf16.gmra.mxu0 %v424
      %v1197 = vpop.f32.mrf.mxu0
      %v1198 = vadd.f32 0.0, %v1197
      %v1199 = vpop.f32.mrf.mxu0
      %v1200 = vadd.f32 0.0, %v1199
      %1201 = vmatmul.bf16.gmra.mxu0 %v425
      %v1202 = vpop.f32.mrf.mxu0
      %v1203 = vadd.f32 0.0, %v1202
      %v1204 = vpop.f32.mrf.mxu0
      %v1205 = vadd.f32 0.0, %v1204
      %1206 = vmatmul.bf16.gmra.mxu0 %v426
      %v1207 = vpop.f32.mrf.mxu0
      %v1208 = vadd.f32 0.0, %v1207
      %v1209 = vpop.f32.mrf.mxu0
      %v1210 = vadd.f32 0.0, %v1209
      %1211 = vmatmul.bf16.gmra.mxu0 %v817
      %v1212 = vpop.f32.mrf.mxu0
      %v1213 = vadd.f32 0.0, %v1212
      %v1214 = vpop.f32.mrf.mxu0
      %v1215 = vadd.f32 0.0, %v1214
      %1216 = vdwg.mxu0
      %1217 = vmatpush.bf16.msra.mxu0 %v1062
      %1218 = vmatpush.bf16.msra.mxu0 %v1060
      %1219 = vmatpush.bf16.msra.mxu0 %v1058
      %1220 = vmatpush.bf16.msra.mxu0 %v1056
      %1221 = vmatpush.bf16.msra.mxu0 %v1054
      %1222 = vmatpush.bf16.msra.mxu0 %v1052
      %1223 = vmatpush.bf16.msra.mxu0 %v1050
      %1224 = vmatpush.bf16.msra.mxu0 %v1048
      %1225 = vmatmul.bf16.gmra.mxu0 %v515
      %v1226 = vpop.f32.mrf.mxu0
      %v1227 = vadd.f32 %v1138, %v1226
      %v1228 = vpop.f32.mrf.mxu0
      %v1229 = vadd.f32 %v1140, %v1228
      %1230 = vmatmul.bf16.gmra.mxu0 %v527
      %v1231 = vpop.f32.mrf.mxu0
      %v1232 = vadd.f32 %v1143, %v1231
      %v1233 = vpop.f32.mrf.mxu0
      %v1234 = vadd.f32 %v1145, %v1233
      %1235 = vmatmul.bf16.gmra.mxu0 %v539
      %v1236 = vpop.f32.mrf.mxu0
      %v1237 = vadd.f32 %v1148, %v1236
      %v1238 = vpop.f32.mrf.mxu0
      %v1239 = vadd.f32 %v1150, %v1238
      %1240 = vmatmul.bf16.gmra.mxu0 %v551
      %v1241 = vpop.f32.mrf.mxu0
      %v1242 = vadd.f32 %v1153, %v1241
      %v1243 = vpop.f32.mrf.mxu0
      %v1244 = vadd.f32 %v1155, %v1243
      %1245 = vmatmul.bf16.gmra.mxu0 %v563
      %v1246 = vpop.f32.mrf.mxu0
      %v1247 = vadd.f32 %v1158, %v1246
      %v1248 = vpop.f32.mrf.mxu0
      %v1249 = vadd.f32 %v1160, %v1248
      %1250 = vmatmul.bf16.gmra.mxu0 %v575
      %v1251 = vpop.f32.mrf.mxu0
      %v1252 = vadd.f32 %v1163, %v1251
      %v1253 = vpop.f32.mrf.mxu0
      %v1254 = vadd.f32 %v1165, %v1253
      %1255 = vmatmul.bf16.gmra.mxu0 %v587
      %v1256 = vpop.f32.mrf.mxu0
      %v1257 = vadd.f32 %v1168, %v1256
      %v1258 = vpop.f32.mrf.mxu0
      %v1259 = vadd.f32 %v1170, %v1258
      %1260 = vmatmul.bf16.gmra.mxu0 %v599
      %v1261 = vpop.f32.mrf.mxu0
      %v1262 = vadd.f32 %v1173, %v1261
      %v1263 = vpop.f32.mrf.mxu0
      %v1264 = vadd.f32 %v1175, %v1263
      %1265 = vmatmul.bf16.gmra.mxu0 %v611
      %v1266 = vpop.f32.mrf.mxu0
      %v1267 = vadd.f32 %v1178, %v1266
      %v1268 = vpop.f32.mrf.mxu0
      %v1269 = vadd.f32 %v1180, %v1268
      %1270 = vmatmul.bf16.gmra.mxu0 %v623
      %v1271 = vpop.f32.mrf.mxu0
      %v1272 = vadd.f32 %v1183, %v1271
      %v1273 = vpop.f32.mrf.mxu0
      %v1274 = vadd.f32 %v1185, %v1273
      %1275 = vmatmul.bf16.gmra.mxu0 %v635
      %v1276 = vpop.f32.mrf.mxu0
      %v1277 = vadd.f32 %v1188, %v1276
      %v1278 = vpop.f32.mrf.mxu0
      %v1279 = vadd.f32 %v1190, %v1278
      %1280 = vmatmul.bf16.gmra.mxu0 %v647
      %v1281 = vpop.f32.mrf.mxu0
      %v1282 = vadd.f32 %v1193, %v1281
      %v1283 = vpop.f32.mrf.mxu0
      %v1284 = vadd.f32 %v1195, %v1283
      %1285 = vmatmul.bf16.gmra.mxu0 %v659
      %v1286 = vpop.f32.mrf.mxu0
      %v1287 = vadd.f32 %v1198, %v1286
      %v1288 = vpop.f32.mrf.mxu0
      %v1289 = vadd.f32 %v1200, %v1288
      %1290 = vmatmul.bf16.gmra.mxu0 %v671
      %v1291 = vpop.f32.mrf.mxu0
      %v1292 = vadd.f32 %v1203, %v1291
      %v1293 = vpop.f32.mrf.mxu0
      %v1294 = vadd.f32 %v1205, %v1293
      %1295 = vmatmul.bf16.gmra.mxu0 %v683
      %v1296 = vpop.f32.mrf.mxu0
      %v1297 = vadd.f32 %v1208, %v1296
      %v1298 = vpop.f32.mrf.mxu0
      %v1299 = vadd.f32 %v1210, %v1298
      %1300 = vmatmul.bf16.gmra.mxu0 %v833
      %v1301 = vpop.f32.mrf.mxu0
      %v1302 = vadd.f32 %v1213, %v1301
      %v1303 = vpop.f32.mrf.mxu0
      %v1304 = vadd.f32 %v1215, %v1303
      %1305 = vdwg.mxu0
      %1306 = vmatpush.bf16.msra.mxu0 %v1078
      %1307 = vmatpush.bf16.msra.mxu0 %v1076
      %1308 = vmatpush.bf16.msra.mxu0 %v1074
      %1309 = vmatpush.bf16.msra.mxu0 %v1072
      %1310 = vmatpush.bf16.msra.mxu0 %v1070
      %1311 = vmatpush.bf16.msra.mxu0 %v1068
      %1312 = vmatpush.bf16.msra.mxu0 %v1066
      %1313 = vmatpush.bf16.msra.mxu0 %v1064
      %1314 = vmatmul.bf16.gmra.mxu0 %v706
      %v1315 = vpop.f32.mrf.mxu0
      %v1316 = vadd.f32 %v1227, %v1315
      %v1317 = vpop.f32.mrf.mxu0
      %v1318 = vadd.f32 %v1229, %v1317
      %1319 = vmatmul.bf16.gmra.mxu0 %v709
      %v1320 = vpop.f32.mrf.mxu0
      %v1321 = vadd.f32 %v1232, %v1320
      %v1322 = vpop.f32.mrf.mxu0
      %v1323 = vadd.f32 %v1234, %v1322
      %1324 = vmatmul.bf16.gmra.mxu0 %v712
      %v1325 = vpop.f32.mrf.mxu0
      %v1326 = vadd.f32 %v1237, %v1325
      %v1327 = vpop.f32.mrf.mxu0
      %v1328 = vadd.f32 %v1239, %v1327
      %1329 = vmatmul.bf16.gmra.mxu0 %v715
      %v1330 = vpop.f32.mrf.mxu0
      %v1331 = vadd.f32 %v1242, %v1330
      %v1332 = vpop.f32.mrf.mxu0
      %v1333 = vadd.f32 %v1244, %v1332
      %1334 = vmatmul.bf16.gmra.mxu0 %v718
      %v1335 = vpop.f32.mrf.mxu0
      %v1336 = vadd.f32 %v1247, %v1335
      %v1337 = vpop.f32.mrf.mxu0
      %v1338 = vadd.f32 %v1249, %v1337
      %1339 = vmatmul.bf16.gmra.mxu0 %v721
      %v1340 = vpop.f32.mrf.mxu0
      %v1341 = vadd.f32 %v1252, %v1340
      %v1342 = vpop.f32.mrf.mxu0
      %v1343 = vadd.f32 %v1254, %v1342
      %1344 = vmatmul.bf16.gmra.mxu0 %v724
      %v1345 = vpop.f32.mrf.mxu0
      %v1346 = vadd.f32 %v1257, %v1345
      %v1347 = vpop.f32.mrf.mxu0
      %v1348 = vadd.f32 %v1259, %v1347
      %1349 = vmatmul.bf16.gmra.mxu0 %v727
      %v1350 = vpop.f32.mrf.mxu0
      %v1351 = vadd.f32 %v1262, %v1350
      %v1352 = vpop.f32.mrf.mxu0
      %v1353 = vadd.f32 %v1264, %v1352
      %1354 = vmatmul.bf16.gmra.mxu0 %v730
      %v1355 = vpop.f32.mrf.mxu0
      %v1356 = vadd.f32 %v1267, %v1355
      %v1357 = vpop.f32.mrf.mxu0
      %v1358 = vadd.f32 %v1269, %v1357
      %1359 = vmatmul.bf16.gmra.mxu0 %v733
      %v1360 = vpop.f32.mrf.mxu0
      %v1361 = vadd.f32 %v1272, %v1360
      %v1362 = vpop.f32.mrf.mxu0
      %v1363 = vadd.f32 %v1274, %v1362
      %1364 = vmatmul.bf16.gmra.mxu0 %v736
      %v1365 = vpop.f32.mrf.mxu0
      %v1366 = vadd.f32 %v1277, %v1365
      %v1367 = vpop.f32.mrf.mxu0
      %v1368 = vadd.f32 %v1279, %v1367
      %1369 = vmatmul.bf16.gmra.mxu0 %v739
      %v1370 = vpop.f32.mrf.mxu0
      %v1371 = vadd.f32 %v1282, %v1370
      %v1372 = vpop.f32.mrf.mxu0
      %v1373 = vadd.f32 %v1284, %v1372
      %1374 = vmatmul.bf16.gmra.mxu0 %v742
      %v1375 = vpop.f32.mrf.mxu0
      %v1376 = vadd.f32 %v1287, %v1375
      %v1377 = vpop.f32.mrf.mxu0
      %v1378 = vadd.f32 %v1289, %v1377
      %1379 = vmatmul.bf16.gmra.mxu0 %v745
      %v1380 = vpop.f32.mrf.mxu0
      %v1381 = vadd.f32 %v1292, %v1380
      %v1382 = vpop.f32.mrf.mxu0
      %v1383 = vadd.f32 %v1294, %v1382
      %1384 = vmatmul.bf16.gmra.mxu0 %v748
      %v1385 = vpop.f32.mrf.mxu0
      %v1386 = vadd.f32 %v1297, %v1385
      %v1387 = vpop.f32.mrf.mxu0
      %v1388 = vadd.f32 %v1299, %v1387
      %1389 = vmatmul.bf16.gmra.mxu0 %v837
      %v1390 = vpop.f32.mrf.mxu0
      %v1391 = vadd.f32 %v1302, %v1390
      %v1392 = vpop.f32.mrf.mxu0
      %v1393 = vadd.f32 %v1304, %v1392
      %1394 = vdwg.mxu0
      %1395 = vmatpush.bf16.msra.mxu0 %v1047
      %1396 = vmatpush.bf16.msra.mxu0 %v1045
      %1397 = vmatpush.bf16.msra.mxu0 %v1043
      %1398 = vmatpush.bf16.msra.mxu0 %v1041
      %1399 = vmatpush.bf16.msra.mxu0 %v1039
      %1400 = vmatpush.bf16.msra.mxu0 %v1037
      %1401 = vmatpush.bf16.msra.mxu0 %v1035
      %1402 = vmatpush.bf16.msra.mxu0 %v1033
      %1403 = vmatmul.bf16.gmra.mxu0 %v412
      %v1404 = vpop.f32.mrf.mxu0
      %v1405 = vadd.f32 0.0, %v1404
      %v1406 = vpop.f32.mrf.mxu0
      %v1407 = vadd.f32 0.0, %v1406
      %1408 = vmatmul.bf16.gmra.mxu0 %v413
      %v1409 = vpop.f32.mrf.mxu0
      %v1410 = vadd.f32 0.0, %v1409
      %v1411 = vpop.f32.mrf.mxu0
      %v1412 = vadd.f32 0.0, %v1411
      %1413 = vmatmul.bf16.gmra.mxu0 %v414
      %v1414 = vpop.f32.mrf.mxu0
      %v1415 = vadd.f32 0.0, %v1414
      %v1416 = vpop.f32.mrf.mxu0
      %v1417 = vadd.f32 0.0, %v1416
      %1418 = vmatmul.bf16.gmra.mxu0 %v415
      %v1419 = vpop.f32.mrf.mxu0
      %v1420 = vadd.f32 0.0, %v1419
      %v1421 = vpop.f32.mrf.mxu0
      %v1422 = vadd.f32 0.0, %v1421
      %1423 = vmatmul.bf16.gmra.mxu0 %v416
      %v1424 = vpop.f32.mrf.mxu0
      %v1425 = vadd.f32 0.0, %v1424
      %v1426 = vpop.f32.mrf.mxu0
      %v1427 = vadd.f32 0.0, %v1426
      %1428 = vmatmul.bf16.gmra.mxu0 %v417
      %v1429 = vpop.f32.mrf.mxu0
      %v1430 = vadd.f32 0.0, %v1429
      %v1431 = vpop.f32.mrf.mxu0
      %v1432 = vadd.f32 0.0, %v1431
      %1433 = vmatmul.bf16.gmra.mxu0 %v418
      %v1434 = vpop.f32.mrf.mxu0
      %v1435 = vadd.f32 0.0, %v1434
      %v1436 = vpop.f32.mrf.mxu0
      %v1437 = vadd.f32 0.0, %v1436
      %1438 = vmatmul.bf16.gmra.mxu0 %v419
      %v1439 = vpop.f32.mrf.mxu0
      %v1440 = vadd.f32 0.0, %v1439
      %v1441 = vpop.f32.mrf.mxu0
      %v1442 = vadd.f32 0.0, %v1441
      %1443 = vmatmul.bf16.gmra.mxu0 %v420
      %v1444 = vpop.f32.mrf.mxu0
      %v1445 = vadd.f32 0.0, %v1444
      %v1446 = vpop.f32.mrf.mxu0
      %v1447 = vadd.f32 0.0, %v1446
      %1448 = vmatmul.bf16.gmra.mxu0 %v421
      %v1449 = vpop.f32.mrf.mxu0
      %v1450 = vadd.f32 0.0, %v1449
      %v1451 = vpop.f32.mrf.mxu0
      %v1452 = vadd.f32 0.0, %v1451
      %1453 = vmatmul.bf16.gmra.mxu0 %v422
      %v1454 = vpop.f32.mrf.mxu0
      %v1455 = vadd.f32 0.0, %v1454
      %v1456 = vpop.f32.mrf.mxu0
      %v1457 = vadd.f32 0.0, %v1456
      %1458 = vmatmul.bf16.gmra.mxu0 %v423
      %v1459 = vpop.f32.mrf.mxu0
      %v1460 = vadd.f32 0.0, %v1459
      %v1461 = vpop.f32.mrf.mxu0
      %v1462 = vadd.f32 0.0, %v1461
      %1463 = vmatmul.bf16.gmra.mxu0 %v424
      %v1464 = vpop.f32.mrf.mxu0
      %v1465 = vadd.f32 0.0, %v1464
      %v1466 = vpop.f32.mrf.mxu0
      %v1467 = vadd.f32 0.0, %v1466
      %1468 = vmatmul.bf16.gmra.mxu0 %v425
      %v1469 = vpop.f32.mrf.mxu0
      %v1470 = vadd.f32 0.0, %v1469
      %v1471 = vpop.f32.mrf.mxu0
      %v1472 = vadd.f32 0.0, %v1471
      %1473 = vmatmul.bf16.gmra.mxu0 %v426
      %v1474 = vpop.f32.mrf.mxu0
      %v1475 = vadd.f32 0.0, %v1474
      %v1476 = vpop.f32.mrf.mxu0
      %v1477 = vadd.f32 0.0, %v1476
      %1478 = vmatmul.bf16.gmra.mxu0 %v817
      %v1479 = vpop.f32.mrf.mxu0
      %v1480 = vadd.f32 0.0, %v1479
      %v1481 = vpop.f32.mrf.mxu0
      %v1482 = vadd.f32 0.0, %v1481
      %1483 = vdwg.mxu0
      %1484 = vmatpush.bf16.msra.mxu0 %v1063
      %1485 = vmatpush.bf16.msra.mxu0 %v1061
      %1486 = vmatpush.bf16.msra.mxu0 %v1059
      %1487 = vmatpush.bf16.msra.mxu0 %v1057
      %1488 = vmatpush.bf16.msra.mxu0 %v1055
      %1489 = vmatpush.bf16.msra.mxu0 %v1053
      %1490 = vmatpush.bf16.msra.mxu0 %v1051
      %1491 = vmatpush.bf16.msra.mxu0 %v1049
      %1492 = vmatmul.bf16.gmra.mxu0 %v515
      %v1493 = vpop.f32.mrf.mxu0
      %v1494 = vadd.f32 %v1405, %v1493
      %v1495 = vpop.f32.mrf.mxu0
      %v1496 = vadd.f32 %v1407, %v1495
      %1497 = vmatmul.bf16.gmra.mxu0 %v527
      %v1498 = vpop.f32.mrf.mxu0
      %v1499 = vadd.f32 %v1410, %v1498
      %v1500 = vpop.f32.mrf.mxu0
      %v1501 = vadd.f32 %v1412, %v1500
      %1502 = vmatmul.bf16.gmra.mxu0 %v539
      %v1503 = vpop.f32.mrf.mxu0
      %v1504 = vadd.f32 %v1415, %v1503
      %v1505 = vpop.f32.mrf.mxu0
      %v1506 = vadd.f32 %v1417, %v1505
      %1507 = vmatmul.bf16.gmra.mxu0 %v551
      %v1508 = vpop.f32.mrf.mxu0
      %v1509 = vadd.f32 %v1420, %v1508
      %v1510 = vpop.f32.mrf.mxu0
      %v1511 = vadd.f32 %v1422, %v1510
      %1512 = vmatmul.bf16.gmra.mxu0 %v563
      %v1513 = vpop.f32.mrf.mxu0
      %v1514 = vadd.f32 %v1425, %v1513
      %v1515 = vpop.f32.mrf.mxu0
      %v1516 = vadd.f32 %v1427, %v1515
      %1517 = vmatmul.bf16.gmra.mxu0 %v575
      %v1518 = vpop.f32.mrf.mxu0
      %v1519 = vadd.f32 %v1430, %v1518
      %v1520 = vpop.f32.mrf.mxu0
      %v1521 = vadd.f32 %v1432, %v1520
      %1522 = vmatmul.bf16.gmra.mxu0 %v587
      %v1523 = vpop.f32.mrf.mxu0
      %v1524 = vadd.f32 %v1435, %v1523
      %v1525 = vpop.f32.mrf.mxu0
      %v1526 = vadd.f32 %v1437, %v1525
      %1527 = vmatmul.bf16.gmra.mxu0 %v599
      %v1528 = vpop.f32.mrf.mxu0
      %v1529 = vadd.f32 %v1440, %v1528
      %v1530 = vpop.f32.mrf.mxu0
      %v1531 = vadd.f32 %v1442, %v1530
      %1532 = vmatmul.bf16.gmra.mxu0 %v611
      %v1533 = vpop.f32.mrf.mxu0
      %v1534 = vadd.f32 %v1445, %v1533
      %v1535 = vpop.f32.mrf.mxu0
      %v1536 = vadd.f32 %v1447, %v1535
      %1537 = vmatmul.bf16.gmra.mxu0 %v623
      %v1538 = vpop.f32.mrf.mxu0
      %v1539 = vadd.f32 %v1450, %v1538
      %v1540 = vpop.f32.mrf.mxu0
      %v1541 = vadd.f32 %v1452, %v1540
      %1542 = vmatmul.bf16.gmra.mxu0 %v635
      %v1543 = vpop.f32.mrf.mxu0
      %v1544 = vadd.f32 %v1455, %v1543
      %v1545 = vpop.f32.mrf.mxu0
      %v1546 = vadd.f32 %v1457, %v1545
      %1547 = vmatmul.bf16.gmra.mxu0 %v647
      %v1548 = vpop.f32.mrf.mxu0
      %v1549 = vadd.f32 %v1460, %v1548
      %v1550 = vpop.f32.mrf.mxu0
      %v1551 = vadd.f32 %v1462, %v1550
      %1552 = vmatmul.bf16.gmra.mxu0 %v659
      %v1553 = vpop.f32.mrf.mxu0
      %v1554 = vadd.f32 %v1465, %v1553
      %v1555 = vpop.f32.mrf.mxu0
      %v1556 = vadd.f32 %v1467, %v1555
      %1557 = vmatmul.bf16.gmra.mxu0 %v671
      %v1558 = vpop.f32.mrf.mxu0
      %v1559 = vadd.f32 %v1470, %v1558
      %v1560 = vpop.f32.mrf.mxu0
      %v1561 = vadd.f32 %v1472, %v1560
      %1562 = vmatmul.bf16.gmra.mxu0 %v683
      %v1563 = vpop.f32.mrf.mxu0
      %v1564 = vadd.f32 %v1475, %v1563
      %v1565 = vpop.f32.mrf.mxu0
      %v1566 = vadd.f32 %v1477, %v1565
      %1567 = vmatmul.bf16.gmra.mxu0 %v833
      %v1568 = vpop.f32.mrf.mxu0
      %v1569 = vadd.f32 %v1480, %v1568
      %v1570 = vpop.f32.mrf.mxu0
      %v1571 = vadd.f32 %v1482, %v1570
      %1572 = vdwg.mxu0
      %1573 = vmatpush.bf16.msra.mxu0 %v1079
      %1574 = vmatpush.bf16.msra.mxu0 %v1077
      %1575 = vmatpush.bf16.msra.mxu0 %v1075
      %1576 = vmatpush.bf16.msra.mxu0 %v1073
      %1577 = vmatpush.bf16.msra.mxu0 %v1071
      %1578 = vmatpush.bf16.msra.mxu0 %v1069
      %1579 = vmatpush.bf16.msra.mxu0 %v1067
      %1580 = vmatpush.bf16.msra.mxu0 %v1065
      %1581 = vmatmul.bf16.gmra.mxu0 %v706
      %v1582 = vpop.f32.mrf.mxu0
      %v1583 = vadd.f32 %v1494, %v1582
      %v1584 = vpop.f32.mrf.mxu0
      %v1585 = vadd.f32 %v1496, %v1584
      %1586 = vmatmul.bf16.gmra.mxu0 %v709
      %v1587 = vpop.f32.mrf.mxu0
      %v1588 = vadd.f32 %v1499, %v1587
      %v1589 = vpop.f32.mrf.mxu0
      %v1590 = vadd.f32 %v1501, %v1589
      %1591 = vmatmul.bf16.gmra.mxu0 %v712
      %v1592 = vpop.f32.mrf.mxu0
      %v1593 = vadd.f32 %v1504, %v1592
      %v1594 = vpop.f32.mrf.mxu0
      %v1595 = vadd.f32 %v1506, %v1594
      %1596 = vmatmul.bf16.gmra.mxu0 %v715
      %v1597 = vpop.f32.mrf.mxu0
      %v1598 = vadd.f32 %v1509, %v1597
      %v1599 = vpop.f32.mrf.mxu0
      %v1600 = vadd.f32 %v1511, %v1599
      %1601 = vmatmul.bf16.gmra.mxu0 %v718
      %v1602 = vpop.f32.mrf.mxu0
      %v1603 = vadd.f32 %v1514, %v1602
      %v1604 = vpop.f32.mrf.mxu0
      %v1605 = vadd.f32 %v1516, %v1604
      %1606 = vmatmul.bf16.gmra.mxu0 %v721
      %v1607 = vpop.f32.mrf.mxu0
      %v1608 = vadd.f32 %v1519, %v1607
      %v1609 = vpop.f32.mrf.mxu0
      %v1610 = vadd.f32 %v1521, %v1609
      %1611 = vmatmul.bf16.gmra.mxu0 %v724
      %v1612 = vpop.f32.mrf.mxu0
      %v1613 = vadd.f32 %v1524, %v1612
      %v1614 = vpop.f32.mrf.mxu0
      %v1615 = vadd.f32 %v1526, %v1614
      %1616 = vmatmul.bf16.gmra.mxu0 %v727
      %v1617 = vpop.f32.mrf.mxu0
      %v1618 = vadd.f32 %v1529, %v1617
      %v1619 = vpop.f32.mrf.mxu0
      %v1620 = vadd.f32 %v1531, %v1619
      %1621 = vmatmul.bf16.gmra.mxu0 %v730
      %v1622 = vpop.f32.mrf.mxu0
      %v1623 = vadd.f32 %v1534, %v1622
      %v1624 = vpop.f32.mrf.mxu0
      %v1625 = vadd.f32 %v1536, %v1624
      %1626 = vmatmul.bf16.gmra.mxu0 %v733
      %v1627 = vpop.f32.mrf.mxu0
      %v1628 = vadd.f32 %v1539, %v1627
      %v1629 = vpop.f32.mrf.mxu0
      %v1630 = vadd.f32 %v1541, %v1629
      %1631 = vmatmul.bf16.gmra.mxu0 %v736
      %v1632 = vpop.f32.mrf.mxu0
      %v1633 = vadd.f32 %v1544, %v1632
      %v1634 = vpop.f32.mrf.mxu0
      %v1635 = vadd.f32 %v1546, %v1634
      %1636 = vmatmul.bf16.gmra.mxu0 %v739
      %v1637 = vpop.f32.mrf.mxu0
      %v1638 = vadd.f32 %v1549, %v1637
      %v1639 = vpop.f32.mrf.mxu0
      %v1640 = vadd.f32 %v1551, %v1639
      %1641 = vmatmul.bf16.gmra.mxu0 %v742
      %v1642 = vpop.f32.mrf.mxu0
      %v1643 = vadd.f32 %v1554, %v1642
      %v1644 = vpop.f32.mrf.mxu0
      %v1645 = vadd.f32 %v1556, %v1644
      %1646 = vmatmul.bf16.gmra.mxu0 %v745
      %v1647 = vpop.f32.mrf.mxu0
      %v1648 = vadd.f32 %v1559, %v1647
      %v1649 = vpop.f32.mrf.mxu0
      %v1650 = vadd.f32 %v1561, %v1649
      %1651 = vmatmul.bf16.gmra.mxu0 %v748
      %v1652 = vpop.f32.mrf.mxu0
      %v1653 = vadd.f32 %v1564, %v1652
      %v1654 = vpop.f32.mrf.mxu0
      %v1655 = vadd.f32 %v1566, %v1654
      %1656 = vmatmul.bf16.gmra.mxu0 %v837
      %v1657 = vpop.f32.mrf.mxu0
      %v1658 = vadd.f32 %v1569, %v1657
      %v1659 = vpop.f32.mrf.mxu0
      %v1660 = vadd.f32 %v1571, %v1659
      %1661 = vdwg.mxu0
      %v1710 = vunpack.c.l.b16 %v765
      %v1711 = vunpack.c.h.b16 %v765
      %v1712 = vunpack.c.l.b16 %v766
      %v1713 = vunpack.c.h.b16 %v766
      %v1714 = vunpack.c.l.b16 %v767
      %v1715 = vunpack.c.h.b16 %v767
      %v1716 = vunpack.c.l.b16 %v768
      %v1717 = vunpack.c.h.b16 %v768
      %v1718 = vunpack.c.l.b16 %v769
      %v1719 = vunpack.c.h.b16 %v769
      %v1720 = vunpack.c.l.b16 %v770
      %v1721 = vunpack.c.h.b16 %v770
      %v1722 = vunpack.c.l.b16 %v771
      %v1723 = vunpack.c.h.b16 %v771
      %v1724 = vunpack.c.l.b16 %v772
      %v1725 = vunpack.c.h.b16 %v772
      %v1726 = vunpack.c.l.b16 %v773
      %v1727 = vunpack.c.h.b16 %v773
      %v1728 = vunpack.c.l.b16 %v774
      %v1729 = vunpack.c.h.b16 %v774
      %v1730 = vunpack.c.l.b16 %v775
      %v1731 = vunpack.c.h.b16 %v775
      %v1732 = vunpack.c.l.b16 %v776
      %v1733 = vunpack.c.h.b16 %v776
      %v1734 = vunpack.c.l.b16 %v777
      %v1735 = vunpack.c.h.b16 %v777
      %v1736 = vunpack.c.l.b16 %v778
      %v1737 = vunpack.c.h.b16 %v778
      %v1738 = vunpack.c.l.b16 %v779
      %v1739 = vunpack.c.h.b16 %v779
      %v1740 = vunpack.c.l.b16 %v780
      %v1741 = vunpack.c.h.b16 %v780
      %v1742 = vunpack.c.l.b16 %v781
      %v1743 = vunpack.c.h.b16 %v781
      %v1744 = vunpack.c.l.b16 %v782
      %v1745 = vunpack.c.h.b16 %v782
      %v1746 = vunpack.c.l.b16 %v783
      %v1747 = vunpack.c.h.b16 %v783
      %v1748 = vunpack.c.l.b16 %v784
      %v1749 = vunpack.c.h.b16 %v784
      %v1750 = vunpack.c.l.b16 %v785
      %v1751 = vunpack.c.h.b16 %v785
      %v1752 = vunpack.c.l.b16 %v786
      %v1753 = vunpack.c.h.b16 %v786
      %v1754 = vunpack.c.l.b16 %v787
      %v1755 = vunpack.c.h.b16 %v787
      %v1756 = vunpack.c.l.b16 %v788
      %v1757 = vunpack.c.h.b16 %v788
      %v1758 = vunpack.c.l.b16 %v789
      %v1759 = vunpack.c.h.b16 %v789
      %v1760 = vunpack.c.l.b16 %v790
      %v1761 = vunpack.c.h.b16 %v790
      %v1762 = vunpack.c.l.b16 %v791
      %v1763 = vunpack.c.h.b16 %v791
      %v1764 = vunpack.c.l.b16 %v792
      %v1765 = vunpack.c.h.b16 %v792
      %v1766 = vunpack.c.l.b16 %v793
      %v1767 = vunpack.c.h.b16 %v793
      %v1768 = vunpack.c.l.b16 %v794
      %v1769 = vunpack.c.h.b16 %v794
      %v1770 = vunpack.c.l.b16 %v795
      %v1771 = vunpack.c.h.b16 %v795
      %v1772 = vunpack.c.l.b16 %v796
      %v1773 = vunpack.c.h.b16 %v796
      %v1774 = vunpack.c.l.b16 %v797
      %v1775 = vunpack.c.h.b16 %v797
      %v1776 = vunpack.c.l.b16 %v798
      %v1777 = vunpack.c.h.b16 %v798
      %v1778 = vunpack.c.l.b16 %v799
      %v1779 = vunpack.c.h.b16 %v799
      %v1780 = vunpack.c.l.b16 %v800
      %v1781 = vunpack.c.h.b16 %v800
      %v1782 = vunpack.c.l.b16 %v801
      %v1783 = vunpack.c.h.b16 %v801
      %v1784 = vunpack.c.l.b16 %v802
      %v1785 = vunpack.c.h.b16 %v802
      %v1786 = vunpack.c.l.b16 %v803
      %v1787 = vunpack.c.h.b16 %v803
      %v1788 = vunpack.c.l.b16 %v804
      %v1789 = vunpack.c.h.b16 %v804
      %v1790 = vunpack.c.l.b16 %v805
      %v1791 = vunpack.c.h.b16 %v805
      %v1792 = vunpack.c.l.b16 %v806
      %v1793 = vunpack.c.h.b16 %v806
      %v1794 = vunpack.c.l.b16 %v807
      %v1795 = vunpack.c.h.b16 %v807
      %v1796 = vunpack.c.l.b16 %v808
      %v1797 = vunpack.c.h.b16 %v808
      %v1798 = vunpack.c.l.b16 %v809
      %v1799 = vunpack.c.h.b16 %v809
      %v1800 = vunpack.c.l.b16 %v810
      %v1801 = vunpack.c.h.b16 %v810
      %v1802 = vunpack.c.l.b16 %v811
      %v1803 = vunpack.c.h.b16 %v811
      %v1804 = vunpack.c.l.b16 %v812
      %v1805 = vunpack.c.h.b16 %v812
      %v1806 = vpack.c.b16 %v1712, %v1710
      %v1807 = vpack.c.b16 %v1713, %v1711
      %v1808 = vpack.c.b16 %v1716, %v1714
      %v1809 = vpack.c.b16 %v1717, %v1715
      %v1810 = vpack.c.b16 %v1720, %v1718
      %v1811 = vpack.c.b16 %v1721, %v1719
      %v1812 = vpack.c.b16 %v1724, %v1722
      %v1813 = vpack.c.b16 %v1725, %v1723
      %v1814 = vpack.c.b16 %v1728, %v1726
      %v1815 = vpack.c.b16 %v1729, %v1727
      %v1816 = vpack.c.b16 %v1732, %v1730
      %v1817 = vpack.c.b16 %v1733, %v1731
      %v1818 = vpack.c.b16 %v1736, %v1734
      %v1819 = vpack.c.b16 %v1737, %v1735
      %v1820 = vpack.c.b16 %v1740, %v1738
      %v1821 = vpack.c.b16 %v1741, %v1739
      %v1822 = vpack.c.b16 %v1744, %v1742
      %v1823 = vpack.c.b16 %v1745, %v1743
      %v1824 = vpack.c.b16 %v1748, %v1746
      %v1825 = vpack.c.b16 %v1749, %v1747
      %v1826 = vpack.c.b16 %v1752, %v1750
      %v1827 = vpack.c.b16 %v1753, %v1751
      %v1828 = vpack.c.b16 %v1756, %v1754
      %v1829 = vpack.c.b16 %v1757, %v1755
      %v1830 = vpack.c.b16 %v1760, %v1758
      %v1831 = vpack.c.b16 %v1761, %v1759
      %v1832 = vpack.c.b16 %v1764, %v1762
      %v1833 = vpack.c.b16 %v1765, %v1763
      %v1834 = vpack.c.b16 %v1768, %v1766
      %v1835 = vpack.c.b16 %v1769, %v1767
      %v1836 = vpack.c.b16 %v1772, %v1770
      %v1837 = vpack.c.b16 %v1773, %v1771
      %v1838 = vpack.c.b16 %v1776, %v1774
      %v1839 = vpack.c.b16 %v1777, %v1775
      %v1840 = vpack.c.b16 %v1780, %v1778
      %v1841 = vpack.c.b16 %v1781, %v1779
      %v1842 = vpack.c.b16 %v1784, %v1782
      %v1843 = vpack.c.b16 %v1785, %v1783
      %v1844 = vpack.c.b16 %v1788, %v1786
      %v1845 = vpack.c.b16 %v1789, %v1787
      %v1846 = vpack.c.b16 %v1792, %v1790
      %v1847 = vpack.c.b16 %v1793, %v1791
      %v1848 = vpack.c.b16 %v1796, %v1794
      %v1849 = vpack.c.b16 %v1797, %v1795
      %v1850 = vpack.c.b16 %v1800, %v1798
      %v1851 = vpack.c.b16 %v1801, %v1799
      %v1852 = vpack.c.b16 %v1804, %v1802
      %v1853 = vpack.c.b16 %v1805, %v1803
      %1902 = vmatpush.bf16.msra.mxu0 %v1820
      %1903 = vmatpush.bf16.msra.mxu0 %v1818
      %1904 = vmatpush.bf16.msra.mxu0 %v1816
      %1905 = vmatpush.bf16.msra.mxu0 %v1814
      %1906 = vmatpush.bf16.msra.mxu0 %v1812
      %1907 = vmatpush.bf16.msra.mxu0 %v1810
      %1908 = vmatpush.bf16.msra.mxu0 %v1808
      %1909 = vmatpush.bf16.msra.mxu0 %v1806
      %1910 = vmatmul.bf16.gmra.mxu0 %v411
      %v1911 = vpop.f32.mrf.mxu0
      %v1912 = vadd.f32 %v1316, %v1911
      %v1913 = vpop.f32.mrf.mxu0
      %v1914 = vadd.f32 %v1318, %v1913
      %1915 = vmatmul.bf16.gmra.mxu0 %v412
      %v1916 = vpop.f32.mrf.mxu0
      %v1917 = vadd.f32 %v1321, %v1916
      %v1918 = vpop.f32.mrf.mxu0
      %v1919 = vadd.f32 %v1323, %v1918
      %1920 = vmatmul.bf16.gmra.mxu0 %v413
      %v1921 = vpop.f32.mrf.mxu0
      %v1922 = vadd.f32 %v1326, %v1921
      %v1923 = vpop.f32.mrf.mxu0
      %v1924 = vadd.f32 %v1328, %v1923
      %1925 = vmatmul.bf16.gmra.mxu0 %v414
      %v1926 = vpop.f32.mrf.mxu0
      %v1927 = vadd.f32 %v1331, %v1926
      %v1928 = vpop.f32.mrf.mxu0
      %v1929 = vadd.f32 %v1333, %v1928
      %1930 = vmatmul.bf16.gmra.mxu0 %v415
      %v1931 = vpop.f32.mrf.mxu0
      %v1932 = vadd.f32 %v1336, %v1931
      %v1933 = vpop.f32.mrf.mxu0
      %v1934 = vadd.f32 %v1338, %v1933
      %1935 = vmatmul.bf16.gmra.mxu0 %v416
      %v1936 = vpop.f32.mrf.mxu0
      %v1937 = vadd.f32 %v1341, %v1936
      %v1938 = vpop.f32.mrf.mxu0
      %v1939 = vadd.f32 %v1343, %v1938
      %1940 = vmatmul.bf16.gmra.mxu0 %v417
      %v1941 = vpop.f32.mrf.mxu0
      %v1942 = vadd.f32 %v1346, %v1941
      %v1943 = vpop.f32.mrf.mxu0
      %v1944 = vadd.f32 %v1348, %v1943
      %1945 = vmatmul.bf16.gmra.mxu0 %v418
      %v1946 = vpop.f32.mrf.mxu0
      %v1947 = vadd.f32 %v1351, %v1946
      %v1948 = vpop.f32.mrf.mxu0
      %v1949 = vadd.f32 %v1353, %v1948
      %1950 = vmatmul.bf16.gmra.mxu0 %v419
      %v1951 = vpop.f32.mrf.mxu0
      %v1952 = vadd.f32 %v1356, %v1951
      %v1953 = vpop.f32.mrf.mxu0
      %v1954 = vadd.f32 %v1358, %v1953
      %1955 = vmatmul.bf16.gmra.mxu0 %v420
      %v1956 = vpop.f32.mrf.mxu0
      %v1957 = vadd.f32 %v1361, %v1956
      %v1958 = vpop.f32.mrf.mxu0
      %v1959 = vadd.f32 %v1363, %v1958
      %1960 = vmatmul.bf16.gmra.mxu0 %v421
      %v1961 = vpop.f32.mrf.mxu0
      %v1962 = vadd.f32 %v1366, %v1961
      %v1963 = vpop.f32.mrf.mxu0
      %v1964 = vadd.f32 %v1368, %v1963
      %1965 = vmatmul.bf16.gmra.mxu0 %v422
      %v1966 = vpop.f32.mrf.mxu0
      %v1967 = vadd.f32 %v1371, %v1966
      %v1968 = vpop.f32.mrf.mxu0
      %v1969 = vadd.f32 %v1373, %v1968
      %1970 = vmatmul.bf16.gmra.mxu0 %v423
      %v1971 = vpop.f32.mrf.mxu0
      %v1972 = vadd.f32 %v1376, %v1971
      %v1973 = vpop.f32.mrf.mxu0
      %v1974 = vadd.f32 %v1378, %v1973
      %1975 = vmatmul.bf16.gmra.mxu0 %v424
      %v1976 = vpop.f32.mrf.mxu0
      %v1977 = vadd.f32 %v1381, %v1976
      %v1978 = vpop.f32.mrf.mxu0
      %v1979 = vadd.f32 %v1383, %v1978
      %1980 = vmatmul.bf16.gmra.mxu0 %v425
      %v1981 = vpop.f32.mrf.mxu0
      %v1982 = vadd.f32 %v1386, %v1981
      %v1983 = vpop.f32.mrf.mxu0
      %v1984 = vadd.f32 %v1388, %v1983
      %1985 = vmatmul.bf16.gmra.mxu0 %v426
      %v1986 = vpop.f32.mrf.mxu0
      %v1987 = vadd.f32 %v1391, %v1986
      %v1988 = vpop.f32.mrf.mxu0
      %v1989 = vadd.f32 %v1393, %v1988
      %1990 = vdwg.mxu0
      %1991 = vmatpush.bf16.msra.mxu0 %v1836
      %1992 = vmatpush.bf16.msra.mxu0 %v1834
      %1993 = vmatpush.bf16.msra.mxu0 %v1832
      %1994 = vmatpush.bf16.msra.mxu0 %v1830
      %1995 = vmatpush.bf16.msra.mxu0 %v1828
      %1996 = vmatpush.bf16.msra.mxu0 %v1826
      %1997 = vmatpush.bf16.msra.mxu0 %v1824
      %1998 = vmatpush.bf16.msra.mxu0 %v1822
      %1999 = vmatmul.bf16.gmra.mxu0 %v503
      %v2000 = vpop.f32.mrf.mxu0
      %v2001 = vadd.f32 %v1912, %v2000
      %v2002 = vpop.f32.mrf.mxu0
      %v2003 = vadd.f32 %v1914, %v2002
      %2004 = vmatmul.bf16.gmra.mxu0 %v515
      %v2005 = vpop.f32.mrf.mxu0
      %v2006 = vadd.f32 %v1917, %v2005
      %v2007 = vpop.f32.mrf.mxu0
      %v2008 = vadd.f32 %v1919, %v2007
      %2009 = vmatmul.bf16.gmra.mxu0 %v527
      %v2010 = vpop.f32.mrf.mxu0
      %v2011 = vadd.f32 %v1922, %v2010
      %v2012 = vpop.f32.mrf.mxu0
      %v2013 = vadd.f32 %v1924, %v2012
      %2014 = vmatmul.bf16.gmra.mxu0 %v539
      %v2015 = vpop.f32.mrf.mxu0
      %v2016 = vadd.f32 %v1927, %v2015
      %v2017 = vpop.f32.mrf.mxu0
      %v2018 = vadd.f32 %v1929, %v2017
      %2019 = vmatmul.bf16.gmra.mxu0 %v551
      %v2020 = vpop.f32.mrf.mxu0
      %v2021 = vadd.f32 %v1932, %v2020
      %v2022 = vpop.f32.mrf.mxu0
      %v2023 = vadd.f32 %v1934, %v2022
      %2024 = vmatmul.bf16.gmra.mxu0 %v563
      %v2025 = vpop.f32.mrf.mxu0
      %v2026 = vadd.f32 %v1937, %v2025
      %v2027 = vpop.f32.mrf.mxu0
      %v2028 = vadd.f32 %v1939, %v2027
      %2029 = vmatmul.bf16.gmra.mxu0 %v575
      %v2030 = vpop.f32.mrf.mxu0
      %v2031 = vadd.f32 %v1942, %v2030
      %v2032 = vpop.f32.mrf.mxu0
      %v2033 = vadd.f32 %v1944, %v2032
      %2034 = vmatmul.bf16.gmra.mxu0 %v587
      %v2035 = vpop.f32.mrf.mxu0
      %v2036 = vadd.f32 %v1947, %v2035
      %v2037 = vpop.f32.mrf.mxu0
      %v2038 = vadd.f32 %v1949, %v2037
      %2039 = vmatmul.bf16.gmra.mxu0 %v599
      %v2040 = vpop.f32.mrf.mxu0
      %v2041 = vadd.f32 %v1952, %v2040
      %v2042 = vpop.f32.mrf.mxu0
      %v2043 = vadd.f32 %v1954, %v2042
      %2044 = vmatmul.bf16.gmra.mxu0 %v611
      %v2045 = vpop.f32.mrf.mxu0
      %v2046 = vadd.f32 %v1957, %v2045
      %v2047 = vpop.f32.mrf.mxu0
      %v2048 = vadd.f32 %v1959, %v2047
      %2049 = vmatmul.bf16.gmra.mxu0 %v623
      %v2050 = vpop.f32.mrf.mxu0
      %v2051 = vadd.f32 %v1962, %v2050
      %v2052 = vpop.f32.mrf.mxu0
      %v2053 = vadd.f32 %v1964, %v2052
      %2054 = vmatmul.bf16.gmra.mxu0 %v635
      %v2055 = vpop.f32.mrf.mxu0
      %v2056 = vadd.f32 %v1967, %v2055
      %v2057 = vpop.f32.mrf.mxu0
      %v2058 = vadd.f32 %v1969, %v2057
      %2059 = vmatmul.bf16.gmra.mxu0 %v647
      %v2060 = vpop.f32.mrf.mxu0
      %v2061 = vadd.f32 %v1972, %v2060
      %v2062 = vpop.f32.mrf.mxu0
      %v2063 = vadd.f32 %v1974, %v2062
      %2064 = vmatmul.bf16.gmra.mxu0 %v659
      %v2065 = vpop.f32.mrf.mxu0
      %v2066 = vadd.f32 %v1977, %v2065
      %v2067 = vpop.f32.mrf.mxu0
      %v2068 = vadd.f32 %v1979, %v2067
      %2069 = vmatmul.bf16.gmra.mxu0 %v671
      %v2070 = vpop.f32.mrf.mxu0
      %v2071 = vadd.f32 %v1982, %v2070
      %v2072 = vpop.f32.mrf.mxu0
      %v2073 = vadd.f32 %v1984, %v2072
      %2074 = vmatmul.bf16.gmra.mxu0 %v683
      %v2075 = vpop.f32.mrf.mxu0
      %v2076 = vadd.f32 %v1987, %v2075
      %v2077 = vpop.f32.mrf.mxu0
      %v2078 = vadd.f32 %v1989, %v2077
      %2079 = vdwg.mxu0
      %2080 = vmatpush.bf16.msra.mxu0 %v1852
      %2081 = vmatpush.bf16.msra.mxu0 %v1850
      %2082 = vmatpush.bf16.msra.mxu0 %v1848
      %2083 = vmatpush.bf16.msra.mxu0 %v1846
      %2084 = vmatpush.bf16.msra.mxu0 %v1844
      %2085 = vmatpush.bf16.msra.mxu0 %v1842
      %2086 = vmatpush.bf16.msra.mxu0 %v1840
      %2087 = vmatpush.bf16.msra.mxu0 %v1838
      %2088 = vmatmul.bf16.gmra.mxu0 %v703
      %v2089 = vpop.f32.mrf.mxu0
      %v2090 = vadd.f32 %v2001, %v2089
      %v2091 = vpop.f32.mrf.mxu0
      %v2092 = vadd.f32 %v2003, %v2091
      %2093 = vmatmul.bf16.gmra.mxu0 %v706
      %v2094 = vpop.f32.mrf.mxu0
      %v2095 = vadd.f32 %v2006, %v2094
      %v2096 = vpop.f32.mrf.mxu0
      %v2097 = vadd.f32 %v2008, %v2096
      %2098 = vmatmul.bf16.gmra.mxu0 %v709
      %v2099 = vpop.f32.mrf.mxu0
      %v2100 = vadd.f32 %v2011, %v2099
      %v2101 = vpop.f32.mrf.mxu0
      %v2102 = vadd.f32 %v2013, %v2101
      %2103 = vmatmul.bf16.gmra.mxu0 %v712
      %v2104 = vpop.f32.mrf.mxu0
      %v2105 = vadd.f32 %v2016, %v2104
      %v2106 = vpop.f32.mrf.mxu0
      %v2107 = vadd.f32 %v2018, %v2106
      %2108 = vmatmul.bf16.gmra.mxu0 %v715
      %v2109 = vpop.f32.mrf.mxu0
      %v2110 = vadd.f32 %v2021, %v2109
      %v2111 = vpop.f32.mrf.mxu0
      %v2112 = vadd.f32 %v2023, %v2111
      %2113 = vmatmul.bf16.gmra.mxu0 %v718
      %v2114 = vpop.f32.mrf.mxu0
      %v2115 = vadd.f32 %v2026, %v2114
      %v2116 = vpop.f32.mrf.mxu0
      %v2117 = vadd.f32 %v2028, %v2116
      %2118 = vmatmul.bf16.gmra.mxu0 %v721
      %v2119 = vpop.f32.mrf.mxu0
      %v2120 = vadd.f32 %v2031, %v2119
      %v2121 = vpop.f32.mrf.mxu0
      %v2122 = vadd.f32 %v2033, %v2121
      %2123 = vmatmul.bf16.gmra.mxu0 %v724
      %v2124 = vpop.f32.mrf.mxu0
      %v2125 = vadd.f32 %v2036, %v2124
      %v2126 = vpop.f32.mrf.mxu0
      %v2127 = vadd.f32 %v2038, %v2126
      %2128 = vmatmul.bf16.gmra.mxu0 %v727
      %v2129 = vpop.f32.mrf.mxu0
      %v2130 = vadd.f32 %v2041, %v2129
      %v2131 = vpop.f32.mrf.mxu0
      %v2132 = vadd.f32 %v2043, %v2131
      %2133 = vmatmul.bf16.gmra.mxu0 %v730
      %v2134 = vpop.f32.mrf.mxu0
      %v2135 = vadd.f32 %v2046, %v2134
      %v2136 = vpop.f32.mrf.mxu0
      %v2137 = vadd.f32 %v2048, %v2136
      %2138 = vmatmul.bf16.gmra.mxu0 %v733
      %v2139 = vpop.f32.mrf.mxu0
      %v2140 = vadd.f32 %v2051, %v2139
      %v2141 = vpop.f32.mrf.mxu0
      %v2142 = vadd.f32 %v2053, %v2141
      %2143 = vmatmul.bf16.gmra.mxu0 %v736
      %v2144 = vpop.f32.mrf.mxu0
      %v2145 = vadd.f32 %v2056, %v2144
      %v2146 = vpop.f32.mrf.mxu0
      %v2147 = vadd.f32 %v2058, %v2146
      %2148 = vmatmul.bf16.gmra.mxu0 %v739
      %v2149 = vpop.f32.mrf.mxu0
      %v2150 = vadd.f32 %v2061, %v2149
      %v2151 = vpop.f32.mrf.mxu0
      %v2152 = vadd.f32 %v2063, %v2151
      %2153 = vmatmul.bf16.gmra.mxu0 %v742
      %v2154 = vpop.f32.mrf.mxu0
      %v2155 = vadd.f32 %v2066, %v2154
      %v2156 = vpop.f32.mrf.mxu0
      %v2157 = vadd.f32 %v2068, %v2156
      %2158 = vmatmul.bf16.gmra.mxu0 %v745
      %v2159 = vpop.f32.mrf.mxu0
      %v2160 = vadd.f32 %v2071, %v2159
      %v2161 = vpop.f32.mrf.mxu0
      %v2162 = vadd.f32 %v2073, %v2161
      %2163 = vmatmul.bf16.gmra.mxu0 %v748
      %v2164 = vpop.f32.mrf.mxu0
      %v2165 = vadd.f32 %v2076, %v2164
      %v2166 = vpop.f32.mrf.mxu0
      %v2167 = vadd.f32 %v2078, %v2166
      %2168 = vdwg.mxu0
      %2169 = vmatpush.bf16.msra.mxu0 %v1821
      %2170 = vmatpush.bf16.msra.mxu0 %v1819
      %2171 = vmatpush.bf16.msra.mxu0 %v1817
      %2172 = vmatpush.bf16.msra.mxu0 %v1815
      %2173 = vmatpush.bf16.msra.mxu0 %v1813
      %2174 = vmatpush.bf16.msra.mxu0 %v1811
      %2175 = vmatpush.bf16.msra.mxu0 %v1809
      %2176 = vmatpush.bf16.msra.mxu0 %v1807
      %2177 = vmatmul.bf16.gmra.mxu0 %v411
      %v2178 = vpop.f32.mrf.mxu0
      %v2179 = vadd.f32 %v1583, %v2178
      %v2180 = vpop.f32.mrf.mxu0
      %v2181 = vadd.f32 %v1585, %v2180
      %2182 = vmatmul.bf16.gmra.mxu0 %v412
      %v2183 = vpop.f32.mrf.mxu0
      %v2184 = vadd.f32 %v1588, %v2183
      %v2185 = vpop.f32.mrf.mxu0
      %v2186 = vadd.f32 %v1590, %v2185
      %2187 = vmatmul.bf16.gmra.mxu0 %v413
      %v2188 = vpop.f32.mrf.mxu0
      %v2189 = vadd.f32 %v1593, %v2188
      %v2190 = vpop.f32.mrf.mxu0
      %v2191 = vadd.f32 %v1595, %v2190
      %2192 = vmatmul.bf16.gmra.mxu0 %v414
      %v2193 = vpop.f32.mrf.mxu0
      %v2194 = vadd.f32 %v1598, %v2193
      %v2195 = vpop.f32.mrf.mxu0
      %v2196 = vadd.f32 %v1600, %v2195
      %2197 = vmatmul.bf16.gmra.mxu0 %v415
      %v2198 = vpop.f32.mrf.mxu0
      %v2199 = vadd.f32 %v1603, %v2198
      %v2200 = vpop.f32.mrf.mxu0
      %v2201 = vadd.f32 %v1605, %v2200
      %2202 = vmatmul.bf16.gmra.mxu0 %v416
      %v2203 = vpop.f32.mrf.mxu0
      %v2204 = vadd.f32 %v1608, %v2203
      %v2205 = vpop.f32.mrf.mxu0
      %v2206 = vadd.f32 %v1610, %v2205
      %2207 = vmatmul.bf16.gmra.mxu0 %v417
      %v2208 = vpop.f32.mrf.mxu0
      %v2209 = vadd.f32 %v1613, %v2208
      %v2210 = vpop.f32.mrf.mxu0
      %v2211 = vadd.f32 %v1615, %v2210
      %2212 = vmatmul.bf16.gmra.mxu0 %v418
      %v2213 = vpop.f32.mrf.mxu0
      %v2214 = vadd.f32 %v1618, %v2213
      %v2215 = vpop.f32.mrf.mxu0
      %v2216 = vadd.f32 %v1620, %v2215
      %2217 = vmatmul.bf16.gmra.mxu0 %v419
      %v2218 = vpop.f32.mrf.mxu0
      %v2219 = vadd.f32 %v1623, %v2218
      %v2220 = vpop.f32.mrf.mxu0
      %v2221 = vadd.f32 %v1625, %v2220
      %2222 = vmatmul.bf16.gmra.mxu0 %v420
      %v2223 = vpop.f32.mrf.mxu0
      %v2224 = vadd.f32 %v1628, %v2223
      %v2225 = vpop.f32.mrf.mxu0
      %v2226 = vadd.f32 %v1630, %v2225
      %2227 = vmatmul.bf16.gmra.mxu0 %v421
      %v2228 = vpop.f32.mrf.mxu0
      %v2229 = vadd.f32 %v1633, %v2228
      %v2230 = vpop.f32.mrf.mxu0
      %v2231 = vadd.f32 %v1635, %v2230
      %2232 = vmatmul.bf16.gmra.mxu0 %v422
      %v2233 = vpop.f32.mrf.mxu0
      %v2234 = vadd.f32 %v1638, %v2233
      %v2235 = vpop.f32.mrf.mxu0
      %v2236 = vadd.f32 %v1640, %v2235
      %2237 = vmatmul.bf16.gmra.mxu0 %v423
      %v2238 = vpop.f32.mrf.mxu0
      %v2239 = vadd.f32 %v1643, %v2238
      %v2240 = vpop.f32.mrf.mxu0
      %v2241 = vadd.f32 %v1645, %v2240
      %2242 = vmatmul.bf16.gmra.mxu0 %v424
      %v2243 = vpop.f32.mrf.mxu0
      %v2244 = vadd.f32 %v1648, %v2243
      %v2245 = vpop.f32.mrf.mxu0
      %v2246 = vadd.f32 %v1650, %v2245
      %2247 = vmatmul.bf16.gmra.mxu0 %v425
      %v2248 = vpop.f32.mrf.mxu0
      %v2249 = vadd.f32 %v1653, %v2248
      %v2250 = vpop.f32.mrf.mxu0
      %v2251 = vadd.f32 %v1655, %v2250
      %2252 = vmatmul.bf16.gmra.mxu0 %v426
      %v2253 = vpop.f32.mrf.mxu0
      %v2254 = vadd.f32 %v1658, %v2253
      %v2255 = vpop.f32.mrf.mxu0
      %v2256 = vadd.f32 %v1660, %v2255
      %2257 = vdwg.mxu0
      %2258 = vmatpush.bf16.msra.mxu0 %v1837
      %2259 = vmatpush.bf16.msra.mxu0 %v1835
      %2260 = vmatpush.bf16.msra.mxu0 %v1833
      %2261 = vmatpush.bf16.msra.mxu0 %v1831
      %2262 = vmatpush.bf16.msra.mxu0 %v1829
      %2263 = vmatpush.bf16.msra.mxu0 %v1827
      %2264 = vmatpush.bf16.msra.mxu0 %v1825
      %2265 = vmatpush.bf16.msra.mxu0 %v1823
      %2266 = vmatmul.bf16.gmra.mxu0 %v503
      %v2267 = vpop.f32.mrf.mxu0
      %v2268 = vadd.f32 %v2179, %v2267
      %v2269 = vpop.f32.mrf.mxu0
      %v2270 = vadd.f32 %v2181, %v2269
      %2271 = vmatmul.bf16.gmra.mxu0 %v515
      %v2272 = vpop.f32.mrf.mxu0
      %v2273 = vadd.f32 %v2184, %v2272
      %v2274 = vpop.f32.mrf.mxu0
      %v2275 = vadd.f32 %v2186, %v2274
      %2276 = vmatmul.bf16.gmra.mxu0 %v527
      %v2277 = vpop.f32.mrf.mxu0
      %v2278 = vadd.f32 %v2189, %v2277
      %v2279 = vpop.f32.mrf.mxu0
      %v2280 = vadd.f32 %v2191, %v2279
      %2281 = vmatmul.bf16.gmra.mxu0 %v539
      %v2282 = vpop.f32.mrf.mxu0
      %v2283 = vadd.f32 %v2194, %v2282
      %v2284 = vpop.f32.mrf.mxu0
      %v2285 = vadd.f32 %v2196, %v2284
      %2286 = vmatmul.bf16.gmra.mxu0 %v551
      %v2287 = vpop.f32.mrf.mxu0
      %v2288 = vadd.f32 %v2199, %v2287
      %v2289 = vpop.f32.mrf.mxu0
      %v2290 = vadd.f32 %v2201, %v2289
      %2291 = vmatmul.bf16.gmra.mxu0 %v563
      %v2292 = vpop.f32.mrf.mxu0
      %v2293 = vadd.f32 %v2204, %v2292
      %v2294 = vpop.f32.mrf.mxu0
      %v2295 = vadd.f32 %v2206, %v2294
      %2296 = vmatmul.bf16.gmra.mxu0 %v575
      %v2297 = vpop.f32.mrf.mxu0
      %v2298 = vadd.f32 %v2209, %v2297
      %v2299 = vpop.f32.mrf.mxu0
      %v2300 = vadd.f32 %v2211, %v2299
      %2301 = vmatmul.bf16.gmra.mxu0 %v587
      %v2302 = vpop.f32.mrf.mxu0
      %v2303 = vadd.f32 %v2214, %v2302
      %v2304 = vpop.f32.mrf.mxu0
      %v2305 = vadd.f32 %v2216, %v2304
      %2306 = vmatmul.bf16.gmra.mxu0 %v599
      %v2307 = vpop.f32.mrf.mxu0
      %v2308 = vadd.f32 %v2219, %v2307
      %v2309 = vpop.f32.mrf.mxu0
      %v2310 = vadd.f32 %v2221, %v2309
      %2311 = vmatmul.bf16.gmra.mxu0 %v611
      %v2312 = vpop.f32.mrf.mxu0
      %v2313 = vadd.f32 %v2224, %v2312
      %v2314 = vpop.f32.mrf.mxu0
      %v2315 = vadd.f32 %v2226, %v2314
      %2316 = vmatmul.bf16.gmra.mxu0 %v623
      %v2317 = vpop.f32.mrf.mxu0
      %v2318 = vadd.f32 %v2229, %v2317
      %v2319 = vpop.f32.mrf.mxu0
      %v2320 = vadd.f32 %v2231, %v2319
      %2321 = vmatmul.bf16.gmra.mxu0 %v635
      %v2322 = vpop.f32.mrf.mxu0
      %v2323 = vadd.f32 %v2234, %v2322
      %v2324 = vpop.f32.mrf.mxu0
      %v2325 = vadd.f32 %v2236, %v2324
      %2326 = vmatmul.bf16.gmra.mxu0 %v647
      %v2327 = vpop.f32.mrf.mxu0
      %v2328 = vadd.f32 %v2239, %v2327
      %v2329 = vpop.f32.mrf.mxu0
      %v2330 = vadd.f32 %v2241, %v2329
      %2331 = vmatmul.bf16.gmra.mxu0 %v659
      %v2332 = vpop.f32.mrf.mxu0
      %v2333 = vadd.f32 %v2244, %v2332
      %v2334 = vpop.f32.mrf.mxu0
      %v2335 = vadd.f32 %v2246, %v2334
      %2336 = vmatmul.bf16.gmra.mxu0 %v671
      %v2337 = vpop.f32.mrf.mxu0
      %v2338 = vadd.f32 %v2249, %v2337
      %v2339 = vpop.f32.mrf.mxu0
      %v2340 = vadd.f32 %v2251, %v2339
      %2341 = vmatmul.bf16.gmra.mxu0 %v683
      %v2342 = vpop.f32.mrf.mxu0
      %v2343 = vadd.f32 %v2254, %v2342
      %v2344 = vpop.f32.mrf.mxu0
      %v2345 = vadd.f32 %v2256, %v2344
      %2346 = vdwg.mxu0
      %2347 = vmatpush.bf16.msra.mxu0 %v1853
      %2348 = vmatpush.bf16.msra.mxu0 %v1851
      %2349 = vmatpush.bf16.msra.mxu0 %v1849
      %2350 = vmatpush.bf16.msra.mxu0 %v1847
      %2351 = vmatpush.bf16.msra.mxu0 %v1845
      %2352 = vmatpush.bf16.msra.mxu0 %v1843
      %2353 = vmatpush.bf16.msra.mxu0 %v1841
      %2354 = vmatpush.bf16.msra.mxu0 %v1839
      %2355 = vmatmul.bf16.gmra.mxu0 %v703
      %v2356 = vpop.f32.mrf.mxu0
      %v2357 = vadd.f32 %v2268, %v2356
      %v2358 = vpop.f32.mrf.mxu0
      %v2359 = vadd.f32 %v2270, %v2358
      %2360 = vmatmul.bf16.gmra.mxu0 %v706
      %v2361 = vpop.f32.mrf.mxu0
      %v2362 = vadd.f32 %v2273, %v2361
      %v2363 = vpop.f32.mrf.mxu0
      %v2364 = vadd.f32 %v2275, %v2363
      %2365 = vmatmul.bf16.gmra.mxu0 %v709
      %v2366 = vpop.f32.mrf.mxu0
      %v2367 = vadd.f32 %v2278, %v2366
      %v2368 = vpop.f32.mrf.mxu0
      %v2369 = vadd.f32 %v2280, %v2368
      %2370 = vmatmul.bf16.gmra.mxu0 %v712
      %v2371 = vpop.f32.mrf.mxu0
      %v2372 = vadd.f32 %v2283, %v2371
      %v2373 = vpop.f32.mrf.mxu0
      %v2374 = vadd.f32 %v2285, %v2373
      %2375 = vmatmul.bf16.gmra.mxu0 %v715
      %v2376 = vpop.f32.mrf.mxu0
      %v2377 = vadd.f32 %v2288, %v2376
      %v2378 = vpop.f32.mrf.mxu0
      %v2379 = vadd.f32 %v2290, %v2378
      %2380 = vmatmul.bf16.gmra.mxu0 %v718
      %v2381 = vpop.f32.mrf.mxu0
      %v2382 = vadd.f32 %v2293, %v2381
      %v2383 = vpop.f32.mrf.mxu0
      %v2384 = vadd.f32 %v2295, %v2383
      %2385 = vmatmul.bf16.gmra.mxu0 %v721
      %v2386 = vpop.f32.mrf.mxu0
      %v2387 = vadd.f32 %v2298, %v2386
      %v2388 = vpop.f32.mrf.mxu0
      %v2389 = vadd.f32 %v2300, %v2388
      %2390 = vmatmul.bf16.gmra.mxu0 %v724
      %v2391 = vpop.f32.mrf.mxu0
      %v2392 = vadd.f32 %v2303, %v2391
      %v2393 = vpop.f32.mrf.mxu0
      %v2394 = vadd.f32 %v2305, %v2393
      %2395 = vmatmul.bf16.gmra.mxu0 %v727
      %v2396 = vpop.f32.mrf.mxu0
      %v2397 = vadd.f32 %v2308, %v2396
      %v2398 = vpop.f32.mrf.mxu0
      %v2399 = vadd.f32 %v2310, %v2398
      %2400 = vmatmul.bf16.gmra.mxu0 %v730
      %v2401 = vpop.f32.mrf.mxu0
      %v2402 = vadd.f32 %v2313, %v2401
      %v2403 = vpop.f32.mrf.mxu0
      %v2404 = vadd.f32 %v2315, %v2403
      %2405 = vmatmul.bf16.gmra.mxu0 %v733
      %v2406 = vpop.f32.mrf.mxu0
      %v2407 = vadd.f32 %v2318, %v2406
      %v2408 = vpop.f32.mrf.mxu0
      %v2409 = vadd.f32 %v2320, %v2408
      %2410 = vmatmul.bf16.gmra.mxu0 %v736
      %v2411 = vpop.f32.mrf.mxu0
      %v2412 = vadd.f32 %v2323, %v2411
      %v2413 = vpop.f32.mrf.mxu0
      %v2414 = vadd.f32 %v2325, %v2413
      %2415 = vmatmul.bf16.gmra.mxu0 %v739
      %v2416 = vpop.f32.mrf.mxu0
      %v2417 = vadd.f32 %v2328, %v2416
      %v2418 = vpop.f32.mrf.mxu0
      %v2419 = vadd.f32 %v2330, %v2418
      %2420 = vmatmul.bf16.gmra.mxu0 %v742
      %v2421 = vpop.f32.mrf.mxu0
      %v2422 = vadd.f32 %v2333, %v2421
      %v2423 = vpop.f32.mrf.mxu0
      %v2424 = vadd.f32 %v2335, %v2423
      %2425 = vmatmul.bf16.gmra.mxu0 %v745
      %v2426 = vpop.f32.mrf.mxu0
      %v2427 = vadd.f32 %v2338, %v2426
      %v2428 = vpop.f32.mrf.mxu0
      %v2429 = vadd.f32 %v2340, %v2428
      %2430 = vmatmul.bf16.gmra.mxu0 %v748
      %v2431 = vpop.f32.mrf.mxu0
      %v2432 = vadd.f32 %v2343, %v2431
      %v2433 = vpop.f32.mrf.mxu0
      %v2434 = vadd.f32 %v2345, %v2433
      %2435 = vdwg.mxu0
      %v2438 = vunpack.c.l.b16 %v344
      %v2439 = vunpack.c.l.b16 %v345
      %v2440 = vpack.c.b16 %v2439, %v2438
      %v2443 = vunpack.c.l.b16 %v346
      %v2444 = vpack.c.b16 %v2443, %v2443
      %v2446 = vshrl.u32 %v2440, 16
      %v2448 = vshll.u32 %v2440, 16
      %v2450 = vrot.slane %v2448, 1
      %v2451 = vor.u32 %v2446, %v2450
      %v2453 = vshll.u32 %v2444, 16
      %v2455 = vrot.slane %v2453, 1
      %v2456 = vsel %vm491, %v2451, %v2455
      %v2458 = vrot.slane %v2440, 1
      %v2459 = vrot.slane %v2444, 1
      %v2460 = vsel %vm700, %v2458, %v2459
      %s2462 = scalar_lea.vmem %s1, 768
      %v2463 = vld [vmem:[%s2462] sm:$0xff]
      %v2464 = vld [vmem:[%s2462 + $0x8] sm:$0xff]
      %v2465 = vld [vmem:[%s2462 + $0x10] sm:$0xff]
      %v2466 = vld [vmem:[%s2462 + $0x18] sm:$0xff]
      %v2467 = vld [vmem:[%s2462 + $0x20] sm:$0xff]
      %v2468 = vld [vmem:[%s2462 + $0x28] sm:$0xff]
      %v2469 = vld [vmem:[%s2462 + $0x30] sm:$0xff]
      %v2470 = vld [vmem:[%s2462 + $0x38] sm:$0xff]
      %v2471 = vld [vmem:[%s2462 + $0x40] sm:$0xff]
      %v2472 = vld [vmem:[%s2462 + $0x48] sm:$0xff]
      %v2473 = vld [vmem:[%s2462 + $0x50] sm:$0xff]
      %v2474 = vld [vmem:[%s2462 + $0x58] sm:$0xff]
      %v2475 = vld [vmem:[%s2462 + $0x60] sm:$0xff]
      %v2476 = vld [vmem:[%s2462 + $0x68] sm:$0xff]
      %v2477 = vld [vmem:[%s2462 + $0x70] sm:$0xff]
      %v2478 = vld [vmem:[%s2462 + $0x78] sm:$0xff]
      %v2479 = vld [vmem:[%s2462 + $0x80] sm:$0xff]
      %v2480 = vld [vmem:[%s2462 + $0x88] sm:$0xff]
      %v2481 = vld [vmem:[%s2462 + $0x90] sm:$0xff]
      %v2482 = vld [vmem:[%s2462 + $0x98] sm:$0xff]
      %v2483 = vld [vmem:[%s2462 + $0xa0] sm:$0xff]
      %v2484 = vld [vmem:[%s2462 + $0xa8] sm:$0xff]
      %v2485 = vld [vmem:[%s2462 + $0xb0] sm:$0xff]
      %v2486 = vld [vmem:[%s2462 + $0xb8] sm:$0xff]
      %v2487 = vld [vmem:[%s2462 + $0xc0] sm:$0xff]
      %v2488 = vld [vmem:[%s2462 + $0xc8] sm:$0xff]
      %v2489 = vld [vmem:[%s2462 + $0xd0] sm:$0xff]
      %v2490 = vld [vmem:[%s2462 + $0xd8] sm:$0xff]
      %v2491 = vld [vmem:[%s2462 + $0xe0] sm:$0xff]
      %v2492 = vld [vmem:[%s2462 + $0xe8] sm:$0xff]
      %v2493 = vld [vmem:[%s2462 + $0xf0] sm:$0xff]
      %v2494 = vld [vmem:[%s2462 + $0xf8] sm:$0xff]
      %v2495 = vld [vmem:[%s2462 + $0x100] sm:$0xff]
      %v2496 = vld [vmem:[%s2462 + $0x108] sm:$0xff]
      %v2497 = vld [vmem:[%s2462 + $0x110] sm:$0xff]
      %v2498 = vld [vmem:[%s2462 + $0x118] sm:$0xff]
      %v2499 = vld [vmem:[%s2462 + $0x120] sm:$0xff]
      %v2500 = vld [vmem:[%s2462 + $0x128] sm:$0xff]
      %v2501 = vld [vmem:[%s2462 + $0x130] sm:$0xff]
      %v2502 = vld [vmem:[%s2462 + $0x138] sm:$0xff]
      %v2503 = vld [vmem:[%s2462 + $0x140] sm:$0xff]
      %v2504 = vld [vmem:[%s2462 + $0x148] sm:$0xff]
      %v2505 = vld [vmem:[%s2462 + $0x150] sm:$0xff]
      %v2506 = vld [vmem:[%s2462 + $0x158] sm:$0xff]
      %v2507 = vld [vmem:[%s2462 + $0x160] sm:$0xff]
      %v2508 = vld [vmem:[%s2462 + $0x168] sm:$0xff]
      %v2509 = vld [vmem:[%s2462 + $0x170] sm:$0xff]
      %v2510 = vld [vmem:[%s2462 + $0x178] sm:$0xff]
      %v2559 = vunpack.c.l.b16 %v2463
      %v2560 = vunpack.c.h.b16 %v2463
      %v2561 = vunpack.c.l.b16 %v2464
      %v2562 = vunpack.c.h.b16 %v2464
      %v2563 = vunpack.c.l.b16 %v2465
      %v2564 = vunpack.c.h.b16 %v2465
      %v2565 = vunpack.c.l.b16 %v2466
      %v2566 = vunpack.c.h.b16 %v2466
      %v2567 = vunpack.c.l.b16 %v2467
      %v2568 = vunpack.c.h.b16 %v2467
      %v2569 = vunpack.c.l.b16 %v2468
      %v2570 = vunpack.c.h.b16 %v2468
      %v2571 = vunpack.c.l.b16 %v2469
      %v2572 = vunpack.c.h.b16 %v2469
      %v2573 = vunpack.c.l.b16 %v2470
      %v2574 = vunpack.c.h.b16 %v2470
      %v2575 = vunpack.c.l.b16 %v2471
      %v2576 = vunpack.c.h.b16 %v2471
      %v2577 = vunpack.c.l.b16 %v2472
      %v2578 = vunpack.c.h.b16 %v2472
      %v2579 = vunpack.c.l.b16 %v2473
      %v2580 = vunpack.c.h.b16 %v2473
      %v2581 = vunpack.c.l.b16 %v2474
      %v2582 = vunpack.c.h.b16 %v2474
      %v2583 = vunpack.c.l.b16 %v2475
      %v2584 = vunpack.c.h.b16 %v2475
      %v2585 = vunpack.c.l.b16 %v2476
      %v2586 = vunpack.c.h.b16 %v2476
      %v2587 = vunpack.c.l.b16 %v2477
      %v2588 = vunpack.c.h.b16 %v2477
      %v2589 = vunpack.c.l.b16 %v2478
      %v2590 = vunpack.c.h.b16 %v2478
      %v2591 = vunpack.c.l.b16 %v2479
      %v2592 = vunpack.c.h.b16 %v2479
      %v2593 = vunpack.c.l.b16 %v2480
      %v2594 = vunpack.c.h.b16 %v2480
      %v2595 = vunpack.c.l.b16 %v2481
      %v2596 = vunpack.c.h.b16 %v2481
      %v2597 = vunpack.c.l.b16 %v2482
      %v2598 = vunpack.c.h.b16 %v2482
      %v2599 = vunpack.c.l.b16 %v2483
      %v2600 = vunpack.c.h.b16 %v2483
      %v2601 = vunpack.c.l.b16 %v2484
      %v2602 = vunpack.c.h.b16 %v2484
      %v2603 = vunpack.c.l.b16 %v2485
      %v2604 = vunpack.c.h.b16 %v2485
      %v2605 = vunpack.c.l.b16 %v2486
      %v2606 = vunpack.c.h.b16 %v2486
      %v2607 = vunpack.c.l.b16 %v2487
      %v2608 = vunpack.c.h.b16 %v2487
      %v2609 = vunpack.c.l.b16 %v2488
      %v2610 = vunpack.c.h.b16 %v2488
      %v2611 = vunpack.c.l.b16 %v2489
      %v2612 = vunpack.c.h.b16 %v2489
      %v2613 = vunpack.c.l.b16 %v2490
      %v2614 = vunpack.c.h.b16 %v2490
      %v2615 = vunpack.c.l.b16 %v2491
      %v2616 = vunpack.c.h.b16 %v2491
      %v2617 = vunpack.c.l.b16 %v2492
      %v2618 = vunpack.c.h.b16 %v2492
      %v2619 = vunpack.c.l.b16 %v2493
      %v2620 = vunpack.c.h.b16 %v2493
      %v2621 = vunpack.c.l.b16 %v2494
      %v2622 = vunpack.c.h.b16 %v2494
      %v2623 = vunpack.c.l.b16 %v2495
      %v2624 = vunpack.c.h.b16 %v2495
      %v2625 = vunpack.c.l.b16 %v2496
      %v2626 = vunpack.c.h.b16 %v2496
      %v2627 = vunpack.c.l.b16 %v2497
      %v2628 = vunpack.c.h.b16 %v2497
      %v2629 = vunpack.c.l.b16 %v2498
      %v2630 = vunpack.c.h.b16 %v2498
      %v2631 = vunpack.c.l.b16 %v2499
      %v2632 = vunpack.c.h.b16 %v2499
      %v2633 = vunpack.c.l.b16 %v2500
      %v2634 = vunpack.c.h.b16 %v2500
      %v2635 = vunpack.c.l.b16 %v2501
      %v2636 = vunpack.c.h.b16 %v2501
      %v2637 = vunpack.c.l.b16 %v2502
      %v2638 = vunpack.c.h.b16 %v2502
      %v2639 = vunpack.c.l.b16 %v2503
      %v2640 = vunpack.c.h.b16 %v2503
      %v2641 = vunpack.c.l.b16 %v2504
      %v2642 = vunpack.c.h.b16 %v2504
      %v2643 = vunpack.c.l.b16 %v2505
      %v2644 = vunpack.c.h.b16 %v2505
      %v2645 = vunpack.c.l.b16 %v2506
      %v2646 = vunpack.c.h.b16 %v2506
      %v2647 = vunpack.c.l.b16 %v2507
      %v2648 = vunpack.c.h.b16 %v2507
      %v2649 = vunpack.c.l.b16 %v2508
      %v2650 = vunpack.c.h.b16 %v2508
      %v2651 = vunpack.c.l.b16 %v2509
      %v2652 = vunpack.c.h.b16 %v2509
      %v2653 = vunpack.c.l.b16 %v2510
      %v2654 = vunpack.c.h.b16 %v2510
      %v2655 = vpack.c.b16 %v2561, %v2559
      %v2656 = vpack.c.b16 %v2562, %v2560
      %v2657 = vpack.c.b16 %v2565, %v2563
      %v2658 = vpack.c.b16 %v2566, %v2564
      %v2659 = vpack.c.b16 %v2569, %v2567
      %v2660 = vpack.c.b16 %v2570, %v2568
      %v2661 = vpack.c.b16 %v2573, %v2571
      %v2662 = vpack.c.b16 %v2574, %v2572
      %v2663 = vpack.c.b16 %v2577, %v2575
      %v2664 = vpack.c.b16 %v2578, %v2576
      %v2665 = vpack.c.b16 %v2581, %v2579
      %v2666 = vpack.c.b16 %v2582, %v2580
      %v2667 = vpack.c.b16 %v2585, %v2583
      %v2668 = vpack.c.b16 %v2586, %v2584
      %v2669 = vpack.c.b16 %v2589, %v2587
      %v2670 = vpack.c.b16 %v2590, %v2588
      %v2671 = vpack.c.b16 %v2593, %v2591
      %v2672 = vpack.c.b16 %v2594, %v2592
      %v2673 = vpack.c.b16 %v2597, %v2595
      %v2674 = vpack.c.b16 %v2598, %v2596
      %v2675 = vpack.c.b16 %v2601, %v2599
      %v2676 = vpack.c.b16 %v2602, %v2600
      %v2677 = vpack.c.b16 %v2605, %v2603
      %v2678 = vpack.c.b16 %v2606, %v2604
      %v2679 = vpack.c.b16 %v2609, %v2607
      %v2680 = vpack.c.b16 %v2610, %v2608
      %v2681 = vpack.c.b16 %v2613, %v2611
      %v2682 = vpack.c.b16 %v2614, %v2612
      %v2683 = vpack.c.b16 %v2617, %v2615
      %v2684 = vpack.c.b16 %v2618, %v2616
      %v2685 = vpack.c.b16 %v2621, %v2619
      %v2686 = vpack.c.b16 %v2622, %v2620
      %v2687 = vpack.c.b16 %v2625, %v2623
      %v2688 = vpack.c.b16 %v2626, %v2624
      %v2689 = vpack.c.b16 %v2629, %v2627
      %v2690 = vpack.c.b16 %v2630, %v2628
      %v2691 = vpack.c.b16 %v2633, %v2631
      %v2692 = vpack.c.b16 %v2634, %v2632
      %v2693 = vpack.c.b16 %v2637, %v2635
      %v2694 = vpack.c.b16 %v2638, %v2636
      %v2695 = vpack.c.b16 %v2641, %v2639
      %v2696 = vpack.c.b16 %v2642, %v2640
      %v2697 = vpack.c.b16 %v2645, %v2643
      %v2698 = vpack.c.b16 %v2646, %v2644
      %v2699 = vpack.c.b16 %v2649, %v2647
      %v2700 = vpack.c.b16 %v2650, %v2648
      %v2701 = vpack.c.b16 %v2653, %v2651
      %v2702 = vpack.c.b16 %v2654, %v2652
      %2751 = vmatpush.bf16.msra.mxu0 %v2669
      %2752 = vmatpush.bf16.msra.mxu0 %v2667
      %2753 = vmatpush.bf16.msra.mxu0 %v2665
      %2754 = vmatpush.bf16.msra.mxu0 %v2663
      %2755 = vmatpush.bf16.msra.mxu0 %v2661
      %2756 = vmatpush.bf16.msra.mxu0 %v2659
      %2757 = vmatpush.bf16.msra.mxu0 %v2657
      %2758 = vmatpush.bf16.msra.mxu0 %v2655
      %2759 = vmatmul.bf16.gmra.mxu0 %v413
      %v2760 = vpop.f32.mrf.mxu0
      %v2761 = vadd.f32 0.0, %v2760
      %v2762 = vpop.f32.mrf.mxu0
      %v2763 = vadd.f32 0.0, %v2762
      %2764 = vmatmul.bf16.gmra.mxu0 %v414
      %v2765 = vpop.f32.mrf.mxu0
      %v2766 = vadd.f32 0.0, %v2765
      %v2767 = vpop.f32.mrf.mxu0
      %v2768 = vadd.f32 0.0, %v2767
      %2769 = vmatmul.bf16.gmra.mxu0 %v415
      %v2770 = vpop.f32.mrf.mxu0
      %v2771 = vadd.f32 0.0, %v2770
      %v2772 = vpop.f32.mrf.mxu0
      %v2773 = vadd.f32 0.0, %v2772
      %2774 = vmatmul.bf16.gmra.mxu0 %v416
      %v2775 = vpop.f32.mrf.mxu0
      %v2776 = vadd.f32 0.0, %v2775
      %v2777 = vpop.f32.mrf.mxu0
      %v2778 = vadd.f32 0.0, %v2777
      %2779 = vmatmul.bf16.gmra.mxu0 %v417
      %v2780 = vpop.f32.mrf.mxu0
      %v2781 = vadd.f32 0.0, %v2780
      %v2782 = vpop.f32.mrf.mxu0
      %v2783 = vadd.f32 0.0, %v2782
      %2784 = vmatmul.bf16.gmra.mxu0 %v418
      %v2785 = vpop.f32.mrf.mxu0
      %v2786 = vadd.f32 0.0, %v2785
      %v2787 = vpop.f32.mrf.mxu0
      %v2788 = vadd.f32 0.0, %v2787
      %2789 = vmatmul.bf16.gmra.mxu0 %v419
      %v2790 = vpop.f32.mrf.mxu0
      %v2791 = vadd.f32 0.0, %v2790
      %v2792 = vpop.f32.mrf.mxu0
      %v2793 = vadd.f32 0.0, %v2792
      %2794 = vmatmul.bf16.gmra.mxu0 %v420
      %v2795 = vpop.f32.mrf.mxu0
      %v2796 = vadd.f32 0.0, %v2795
      %v2797 = vpop.f32.mrf.mxu0
      %v2798 = vadd.f32 0.0, %v2797
      %2799 = vmatmul.bf16.gmra.mxu0 %v421
      %v2800 = vpop.f32.mrf.mxu0
      %v2801 = vadd.f32 0.0, %v2800
      %v2802 = vpop.f32.mrf.mxu0
      %v2803 = vadd.f32 0.0, %v2802
      %2804 = vmatmul.bf16.gmra.mxu0 %v422
      %v2805 = vpop.f32.mrf.mxu0
      %v2806 = vadd.f32 0.0, %v2805
      %v2807 = vpop.f32.mrf.mxu0
      %v2808 = vadd.f32 0.0, %v2807
      %2809 = vmatmul.bf16.gmra.mxu0 %v423
      %v2810 = vpop.f32.mrf.mxu0
      %v2811 = vadd.f32 0.0, %v2810
      %v2812 = vpop.f32.mrf.mxu0
      %v2813 = vadd.f32 0.0, %v2812
      %2814 = vmatmul.bf16.gmra.mxu0 %v424
      %v2815 = vpop.f32.mrf.mxu0
      %v2816 = vadd.f32 0.0, %v2815
      %v2817 = vpop.f32.mrf.mxu0
      %v2818 = vadd.f32 0.0, %v2817
      %2819 = vmatmul.bf16.gmra.mxu0 %v425
      %v2820 = vpop.f32.mrf.mxu0
      %v2821 = vadd.f32 0.0, %v2820
      %v2822 = vpop.f32.mrf.mxu0
      %v2823 = vadd.f32 0.0, %v2822
      %2824 = vmatmul.bf16.gmra.mxu0 %v426
      %v2825 = vpop.f32.mrf.mxu0
      %v2826 = vadd.f32 0.0, %v2825
      %v2827 = vpop.f32.mrf.mxu0
      %v2828 = vadd.f32 0.0, %v2827
      %2829 = vmatmul.bf16.gmra.mxu0 %v817
      %v2830 = vpop.f32.mrf.mxu0
      %v2831 = vadd.f32 0.0, %v2830
      %v2832 = vpop.f32.mrf.mxu0
      %v2833 = vadd.f32 0.0, %v2832
      %2834 = vmatmul.bf16.gmra.mxu0 %v2440
      %v2835 = vpop.f32.mrf.mxu0
      %v2836 = vadd.f32 0.0, %v2835
      %v2837 = vpop.f32.mrf.mxu0
      %v2838 = vadd.f32 0.0, %v2837
      %2839 = vdwg.mxu0
      %2840 = vmatpush.bf16.msra.mxu0 %v2685
      %2841 = vmatpush.bf16.msra.mxu0 %v2683
      %2842 = vmatpush.bf16.msra.mxu0 %v2681
      %2843 = vmatpush.bf16.msra.mxu0 %v2679
      %2844 = vmatpush.bf16.msra.mxu0 %v2677
      %2845 = vmatpush.bf16.msra.mxu0 %v2675
      %2846 = vmatpush.bf16.msra.mxu0 %v2673
      %2847 = vmatpush.bf16.msra.mxu0 %v2671
      %2848 = vmatmul.bf16.gmra.mxu0 %v527
      %v2849 = vpop.f32.mrf.mxu0
      %v2850 = vadd.f32 %v2761, %v2849
      %v2851 = vpop.f32.mrf.mxu0
      %v2852 = vadd.f32 %v2763, %v2851
      %2853 = vmatmul.bf16.gmra.mxu0 %v539
      %v2854 = vpop.f32.mrf.mxu0
      %v2855 = vadd.f32 %v2766, %v2854
      %v2856 = vpop.f32.mrf.mxu0
      %v2857 = vadd.f32 %v2768, %v2856
      %2858 = vmatmul.bf16.gmra.mxu0 %v551
      %v2859 = vpop.f32.mrf.mxu0
      %v2860 = vadd.f32 %v2771, %v2859
      %v2861 = vpop.f32.mrf.mxu0
      %v2862 = vadd.f32 %v2773, %v2861
      %2863 = vmatmul.bf16.gmra.mxu0 %v563
      %v2864 = vpop.f32.mrf.mxu0
      %v2865 = vadd.f32 %v2776, %v2864
      %v2866 = vpop.f32.mrf.mxu0
      %v2867 = vadd.f32 %v2778, %v2866
      %2868 = vmatmul.bf16.gmra.mxu0 %v575
      %v2869 = vpop.f32.mrf.mxu0
      %v2870 = vadd.f32 %v2781, %v2869
      %v2871 = vpop.f32.mrf.mxu0
      %v2872 = vadd.f32 %v2783, %v2871
      %2873 = vmatmul.bf16.gmra.mxu0 %v587
      %v2874 = vpop.f32.mrf.mxu0
      %v2875 = vadd.f32 %v2786, %v2874
      %v2876 = vpop.f32.mrf.mxu0
      %v2877 = vadd.f32 %v2788, %v2876
      %2878 = vmatmul.bf16.gmra.mxu0 %v599
      %v2879 = vpop.f32.mrf.mxu0
      %v2880 = vadd.f32 %v2791, %v2879
      %v2881 = vpop.f32.mrf.mxu0
      %v2882 = vadd.f32 %v2793, %v2881
      %2883 = vmatmul.bf16.gmra.mxu0 %v611
      %v2884 = vpop.f32.mrf.mxu0
      %v2885 = vadd.f32 %v2796, %v2884
      %v2886 = vpop.f32.mrf.mxu0
      %v2887 = vadd.f32 %v2798, %v2886
      %2888 = vmatmul.bf16.gmra.mxu0 %v623
      %v2889 = vpop.f32.mrf.mxu0
      %v2890 = vadd.f32 %v2801, %v2889
      %v2891 = vpop.f32.mrf.mxu0
      %v2892 = vadd.f32 %v2803, %v2891
      %2893 = vmatmul.bf16.gmra.mxu0 %v635
      %v2894 = vpop.f32.mrf.mxu0
      %v2895 = vadd.f32 %v2806, %v2894
      %v2896 = vpop.f32.mrf.mxu0
      %v2897 = vadd.f32 %v2808, %v2896
      %2898 = vmatmul.bf16.gmra.mxu0 %v647
      %v2899 = vpop.f32.mrf.mxu0
      %v2900 = vadd.f32 %v2811, %v2899
      %v2901 = vpop.f32.mrf.mxu0
      %v2902 = vadd.f32 %v2813, %v2901
      %2903 = vmatmul.bf16.gmra.mxu0 %v659
      %v2904 = vpop.f32.mrf.mxu0
      %v2905 = vadd.f32 %v2816, %v2904
      %v2906 = vpop.f32.mrf.mxu0
      %v2907 = vadd.f32 %v2818, %v2906
      %2908 = vmatmul.bf16.gmra.mxu0 %v671
      %v2909 = vpop.f32.mrf.mxu0
      %v2910 = vadd.f32 %v2821, %v2909
      %v2911 = vpop.f32.mrf.mxu0
      %v2912 = vadd.f32 %v2823, %v2911
      %2913 = vmatmul.bf16.gmra.mxu0 %v683
      %v2914 = vpop.f32.mrf.mxu0
      %v2915 = vadd.f32 %v2826, %v2914
      %v2916 = vpop.f32.mrf.mxu0
      %v2917 = vadd.f32 %v2828, %v2916
      %2918 = vmatmul.bf16.gmra.mxu0 %v833
      %v2919 = vpop.f32.mrf.mxu0
      %v2920 = vadd.f32 %v2831, %v2919
      %v2921 = vpop.f32.mrf.mxu0
      %v2922 = vadd.f32 %v2833, %v2921
      %2923 = vmatmul.bf16.gmra.mxu0 %v2456
      %v2924 = vpop.f32.mrf.mxu0
      %v2925 = vadd.f32 %v2836, %v2924
      %v2926 = vpop.f32.mrf.mxu0
      %v2927 = vadd.f32 %v2838, %v2926
      %2928 = vdwg.mxu0
      %2929 = vmatpush.bf16.msra.mxu0 %v2701
      %2930 = vmatpush.bf16.msra.mxu0 %v2699
      %2931 = vmatpush.bf16.msra.mxu0 %v2697
      %2932 = vmatpush.bf16.msra.mxu0 %v2695
      %2933 = vmatpush.bf16.msra.mxu0 %v2693
      %2934 = vmatpush.bf16.msra.mxu0 %v2691
      %2935 = vmatpush.bf16.msra.mxu0 %v2689
      %2936 = vmatpush.bf16.msra.mxu0 %v2687
      %2937 = vmatmul.bf16.gmra.mxu0 %v709
      %v2938 = vpop.f32.mrf.mxu0
      %v2939 = vadd.f32 %v2850, %v2938
      %v2940 = vpop.f32.mrf.mxu0
      %v2941 = vadd.f32 %v2852, %v2940
      %2942 = vmatmul.bf16.gmra.mxu0 %v712
      %v2943 = vpop.f32.mrf.mxu0
      %v2944 = vadd.f32 %v2855, %v2943
      %v2945 = vpop.f32.mrf.mxu0
      %v2946 = vadd.f32 %v2857, %v2945
      %2947 = vmatmul.bf16.gmra.mxu0 %v715
      %v2948 = vpop.f32.mrf.mxu0
      %v2949 = vadd.f32 %v2860, %v2948
      %v2950 = vpop.f32.mrf.mxu0
      %v2951 = vadd.f32 %v2862, %v2950
      %2952 = vmatmul.bf16.gmra.mxu0 %v718
      %v2953 = vpop.f32.mrf.mxu0
      %v2954 = vadd.f32 %v2865, %v2953
      %v2955 = vpop.f32.mrf.mxu0
      %v2956 = vadd.f32 %v2867, %v2955
      %2957 = vmatmul.bf16.gmra.mxu0 %v721
      %v2958 = vpop.f32.mrf.mxu0
      %v2959 = vadd.f32 %v2870, %v2958
      %v2960 = vpop.f32.mrf.mxu0
      %v2961 = vadd.f32 %v2872, %v2960
      %2962 = vmatmul.bf16.gmra.mxu0 %v724
      %v2963 = vpop.f32.mrf.mxu0
      %v2964 = vadd.f32 %v2875, %v2963
      %v2965 = vpop.f32.mrf.mxu0
      %v2966 = vadd.f32 %v2877, %v2965
      %2967 = vmatmul.bf16.gmra.mxu0 %v727
      %v2968 = vpop.f32.mrf.mxu0
      %v2969 = vadd.f32 %v2880, %v2968
      %v2970 = vpop.f32.mrf.mxu0
      %v2971 = vadd.f32 %v2882, %v2970
      %2972 = vmatmul.bf16.gmra.mxu0 %v730
      %v2973 = vpop.f32.mrf.mxu0
      %v2974 = vadd.f32 %v2885, %v2973
      %v2975 = vpop.f32.mrf.mxu0
      %v2976 = vadd.f32 %v2887, %v2975
      %2977 = vmatmul.bf16.gmra.mxu0 %v733
      %v2978 = vpop.f32.mrf.mxu0
      %v2979 = vadd.f32 %v2890, %v2978
      %v2980 = vpop.f32.mrf.mxu0
      %v2981 = vadd.f32 %v2892, %v2980
      %2982 = vmatmul.bf16.gmra.mxu0 %v736
      %v2983 = vpop.f32.mrf.mxu0
      %v2984 = vadd.f32 %v2895, %v2983
      %v2985 = vpop.f32.mrf.mxu0
      %v2986 = vadd.f32 %v2897, %v2985
      %2987 = vmatmul.bf16.gmra.mxu0 %v739
      %v2988 = vpop.f32.mrf.mxu0
      %v2989 = vadd.f32 %v2900, %v2988
      %v2990 = vpop.f32.mrf.mxu0
      %v2991 = vadd.f32 %v2902, %v2990
      %2992 = vmatmul.bf16.gmra.mxu0 %v742
      %v2993 = vpop.f32.mrf.mxu0
      %v2994 = vadd.f32 %v2905, %v2993
      %v2995 = vpop.f32.mrf.mxu0
      %v2996 = vadd.f32 %v2907, %v2995
      %2997 = vmatmul.bf16.gmra.mxu0 %v745
      %v2998 = vpop.f32.mrf.mxu0
      %v2999 = vadd.f32 %v2910, %v2998
      %v3000 = vpop.f32.mrf.mxu0
      %v3001 = vadd.f32 %v2912, %v3000
      %3002 = vmatmul.bf16.gmra.mxu0 %v748
      %v3003 = vpop.f32.mrf.mxu0
      %v3004 = vadd.f32 %v2915, %v3003
      %v3005 = vpop.f32.mrf.mxu0
      %v3006 = vadd.f32 %v2917, %v3005
      %3007 = vmatmul.bf16.gmra.mxu0 %v837
      %v3008 = vpop.f32.mrf.mxu0
      %v3009 = vadd.f32 %v2920, %v3008
      %v3010 = vpop.f32.mrf.mxu0
      %v3011 = vadd.f32 %v2922, %v3010
      %3012 = vmatmul.bf16.gmra.mxu0 %v2460
      %v3013 = vpop.f32.mrf.mxu0
      %v3014 = vadd.f32 %v2925, %v3013
      %v3015 = vpop.f32.mrf.mxu0
      %v3016 = vadd.f32 %v2927, %v3015
      %3017 = vdwg.mxu0
      %3018 = vmatpush.bf16.msra.mxu0 %v2670
      %3019 = vmatpush.bf16.msra.mxu0 %v2668
      %3020 = vmatpush.bf16.msra.mxu0 %v2666
      %3021 = vmatpush.bf16.msra.mxu0 %v2664
      %3022 = vmatpush.bf16.msra.mxu0 %v2662
      %3023 = vmatpush.bf16.msra.mxu0 %v2660
      %3024 = vmatpush.bf16.msra.mxu0 %v2658
      %3025 = vmatpush.bf16.msra.mxu0 %v2656
      %3026 = vmatmul.bf16.gmra.mxu0 %v413
      %v3027 = vpop.f32.mrf.mxu0
      %v3028 = vadd.f32 0.0, %v3027
      %v3029 = vpop.f32.mrf.mxu0
      %v3030 = vadd.f32 0.0, %v3029
      %3031 = vmatmul.bf16.gmra.mxu0 %v414
      %v3032 = vpop.f32.mrf.mxu0
      %v3033 = vadd.f32 0.0, %v3032
      %v3034 = vpop.f32.mrf.mxu0
      %v3035 = vadd.f32 0.0, %v3034
      %3036 = vmatmul.bf16.gmra.mxu0 %v415
      %v3037 = vpop.f32.mrf.mxu0
      %v3038 = vadd.f32 0.0, %v3037
      %v3039 = vpop.f32.mrf.mxu0
      %v3040 = vadd.f32 0.0, %v3039
      %3041 = vmatmul.bf16.gmra.mxu0 %v416
      %v3042 = vpop.f32.mrf.mxu0
      %v3043 = vadd.f32 0.0, %v3042
      %v3044 = vpop.f32.mrf.mxu0
      %v3045 = vadd.f32 0.0, %v3044
      %3046 = vmatmul.bf16.gmra.mxu0 %v417
      %v3047 = vpop.f32.mrf.mxu0
      %v3048 = vadd.f32 0.0, %v3047
      %v3049 = vpop.f32.mrf.mxu0
      %v3050 = vadd.f32 0.0, %v3049
      %3051 = vmatmul.bf16.gmra.mxu0 %v418
      %v3052 = vpop.f32.mrf.mxu0
      %v3053 = vadd.f32 0.0, %v3052
      %v3054 = vpop.f32.mrf.mxu0
      %v3055 = vadd.f32 0.0, %v3054
      %3056 = vmatmul.bf16.gmra.mxu0 %v419
      %v3057 = vpop.f32.mrf.mxu0
      %v3058 = vadd.f32 0.0, %v3057
      %v3059 = vpop.f32.mrf.mxu0
      %v3060 = vadd.f32 0.0, %v3059
      %3061 = vmatmul.bf16.gmra.mxu0 %v420
      %v3062 = vpop.f32.mrf.mxu0
      %v3063 = vadd.f32 0.0, %v3062
      %v3064 = vpop.f32.mrf.mxu0
      %v3065 = vadd.f32 0.0, %v3064
      %3066 = vmatmul.bf16.gmra.mxu0 %v421
      %v3067 = vpop.f32.mrf.mxu0
      %v3068 = vadd.f32 0.0, %v3067
      %v3069 = vpop.f32.mrf.mxu0
      %v3070 = vadd.f32 0.0, %v3069
      %3071 = vmatmul.bf16.gmra.mxu0 %v422
      %v3072 = vpop.f32.mrf.mxu0
      %v3073 = vadd.f32 0.0, %v3072
      %v3074 = vpop.f32.mrf.mxu0
      %v3075 = vadd.f32 0.0, %v3074
      %3076 = vmatmul.bf16.gmra.mxu0 %v423
      %v3077 = vpop.f32.mrf.mxu0
      %v3078 = vadd.f32 0.0, %v3077
      %v3079 = vpop.f32.mrf.mxu0
      %v3080 = vadd.f32 0.0, %v3079
      %3081 = vmatmul.bf16.gmra.mxu0 %v424
      %v3082 = vpop.f32.mrf.mxu0
      %v3083 = vadd.f32 0.0, %v3082
      %v3084 = vpop.f32.mrf.mxu0
      %v3085 = vadd.f32 0.0, %v3084
      %3086 = vmatmul.bf16.gmra.mxu0 %v425
      %v3087 = vpop.f32.mrf.mxu0
      %v3088 = vadd.f32 0.0, %v3087
      %v3089 = vpop.f32.mrf.mxu0
      %v3090 = vadd.f32 0.0, %v3089
      %3091 = vmatmul.bf16.gmra.mxu0 %v426
      %v3092 = vpop.f32.mrf.mxu0
      %v3093 = vadd.f32 0.0, %v3092
      %v3094 = vpop.f32.mrf.mxu0
      %v3095 = vadd.f32 0.0, %v3094
      %3096 = vmatmul.bf16.gmra.mxu0 %v817
      %v3097 = vpop.f32.mrf.mxu0
      %v3098 = vadd.f32 0.0, %v3097
      %v3099 = vpop.f32.mrf.mxu0
      %v3100 = vadd.f32 0.0, %v3099
      %3101 = vmatmul.bf16.gmra.mxu0 %v2440
      %v3102 = vpop.f32.mrf.mxu0
      %v3103 = vadd.f32 0.0, %v3102
      %v3104 = vpop.f32.mrf.mxu0
      %v3105 = vadd.f32 0.0, %v3104
      %3106 = vdwg.mxu0
      %3107 = vmatpush.bf16.msra.mxu0 %v2686
      %3108 = vmatpush.bf16.msra.mxu0 %v2684
      %3109 = vmatpush.bf16.msra.mxu0 %v2682
      %3110 = vmatpush.bf16.msra.mxu0 %v2680
      %3111 = vmatpush.bf16.msra.mxu0 %v2678
      %3112 = vmatpush.bf16.msra.mxu0 %v2676
      %3113 = vmatpush.bf16.msra.mxu0 %v2674
      %3114 = vmatpush.bf16.msra.mxu0 %v2672
      %3115 = vmatmul.bf16.gmra.mxu0 %v527
      %v3116 = vpop.f32.mrf.mxu0
      %v3117 = vadd.f32 %v3028, %v3116
      %v3118 = vpop.f32.mrf.mxu0
      %v3119 = vadd.f32 %v3030, %v3118
      %3120 = vmatmul.bf16.gmra.mxu0 %v539
      %v3121 = vpop.f32.mrf.mxu0
      %v3122 = vadd.f32 %v3033, %v3121
      %v3123 = vpop.f32.mrf.mxu0
      %v3124 = vadd.f32 %v3035, %v3123
      %3125 = vmatmul.bf16.gmra.mxu0 %v551
      %v3126 = vpop.f32.mrf.mxu0
      %v3127 = vadd.f32 %v3038, %v3126
      %v3128 = vpop.f32.mrf.mxu0
      %v3129 = vadd.f32 %v3040, %v3128
      %3130 = vmatmul.bf16.gmra.mxu0 %v563
      %v3131 = vpop.f32.mrf.mxu0
      %v3132 = vadd.f32 %v3043, %v3131
      %v3133 = vpop.f32.mrf.mxu0
      %v3134 = vadd.f32 %v3045, %v3133
      %3135 = vmatmul.bf16.gmra.mxu0 %v575
      %v3136 = vpop.f32.mrf.mxu0
      %v3137 = vadd.f32 %v3048, %v3136
      %v3138 = vpop.f32.mrf.mxu0
      %v3139 = vadd.f32 %v3050, %v3138
      %3140 = vmatmul.bf16.gmra.mxu0 %v587
      %v3141 = vpop.f32.mrf.mxu0
      %v3142 = vadd.f32 %v3053, %v3141
      %v3143 = vpop.f32.mrf.mxu0
      %v3144 = vadd.f32 %v3055, %v3143
      %3145 = vmatmul.bf16.gmra.mxu0 %v599
      %v3146 = vpop.f32.mrf.mxu0
      %v3147 = vadd.f32 %v3058, %v3146
      %v3148 = vpop.f32.mrf.mxu0
      %v3149 = vadd.f32 %v3060, %v3148
      %3150 = vmatmul.bf16.gmra.mxu0 %v611
      %v3151 = vpop.f32.mrf.mxu0
      %v3152 = vadd.f32 %v3063, %v3151
      %v3153 = vpop.f32.mrf.mxu0
      %v3154 = vadd.f32 %v3065, %v3153
      %3155 = vmatmul.bf16.gmra.mxu0 %v623
      %v3156 = vpop.f32.mrf.mxu0
      %v3157 = vadd.f32 %v3068, %v3156
      %v3158 = vpop.f32.mrf.mxu0
      %v3159 = vadd.f32 %v3070, %v3158
      %3160 = vmatmul.bf16.gmra.mxu0 %v635
      %v3161 = vpop.f32.mrf.mxu0
      %v3162 = vadd.f32 %v3073, %v3161
      %v3163 = vpop.f32.mrf.mxu0
      %v3164 = vadd.f32 %v3075, %v3163
      %3165 = vmatmul.bf16.gmra.mxu0 %v647
      %v3166 = vpop.f32.mrf.mxu0
      %v3167 = vadd.f32 %v3078, %v3166
      %v3168 = vpop.f32.mrf.mxu0
      %v3169 = vadd.f32 %v3080, %v3168
      %3170 = vmatmul.bf16.gmra.mxu0 %v659
      %v3171 = vpop.f32.mrf.mxu0
      %v3172 = vadd.f32 %v3083, %v3171
      %v3173 = vpop.f32.mrf.mxu0
      %v3174 = vadd.f32 %v3085, %v3173
      %3175 = vmatmul.bf16.gmra.mxu0 %v671
      %v3176 = vpop.f32.mrf.mxu0
      %v3177 = vadd.f32 %v3088, %v3176
      %v3178 = vpop.f32.mrf.mxu0
      %v3179 = vadd.f32 %v3090, %v3178
      %3180 = vmatmul.bf16.gmra.mxu0 %v683
      %v3181 = vpop.f32.mrf.mxu0
      %v3182 = vadd.f32 %v3093, %v3181
      %v3183 = vpop.f32.mrf.mxu0
      %v3184 = vadd.f32 %v3095, %v3183
      %3185 = vmatmul.bf16.gmra.mxu0 %v833
      %v3186 = vpop.f32.mrf.mxu0
      %v3187 = vadd.f32 %v3098, %v3186
      %v3188 = vpop.f32.mrf.mxu0
      %v3189 = vadd.f32 %v3100, %v3188
      %3190 = vmatmul.bf16.gmra.mxu0 %v2456
      %v3191 = vpop.f32.mrf.mxu0
      %v3192 = vadd.f32 %v3103, %v3191
      %v3193 = vpop.f32.mrf.mxu0
      %v3194 = vadd.f32 %v3105, %v3193
      %3195 = vdwg.mxu0
      %3196 = vmatpush.bf16.msra.mxu0 %v2702
      %3197 = vmatpush.bf16.msra.mxu0 %v2700
      %3198 = vmatpush.bf16.msra.mxu0 %v2698
      %3199 = vmatpush.bf16.msra.mxu0 %v2696
      %3200 = vmatpush.bf16.msra.mxu0 %v2694
      %3201 = vmatpush.bf16.msra.mxu0 %v2692
      %3202 = vmatpush.bf16.msra.mxu0 %v2690
      %3203 = vmatpush.bf16.msra.mxu0 %v2688
      %3204 = vmatmul.bf16.gmra.mxu0 %v709
      %v3205 = vpop.f32.mrf.mxu0
      %v3206 = vadd.f32 %v3117, %v3205
      %v3207 = vpop.f32.mrf.mxu0
      %v3208 = vadd.f32 %v3119, %v3207
      %3209 = vmatmul.bf16.gmra.mxu0 %v712
      %v3210 = vpop.f32.mrf.mxu0
      %v3211 = vadd.f32 %v3122, %v3210
      %v3212 = vpop.f32.mrf.mxu0
      %v3213 = vadd.f32 %v3124, %v3212
      %3214 = vmatmul.bf16.gmra.mxu0 %v715
      %v3215 = vpop.f32.mrf.mxu0
      %v3216 = vadd.f32 %v3127, %v3215
      %v3217 = vpop.f32.mrf.mxu0
      %v3218 = vadd.f32 %v3129, %v3217
      %3219 = vmatmul.bf16.gmra.mxu0 %v718
      %v3220 = vpop.f32.mrf.mxu0
      %v3221 = vadd.f32 %v3132, %v3220
      %v3222 = vpop.f32.mrf.mxu0
      %v3223 = vadd.f32 %v3134, %v3222
      %3224 = vmatmul.bf16.gmra.mxu0 %v721
      %v3225 = vpop.f32.mrf.mxu0
      %v3226 = vadd.f32 %v3137, %v3225
      %v3227 = vpop.f32.mrf.mxu0
      %v3228 = vadd.f32 %v3139, %v3227
      %3229 = vmatmul.bf16.gmra.mxu0 %v724
      %v3230 = vpop.f32.mrf.mxu0
      %v3231 = vadd.f32 %v3142, %v3230
      %v3232 = vpop.f32.mrf.mxu0
      %v3233 = vadd.f32 %v3144, %v3232
      %3234 = vmatmul.bf16.gmra.mxu0 %v727
      %v3235 = vpop.f32.mrf.mxu0
      %v3236 = vadd.f32 %v3147, %v3235
      %v3237 = vpop.f32.mrf.mxu0
      %v3238 = vadd.f32 %v3149, %v3237
      %3239 = vmatmul.bf16.gmra.mxu0 %v730
      %v3240 = vpop.f32.mrf.mxu0
      %v3241 = vadd.f32 %v3152, %v3240
      %v3242 = vpop.f32.mrf.mxu0
      %v3243 = vadd.f32 %v3154, %v3242
      %3244 = vmatmul.bf16.gmra.mxu0 %v733
      %v3245 = vpop.f32.mrf.mxu0
      %v3246 = vadd.f32 %v3157, %v3245
      %v3247 = vpop.f32.mrf.mxu0
      %v3248 = vadd.f32 %v3159, %v3247
      %3249 = vmatmul.bf16.gmra.mxu0 %v736
      %v3250 = vpop.f32.mrf.mxu0
      %v3251 = vadd.f32 %v3162, %v3250
      %v3252 = vpop.f32.mrf.mxu0
      %v3253 = vadd.f32 %v3164, %v3252
      %3254 = vmatmul.bf16.gmra.mxu0 %v739
      %v3255 = vpop.f32.mrf.mxu0
      %v3256 = vadd.f32 %v3167, %v3255
      %v3257 = vpop.f32.mrf.mxu0
      %v3258 = vadd.f32 %v3169, %v3257
      %3259 = vmatmul.bf16.gmra.mxu0 %v742
      %v3260 = vpop.f32.mrf.mxu0
      %v3261 = vadd.f32 %v3172, %v3260
      %v3262 = vpop.f32.mrf.mxu0
      %v3263 = vadd.f32 %v3174, %v3262
      %3264 = vmatmul.bf16.gmra.mxu0 %v745
      %v3265 = vpop.f32.mrf.mxu0
      %v3266 = vadd.f32 %v3177, %v3265
      %v3267 = vpop.f32.mrf.mxu0
      %v3268 = vadd.f32 %v3179, %v3267
      %3269 = vmatmul.bf16.gmra.mxu0 %v748
      %v3270 = vpop.f32.mrf.mxu0
      %v3271 = vadd.f32 %v3182, %v3270
      %v3272 = vpop.f32.mrf.mxu0
      %v3273 = vadd.f32 %v3184, %v3272
      %3274 = vmatmul.bf16.gmra.mxu0 %v837
      %v3275 = vpop.f32.mrf.mxu0
      %v3276 = vadd.f32 %v3187, %v3275
      %v3277 = vpop.f32.mrf.mxu0
      %v3278 = vadd.f32 %v3189, %v3277
      %3279 = vmatmul.bf16.gmra.mxu0 %v2460
      %v3280 = vpop.f32.mrf.mxu0
      %v3281 = vadd.f32 %v3192, %v3280
      %v3282 = vpop.f32.mrf.mxu0
      %v3283 = vadd.f32 %v3194, %v3282
      %3284 = vdwg.mxu0
      %v3285 = vadd.f32 %v2090, %v2939
      %v3286 = vadd.f32 %v2357, %v3206
      %v3287 = vadd.f32 %v2092, %v2941
      %v3288 = vadd.f32 %v2359, %v3208
      %v3289 = vadd.f32 %v2095, %v2944
      %v3290 = vadd.f32 %v2362, %v3211
      %v3291 = vadd.f32 %v2097, %v2946
      %v3292 = vadd.f32 %v2364, %v3213
      %v3293 = vadd.f32 %v2100, %v2949
      %v3294 = vadd.f32 %v2367, %v3216
      %v3295 = vadd.f32 %v2102, %v2951
      %v3296 = vadd.f32 %v2369, %v3218
      %v3297 = vadd.f32 %v2105, %v2954
      %v3298 = vadd.f32 %v2372, %v3221
      %v3299 = vadd.f32 %v2107, %v2956
      %v3300 = vadd.f32 %v2374, %v3223
      %v3301 = vadd.f32 %v2110, %v2959
      %v3302 = vadd.f32 %v2377, %v3226
      %v3303 = vadd.f32 %v2112, %v2961
      %v3304 = vadd.f32 %v2379, %v3228
      %v3305 = vadd.f32 %v2115, %v2964
      %v3306 = vadd.f32 %v2382, %v3231
      %v3307 = vadd.f32 %v2117, %v2966
      %v3308 = vadd.f32 %v2384, %v3233
      %v3309 = vadd.f32 %v2120, %v2969
      %v3310 = vadd.f32 %v2387, %v3236
      %v3311 = vadd.f32 %v2122, %v2971
      %v3312 = vadd.f32 %v2389, %v3238
      %v3313 = vadd.f32 %v2125, %v2974
      %v3314 = vadd.f32 %v2392, %v3241
      %v3315 = vadd.f32 %v2127, %v2976
      %v3316 = vadd.f32 %v2394, %v3243
      %v3317 = vadd.f32 %v2130, %v2979
      %v3318 = vadd.f32 %v2397, %v3246
      %v3319 = vadd.f32 %v2132, %v2981
      %v3320 = vadd.f32 %v2399, %v3248
      %v3321 = vadd.f32 %v2135, %v2984
      %v3322 = vadd.f32 %v2402, %v3251
      %v3323 = vadd.f32 %v2137, %v2986
      %v3324 = vadd.f32 %v2404, %v3253
      %v3325 = vadd.f32 %v2140, %v2989
      %v3326 = vadd.f32 %v2407, %v3256
      %v3327 = vadd.f32 %v2142, %v2991
      %v3328 = vadd.f32 %v2409, %v3258
      %v3329 = vadd.f32 %v2145, %v2994
      %v3330 = vadd.f32 %v2412, %v3261
      %v3331 = vadd.f32 %v2147, %v2996
      %v3332 = vadd.f32 %v2414, %v3263
      %v3333 = vadd.f32 %v2150, %v2999
      %v3334 = vadd.f32 %v2417, %v3266
      %v3335 = vadd.f32 %v2152, %v3001
      %v3336 = vadd.f32 %v2419, %v3268
      %v3337 = vadd.f32 %v2155, %v3004
      %v3338 = vadd.f32 %v2422, %v3271
      %v3339 = vadd.f32 %v2157, %v3006
      %v3340 = vadd.f32 %v2424, %v3273
      %v3341 = vadd.f32 %v2160, %v3009
      %v3342 = vadd.f32 %v2427, %v3276
      %v3343 = vadd.f32 %v2162, %v3011
      %v3344 = vadd.f32 %v2429, %v3278
      %v3345 = vadd.f32 %v2165, %v3014
      %v3346 = vadd.f32 %v2432, %v3281
      %v3347 = vadd.f32 %v2167, %v3016
      %v3348 = vadd.f32 %v2434, %v3283
      %v3349 = vpack.c.bf16 %v3285, %v3285
      %v3350 = vpack.c.bf16 %v3287, %v3287
      %v3351 = vpack.c.bf16 %v3289, %v3289
      %v3352 = vpack.c.bf16 %v3291, %v3291
      %v3353 = vpack.c.bf16 %v3293, %v3293
      %v3354 = vpack.c.bf16 %v3295, %v3295
      %v3355 = vpack.c.bf16 %v3297, %v3297
      %v3356 = vpack.c.bf16 %v3299, %v3299
      %v3357 = vpack.c.bf16 %v3301, %v3301
      %v3358 = vpack.c.bf16 %v3303, %v3303
      %v3359 = vpack.c.bf16 %v3305, %v3305
      %v3360 = vpack.c.bf16 %v3307, %v3307
      %v3361 = vpack.c.bf16 %v3309, %v3309
      %v3362 = vpack.c.bf16 %v3311, %v3311
      %v3363 = vpack.c.bf16 %v3313, %v3313
      %v3364 = vpack.c.bf16 %v3315, %v3315
      %v3365 = vpack.c.bf16 %v3317, %v3317
      %v3366 = vpack.c.bf16 %v3319, %v3319
      %v3367 = vpack.c.bf16 %v3321, %v3321
      %v3368 = vpack.c.bf16 %v3323, %v3323
      %v3369 = vpack.c.bf16 %v3325, %v3325
      %v3370 = vpack.c.bf16 %v3327, %v3327
      %v3371 = vpack.c.bf16 %v3329, %v3329
      %v3372 = vpack.c.bf16 %v3331, %v3331
      %v3373 = vpack.c.bf16 %v3333, %v3333
      %v3374 = vpack.c.bf16 %v3335, %v3335
      %v3375 = vpack.c.bf16 %v3337, %v3337
      %v3376 = vpack.c.bf16 %v3339, %v3339
      %v3377 = vpack.c.bf16 %v3341, %v3341
      %v3378 = vpack.c.bf16 %v3343, %v3343
      %v3379 = vpack.c.bf16 %v3345, %v3345
      %v3380 = vpack.c.bf16 %v3347, %v3347
      %3381 = vst [vmem:[%s270] sm:$0xf] %v3349
      %3382 = vst [vmem:[%s270 + $0x4] sm:$0xf] %v3350
      %3383 = vst [vmem:[%s270 + $0x8] sm:$0xf] %v3351
      %3384 = vst [vmem:[%s270 + $0xc] sm:$0xf] %v3352
      %3385 = vst [vmem:[%s270 + $0x10] sm:$0xf] %v3353
      %3386 = vst [vmem:[%s270 + $0x14] sm:$0xf] %v3354
      %3387 = vst [vmem:[%s270 + $0x18] sm:$0xf] %v3355
      %3388 = vst [vmem:[%s270 + $0x1c] sm:$0xf] %v3356
      %3389 = vst [vmem:[%s270 + $0x20] sm:$0xf] %v3357
      %3390 = vst [vmem:[%s270 + $0x24] sm:$0xf] %v3358
      %3391 = vst [vmem:[%s270 + $0x28] sm:$0xf] %v3359
      %3392 = vst [vmem:[%s270 + $0x2c] sm:$0xf] %v3360
      %3393 = vst [vmem:[%s270 + $0x30] sm:$0xf] %v3361
      %3394 = vst [vmem:[%s270 + $0x34] sm:$0xf] %v3362
      %3395 = vst [vmem:[%s270 + $0x38] sm:$0xf] %v3363
      %3396 = vst [vmem:[%s270 + $0x3c] sm:$0xf] %v3364
      %3397 = vst [vmem:[%s270 + $0x40] sm:$0xf] %v3365
      %3398 = vst [vmem:[%s270 + $0x44] sm:$0xf] %v3366
      %3399 = vst [vmem:[%s270 + $0x48] sm:$0xf] %v3367
      %3400 = vst [vmem:[%s270 + $0x4c] sm:$0xf] %v3368
      %3401 = vst [vmem:[%s270 + $0x50] sm:$0xf] %v3369
      %3402 = vst [vmem:[%s270 + $0x54] sm:$0xf] %v3370
      %3403 = vst [vmem:[%s270 + $0x58] sm:$0xf] %v3371
      %3404 = vst [vmem:[%s270 + $0x5c] sm:$0xf] %v3372
      %3405 = vst [vmem:[%s270 + $0x60] sm:$0xf] %v3373
      %3406 = vst [vmem:[%s270 + $0x64] sm:$0xf] %v3374
      %3407 = vst [vmem:[%s270 + $0x68] sm:$0xf] %v3375
      %3408 = vst [vmem:[%s270 + $0x6c] sm:$0xf] %v3376
      %3409 = vst [vmem:[%s270 + $0x70] sm:$0xf] %v3377
      %3410 = vst [vmem:[%s270 + $0x74] sm:$0xf] %v3378
      %3411 = vst [vmem:[%s270 + $0x78] sm:$0xf] %v3379
      %3412 = vst [vmem:[%s270 + $0x7c] sm:$0xf] %v3380
      %v3413 = vpack.c.bf16 %v3286, %v3286
      %v3414 = vpack.c.bf16 %v3288, %v3288
      %v3415 = vpack.c.bf16 %v3290, %v3290
      %v3416 = vpack.c.bf16 %v3292, %v3292
      %v3417 = vpack.c.bf16 %v3294, %v3294
      %v3418 = vpack.c.bf16 %v3296, %v3296
      %v3419 = vpack.c.bf16 %v3298, %v3298
      %v3420 = vpack.c.bf16 %v3300, %v3300
      %v3421 = vpack.c.bf16 %v3302, %v3302
      %v3422 = vpack.c.bf16 %v3304, %v3304
      %v3423 = vpack.c.bf16 %v3306, %v3306
      %v3424 = vpack.c.bf16 %v3308, %v3308
      %v3425 = vpack.c.bf16 %v3310, %v3310
      %v3426 = vpack.c.bf16 %v3312, %v3312
      %v3427 = vpack.c.bf16 %v3314, %v3314
      %v3428 = vpack.c.bf16 %v3316, %v3316
      %v3429 = vpack.c.bf16 %v3318, %v3318
      %v3430 = vpack.c.bf16 %v3320, %v3320
      %v3431 = vpack.c.bf16 %v3322, %v3322
      %v3432 = vpack.c.bf16 %v3324, %v3324
      %v3433 = vpack.c.bf16 %v3326, %v3326
      %v3434 = vpack.c.bf16 %v3328, %v3328
      %v3435 = vpack.c.bf16 %v3330, %v3330
      %v3436 = vpack.c.bf16 %v3332, %v3332
      %v3437 = vpack.c.bf16 %v3334, %v3334
      %v3438 = vpack.c.bf16 %v3336, %v3336
      %v3439 = vpack.c.bf16 %v3338, %v3338
      %v3440 = vpack.c.bf16 %v3340, %v3340
      %v3441 = vpack.c.bf16 %v3342, %v3342
      %v3442 = vpack.c.bf16 %v3344, %v3344
      %v3443 = vpack.c.bf16 %v3346, %v3346
      %v3444 = vpack.c.bf16 %v3348, %v3348
      %3445 = vst [vmem:[%s277] sm:$0xf] %v3413
      %3446 = vst [vmem:[%s277 + $0x4] sm:$0xf] %v3414
      %3447 = vst [vmem:[%s277 + $0x8] sm:$0xf] %v3415
      %3448 = vst [vmem:[%s277 + $0xc] sm:$0xf] %v3416
      %3449 = vst [vmem:[%s277 + $0x10] sm:$0xf] %v3417
      %3450 = vst [vmem:[%s277 + $0x14] sm:$0xf] %v3418
      %3451 = vst [vmem:[%s277 + $0x18] sm:$0xf] %v3419
      %3452 = vst [vmem:[%s277 + $0x1c] sm:$0xf] %v3420
      %3453 = vst [vmem:[%s277 + $0x20] sm:$0xf] %v3421
      %3454 = vst [vmem:[%s277 + $0x24] sm:$0xf] %v3422
      %3455 = vst [vmem:[%s277 + $0x28] sm:$0xf] %v3423
      %3456 = vst [vmem:[%s277 + $0x2c] sm:$0xf] %v3424
      %3457 = vst [vmem:[%s277 + $0x30] sm:$0xf] %v3425
      %3458 = vst [vmem:[%s277 + $0x34] sm:$0xf] %v3426
      %3459 = vst [vmem:[%s277 + $0x38] sm:$0xf] %v3427
      %3460 = vst [vmem:[%s277 + $0x3c] sm:$0xf] %v3428
      %3461 = vst [vmem:[%s277 + $0x40] sm:$0xf] %v3429
      %3462 = vst [vmem:[%s277 + $0x44] sm:$0xf] %v3430
      %3463 = vst [vmem:[%s277 + $0x48] sm:$0xf] %v3431
      %3464 = vst [vmem:[%s277 + $0x4c] sm:$0xf] %v3432
      %3465 = vst [vmem:[%s277 + $0x50] sm:$0xf] %v3433
      %3466 = vst [vmem:[%s277 + $0x54] sm:$0xf] %v3434
      %3467 = vst [vmem:[%s277 + $0x58] sm:$0xf] %v3435
      %3468 = vst [vmem:[%s277 + $0x5c] sm:$0xf] %v3436
      %3469 = vst [vmem:[%s277 + $0x60] sm:$0xf] %v3437
      %3470 = vst [vmem:[%s277 + $0x64] sm:$0xf] %v3438
      %3471 = vst [vmem:[%s277 + $0x68] sm:$0xf] %v3439
      %3472 = vst [vmem:[%s277 + $0x6c] sm:$0xf] %v3440
      %3473 = vst [vmem:[%s277 + $0x70] sm:$0xf] %v3441
      %3474 = vst [vmem:[%s277 + $0x74] sm:$0xf] %v3442
      %3475 = vst [vmem:[%s277 + $0x78] sm:$0xf] %v3443
      %3476 = vst [vmem:[%s277 + $0x7c] sm:$0xf] %v3444
      %v3477 = vld [vmem:[%s282] sm:$0x3]
      %v3478 = vadd.f32 %v3285, %v3287
      %v3479 = vadd.f32 %v3478, %v3289
      %v3480 = vadd.f32 %v3479, %v3291
      %v3481 = vadd.f32 %v3480, %v3293
      %v3482 = vadd.f32 %v3481, %v3295
      %v3483 = vadd.f32 %v3482, %v3297
      %v3484 = vadd.f32 %v3483, %v3299
      %v3485 = vadd.f32 %v3484, %v3301
      %v3486 = vadd.f32 %v3485, %v3303
      %v3487 = vadd.f32 %v3486, %v3305
      %v3488 = vadd.f32 %v3487, %v3307
      %v3489 = vadd.f32 %v3488, %v3309
      %v3490 = vadd.f32 %v3489, %v3311
      %v3491 = vadd.f32 %v3490, %v3313
      %v3492 = vadd.f32 %v3491, %v3315
      %v3493 = vadd.f32 %v3492, %v3317
      %v3494 = vadd.f32 %v3493, %v3319
      %v3495 = vadd.f32 %v3494, %v3321
      %v3496 = vadd.f32 %v3495, %v3323
      %v3497 = vadd.f32 %v3496, %v3325
      %v3498 = vadd.f32 %v3497, %v3327
      %v3499 = vadd.f32 %v3498, %v3329
      %v3500 = vadd.f32 %v3499, %v3331
      %v3501 = vadd.f32 %v3500, %v3333
      %v3502 = vadd.f32 %v3501, %v3335
      %v3503 = vadd.f32 %v3502, %v3337
      %v3504 = vadd.f32 %v3503, %v3339
      %v3505 = vadd.f32 %v3504, %v3341
      %v3506 = vadd.f32 %v3505, %v3343
      %v3507 = vadd.f32 %v3506, %v3345
      %v3508 = vadd.f32 %v3507, %v3347
      %v3509 = vrot.slane %v3508, 4
      %v3510 = vadd.f32 %v3508, %v3509
      %v3511 = vrot.slane %v3510, 2
      %v3512 = vadd.f32 %v3510, %v3511
      %v3513 = vrot.slane %v3512, 1
      %v3514 = vadd.f32 %v3512, %v3513
      %v3515 = vmul.f32 %v3285, %v3285
      %v3516 = vmul.f32 %v3287, %v3287
      %v3517 = vmul.f32 %v3289, %v3289
      %v3518 = vmul.f32 %v3291, %v3291
      %v3519 = vmul.f32 %v3293, %v3293
      %v3520 = vmul.f32 %v3295, %v3295
      %v3521 = vmul.f32 %v3297, %v3297
      %v3522 = vmul.f32 %v3299, %v3299
      %v3523 = vmul.f32 %v3301, %v3301
      %v3524 = vmul.f32 %v3303, %v3303
      %v3525 = vmul.f32 %v3305, %v3305
      %v3526 = vmul.f32 %v3307, %v3307
      %v3527 = vmul.f32 %v3309, %v3309
      %v3528 = vmul.f32 %v3311, %v3311
      %v3529 = vmul.f32 %v3313, %v3313
      %v3530 = vmul.f32 %v3315, %v3315
      %v3531 = vmul.f32 %v3317, %v3317
      %v3532 = vmul.f32 %v3319, %v3319
      %v3533 = vmul.f32 %v3321, %v3321
      %v3534 = vmul.f32 %v3323, %v3323
      %v3535 = vmul.f32 %v3325, %v3325
      %v3536 = vmul.f32 %v3327, %v3327
      %v3537 = vmul.f32 %v3329, %v3329
      %v3538 = vmul.f32 %v3331, %v3331
      %v3539 = vmul.f32 %v3333, %v3333
      %v3540 = vmul.f32 %v3335, %v3335
      %v3541 = vmul.f32 %v3337, %v3337
      %v3542 = vmul.f32 %v3339, %v3339
      %v3543 = vmul.f32 %v3341, %v3341
      %v3544 = vmul.f32 %v3343, %v3343
      %v3545 = vmul.f32 %v3345, %v3345
      %v3546 = vmul.f32 %v3347, %v3347
      %v3547 = vadd.f32 %v3515, %v3516
      %v3548 = vadd.f32 %v3547, %v3517
      %v3549 = vadd.f32 %v3548, %v3518
      %v3550 = vadd.f32 %v3549, %v3519
      %v3551 = vadd.f32 %v3550, %v3520
      %v3552 = vadd.f32 %v3551, %v3521
      %v3553 = vadd.f32 %v3552, %v3522
      %v3554 = vadd.f32 %v3553, %v3523
      %v3555 = vadd.f32 %v3554, %v3524
      %v3556 = vadd.f32 %v3555, %v3525
      %v3557 = vadd.f32 %v3556, %v3526
      %v3558 = vadd.f32 %v3557, %v3527
      %v3559 = vadd.f32 %v3558, %v3528
      %v3560 = vadd.f32 %v3559, %v3529
      %v3561 = vadd.f32 %v3560, %v3530
      %v3562 = vadd.f32 %v3561, %v3531
      %v3563 = vadd.f32 %v3562, %v3532
      %v3564 = vadd.f32 %v3563, %v3533
      %v3565 = vadd.f32 %v3564, %v3534
      %v3566 = vadd.f32 %v3565, %v3535
      %v3567 = vadd.f32 %v3566, %v3536
      %v3568 = vadd.f32 %v3567, %v3537
      %v3569 = vadd.f32 %v3568, %v3538
      %v3570 = vadd.f32 %v3569, %v3539
      %v3571 = vadd.f32 %v3570, %v3540
      %v3572 = vadd.f32 %v3571, %v3541
      %v3573 = vadd.f32 %v3572, %v3542
      %v3574 = vadd.f32 %v3573, %v3543
      %v3575 = vadd.f32 %v3574, %v3544
      %v3576 = vadd.f32 %v3575, %v3545
      %v3577 = vadd.f32 %v3576, %v3546
      %v3578 = vrot.slane %v3577, 4
      %v3579 = vadd.f32 %v3577, %v3578
      %v3580 = vrot.slane %v3579, 2
      %v3581 = vadd.f32 %v3579, %v3580
      %v3582 = vrot.slane %v3581, 1
      %v3583 = vadd.f32 %v3581, %v3582
      %vm3584 = vcmask 1040384
      %v3585 = vsel %vm3584, %v3514, %v3583
      %v3586 = vadd.f32 %v3477, %v3585
      %3587 = vst [vmem:[%s282] sm:$0x3] %v3586
      %v3588 = vld [vmem:[%s286] sm:$0x3]
      %v3589 = vadd.f32 %v3286, %v3288
      %v3590 = vadd.f32 %v3589, %v3290
      %v3591 = vadd.f32 %v3590, %v3292
      %v3592 = vadd.f32 %v3591, %v3294
      %v3593 = vadd.f32 %v3592, %v3296
      %v3594 = vadd.f32 %v3593, %v3298
      %v3595 = vadd.f32 %v3594, %v3300
      %v3596 = vadd.f32 %v3595, %v3302
      %v3597 = vadd.f32 %v3596, %v3304
      %v3598 = vadd.f32 %v3597, %v3306
      %v3599 = vadd.f32 %v3598, %v3308
      %v3600 = vadd.f32 %v3599, %v3310
      %v3601 = vadd.f32 %v3600, %v3312
      %v3602 = vadd.f32 %v3601, %v3314
      %v3603 = vadd.f32 %v3602, %v3316
      %v3604 = vadd.f32 %v3603, %v3318
      %v3605 = vadd.f32 %v3604, %v3320
      %v3606 = vadd.f32 %v3605, %v3322
      %v3607 = vadd.f32 %v3606, %v3324
      %v3608 = vadd.f32 %v3607, %v3326
      %v3609 = vadd.f32 %v3608, %v3328
      %v3610 = vadd.f32 %v3609, %v3330
      %v3611 = vadd.f32 %v3610, %v3332
      %v3612 = vadd.f32 %v3611, %v3334
      %v3613 = vadd.f32 %v3612, %v3336
      %v3614 = vadd.f32 %v3613, %v3338
      %v3615 = vadd.f32 %v3614, %v3340
      %v3616 = vadd.f32 %v3615, %v3342
      %v3617 = vadd.f32 %v3616, %v3344
      %v3618 = vadd.f32 %v3617, %v3346
      %v3619 = vadd.f32 %v3618, %v3348
      %v3620 = vrot.slane %v3619, 4
      %v3621 = vadd.f32 %v3619, %v3620
      %v3622 = vrot.slane %v3621, 2
      %v3623 = vadd.f32 %v3621, %v3622
      %v3624 = vrot.slane %v3623, 1
      %v3625 = vadd.f32 %v3623, %v3624
      %v3626 = vmul.f32 %v3286, %v3286
      %v3627 = vmul.f32 %v3288, %v3288
      %v3628 = vmul.f32 %v3290, %v3290
      %v3629 = vmul.f32 %v3292, %v3292
      %v3630 = vmul.f32 %v3294, %v3294
      %v3631 = vmul.f32 %v3296, %v3296
      %v3632 = vmul.f32 %v3298, %v3298
      %v3633 = vmul.f32 %v3300, %v3300
      %v3634 = vmul.f32 %v3302, %v3302
      %v3635 = vmul.f32 %v3304, %v3304
      %v3636 = vmul.f32 %v3306, %v3306
      %v3637 = vmul.f32 %v3308, %v3308
      %v3638 = vmul.f32 %v3310, %v3310
      %v3639 = vmul.f32 %v3312, %v3312
      %v3640 = vmul.f32 %v3314, %v3314
      %v3641 = vmul.f32 %v3316, %v3316
      %v3642 = vmul.f32 %v3318, %v3318
      %v3643 = vmul.f32 %v3320, %v3320
      %v3644 = vmul.f32 %v3322, %v3322
      %v3645 = vmul.f32 %v3324, %v3324
      %v3646 = vmul.f32 %v3326, %v3326
      %v3647 = vmul.f32 %v3328, %v3328
      %v3648 = vmul.f32 %v3330, %v3330
      %v3649 = vmul.f32 %v3332, %v3332
      %v3650 = vmul.f32 %v3334, %v3334
      %v3651 = vmul.f32 %v3336, %v3336
      %v3652 = vmul.f32 %v3338, %v3338
      %v3653 = vmul.f32 %v3340, %v3340
      %v3654 = vmul.f32 %v3342, %v3342
      %v3655 = vmul.f32 %v3344, %v3344
      %v3656 = vmul.f32 %v3346, %v3346
      %v3657 = vmul.f32 %v3348, %v3348
      %v3658 = vadd.f32 %v3626, %v3627
      %v3659 = vadd.f32 %v3658, %v3628
      %v3660 = vadd.f32 %v3659, %v3629
      %v3661 = vadd.f32 %v3660, %v3630
      %v3662 = vadd.f32 %v3661, %v3631
      %v3663 = vadd.f32 %v3662, %v3632
      %v3664 = vadd.f32 %v3663, %v3633
      %v3665 = vadd.f32 %v3664, %v3634
      %v3666 = vadd.f32 %v3665, %v3635
      %v3667 = vadd.f32 %v3666, %v3636
      %v3668 = vadd.f32 %v3667, %v3637
      %v3669 = vadd.f32 %v3668, %v3638
      %v3670 = vadd.f32 %v3669, %v3639
      %v3671 = vadd.f32 %v3670, %v3640
      %v3672 = vadd.f32 %v3671, %v3641
      %v3673 = vadd.f32 %v3672, %v3642
      %v3674 = vadd.f32 %v3673, %v3643
      %v3675 = vadd.f32 %v3674, %v3644
      %v3676 = vadd.f32 %v3675, %v3645
      %v3677 = vadd.f32 %v3676, %v3646
      %v3678 = vadd.f32 %v3677, %v3647
      %v3679 = vadd.f32 %v3678, %v3648
      %v3680 = vadd.f32 %v3679, %v3649
      %v3681 = vadd.f32 %v3680, %v3650
      %v3682 = vadd.f32 %v3681, %v3651
      %v3683 = vadd.f32 %v3682, %v3652
      %v3684 = vadd.f32 %v3683, %v3653
      %v3685 = vadd.f32 %v3684, %v3654
      %v3686 = vadd.f32 %v3685, %v3655
      %v3687 = vadd.f32 %v3686, %v3656
      %v3688 = vadd.f32 %v3687, %v3657
      %v3689 = vrot.slane %v3688, 4
      %v3690 = vadd.f32 %v3688, %v3689
      %v3691 = vrot.slane %v3690, 2
      %v3692 = vadd.f32 %v3690, %v3691
      %v3693 = vrot.slane %v3692, 1
      %v3694 = vadd.f32 %v3692, %v3693
      %v3695 = vsel %vm3584, %v3625, %v3694
      %v3696 = vadd.f32 %v3588, %v3695
      %3697 = vst [vmem:[%s286] sm:$0x3] %v3696
      %s3698 = sadd.s32 %s21, %s22
      %p3699 = scmp.lt.s32.totalorder %s3698, 1
      %s3700 = scalar_select %p3699, %s3698, 1
      %s3701 = smul.addr %s3700, 32
      %s3702 = smul.addr %s3701, 4
      %s3703 = scalar_lea.vmem %s2, %s3702
      %s3704 = sadd.s32 %s21, %s22
      %p3705 = scmp.lt.s32.totalorder %s3704, 1
      %s3706 = scalar_select %p3705, %s3704, 1
      %s3707 = smul.addr %s3706, 32
      %s3708 = smul.addr %s3707, 4
      %s3709 = scalar_lea.vmem %s3, %s3708
      %p3710 = scmp.lt.s32.totalorder %s21, 1
      %s3711 = scalar_select %p3710, %s21, 1
      %s3712 = smul.addr %s3711, 2
      %s3713 = scalar_lea.vmem %s4, %s3712
      %p3714 = scmp.lt.s32.totalorder %s21, 1
      %s3715 = scalar_select %p3714, %s21, 1
      %s3716 = smul.addr %s3715, 2
      %s3717 = scalar_lea.vmem %s5, %s3716
      // Predicated region
      $region33: #{basic_block_forward.3} parent=27 // pred_check
        %p3718 = pneg %p98
      $region34: #{basic_block_forward.3} parent=27 // pred_check_branch
        %3720 = sbr.rel (%p3718) target = $region36
      $region35: #{basic_block_forward.3} parent=27 // pred_region
        %s3721 = sadd.s32 %s21, %s22
      $region36: #{basic_block_forward.3} parent=27 // pred_fallthru
        _
      // Predicated region
      $region37: #{basic_block_forward.3} parent=27 // pred_check
        %p3722 = pneg %p126
      $region38: #{basic_block_forward.3} parent=27 // pred_check_branch
        %3724 = sbr.rel (%p3722) target = $region40
      $region39: #{basic_block_forward.3} parent=27 // pred_region
        %s3725 = sadd.s32 %s21, %s22
      $region40: #{basic_block_forward.3} parent=27 // pred_fallthru
        _
      // Predicated region
      $region41: #{basic_block_forward.3} parent=27 // pred_check
        %p3726 = pneg %p152
      $region42: #{basic_block_forward.3} parent=27 // pred_check_branch
        %3728 = sbr.rel (%p3726) target = $region44
      $region43: #{basic_block_forward.3} parent=27 // pred_region
        _
      $region44: #{basic_block_forward.3} parent=27 // pred_fallthru
        _
      // Predicated region
      $region45: #{basic_block_forward.3} parent=27 // pred_check
        %p3729 = pneg %p178
      $region46: #{basic_block_forward.3} parent=27 // pred_check_branch
        %3731 = sbr.rel (%p3729) target = $region48
      $region47: #{basic_block_forward.3} parent=27 // pred_region
        _
      $region48: #{basic_block_forward.3} parent=27 // pred_fallthru
        _
    $region28: #{basic_block_forward.3} parent=5 // pred_fallthru
      _
    %p3732 = scmp.le.s32.totalorder 2, %s12
    // Predicated region
    $region49: #{basic_block_forward.3} parent=5 // pred_check
      %p3733 = pneg %p3732
    $region50: #{basic_block_forward.3} parent=5 // pred_check_branch
      %3735 = sbr.rel (%p3733) target = $region52
    $region51: #{basic_block_forward.3} parent=5 // pred_region
      %s3736 = ssub.s32 %s12, 2
      // Predicated region
      $region53: #{basic_block_forward.3} parent=51 // pred_check
        %p3737 = pneg %p104
      $region54: #{basic_block_forward.3} parent=51 // pred_check_branch
        %3739 = sbr.rel (%p3737) target = $region56
      $region55: #{basic_block_forward.3} parent=51 // pred_region
        %s3740 = sadd.s32 %s23, %s24
        %p3741 = scmp.lt.s32.totalorder %s3740, 1
        %s3742 = scalar_select %p3741, %s3740, 1
        %s3743 = smul.addr %s3742, 32
        %s3744 = smul.addr %s3743, 4
        %s3745 = scalar_lea.vmem %s2, %s3744
      $region56: #{basic_block_forward.3} parent=51 // pred_fallthru
        _
      // Predicated region
      $region57: #{basic_block_forward.3} parent=51 // pred_check
        %p3746 = pneg %p132
      $region58: #{basic_block_forward.3} parent=51 // pred_check_branch
        %3748 = sbr.rel (%p3746) target = $region60
      $region59: #{basic_block_forward.3} parent=51 // pred_region
        %s3749 = sadd.s32 %s23, %s24
        %p3750 = scmp.lt.s32.totalorder %s3749, 1
        %s3751 = scalar_select %p3750, %s3749, 1
        %s3752 = smul.addr %s3751, 32
        %s3753 = smul.addr %s3752, 4
        %s3754 = scalar_lea.vmem %s3, %s3753
      $region60: #{basic_block_forward.3} parent=51 // pred_fallthru
        _
      // Predicated region
      $region61: #{basic_block_forward.3} parent=51 // pred_check
        %p3755 = pneg %p158
      $region62: #{basic_block_forward.3} parent=51 // pred_check_branch
        %3757 = sbr.rel (%p3755) target = $region64
      $region63: #{basic_block_forward.3} parent=51 // pred_region
        %p3758 = scmp.lt.s32.totalorder %s23, 1
        %s3759 = scalar_select %p3758, %s23, 1
        %s3760 = smul.addr %s3759, 2
        %s3761 = scalar_lea.vmem %s4, %s3760
      $region64: #{basic_block_forward.3} parent=51 // pred_fallthru
        _
      // Predicated region
      $region65: #{basic_block_forward.3} parent=51 // pred_check
        %p3762 = pneg %p184
      $region66: #{basic_block_forward.3} parent=51 // pred_check_branch
        %3764 = sbr.rel (%p3762) target = $region68
      $region67: #{basic_block_forward.3} parent=51 // pred_region
        %p3765 = scmp.lt.s32.totalorder %s23, 1
        %s3766 = scalar_select %p3765, %s23, 1
        %s3767 = smul.addr %s3766, 2
        %s3768 = scalar_lea.vmem %s5, %s3767
      $region68: #{basic_block_forward.3} parent=51 // pred_fallthru
        _
    $region52: #{basic_block_forward.3} parent=5 // pred_fallthru
      _
  $region6: #{basic_block_forward.3} parent=0 // loop_footer
    %s16 = sadd.s32 1, %s12
  $region7: #{basic_block_forward.3} parent=0 // loop_footer_branch
    %11 = sbr.rel target = $region3
  $region8: #{basic_block_forward.3} parent=0 // loop_exit
    _

// kernel: basic_block_forward.4
$region0: #{basic_block_forward.4}
  #allocation0 [shape = 'u32[]', space=smem, size = 0x4, offset = 0x4, fixed_abs, tag = 'smem constant byte address 0x4 - core index']
  #allocation1 [shape = 'u32[72,128]{1,0:T(1,128)}', space=vmem, size = 0x9000, scoped, tag = 'internal scratch']
  #allocation2 [shape = 'bf16[1,18,18,128]{3,2,1,0:T(8,128)(2,1)}', space=vmem, size = 0x1b000, scoped, tag = 'scratch operand']
  %s0 = inlined_call_operand.vmem [shape: bf16[2,16,16,128], index: 0, kind: input, shape index: {}]
  %s1 = inlined_call_operand.vmem [shape: f32[1,128], index: 1, kind: input, shape index: {}]
  %s2 = inlined_call_operand.vmem [shape: f32[1,128], index: 2, kind: input, shape index: {}]
  %s3 = inlined_call_operand.vmem [shape: bf16[3,384,128], index: 3, kind: input, shape index: {}]
  %s4 = inlined_call_operand.vmem [shape: bf16[2,16,16,128], index: 4, kind: output, shape index: {0}]
  %s5 = inlined_call_operand.vmem [shape: f32[2,2,128], index: 5, kind: output, shape index: {1}]
  %6 = xla_tuple %s4, %s5
  %s7 = sld [smem:[#allocation0]]
  $region61: #{basic_block_forward.4} parent=0
    _
  %s9 = ssub.s32 1, %s7
  %s10 = scalar_select 0, %s9, %s7
  loop: start=0, step=1, limit=4
  $region2: #{basic_block_forward.4} parent=0 // loop_pre_header
    _
  $region3: #{basic_block_forward.4} parent=0 // loop_header
    %s12 = sphi 0, %s16
    %p13 = scmp.ge.s32.totalorder %s12, 4
    %s19 = sphi 0, %s31
    %s20 = sphi 0, %s27
    %s21 = sphi 0, %s19
    %s22 = sphi 0, %s20
    %s23 = sphi 0, %s21
    %s24 = sphi 0, %s22
    %s36 = sphi 0, %s38
    %s39 = sphi 0, %s36
    %s40 = sphi 0, %s39
    %s56 = sphi 0, %s40
    %s60 = sphi 0, %s60
    %s62 = sphi 0, %s60
    %s63 = sphi 0, %s62
    %s77 = sphi 0, %s63
    %s81 = sphi 0, %s81
    %s83 = sphi 0, %s81
    %s84 = sphi 0, %s83
    %s98 = sphi 0, %s84
    %s102 = sphi 0, %s102
    %s104 = sphi 0, %s102
    %s105 = sphi 0, %s104
    %s119 = sphi 0, %s105
    %s127 = sphi 0, %s129
    %s130 = sphi 0, %s127
    %s131 = sphi 0, %s130
    %s147 = sphi 0, %s131
    %s153 = sphi 0, %s155
    %s156 = sphi 0, %s153
    %s157 = sphi 0, %s156
    %s173 = sphi 0, %s157
  $region4: #{basic_block_forward.4} parent=0 // loop_header_branch
    %15 = sbr.rel (%p13) target = $region8
  $region5: #{basic_block_forward.4} parent=0 // loop_body
    %s17 = ssub.s32 %s12, 1
    %s18 = ssub.s32 %s12, 2
    %s25 = sadd.s32 1, %s20
    %p26 = scmp.ge.s32.totalorder %s25, 1
    %s27 = scalar_select %p26, 0, %s25
    %s28 = sadd.s32 1, %s19
    %s29 = scalar_select %p26, %s28, %s19
    %p30 = scmp.ge.s32.totalorder %s29, 2
    %s31 = scalar_select %p30, 0, %s29
    %s32 = sadd.s32 %s19, %s20
    %s33 = sadd.s32 %s31, %s27
    %s34 = ssub.s32 %s32, %s33
    %p35 = scmp.eq.s32.totalorder %s34, 0
    %s37 = sadd.s32 %s36, 1
    %s38 = scalar_select %p35, %s36, %s37
    %p41 = pneg %p35
    %p42 = scmp.eq.s32.totalorder %s12, 1
    %p43 = por %p41, %p42
    %p44 = scmp.ne.s32.totalorder %s36, %s39
    %p45 = scmp.eq.s32.totalorder %s12, 0
    %p46 = por %p44, %p45
    %p47 = scmp.ne.s32.totalorder %s36, %s39
    %p48 = scmp.eq.s32.totalorder %s17, 1
    %p49 = por %p47, %p48
    %p50 = scmp.ne.s32.totalorder %s39, %s40
    %p51 = scmp.eq.s32.totalorder %s17, 0
    %p52 = por %p50, %p51
    %p53 = scmp.ne.s32.totalorder %s39, %s40
    %p54 = scmp.eq.s32.totalorder %s18, 1
    %p55 = por %p53, %p54
    %p57 = scmp.ne.s32.totalorder %s40, %s56
    %p58 = scmp.eq.s32.totalorder %s18, 0
    %p59 = por %p57, %p58
    %s61 = sadd.s32 %s60, 1
    %p64 = scmp.eq.s32.totalorder %s12, 1
    %p65 = scmp.ne.s32.totalorder %s60, %s62
    %p66 = scmp.eq.s32.totalorder %s12, 0
    %p67 = por %p65, %p66
    %p68 = scmp.ne.s32.totalorder %s60, %s62
    %p69 = scmp.eq.s32.totalorder %s17, 1
    %p70 = por %p68, %p69
    %p71 = scmp.ne.s32.totalorder %s62, %s63
    %p72 = scmp.eq.s32.totalorder %s17, 0
    %p73 = por %p71, %p72
    %p74 = scmp.ne.s32.totalorder %s62, %s63
    %p75 = scmp.eq.s32.totalorder %s18, 1
    %p76 = por %p74, %p75
    %p78 = scmp.ne.s32.totalorder %s63, %s77
    %p79 = scmp.eq.s32.totalorder %s18, 0
    %p80 = por %p78, %p79
    %s82 = sadd.s32 %s81, 1
    %p85 = scmp.eq.s32.totalorder %s12, 1
    %p86 = scmp.ne.s32.totalorder %s81, %s83
    %p87 = scmp.eq.s32.totalorder %s12, 0
    %p88 = por %p86, %p87
    %p89 = scmp.ne.s32.totalorder %s81, %s83
    %p90 = scmp.eq.s32.totalorder %s17, 1
    %p91 = por %p89, %p90
    %p92 = scmp.ne.s32.totalorder %s83, %s84
    %p93 = scmp.eq.s32.totalorder %s17, 0
    %p94 = por %p92, %p93
    %p95 = scmp.ne.s32.totalorder %s83, %s84
    %p96 = scmp.eq.s32.totalorder %s18, 1
    %p97 = por %p95, %p96
    %p99 = scmp.ne.s32.totalorder %s84, %s98
    %p100 = scmp.eq.s32.totalorder %s18, 0
    %p101 = por %p99, %p100
    %s103 = sadd.s32 %s102, 1
    %p106 = scmp.eq.s32.totalorder %s12, 1
    %p107 = scmp.ne.s32.totalorder %s102, %s104
    %p108 = scmp.eq.s32.totalorder %s12, 0
    %p109 = por %p107, %p108
    %p110 = scmp.ne.s32.totalorder %s102, %s104
    %p111 = scmp.eq.s32.totalorder %s17, 1
    %p112 = por %p110, %p111
    %p113 = scmp.ne.s32.totalorder %s104, %s105
    %p114 = scmp.eq.s32.totalorder %s17, 0
    %p115 = por %p113, %p114
    %p116 = scmp.ne.s32.totalorder %s104, %s105
    %p117 = scmp.eq.s32.totalorder %s18, 1
    %p118 = por %p116, %p117
    %p120 = scmp.ne.s32.totalorder %s105, %s119
    %p121 = scmp.eq.s32.totalorder %s18, 0
    %p122 = por %p120, %p121
    %s123 = sadd.s32 %s19, %s20
    %s124 = sadd.s32 %s31, %s27
    %s125 = ssub.s32 %s123, %s124
    %p126 = scmp.eq.s32.totalorder %s125, 0
    %s128 = sadd.s32 %s127, 1
    %s129 = scalar_select %p126, %s127, %s128
    %p132 = pneg %p126
    %p133 = scmp.eq.s32.totalorder %s12, 1
    %p134 = por %p132, %p133
    %p135 = scmp.ne.s32.totalorder %s127, %s130
    %p136 = scmp.eq.s32.totalorder %s12, 0
    %p137 = por %p135, %p136
    %p138 = scmp.ne.s32.totalorder %s127, %s130
    %p139 = scmp.eq.s32.totalorder %s17, 1
    %p140 = por %p138, %p139
    %p141 = scmp.ne.s32.totalorder %s130, %s131
    %p142 = scmp.eq.s32.totalorder %s17, 0
    %p143 = por %p141, %p142
    %p144 = scmp.ne.s32.totalorder %s130, %s131
    %p145 = scmp.eq.s32.totalorder %s18, 1
    %p146 = por %p144, %p145
    %p148 = scmp.ne.s32.totalorder %s131, %s147
    %p149 = scmp.eq.s32.totalorder %s18, 0
    %p150 = por %p148, %p149
    %s151 = ssub.s32 %s19, %s31
    %p152 = scmp.eq.s32.totalorder %s151, 0
    %s154 = sadd.s32 %s153, 1
    %s155 = scalar_select %p152, %s153, %s154
    %p158 = pneg %p152
    %p159 = scmp.eq.s32.totalorder %s12, 1
    %p160 = por %p158, %p159
    %p161 = scmp.ne.s32.totalorder %s153, %s156
    %p162 = scmp.eq.s32.totalorder %s12, 0
    %p163 = por %p161, %p162
    %p164 = scmp.ne.s32.totalorder %s153, %s156
    %p165 = scmp.eq.s32.totalorder %s17, 1
    %p166 = por %p164, %p165
    %p167 = scmp.ne.s32.totalorder %s156, %s157
    %p168 = scmp.eq.s32.totalorder %s17, 0
    %p169 = por %p167, %p168
    %p170 = scmp.ne.s32.totalorder %s156, %s157
    %p171 = scmp.eq.s32.totalorder %s18, 1
    %p172 = por %p170, %p171
    %p174 = scmp.ne.s32.totalorder %s157, %s173
    %p175 = scmp.eq.s32.totalorder %s18, 0
    %p176 = por %p174, %p175
    %p177 = scmp.le.s32.totalorder 1, %s12
    %p178 = scmp.lt.s32.totalorder %s12, 3
    %p179 = pnand %p177, %p178
    %p180 = pneg %p179
    // Predicated region
    $region9: #{basic_block_forward.4} parent=5 // pred_check
      _
    $region10: #{basic_block_forward.4} parent=5 // pred_check_branch
      %182 = sbr.rel (%p179) target = $region12
    $region11: #{basic_block_forward.4} parent=5 // pred_region
      %s183 = ssub.s32 %s12, 1
      // Predicated region
      $region13: #{basic_block_forward.4} parent=11 // pred_check
        %p184 = pneg %p73
      $region14: #{basic_block_forward.4} parent=11 // pred_check_branch
        %186 = sbr.rel (%p184) target = $region16
      $region15: #{basic_block_forward.4} parent=11 // pred_region
        _
      $region16: #{basic_block_forward.4} parent=11 // pred_fallthru
        _
      // Predicated region
      $region17: #{basic_block_forward.4} parent=11 // pred_check
        %p187 = pneg %p94
      $region18: #{basic_block_forward.4} parent=11 // pred_check_branch
        %189 = sbr.rel (%p187) target = $region20
      $region19: #{basic_block_forward.4} parent=11 // pred_region
        _
      $region20: #{basic_block_forward.4} parent=11 // pred_fallthru
        _
      // Predicated region
      $region21: #{basic_block_forward.4} parent=11 // pred_check
        %p190 = pneg %p115
      $region22: #{basic_block_forward.4} parent=11 // pred_check_branch
        %192 = sbr.rel (%p190) target = $region24
      $region23: #{basic_block_forward.4} parent=11 // pred_region
        _
      $region24: #{basic_block_forward.4} parent=11 // pred_fallthru
        _
    $region12: #{basic_block_forward.4} parent=5 // pred_fallthru
      _
    %p193 = scmp.lt.s32.totalorder %s12, 2
    // Predicated region
    $region25: #{basic_block_forward.4} parent=5 // pred_check
      %p194 = pneg %p193
    $region26: #{basic_block_forward.4} parent=5 // pred_check_branch
      %196 = sbr.rel (%p194) target = $region28
    $region27: #{basic_block_forward.4} parent=5 // pred_region
      // Predicated region
      $region29: #{basic_block_forward.4} parent=27 // pred_check
        %p197 = pneg %p46
      $region30: #{basic_block_forward.4} parent=27 // pred_check_branch
        %199 = sbr.rel (%p197) target = $region32
      $region31: #{basic_block_forward.4} parent=27 // pred_region
        %s200 = sadd.s32 %s19, %s20
        %p201 = scmp.lt.s32.totalorder %s200, 1
        %s202 = scalar_select %p201, %s200, 1
        %s203 = smul.addr %s202, 32
        %s204 = smul.addr %s203, 4
        %s205 = scalar_lea.vmem %s0, %s204
        %s206 = sadd.s32 %s19, %s20
      $region32: #{basic_block_forward.4} parent=27 // pred_fallthru
        _
    $region28: #{basic_block_forward.4} parent=5 // pred_fallthru
      _
    %p207 = scmp.le.s32.totalorder 1, %s12
    %p208 = scmp.lt.s32.totalorder %s12, 3
    %p209 = pnand %p207, %p208
    %p210 = pneg %p209
    // Predicated region
    $region33: #{basic_block_forward.4} parent=5 // pred_check
      _
    $region34: #{basic_block_forward.4} parent=5 // pred_check_branch
      %212 = sbr.rel (%p209) target = $region36
    $region35: #{basic_block_forward.4} parent=5 // pred_region
      %s213 = ssub.s32 %s12, 1
      %s214 = sadd.s32 %s21, %s22
      %p215 = scmp.lt.s32.totalorder %s214, 1
      %s216 = scalar_select %p215, %s214, 1
      %s217 = smul.addr %s216, 32
      %s218 = smul.addr %s217, 4
      %s219 = scalar_lea.vmem %s0, %s218
      %p220 = pneg %p52
      %p221 = pneg %p49
      %p222 = pneg %p73
      %p223 = pneg %p70
      %p224 = pneg %p94
      %p225 = pneg %p91
      %p226 = pneg %p115
      %p227 = pneg %p112
      %p228 = pneg %p143
      %p229 = pneg %p140
      %s230 = sadd.s32 %s21, %s22
      %p231 = scmp.lt.s32.totalorder %s230, 1
      %s232 = scalar_select %p231, %s230, 1
      %s233 = smul.addr %s232, 32
      %s234 = smul.addr %s233, 4
      %s235 = scalar_lea.vmem %s4, %s234
      %p236 = pneg %p169
      %p237 = pneg %p166
      %p238 = scmp.lt.s32.totalorder %s21, 1
      %s239 = scalar_select %p238, %s21, 1
      %s240 = smul.addr %s239, 2
      %s241 = scalar_lea.vmem %s5, %s240
      %s242 = sadd.s32 %s21, %s22
      %p243 = scmp.lt.s32.totalorder %s242, 1
      %s244 = scalar_select %p243, %s242, 1
      %s245 = smul.addr %s244, 32
      %s246 = smul.addr %s245, 4
      %s247 = scalar_lea.vmem %s0, %s246
      %s248 = sadd.s32 %s21, %s22
      %s249 = sadd.s32 %s21, %s22
      %p250 = scmp.lt.s32.totalorder %s249, 1
      %s251 = scalar_select %p250, %s249, 1
      %s252 = smul.addr %s251, 32
      %s253 = smul.addr %s252, 4
      %s254 = scalar_lea.vmem %s4, %s253
      %s255 = sadd.s32 %s21, %s22
      %p256 = scmp.lt.s32.totalorder %s21, 1
      %s257 = scalar_select %p256, %s21, 1
      %s258 = smul.addr %s257, 2
      %s259 = scalar_lea.vmem %s5, %s258
      %p261 = scmp.eq.s32.totalorder %s22, 0
      // Predicated region
      $region37: #{basic_block_forward.4} parent=35 // pred_check
        %p262 = pneg %p261
      $region38: #{basic_block_forward.4} parent=35 // pred_check_branch
        %264 = sbr.rel (%p262) target = $region40
      $region39: #{basic_block_forward.4} parent=35 // pred_region
        %265 = vst [vmem:[%s259] sm:$0x3] 0.0
        %266 = vst [vmem:[#allocation2] sm:$0xf] 0
        %267 = vst [vmem:[#allocation2 + $0x4] sm:$0xf] 0
        %268 = vst [vmem:[#allocation2 + $0x8] sm:$0x1] 0
        %269 = vst [vmem:[#allocation2 + $0xc] sm:$0xf] 0
        %270 = vst [vmem:[#allocation2 + $0x10] sm:$0xf] 0
        %271 = vst [vmem:[#allocation2 + $0x14] sm:$0x1] 0
        %272 = vst [vmem:[#allocation2 + $0x18] sm:$0xf] 0
        %273 = vst [vmem:[#allocation2 + $0x1c] sm:$0xf] 0
        %274 = vst [vmem:[#allocation2 + $0x20] sm:$0x1] 0
        %275 = vst [vmem:[#allocation2 + $0x24] sm:$0xf] 0
        %276 = vst [vmem:[#allocation2 + $0x28] sm:$0xf] 0
        %277 = vst [vmem:[#allocation2 + $0x2c] sm:$0x1] 0
        %278 = vst [vmem:[#allocation2 + $0x30] sm:$0xf] 0
        %279 = vst [vmem:[#allocation2 + $0x34] sm:$0xf] 0
        %280 = vst [vmem:[#allocation2 + $0x38] sm:$0x1] 0
        %281 = vst [vmem:[#allocation2 + $0x3c] sm:$0xf] 0
        %282 = vst [vmem:[#allocation2 + $0x40] sm:$0xf] 0
        %283 = vst [vmem:[#allocation2 + $0x44] sm:$0x1] 0
        %284 = vst [vmem:[#allocation2 + $0x48] sm:$0xf] 0
        %285 = vst [vmem:[#allocation2 + $0x4c] sm:$0xf] 0
        %286 = vst [vmem:[#allocation2 + $0x50] sm:$0x1] 0
        %287 = vst [vmem:[#allocation2 + $0x54] sm:$0xf] 0
        %288 = vst [vmem:[#allocation2 + $0x58] sm:$0xf] 0
        %289 = vst [vmem:[#allocation2 + $0x5c] sm:$0x1] 0
        %290 = vst [vmem:[#allocation2 + $0x60] sm:$0xf] 0
        %291 = vst [vmem:[#allocation2 + $0x64] sm:$0xf] 0
        %292 = vst [vmem:[#allocation2 + $0x68] sm:$0x1] 0
        %293 = vst [vmem:[#allocation2 + $0x6c] sm:$0xf] 0
        %294 = vst [vmem:[#allocation2 + $0x70] sm:$0xf] 0
        %295 = vst [vmem:[#allocation2 + $0x74] sm:$0x1] 0
        %296 = vst [vmem:[#allocation2 + $0x78] sm:$0xf] 0
        %297 = vst [vmem:[#allocation2 + $0x7c] sm:$0xf] 0
        %298 = vst [vmem:[#allocation2 + $0x80] sm:$0x1] 0
        %299 = vst [vmem:[#allocation2 + $0x84] sm:$0xf] 0
        %300 = vst [vmem:[#allocation2 + $0x88] sm:$0xf] 0
        %301 = vst [vmem:[#allocation2 + $0x8c] sm:$0x1] 0
        %302 = vst [vmem:[#allocation2 + $0x90] sm:$0xf] 0
        %303 = vst [vmem:[#allocation2 + $0x94] sm:$0xf] 0
        %304 = vst [vmem:[#allocation2 + $0x98] sm:$0x1] 0
        %305 = vst [vmem:[#allocation2 + $0x9c] sm:$0xf] 0
        %306 = vst [vmem:[#allocation2 + $0xa0] sm:$0xf] 0
        %307 = vst [vmem:[#allocation2 + $0xa4] sm:$0x1] 0
        %308 = vst [vmem:[#allocation2 + $0xa8] sm:$0xf] 0
        %309 = vst [vmem:[#allocation2 + $0xac] sm:$0xf] 0
        %310 = vst [vmem:[#allocation2 + $0xb0] sm:$0x1] 0
        %311 = vst [vmem:[#allocation2 + $0xb4] sm:$0xf] 0
        %312 = vst [vmem:[#allocation2 + $0xb8] sm:$0xf] 0
        %313 = vst [vmem:[#allocation2 + $0xbc] sm:$0x1] 0
        %314 = vst [vmem:[#allocation2 + $0xc0] sm:$0xf] 0
        %315 = vst [vmem:[#allocation2 + $0xc4] sm:$0xf] 0
        %316 = vst [vmem:[#allocation2 + $0xc8] sm:$0x1] 0
        %317 = vst [vmem:[#allocation2 + $0xcc] sm:$0xf] 0
        %318 = vst [vmem:[#allocation2 + $0xd0] sm:$0xf] 0
        %319 = vst [vmem:[#allocation2 + $0xd4] sm:$0x1] 0
      $region40: #{basic_block_forward.4} parent=35 // pred_fallthru
        _
      %v320 = vld [vmem:[%s247] sm:$0xf]
      %v321 = vld [vmem:[%s247 + $0x4] sm:$0xf]
      %v322 = vld [vmem:[%s247 + $0x8] sm:$0xf]
      %v323 = vld [vmem:[%s247 + $0xc] sm:$0xf]
      %v324 = vld [vmem:[%s247 + $0x10] sm:$0xf]
      %v325 = vld [vmem:[%s247 + $0x14] sm:$0xf]
      %v326 = vld [vmem:[%s247 + $0x18] sm:$0xf]
      %v327 = vld [vmem:[%s247 + $0x1c] sm:$0xf]
      %v328 = vld [vmem:[%s247 + $0x20] sm:$0xf]
      %v329 = vld [vmem:[%s247 + $0x24] sm:$0xf]
      %v330 = vld [vmem:[%s247 + $0x28] sm:$0xf]
      %v331 = vld [vmem:[%s247 + $0x2c] sm:$0xf]
      %v332 = vld [vmem:[%s247 + $0x30] sm:$0xf]
      %v333 = vld [vmem:[%s247 + $0x34] sm:$0xf]
      %v334 = vld [vmem:[%s247 + $0x38] sm:$0xf]
      %v335 = vld [vmem:[%s247 + $0x3c] sm:$0xf]
      %v336 = vld [vmem:[%s247 + $0x40] sm:$0xf]
      %v337 = vld [vmem:[%s247 + $0x44] sm:$0xf]
      %v338 = vld [vmem:[%s247 + $0x48] sm:$0xf]
      %v339 = vld [vmem:[%s247 + $0x4c] sm:$0xf]
      %v340 = vld [vmem:[%s247 + $0x50] sm:$0xf]
      %v341 = vld [vmem:[%s247 + $0x54] sm:$0xf]
      %v342 = vld [vmem:[%s247 + $0x58] sm:$0xf]
      %v343 = vld [vmem:[%s247 + $0x5c] sm:$0xf]
      %v344 = vld [vmem:[%s247 + $0x60] sm:$0xf]
      %v345 = vld [vmem:[%s247 + $0x64] sm:$0xf]
      %v346 = vld [vmem:[%s247 + $0x68] sm:$0xf]
      %v347 = vld [vmem:[%s247 + $0x6c] sm:$0xf]
      %v348 = vld [vmem:[%s247 + $0x70] sm:$0xf]
      %v349 = vld [vmem:[%s247 + $0x74] sm:$0xf]
      %v350 = vld [vmem:[%s247 + $0x78] sm:$0xf]
      %v351 = vld [vmem:[%s247 + $0x7c] sm:$0xf]
      %v352 = vunpack.c.l.bf16 %v320
      %v353 = vunpack.c.l.bf16 %v321
      %v354 = vunpack.c.l.bf16 %v322
      %v355 = vunpack.c.l.bf16 %v323
      %v356 = vunpack.c.l.bf16 %v324
      %v357 = vunpack.c.l.bf16 %v325
      %v358 = vunpack.c.l.bf16 %v326
      %v359 = vunpack.c.l.bf16 %v327
      %v360 = vunpack.c.l.bf16 %v328
      %v361 = vunpack.c.l.bf16 %v329
      %v362 = vunpack.c.l.bf16 %v330
      %v363 = vunpack.c.l.bf16 %v331
      %v364 = vunpack.c.l.bf16 %v332
      %v365 = vunpack.c.l.bf16 %v333
      %v366 = vunpack.c.l.bf16 %v334
      %v367 = vunpack.c.l.bf16 %v335
      %v368 = vunpack.c.l.bf16 %v336
      %v369 = vunpack.c.l.bf16 %v337
      %v370 = vunpack.c.l.bf16 %v338
      %v371 = vunpack.c.l.bf16 %v339
      %v372 = vunpack.c.l.bf16 %v340
      %v373 = vunpack.c.l.bf16 %v341
      %v374 = vunpack.c.l.bf16 %v342
      %v375 = vunpack.c.l.bf16 %v343
      %v376 = vunpack.c.l.bf16 %v344
      %v377 = vunpack.c.l.bf16 %v345
      %v378 = vunpack.c.l.bf16 %v346
      %v379 = vunpack.c.l.bf16 %v347
      %v380 = vunpack.c.l.bf16 %v348
      %v381 = vunpack.c.l.bf16 %v349
      %v382 = vunpack.c.l.bf16 %v350
      %v383 = vunpack.c.l.bf16 %v351
      %v384 = vld [vmem:[%s1] sm:$0x1]
      %v386 = vperm.slane %v384, 0
      %v388 = vmul.f32 %v352, %v386
      %v389 = vmul.f32 %v353, %v386
      %v390 = vmul.f32 %v354, %v386
      %v391 = vmul.f32 %v355, %v386
      %v392 = vmul.f32 %v356, %v386
      %v393 = vmul.f32 %v357, %v386
      %v394 = vmul.f32 %v358, %v386
      %v395 = vmul.f32 %v359, %v386
      %v396 = vmul.f32 %v360, %v386
      %v397 = vmul.f32 %v361, %v386
      %v398 = vmul.f32 %v362, %v386
      %v399 = vmul.f32 %v363, %v386
      %v400 = vmul.f32 %v364, %v386
      %v401 = vmul.f32 %v365, %v386
      %v402 = vmul.f32 %v366, %v386
      %v403 = vmul.f32 %v367, %v386
      %v404 = vmul.f32 %v368, %v386
      %v405 = vmul.f32 %v369, %v386
      %v406 = vmul.f32 %v370, %v386
      %v407 = vmul.f32 %v371, %v386
      %v408 = vmul.f32 %v372, %v386
      %v409 = vmul.f32 %v373, %v386
      %v410 = vmul.f32 %v374, %v386
      %v411 = vmul.f32 %v375, %v386
      %v412 = vmul.f32 %v376, %v386
      %v413 = vmul.f32 %v377, %v386
      %v414 = vmul.f32 %v378, %v386
      %v415 = vmul.f32 %v379, %v386
      %v416 = vmul.f32 %v380, %v386
      %v417 = vmul.f32 %v381, %v386
      %v418 = vmul.f32 %v382, %v386
      %v419 = vmul.f32 %v383, %v386
      %v420 = vld [vmem:[%s2] sm:$0x1]
      %v422 = vperm.slane %v420, 0
      %v424 = vadd.f32 %v388, %v422
      %v425 = vadd.f32 %v389, %v422
      %v426 = vadd.f32 %v390, %v422
      %v427 = vadd.f32 %v391, %v422
      %v428 = vadd.f32 %v392, %v422
      %v429 = vadd.f32 %v393, %v422
      %v430 = vadd.f32 %v394, %v422
      %v431 = vadd.f32 %v395, %v422
      %v432 = vadd.f32 %v396, %v422
      %v433 = vadd.f32 %v397, %v422
      %v434 = vadd.f32 %v398, %v422
      %v435 = vadd.f32 %v399, %v422
      %v436 = vadd.f32 %v400, %v422
      %v437 = vadd.f32 %v401, %v422
      %v438 = vadd.f32 %v402, %v422
      %v439 = vadd.f32 %v403, %v422
      %v440 = vadd.f32 %v404, %v422
      %v441 = vadd.f32 %v405, %v422
      %v442 = vadd.f32 %v406, %v422
      %v443 = vadd.f32 %v407, %v422
      %v444 = vadd.f32 %v408, %v422
      %v445 = vadd.f32 %v409, %v422
      %v446 = vadd.f32 %v410, %v422
      %v447 = vadd.f32 %v411, %v422
      %v448 = vadd.f32 %v412, %v422
      %v449 = vadd.f32 %v413, %v422
      %v450 = vadd.f32 %v414, %v422
      %v451 = vadd.f32 %v415, %v422
      %v452 = vadd.f32 %v416, %v422
      %v453 = vadd.f32 %v417, %v422
      %v454 = vadd.f32 %v418, %v422
      %v455 = vadd.f32 %v419, %v422
      %v456 = vmax.f32 %v424, 0.0
      %v457 = vmax.f32 %v425, 0.0
      %v458 = vmax.f32 %v426, 0.0
      %v459 = vmax.f32 %v427, 0.0
      %v460 = vmax.f32 %v428, 0.0
      %v461 = vmax.f32 %v429, 0.0
      %v462 = vmax.f32 %v430, 0.0
      %v463 = vmax.f32 %v431, 0.0
      %v464 = vmax.f32 %v432, 0.0
      %v465 = vmax.f32 %v433, 0.0
      %v466 = vmax.f32 %v434, 0.0
      %v467 = vmax.f32 %v435, 0.0
      %v468 = vmax.f32 %v436, 0.0
      %v469 = vmax.f32 %v437, 0.0
      %v470 = vmax.f32 %v438, 0.0
      %v471 = vmax.f32 %v439, 0.0
      %v472 = vmax.f32 %v440, 0.0
      %v473 = vmax.f32 %v441, 0.0
      %v474 = vmax.f32 %v442, 0.0
      %v475 = vmax.f32 %v443, 0.0
      %v476 = vmax.f32 %v444, 0.0
      %v477 = vmax.f32 %v445, 0.0
      %v478 = vmax.f32 %v446, 0.0
      %v479 = vmax.f32 %v447, 0.0
      %v480 = vmax.f32 %v448, 0.0
      %v481 = vmax.f32 %v449, 0.0
      %v482 = vmax.f32 %v450, 0.0
      %v483 = vmax.f32 %v451, 0.0
      %v484 = vmax.f32 %v452, 0.0
      %v485 = vmax.f32 %v453, 0.0
      %v486 = vmax.f32 %v454, 0.0
      %v487 = vmax.f32 %v455, 0.0
      %v488 = vpack.c.bf16 %v456, %v456
      %v489 = vpack.c.bf16 %v457, %v457
      %v490 = vpack.c.bf16 %v458, %v458
      %v491 = vpack.c.bf16 %v459, %v459
      %v492 = vpack.c.bf16 %v460, %v460
      %v493 = vpack.c.bf16 %v461, %v461
      %v494 = vpack.c.bf16 %v462, %v462
      %v495 = vpack.c.bf16 %v463, %v463
      %v496 = vpack.c.bf16 %v464, %v464
      %v497 = vpack.c.bf16 %v465, %v465
      %v498 = vpack.c.bf16 %v466, %v466
      %v499 = vpack.c.bf16 %v467, %v467
      %v500 = vpack.c.bf16 %v468, %v468
      %v501 = vpack.c.bf16 %v469, %v469
      %v502 = vpack.c.bf16 %v470, %v470
      %v503 = vpack.c.bf16 %v471, %v471
      %v504 = vpack.c.bf16 %v472, %v472
      %v505 = vpack.c.bf16 %v473, %v473
      %v506 = vpack.c.bf16 %v474, %v474
      %v507 = vpack.c.bf16 %v475, %v475
      %v508 = vpack.c.bf16 %v476, %v476
      %v509 = vpack.c.bf16 %v477, %v477
      %v510 = vpack.c.bf16 %v478, %v478
      %v511 = vpack.c.bf16 %v479, %v479
      %v512 = vpack.c.bf16 %v480, %v480
      %v513 = vpack.c.bf16 %v481, %v481
      %v514 = vpack.c.bf16 %v482, %v482
      %v515 = vpack.c.bf16 %v483, %v483
      %v516 = vpack.c.bf16 %v484, %v484
      %v517 = vpack.c.bf16 %v485, %v485
      %v518 = vpack.c.bf16 %v486, %v486
      %v519 = vpack.c.bf16 %v487, %v487
      %vm520 = vsmask.f32 256
      %vm521 = vsmask.f32 4368
      %vm522 = vmor %vm520, %vm521
      %v524 = vshrl.u32 %v488, 16
      %v526 = vrot.slane %v524, 7
      %v527 = vshll.u32 %v488, 16
      %v529 = vor.u32 %v526, %v527
      %v530 = vrot.slane %v526, 4
      %v532 = vshrl.u32 %v489, 16
      %v534 = vrot.slane %v532, 7
      %v535 = vshll.u32 %v489, 16
      %v537 = vor.u32 %v534, %v535
      %v538 = vsel %vm522, %v530, %v537
      %v539 = vrot.slane %v534, 4
      %v541 = vshrl.u32 %v490, 16
      %v543 = vrot.slane %v541, 7
      %v544 = vshll.u32 %v490, 16
      %v546 = vor.u32 %v543, %v544
      %v547 = vrot.slane %v543, 4
      %v549 = vshrl.u32 %v491, 16
      %v551 = vrot.slane %v549, 7
      %v552 = vshll.u32 %v491, 16
      %v554 = vor.u32 %v551, %v552
      %v555 = vsel %vm522, %v547, %v554
      %v556 = vrot.slane %v551, 4
      %v558 = vshrl.u32 %v492, 16
      %v560 = vrot.slane %v558, 7
      %v561 = vshll.u32 %v492, 16
      %v563 = vor.u32 %v560, %v561
      %v564 = vrot.slane %v560, 4
      %v566 = vshrl.u32 %v493, 16
      %v568 = vrot.slane %v566, 7
      %v569 = vshll.u32 %v493, 16
      %v571 = vor.u32 %v568, %v569
      %v572 = vsel %vm522, %v564, %v571
      %v573 = vrot.slane %v568, 4
      %v575 = vshrl.u32 %v494, 16
      %v577 = vrot.slane %v575, 7
      %v578 = vshll.u32 %v494, 16
      %v580 = vor.u32 %v577, %v578
      %v581 = vrot.slane %v577, 4
      %v583 = vshrl.u32 %v495, 16
      %v585 = vrot.slane %v583, 7
      %v586 = vshll.u32 %v495, 16
      %v588 = vor.u32 %v585, %v586
      %v589 = vsel %vm522, %v581, %v588
      %v590 = vrot.slane %v585, 4
      %v592 = vshrl.u32 %v496, 16
      %v594 = vrot.slane %v592, 7
      %v595 = vshll.u32 %v496, 16
      %v597 = vor.u32 %v594, %v595
      %v598 = vrot.slane %v594, 4
      %v600 = vshrl.u32 %v497, 16
      %v602 = vrot.slane %v600, 7
      %v603 = vshll.u32 %v497, 16
      %v605 = vor.u32 %v602, %v603
      %v606 = vsel %vm522, %v598, %v605
      %v607 = vrot.slane %v602, 4
      %v609 = vshrl.u32 %v498, 16
      %v611 = vrot.slane %v609, 7
      %v612 = vshll.u32 %v498, 16
      %v614 = vor.u32 %v611, %v612
      %v615 = vrot.slane %v611, 4
      %v617 = vshrl.u32 %v499, 16
      %v619 = vrot.slane %v617, 7
      %v620 = vshll.u32 %v499, 16
      %v622 = vor.u32 %v619, %v620
      %v623 = vsel %vm522, %v615, %v622
      %v624 = vrot.slane %v619, 4
      %v626 = vshrl.u32 %v500, 16
      %v628 = vrot.slane %v626, 7
      %v629 = vshll.u32 %v500, 16
      %v631 = vor.u32 %v628, %v629
      %v632 = vrot.slane %v628, 4
      %v634 = vshrl.u32 %v501, 16
      %v636 = vrot.slane %v634, 7
      %v637 = vshll.u32 %v501, 16
      %v639 = vor.u32 %v636, %v637
      %v640 = vsel %vm522, %v632, %v639
      %v641 = vrot.slane %v636, 4
      %v643 = vshrl.u32 %v502, 16
      %v645 = vrot.slane %v643, 7
      %v646 = vshll.u32 %v502, 16
      %v648 = vor.u32 %v645, %v646
      %v649 = vrot.slane %v645, 4
      %v651 = vshrl.u32 %v503, 16
      %v653 = vrot.slane %v651, 7
      %v654 = vshll.u32 %v503, 16
      %v656 = vor.u32 %v653, %v654
      %v657 = vsel %vm522, %v649, %v656
      %v658 = vrot.slane %v653, 4
      %v660 = vshrl.u32 %v504, 16
      %v662 = vrot.slane %v660, 7
      %v663 = vshll.u32 %v504, 16
      %v665 = vor.u32 %v662, %v663
      %v666 = vrot.slane %v662, 4
      %v668 = vshrl.u32 %v505, 16
      %v670 = vrot.slane %v668, 7
      %v671 = vshll.u32 %v505, 16
      %v673 = vor.u32 %v670, %v671
      %v674 = vsel %vm522, %v666, %v673
      %v675 = vrot.slane %v670, 4
      %v677 = vshrl.u32 %v506, 16
      %v679 = vrot.slane %v677, 7
      %v680 = vshll.u32 %v506, 16
      %v682 = vor.u32 %v679, %v680
      %v683 = vrot.slane %v679, 4
      %v685 = vshrl.u32 %v507, 16
      %v687 = vrot.slane %v685, 7
      %v688 = vshll.u32 %v507, 16
      %v690 = vor.u32 %v687, %v688
      %v691 = vsel %vm522, %v683, %v690
      %v692 = vrot.slane %v687, 4
      %v694 = vshrl.u32 %v508, 16
      %v696 = vrot.slane %v694, 7
      %v697 = vshll.u32 %v508, 16
      %v699 = vor.u32 %v696, %v697
      %v700 = vrot.slane %v696, 4
      %v702 = vshrl.u32 %v509, 16
      %v704 = vrot.slane %v702, 7
      %v705 = vshll.u32 %v509, 16
      %v707 = vor.u32 %v704, %v705
      %v708 = vsel %vm522, %v700, %v707
      %v709 = vrot.slane %v704, 4
      %v711 = vshrl.u32 %v510, 16
      %v713 = vrot.slane %v711, 7
      %v714 = vshll.u32 %v510, 16
      %v716 = vor.u32 %v713, %v714
      %v717 = vrot.slane %v713, 4
      %v719 = vshrl.u32 %v511, 16
      %v721 = vrot.slane %v719, 7
      %v722 = vshll.u32 %v511, 16
      %v724 = vor.u32 %v721, %v722
      %v725 = vsel %vm522, %v717, %v724
      %v726 = vrot.slane %v721, 4
      %v728 = vshrl.u32 %v512, 16
      %v730 = vrot.slane %v728, 7
      %v731 = vshll.u32 %v512, 16
      %v733 = vor.u32 %v730, %v731
      %v734 = vrot.slane %v730, 4
      %v736 = vshrl.u32 %v513, 16
      %v738 = vrot.slane %v736, 7
      %v739 = vshll.u32 %v513, 16
      %v741 = vor.u32 %v738, %v739
      %v742 = vsel %vm522, %v734, %v741
      %v743 = vrot.slane %v738, 4
      %v745 = vshrl.u32 %v514, 16
      %v747 = vrot.slane %v745, 7
      %v748 = vshll.u32 %v514, 16
      %v750 = vor.u32 %v747, %v748
      %v751 = vrot.slane %v747, 4
      %v753 = vshrl.u32 %v515, 16
      %v755 = vrot.slane %v753, 7
      %v756 = vshll.u32 %v515, 16
      %v758 = vor.u32 %v755, %v756
      %v759 = vsel %vm522, %v751, %v758
      %v760 = vrot.slane %v755, 4
      %v762 = vshrl.u32 %v516, 16
      %v764 = vrot.slane %v762, 7
      %v765 = vshll.u32 %v516, 16
      %v767 = vor.u32 %v764, %v765
      %v768 = vrot.slane %v764, 4
      %v770 = vshrl.u32 %v517, 16
      %v772 = vrot.slane %v770, 7
      %v773 = vshll.u32 %v517, 16
      %v775 = vor.u32 %v772, %v773
      %v776 = vsel %vm522, %v768, %v775
      %v777 = vrot.slane %v772, 4
      %v779 = vshrl.u32 %v518, 16
      %v781 = vrot.slane %v779, 7
      %v782 = vshll.u32 %v518, 16
      %v784 = vor.u32 %v781, %v782
      %v785 = vrot.slane %v781, 4
      %v787 = vshrl.u32 %v519, 16
      %v789 = vrot.slane %v787, 7
      %v790 = vshll.u32 %v519, 16
      %v792 = vor.u32 %v789, %v790
      %v793 = vsel %vm522, %v785, %v792
      %v794 = vrot.slane %v789, 4
      %s843 = scalar_lea.vmem [#allocation2], 12
      %vm844 = vcmask 1043456
      %vm845 = vsmask.f32 7938
      %vm846 = vmand %vm844, %vm845
      %v847 = vld [vmem:[%s843] sm:$0xf]
      %v848 = vsel %vm846, %v529, %v847
      %849 = vst [vmem:[%s843] sm:$0xf] %v848
      %850 = vst [vmem:[%s843 + $0x4] sm:$0xf] %v538
      %vm851 = vcmask 1040384
      %vm852 = vmand %vm851, %vm520
      %v853 = vld [vmem:[%s843 + $0x8] sm:$0x1]
      %v854 = vsel %vm852, %v539, %v853
      %855 = vst [vmem:[%s843 + $0x8] sm:$0x1] %v854
      %v856 = vld [vmem:[%s843 + $0xc] sm:$0xf]
      %v857 = vsel %vm846, %v546, %v856
      %858 = vst [vmem:[%s843 + $0xc] sm:$0xf] %v857
      %859 = vst [vmem:[%s843 + $0x10] sm:$0xf] %v555
      %v860 = vld [vmem:[%s843 + $0x14] sm:$0x1]
      %v861 = vsel %vm852, %v556, %v860
      %862 = vst [vmem:[%s843 + $0x14] sm:$0x1] %v861
      %v863 = vld [vmem:[%s843 + $0x18] sm:$0xf]
      %v864 = vsel %vm846, %v563, %v863
      %865 = vst [vmem:[%s843 + $0x18] sm:$0xf] %v864
      %866 = vst [vmem:[%s843 + $0x1c] sm:$0xf] %v572
      %v867 = vld [vmem:[%s843 + $0x20] sm:$0x1]
      %v868 = vsel %vm852, %v573, %v867
      %869 = vst [vmem:[%s843 + $0x20] sm:$0x1] %v868
      %v870 = vld [vmem:[%s843 + $0x24] sm:$0xf]
      %v871 = vsel %vm846, %v580, %v870
      %872 = vst [vmem:[%s843 + $0x24] sm:$0xf] %v871
      %873 = vst [vmem:[%s843 + $0x28] sm:$0xf] %v589
      %v874 = vld [vmem:[%s843 + $0x2c] sm:$0x1]
      %v875 = vsel %vm852, %v590, %v874
      %876 = vst [vmem:[%s843 + $0x2c] sm:$0x1] %v875
      %v877 = vld [vmem:[%s843 + $0x30] sm:$0xf]
      %v878 = vsel %vm846, %v597, %v877
      %879 = vst [vmem:[%s843 + $0x30] sm:$0xf] %v878
      %880 = vst [vmem:[%s843 + $0x34] sm:$0xf] %v606
      %v881 = vld [vmem:[%s843 + $0x38] sm:$0x1]
      %v882 = vsel %vm852, %v607, %v881
      %883 = vst [vmem:[%s843 + $0x38] sm:$0x1] %v882
      %v884 = vld [vmem:[%s843 + $0x3c] sm:$0xf]
      %v885 = vsel %vm846, %v614, %v884
      %886 = vst [vmem:[%s843 + $0x3c] sm:$0xf] %v885
      %887 = vst [vmem:[%s843 + $0x40] sm:$0xf] %v623
      %v888 = vld [vmem:[%s843 + $0x44] sm:$0x1]
      %v889 = vsel %vm852, %v624, %v888
      %890 = vst [vmem:[%s843 + $0x44] sm:$0x1] %v889
      %v891 = vld [vmem:[%s843 + $0x48] sm:$0xf]
      %v892 = vsel %vm846, %v631, %v891
      %893 = vst [vmem:[%s843 + $0x48] sm:$0xf] %v892
      %894 = vst [vmem:[%s843 + $0x4c] sm:$0xf] %v640
      %v895 = vld [vmem:[%s843 + $0x50] sm:$0x1]
      %v896 = vsel %vm852, %v641, %v895
      %897 = vst [vmem:[%s843 + $0x50] sm:$0x1] %v896
      %v898 = vld [vmem:[%s843 + $0x54] sm:$0xf]
      %v899 = vsel %vm846, %v648, %v898
      %900 = vst [vmem:[%s843 + $0x54] sm:$0xf] %v899
      %901 = vst [vmem:[%s843 + $0x58] sm:$0xf] %v657
      %v902 = vld [vmem:[%s843 + $0x5c] sm:$0x1]
      %v903 = vsel %vm852, %v658, %v902
      %904 = vst [vmem:[%s843 + $0x5c] sm:$0x1] %v903
      %v905 = vld [vmem:[%s843 + $0x60] sm:$0xf]
      %v906 = vsel %vm846, %v665, %v905
      %907 = vst [vmem:[%s843 + $0x60] sm:$0xf] %v906
      %908 = vst [vmem:[%s843 + $0x64] sm:$0xf] %v674
      %v909 = vld [vmem:[%s843 + $0x68] sm:$0x1]
      %v910 = vsel %vm852, %v675, %v909
      %911 = vst [vmem:[%s843 + $0x68] sm:$0x1] %v910
      %v912 = vld [vmem:[%s843 + $0x6c] sm:$0xf]
      %v913 = vsel %vm846, %v682, %v912
      %914 = vst [vmem:[%s843 + $0x6c] sm:$0xf] %v913
      %915 = vst [vmem:[%s843 + $0x70] sm:$0xf] %v691
      %v916 = vld [vmem:[%s843 + $0x74] sm:$0x1]
      %v917 = vsel %vm852, %v692, %v916
      %918 = vst [vmem:[%s843 + $0x74] sm:$0x1] %v917
      %v919 = vld [vmem:[%s843 + $0x78] sm:$0xf]
      %v920 = vsel %vm846, %v699, %v919
      %921 = vst [vmem:[%s843 + $0x78] sm:$0xf] %v920
      %922 = vst [vmem:[%s843 + $0x7c] sm:$0xf] %v708
      %v923 = vld [vmem:[%s843 + $0x80] sm:$0x1]
      %v924 = vsel %vm852, %v709, %v923
      %925 = vst [vmem:[%s843 + $0x80] sm:$0x1] %v924
      %v926 = vld [vmem:[%s843 + $0x84] sm:$0xf]
      %v927 = vsel %vm846, %v716, %v926
      %928 = vst [vmem:[%s843 + $0x84] sm:$0xf] %v927
      %929 = vst [vmem:[%s843 + $0x88] sm:$0xf] %v725
      %v930 = vld [vmem:[%s843 + $0x8c] sm:$0x1]
      %v931 = vsel %vm852, %v726, %v930
      %932 = vst [vmem:[%s843 + $0x8c] sm:$0x1] %v931
      %v933 = vld [vmem:[%s843 + $0x90] sm:$0xf]
      %v934 = vsel %vm846, %v733, %v933
      %935 = vst [vmem:[%s843 + $0x90] sm:$0xf] %v934
      %936 = vst [vmem:[%s843 + $0x94] sm:$0xf] %v742
      %v937 = vld [vmem:[%s843 + $0x98] sm:$0x1]
      %v938 = vsel %vm852, %v743, %v937
      %939 = vst [vmem:[%s843 + $0x98] sm:$0x1] %v938
      %v940 = vld [vmem:[%s843 + $0x9c] sm:$0xf]
      %v941 = vsel %vm846, %v750, %v940
      %942 = vst [vmem:[%s843 + $0x9c] sm:$0xf] %v941
      %943 = vst [vmem:[%s843 + $0xa0] sm:$0xf] %v759
      %v944 = vld [vmem:[%s843 + $0xa4] sm:$0x1]
      %v945 = vsel %vm852, %v760, %v944
      %946 = vst [vmem:[%s843 + $0xa4] sm:$0x1] %v945
      %v947 = vld [vmem:[%s843 + $0xa8] sm:$0xf]
      %v948 = vsel %vm846, %v767, %v947
      %949 = vst [vmem:[%s843 + $0xa8] sm:$0xf] %v948
      %950 = vst [vmem:[%s843 + $0xac] sm:$0xf] %v776
      %v951 = vld [vmem:[%s843 + $0xb0] sm:$0x1]
      %v952 = vsel %vm852, %v777, %v951
      %953 = vst [vmem:[%s843 + $0xb0] sm:$0x1] %v952
      %v954 = vld [vmem:[%s843 + $0xb4] sm:$0xf]
      %v955 = vsel %vm846, %v784, %v954
      %956 = vst [vmem:[%s843 + $0xb4] sm:$0xf] %v955
      %957 = vst [vmem:[%s843 + $0xb8] sm:$0xf] %v793
      %v958 = vld [vmem:[%s843 + $0xbc] sm:$0x1]
      %v959 = vsel %vm852, %v794, %v958
      %960 = vst [vmem:[%s843 + $0xbc] sm:$0x1] %v959
      %v961 = vld [vmem:[#allocation2] sm:$0xf]
      %v962 = vld [vmem:[#allocation2 + $0x4] sm:$0xf]
      %v963 = vld [vmem:[#allocation2 + $0x8] sm:$0x1]
      %v964 = vld [vmem:[#allocation2 + $0xc] sm:$0xf]
      %v965 = vld [vmem:[#allocation2 + $0x10] sm:$0xf]
      %v966 = vld [vmem:[#allocation2 + $0x14] sm:$0x1]
      %v967 = vld [vmem:[#allocation2 + $0x18] sm:$0xf]
      %v968 = vld [vmem:[#allocation2 + $0x1c] sm:$0xf]
      %v969 = vld [vmem:[#allocation2 + $0x20] sm:$0x1]
      %v970 = vld [vmem:[#allocation2 + $0x24] sm:$0xf]
      %v971 = vld [vmem:[#allocation2 + $0x28] sm:$0xf]
      %v972 = vld [vmem:[#allocation2 + $0x2c] sm:$0x1]
      %v973 = vld [vmem:[#allocation2 + $0x30] sm:$0xf]
      %v974 = vld [vmem:[#allocation2 + $0x34] sm:$0xf]
      %v975 = vld [vmem:[#allocation2 + $0x38] sm:$0x1]
      %v976 = vld [vmem:[#allocation2 + $0x3c] sm:$0xf]
      %v977 = vld [vmem:[#allocation2 + $0x40] sm:$0xf]
      %v978 = vld [vmem:[#allocation2 + $0x44] sm:$0x1]
      %v979 = vld [vmem:[#allocation2 + $0x48] sm:$0xf]
      %v980 = vld [vmem:[#allocation2 + $0x4c] sm:$0xf]
      %v981 = vld [vmem:[#allocation2 + $0x50] sm:$0x1]
      %v982 = vld [vmem:[#allocation2 + $0x54] sm:$0xf]
      %v983 = vld [vmem:[#allocation2 + $0x58] sm:$0xf]
      %v984 = vld [vmem:[#allocation2 + $0x5c] sm:$0x1]
      %v985 = vld [vmem:[#allocation2 + $0x60] sm:$0xf]
      %v986 = vld [vmem:[#allocation2 + $0x64] sm:$0xf]
      %v987 = vld [vmem:[#allocation2 + $0x68] sm:$0x1]
      %v988 = vld [vmem:[#allocation2 + $0x6c] sm:$0xf]
      %v989 = vld [vmem:[#allocation2 + $0x70] sm:$0xf]
      %v990 = vld [vmem:[#allocation2 + $0x74] sm:$0x1]
      %v991 = vld [vmem:[#allocation2 + $0x78] sm:$0xf]
      %v992 = vld [vmem:[#allocation2 + $0x7c] sm:$0xf]
      %v993 = vld [vmem:[#allocation2 + $0x80] sm:$0x1]
      %v994 = vld [vmem:[#allocation2 + $0x84] sm:$0xf]
      %v995 = vld [vmem:[#allocation2 + $0x88] sm:$0xf]
      %v996 = vld [vmem:[#allocation2 + $0x8c] sm:$0x1]
      %v997 = vld [vmem:[#allocation2 + $0x90] sm:$0xf]
      %v998 = vld [vmem:[#allocation2 + $0x94] sm:$0xf]
      %v999 = vld [vmem:[#allocation2 + $0x98] sm:$0x1]
      %v1000 = vld [vmem:[#allocation2 + $0x9c] sm:$0xf]
      %v1001 = vld [vmem:[#allocation2 + $0xa0] sm:$0xf]
      %v1002 = vld [vmem:[#allocation2 + $0xa4] sm:$0x1]
      %v1003 = vld [vmem:[#allocation2 + $0xa8] sm:$0xf]
      %v1004 = vld [vmem:[#allocation2 + $0xac] sm:$0xf]
      %v1005 = vld [vmem:[#allocation2 + $0xb0] sm:$0x1]
      %v1006 = vld [vmem:[#allocation2 + $0xb4] sm:$0xf]
      %v1007 = vld [vmem:[#allocation2 + $0xb8] sm:$0xf]
      %v1008 = vld [vmem:[#allocation2 + $0xbc] sm:$0x1]
      %v1009 = vld [vmem:[#allocation2 + $0xc0] sm:$0xf]
      %v1010 = vld [vmem:[#allocation2 + $0xc4] sm:$0xf]
      %v1011 = vld [vmem:[#allocation2 + $0xc8] sm:$0x1]
      %v1012 = vld [vmem:[#allocation2 + $0xcc] sm:$0xf]
      %v1013 = vld [vmem:[#allocation2 + $0xd0] sm:$0xf]
      %v1014 = vld [vmem:[#allocation2 + $0xd4] sm:$0x1]
      %v1047 = vunpack.c.l.b16 %v961
      %v1048 = vunpack.c.l.b16 %v962
      %v1049 = vunpack.c.l.b16 %v964
      %v1050 = vunpack.c.l.b16 %v965
      %v1051 = vunpack.c.l.b16 %v967
      %v1052 = vunpack.c.l.b16 %v968
      %v1053 = vunpack.c.l.b16 %v970
      %v1054 = vunpack.c.l.b16 %v971
      %v1055 = vunpack.c.l.b16 %v973
      %v1056 = vunpack.c.l.b16 %v974
      %v1057 = vunpack.c.l.b16 %v976
      %v1058 = vunpack.c.l.b16 %v977
      %v1059 = vunpack.c.l.b16 %v979
      %v1060 = vunpack.c.l.b16 %v980
      %v1061 = vunpack.c.l.b16 %v982
      %v1062 = vunpack.c.l.b16 %v983
      %v1063 = vunpack.c.l.b16 %v985
      %v1064 = vunpack.c.l.b16 %v986
      %v1065 = vunpack.c.l.b16 %v988
      %v1066 = vunpack.c.l.b16 %v989
      %v1067 = vunpack.c.l.b16 %v991
      %v1068 = vunpack.c.l.b16 %v992
      %v1069 = vunpack.c.l.b16 %v994
      %v1070 = vunpack.c.l.b16 %v995
      %v1071 = vunpack.c.l.b16 %v997
      %v1072 = vunpack.c.l.b16 %v998
      %v1073 = vunpack.c.l.b16 %v1000
      %v1074 = vunpack.c.l.b16 %v1001
      %v1075 = vunpack.c.l.b16 %v1003
      %v1076 = vunpack.c.l.b16 %v1004
      %v1077 = vunpack.c.l.b16 %v1006
      %v1078 = vunpack.c.l.b16 %v1007
      %v1079 = vpack.c.b16 %v1048, %v1047
      %v1080 = vpack.c.b16 %v1050, %v1049
      %v1081 = vpack.c.b16 %v1052, %v1051
      %v1082 = vpack.c.b16 %v1054, %v1053
      %v1083 = vpack.c.b16 %v1056, %v1055
      %v1084 = vpack.c.b16 %v1058, %v1057
      %v1085 = vpack.c.b16 %v1060, %v1059
      %v1086 = vpack.c.b16 %v1062, %v1061
      %v1087 = vpack.c.b16 %v1064, %v1063
      %v1088 = vpack.c.b16 %v1066, %v1065
      %v1089 = vpack.c.b16 %v1068, %v1067
      %v1090 = vpack.c.b16 %v1070, %v1069
      %v1091 = vpack.c.b16 %v1072, %v1071
      %v1092 = vpack.c.b16 %v1074, %v1073
      %v1093 = vpack.c.b16 %v1076, %v1075
      %v1094 = vpack.c.b16 %v1078, %v1077
      %v1127 = vunpack.c.l.b16 %v963
      %v1128 = vunpack.c.l.b16 %v966
      %v1129 = vunpack.c.l.b16 %v969
      %v1130 = vunpack.c.l.b16 %v972
      %v1131 = vunpack.c.l.b16 %v975
      %v1132 = vunpack.c.l.b16 %v978
      %v1133 = vunpack.c.l.b16 %v981
      %v1134 = vunpack.c.l.b16 %v984
      %v1135 = vunpack.c.l.b16 %v987
      %v1136 = vunpack.c.l.b16 %v990
      %v1137 = vunpack.c.l.b16 %v993
      %v1138 = vunpack.c.l.b16 %v996
      %v1139 = vunpack.c.l.b16 %v999
      %v1140 = vunpack.c.l.b16 %v1002
      %v1141 = vunpack.c.l.b16 %v1005
      %v1142 = vunpack.c.l.b16 %v1008
      %v1143 = vpack.c.b16 %v1127, %v1127
      %v1144 = vpack.c.b16 %v1128, %v1128
      %v1145 = vpack.c.b16 %v1129, %v1129
      %v1146 = vpack.c.b16 %v1130, %v1130
      %v1147 = vpack.c.b16 %v1131, %v1131
      %v1148 = vpack.c.b16 %v1132, %v1132
      %v1149 = vpack.c.b16 %v1133, %v1133
      %v1150 = vpack.c.b16 %v1134, %v1134
      %v1151 = vpack.c.b16 %v1135, %v1135
      %v1152 = vpack.c.b16 %v1136, %v1136
      %v1153 = vpack.c.b16 %v1137, %v1137
      %v1154 = vpack.c.b16 %v1138, %v1138
      %v1155 = vpack.c.b16 %v1139, %v1139
      %v1156 = vpack.c.b16 %v1140, %v1140
      %v1157 = vpack.c.b16 %v1141, %v1141
      %v1158 = vpack.c.b16 %v1142, %v1142
      %vm1159 = vsmask.f32 7424
      %v1161 = vshrl.u32 %v1079, 16
      %v1163 = vshll.u32 %v1079, 16
      %v1165 = vrot.slane %v1163, 1
      %v1166 = vor.u32 %v1161, %v1165
      %v1168 = vshll.u32 %v1143, 16
      %v1170 = vrot.slane %v1168, 1
      %v1171 = vsel %vm1159, %v1166, %v1170
      %v1173 = vshrl.u32 %v1080, 16
      %v1175 = vshll.u32 %v1080, 16
      %v1177 = vrot.slane %v1175, 1
      %v1178 = vor.u32 %v1173, %v1177
      %v1180 = vshll.u32 %v1144, 16
      %v1182 = vrot.slane %v1180, 1
      %v1183 = vsel %vm1159, %v1178, %v1182
      %v1185 = vshrl.u32 %v1081, 16
      %v1187 = vshll.u32 %v1081, 16
      %v1189 = vrot.slane %v1187, 1
      %v1190 = vor.u32 %v1185, %v1189
      %v1192 = vshll.u32 %v1145, 16
      %v1194 = vrot.slane %v1192, 1
      %v1195 = vsel %vm1159, %v1190, %v1194
      %v1197 = vshrl.u32 %v1082, 16
      %v1199 = vshll.u32 %v1082, 16
      %v1201 = vrot.slane %v1199, 1
      %v1202 = vor.u32 %v1197, %v1201
      %v1204 = vshll.u32 %v1146, 16
      %v1206 = vrot.slane %v1204, 1
      %v1207 = vsel %vm1159, %v1202, %v1206
      %v1209 = vshrl.u32 %v1083, 16
      %v1211 = vshll.u32 %v1083, 16
      %v1213 = vrot.slane %v1211, 1
      %v1214 = vor.u32 %v1209, %v1213
      %v1216 = vshll.u32 %v1147, 16
      %v1218 = vrot.slane %v1216, 1
      %v1219 = vsel %vm1159, %v1214, %v1218
      %v1221 = vshrl.u32 %v1084, 16
      %v1223 = vshll.u32 %v1084, 16
      %v1225 = vrot.slane %v1223, 1
      %v1226 = vor.u32 %v1221, %v1225
      %v1228 = vshll.u32 %v1148, 16
      %v1230 = vrot.slane %v1228, 1
      %v1231 = vsel %vm1159, %v1226, %v1230
      %v1233 = vshrl.u32 %v1085, 16
      %v1235 = vshll.u32 %v1085, 16
      %v1237 = vrot.slane %v1235, 1
      %v1238 = vor.u32 %v1233, %v1237
      %v1240 = vshll.u32 %v1149, 16
      %v1242 = vrot.slane %v1240, 1
      %v1243 = vsel %vm1159, %v1238, %v1242
      %v1245 = vshrl.u32 %v1086, 16
      %v1247 = vshll.u32 %v1086, 16
      %v1249 = vrot.slane %v1247, 1
      %v1250 = vor.u32 %v1245, %v1249
      %v1252 = vshll.u32 %v1150, 16
      %v1254 = vrot.slane %v1252, 1
      %v1255 = vsel %vm1159, %v1250, %v1254
      %v1257 = vshrl.u32 %v1087, 16
      %v1259 = vshll.u32 %v1087, 16
      %v1261 = vrot.slane %v1259, 1
      %v1262 = vor.u32 %v1257, %v1261
      %v1264 = vshll.u32 %v1151, 16
      %v1266 = vrot.slane %v1264, 1
      %v1267 = vsel %vm1159, %v1262, %v1266
      %v1269 = vshrl.u32 %v1088, 16
      %v1271 = vshll.u32 %v1088, 16
      %v1273 = vrot.slane %v1271, 1
      %v1274 = vor.u32 %v1269, %v1273
      %v1276 = vshll.u32 %v1152, 16
      %v1278 = vrot.slane %v1276, 1
      %v1279 = vsel %vm1159, %v1274, %v1278
      %v1281 = vshrl.u32 %v1089, 16
      %v1283 = vshll.u32 %v1089, 16
      %v1285 = vrot.slane %v1283, 1
      %v1286 = vor.u32 %v1281, %v1285
      %v1288 = vshll.u32 %v1153, 16
      %v1290 = vrot.slane %v1288, 1
      %v1291 = vsel %vm1159, %v1286, %v1290
      %v1293 = vshrl.u32 %v1090, 16
      %v1295 = vshll.u32 %v1090, 16
      %v1297 = vrot.slane %v1295, 1
      %v1298 = vor.u32 %v1293, %v1297
      %v1300 = vshll.u32 %v1154, 16
      %v1302 = vrot.slane %v1300, 1
      %v1303 = vsel %vm1159, %v1298, %v1302
      %v1305 = vshrl.u32 %v1091, 16
      %v1307 = vshll.u32 %v1091, 16
      %v1309 = vrot.slane %v1307, 1
      %v1310 = vor.u32 %v1305, %v1309
      %v1312 = vshll.u32 %v1155, 16
      %v1314 = vrot.slane %v1312, 1
      %v1315 = vsel %vm1159, %v1310, %v1314
      %v1317 = vshrl.u32 %v1092, 16
      %v1319 = vshll.u32 %v1092, 16
      %v1321 = vrot.slane %v1319, 1
      %v1322 = vor.u32 %v1317, %v1321
      %v1324 = vshll.u32 %v1156, 16
      %v1326 = vrot.slane %v1324, 1
      %v1327 = vsel %vm1159, %v1322, %v1326
      %v1329 = vshrl.u32 %v1093, 16
      %v1331 = vshll.u32 %v1093, 16
      %v1333 = vrot.slane %v1331, 1
      %v1334 = vor.u32 %v1329, %v1333
      %v1336 = vshll.u32 %v1157, 16
      %v1338 = vrot.slane %v1336, 1
      %v1339 = vsel %vm1159, %v1334, %v1338
      %v1341 = vshrl.u32 %v1094, 16
      %v1343 = vshll.u32 %v1094, 16
      %v1345 = vrot.slane %v1343, 1
      %v1346 = vor.u32 %v1341, %v1345
      %v1348 = vshll.u32 %v1158, 16
      %v1350 = vrot.slane %v1348, 1
      %v1351 = vsel %vm1159, %v1346, %v1350
      %vm1368 = vcmask 1046528
      %v1369 = vrot.slane %v1079, 1
      %v1370 = vrot.slane %v1143, 1
      %v1371 = vsel %vm1368, %v1369, %v1370
      %v1372 = vrot.slane %v1080, 1
      %v1373 = vrot.slane %v1144, 1
      %v1374 = vsel %vm1368, %v1372, %v1373
      %v1375 = vrot.slane %v1081, 1
      %v1376 = vrot.slane %v1145, 1
      %v1377 = vsel %vm1368, %v1375, %v1376
      %v1378 = vrot.slane %v1082, 1
      %v1379 = vrot.slane %v1146, 1
      %v1380 = vsel %vm1368, %v1378, %v1379
      %v1381 = vrot.slane %v1083, 1
      %v1382 = vrot.slane %v1147, 1
      %v1383 = vsel %vm1368, %v1381, %v1382
      %v1384 = vrot.slane %v1084, 1
      %v1385 = vrot.slane %v1148, 1
      %v1386 = vsel %vm1368, %v1384, %v1385
      %v1387 = vrot.slane %v1085, 1
      %v1388 = vrot.slane %v1149, 1
      %v1389 = vsel %vm1368, %v1387, %v1388
      %v1390 = vrot.slane %v1086, 1
      %v1391 = vrot.slane %v1150, 1
      %v1392 = vsel %vm1368, %v1390, %v1391
      %v1393 = vrot.slane %v1087, 1
      %v1394 = vrot.slane %v1151, 1
      %v1395 = vsel %vm1368, %v1393, %v1394
      %v1396 = vrot.slane %v1088, 1
      %v1397 = vrot.slane %v1152, 1
      %v1398 = vsel %vm1368, %v1396, %v1397
      %v1399 = vrot.slane %v1089, 1
      %v1400 = vrot.slane %v1153, 1
      %v1401 = vsel %vm1368, %v1399, %v1400
      %v1402 = vrot.slane %v1090, 1
      %v1403 = vrot.slane %v1154, 1
      %v1404 = vsel %vm1368, %v1402, %v1403
      %v1405 = vrot.slane %v1091, 1
      %v1406 = vrot.slane %v1155, 1
      %v1407 = vsel %vm1368, %v1405, %v1406
      %v1408 = vrot.slane %v1092, 1
      %v1409 = vrot.slane %v1156, 1
      %v1410 = vsel %vm1368, %v1408, %v1409
      %v1411 = vrot.slane %v1093, 1
      %v1412 = vrot.slane %v1157, 1
      %v1413 = vsel %vm1368, %v1411, %v1412
      %v1414 = vrot.slane %v1094, 1
      %v1415 = vrot.slane %v1158, 1
      %v1416 = vsel %vm1368, %v1414, %v1415
      %v1433 = vld [vmem:[%s3] sm:$0xf]
      %v1434 = vld [vmem:[%s3 + $0x4] sm:$0xf]
      %v1435 = vld [vmem:[%s3 + $0x8] sm:$0xf]
      %v1436 = vld [vmem:[%s3 + $0xc] sm:$0xf]
      %v1437 = vld [vmem:[%s3 + $0x10] sm:$0xf]
      %v1438 = vld [vmem:[%s3 + $0x14] sm:$0xf]
      %v1439 = vld [vmem:[%s3 + $0x18] sm:$0xf]
      %v1440 = vld [vmem:[%s3 + $0x1c] sm:$0xf]
      %v1441 = vld [vmem:[%s3 + $0x20] sm:$0xf]
      %v1442 = vld [vmem:[%s3 + $0x24] sm:$0xf]
      %v1443 = vld [vmem:[%s3 + $0x28] sm:$0xf]
      %v1444 = vld [vmem:[%s3 + $0x2c] sm:$0xf]
      %v1445 = vld [vmem:[%s3 + $0x30] sm:$0xf]
      %v1446 = vld [vmem:[%s3 + $0x34] sm:$0xf]
      %v1447 = vld [vmem:[%s3 + $0x38] sm:$0xf]
      %v1448 = vld [vmem:[%s3 + $0x3c] sm:$0xf]
      %v1449 = vld [vmem:[%s3 + $0x40] sm:$0xf]
      %v1450 = vld [vmem:[%s3 + $0x44] sm:$0xf]
      %v1451 = vld [vmem:[%s3 + $0x48] sm:$0xf]
      %v1452 = vld [vmem:[%s3 + $0x4c] sm:$0xf]
      %v1453 = vld [vmem:[%s3 + $0x50] sm:$0xf]
      %v1454 = vld [vmem:[%s3 + $0x54] sm:$0xf]
      %v1455 = vld [vmem:[%s3 + $0x58] sm:$0xf]
      %v1456 = vld [vmem:[%s3 + $0x5c] sm:$0xf]
      %v1457 = vld [vmem:[%s3 + $0x60] sm:$0xf]
      %v1458 = vld [vmem:[%s3 + $0x64] sm:$0xf]
      %v1459 = vld [vmem:[%s3 + $0x68] sm:$0xf]
      %v1460 = vld [vmem:[%s3 + $0x6c] sm:$0xf]
      %v1461 = vld [vmem:[%s3 + $0x70] sm:$0xf]
      %v1462 = vld [vmem:[%s3 + $0x74] sm:$0xf]
      %v1463 = vld [vmem:[%s3 + $0x78] sm:$0xf]
      %v1464 = vld [vmem:[%s3 + $0x7c] sm:$0xf]
      %v1465 = vld [vmem:[%s3 + $0x80] sm:$0xf]
      %v1466 = vld [vmem:[%s3 + $0x84] sm:$0xf]
      %v1467 = vld [vmem:[%s3 + $0x88] sm:$0xf]
      %v1468 = vld [vmem:[%s3 + $0x8c] sm:$0xf]
      %v1469 = vld [vmem:[%s3 + $0x90] sm:$0xf]
      %v1470 = vld [vmem:[%s3 + $0x94] sm:$0xf]
      %v1471 = vld [vmem:[%s3 + $0x98] sm:$0xf]
      %v1472 = vld [vmem:[%s3 + $0x9c] sm:$0xf]
      %v1473 = vld [vmem:[%s3 + $0xa0] sm:$0xf]
      %v1474 = vld [vmem:[%s3 + $0xa4] sm:$0xf]
      %v1475 = vld [vmem:[%s3 + $0xa8] sm:$0xf]
      %v1476 = vld [vmem:[%s3 + $0xac] sm:$0xf]
      %v1477 = vld [vmem:[%s3 + $0xb0] sm:$0xf]
      %v1478 = vld [vmem:[%s3 + $0xb4] sm:$0xf]
      %v1479 = vld [vmem:[%s3 + $0xb8] sm:$0xf]
      %v1480 = vld [vmem:[%s3 + $0xbc] sm:$0xf]
      %v1483 = vunpack.c.l.b16 %v1009
      %v1484 = vunpack.c.l.b16 %v1010
      %v1485 = vpack.c.b16 %v1484, %v1483
      %v1488 = vunpack.c.l.b16 %v1011
      %v1489 = vpack.c.b16 %v1488, %v1488
      %v1491 = vshrl.u32 %v1485, 16
      %v1493 = vshll.u32 %v1485, 16
      %v1495 = vrot.slane %v1493, 1
      %v1496 = vor.u32 %v1491, %v1495
      %v1498 = vshll.u32 %v1489, 16
      %v1500 = vrot.slane %v1498, 1
      %v1501 = vsel %vm1159, %v1496, %v1500
      %v1503 = vrot.slane %v1485, 1
      %v1504 = vrot.slane %v1489, 1
      %v1505 = vsel %vm1368, %v1503, %v1504
      %s1507 = scalar_lea.vmem %s3, 192
      %v1508 = vld [vmem:[%s1507] sm:$0xf]
      %v1509 = vld [vmem:[%s1507 + $0x4] sm:$0xf]
      %v1510 = vld [vmem:[%s1507 + $0x8] sm:$0xf]
      %v1511 = vld [vmem:[%s1507 + $0xc] sm:$0xf]
      %v1512 = vld [vmem:[%s1507 + $0x10] sm:$0xf]
      %v1513 = vld [vmem:[%s1507 + $0x14] sm:$0xf]
      %v1514 = vld [vmem:[%s1507 + $0x18] sm:$0xf]
      %v1515 = vld [vmem:[%s1507 + $0x1c] sm:$0xf]
      %v1516 = vld [vmem:[%s1507 + $0x20] sm:$0xf]
      %v1517 = vld [vmem:[%s1507 + $0x24] sm:$0xf]
      %v1518 = vld [vmem:[%s1507 + $0x28] sm:$0xf]
      %v1519 = vld [vmem:[%s1507 + $0x2c] sm:$0xf]
      %v1520 = vld [vmem:[%s1507 + $0x30] sm:$0xf]
      %v1521 = vld [vmem:[%s1507 + $0x34] sm:$0xf]
      %v1522 = vld [vmem:[%s1507 + $0x38] sm:$0xf]
      %v1523 = vld [vmem:[%s1507 + $0x3c] sm:$0xf]
      %v1524 = vld [vmem:[%s1507 + $0x40] sm:$0xf]
      %v1525 = vld [vmem:[%s1507 + $0x44] sm:$0xf]
      %v1526 = vld [vmem:[%s1507 + $0x48] sm:$0xf]
      %v1527 = vld [vmem:[%s1507 + $0x4c] sm:$0xf]
      %v1528 = vld [vmem:[%s1507 + $0x50] sm:$0xf]
      %v1529 = vld [vmem:[%s1507 + $0x54] sm:$0xf]
      %v1530 = vld [vmem:[%s1507 + $0x58] sm:$0xf]
      %v1531 = vld [vmem:[%s1507 + $0x5c] sm:$0xf]
      %v1532 = vld [vmem:[%s1507 + $0x60] sm:$0xf]
      %v1533 = vld [vmem:[%s1507 + $0x64] sm:$0xf]
      %v1534 = vld [vmem:[%s1507 + $0x68] sm:$0xf]
      %v1535 = vld [vmem:[%s1507 + $0x6c] sm:$0xf]
      %v1536 = vld [vmem:[%s1507 + $0x70] sm:$0xf]
      %v1537 = vld [vmem:[%s1507 + $0x74] sm:$0xf]
      %v1538 = vld [vmem:[%s1507 + $0x78] sm:$0xf]
      %v1539 = vld [vmem:[%s1507 + $0x7c] sm:$0xf]
      %v1540 = vld [vmem:[%s1507 + $0x80] sm:$0xf]
      %v1541 = vld [vmem:[%s1507 + $0x84] sm:$0xf]
      %v1542 = vld [vmem:[%s1507 + $0x88] sm:$0xf]
      %v1543 = vld [vmem:[%s1507 + $0x8c] sm:$0xf]
      %v1544 = vld [vmem:[%s1507 + $0x90] sm:$0xf]
      %v1545 = vld [vmem:[%s1507 + $0x94] sm:$0xf]
      %v1546 = vld [vmem:[%s1507 + $0x98] sm:$0xf]
      %v1547 = vld [vmem:[%s1507 + $0x9c] sm:$0xf]
      %v1548 = vld [vmem:[%s1507 + $0xa0] sm:$0xf]
      %v1549 = vld [vmem:[%s1507 + $0xa4] sm:$0xf]
      %v1550 = vld [vmem:[%s1507 + $0xa8] sm:$0xf]
      %v1551 = vld [vmem:[%s1507 + $0xac] sm:$0xf]
      %v1552 = vld [vmem:[%s1507 + $0xb0] sm:$0xf]
      %v1553 = vld [vmem:[%s1507 + $0xb4] sm:$0xf]
      %v1554 = vld [vmem:[%s1507 + $0xb8] sm:$0xf]
      %v1555 = vld [vmem:[%s1507 + $0xbc] sm:$0xf]
      %v1604 = vunpack.c.l.b16 %v1508
      %v1605 = vunpack.c.l.b16 %v1509
      %v1606 = vunpack.c.l.b16 %v1510
      %v1607 = vunpack.c.l.b16 %v1511
      %v1608 = vunpack.c.l.b16 %v1512
      %v1609 = vunpack.c.l.b16 %v1513
      %v1610 = vunpack.c.l.b16 %v1514
      %v1611 = vunpack.c.l.b16 %v1515
      %v1612 = vunpack.c.l.b16 %v1516
      %v1613 = vunpack.c.l.b16 %v1517
      %v1614 = vunpack.c.l.b16 %v1518
      %v1615 = vunpack.c.l.b16 %v1519
      %v1616 = vunpack.c.l.b16 %v1520
      %v1617 = vunpack.c.l.b16 %v1521
      %v1618 = vunpack.c.l.b16 %v1522
      %v1619 = vunpack.c.l.b16 %v1523
      %v1620 = vunpack.c.l.b16 %v1524
      %v1621 = vunpack.c.l.b16 %v1525
      %v1622 = vunpack.c.l.b16 %v1526
      %v1623 = vunpack.c.l.b16 %v1527
      %v1624 = vunpack.c.l.b16 %v1528
      %v1625 = vunpack.c.l.b16 %v1529
      %v1626 = vunpack.c.l.b16 %v1530
      %v1627 = vunpack.c.l.b16 %v1531
      %v1628 = vunpack.c.l.b16 %v1532
      %v1629 = vunpack.c.l.b16 %v1533
      %v1630 = vunpack.c.l.b16 %v1534
      %v1631 = vunpack.c.l.b16 %v1535
      %v1632 = vunpack.c.l.b16 %v1536
      %v1633 = vunpack.c.l.b16 %v1537
      %v1634 = vunpack.c.l.b16 %v1538
      %v1635 = vunpack.c.l.b16 %v1539
      %v1636 = vunpack.c.l.b16 %v1540
      %v1637 = vunpack.c.l.b16 %v1541
      %v1638 = vunpack.c.l.b16 %v1542
      %v1639 = vunpack.c.l.b16 %v1543
      %v1640 = vunpack.c.l.b16 %v1544
      %v1641 = vunpack.c.l.b16 %v1545
      %v1642 = vunpack.c.l.b16 %v1546
      %v1643 = vunpack.c.l.b16 %v1547
      %v1644 = vunpack.c.l.b16 %v1548
      %v1645 = vunpack.c.l.b16 %v1549
      %v1646 = vunpack.c.l.b16 %v1550
      %v1647 = vunpack.c.l.b16 %v1551
      %v1648 = vunpack.c.l.b16 %v1552
      %v1649 = vunpack.c.l.b16 %v1553
      %v1650 = vunpack.c.l.b16 %v1554
      %v1651 = vunpack.c.l.b16 %v1555
      %v1652 = vpack.c.b16 %v1605, %v1604
      %v1653 = vpack.c.b16 %v1607, %v1606
      %v1654 = vpack.c.b16 %v1609, %v1608
      %v1655 = vpack.c.b16 %v1611, %v1610
      %v1656 = vpack.c.b16 %v1613, %v1612
      %v1657 = vpack.c.b16 %v1615, %v1614
      %v1658 = vpack.c.b16 %v1617, %v1616
      %v1659 = vpack.c.b16 %v1619, %v1618
      %v1660 = vpack.c.b16 %v1621, %v1620
      %v1661 = vpack.c.b16 %v1623, %v1622
      %v1662 = vpack.c.b16 %v1625, %v1624
      %v1663 = vpack.c.b16 %v1627, %v1626
      %v1664 = vpack.c.b16 %v1629, %v1628
      %v1665 = vpack.c.b16 %v1631, %v1630
      %v1666 = vpack.c.b16 %v1633, %v1632
      %v1667 = vpack.c.b16 %v1635, %v1634
      %v1668 = vpack.c.b16 %v1637, %v1636
      %v1669 = vpack.c.b16 %v1639, %v1638
      %v1670 = vpack.c.b16 %v1641, %v1640
      %v1671 = vpack.c.b16 %v1643, %v1642
      %v1672 = vpack.c.b16 %v1645, %v1644
      %v1673 = vpack.c.b16 %v1647, %v1646
      %v1674 = vpack.c.b16 %v1649, %v1648
      %v1675 = vpack.c.b16 %v1651, %v1650
      %1700 = vmatpush.bf16.msra.mxu0 %v1659
      %1701 = vmatpush.bf16.msra.mxu0 %v1658
      %1702 = vmatpush.bf16.msra.mxu0 %v1657
      %1703 = vmatpush.bf16.msra.mxu0 %v1656
      %1704 = vmatpush.bf16.msra.mxu0 %v1655
      %1705 = vmatpush.bf16.msra.mxu0 %v1654
      %1706 = vmatpush.bf16.msra.mxu0 %v1653
      %1707 = vmatpush.bf16.msra.mxu0 %v1652
      %1708 = vmatmul.bf16.gmra.mxu0 %v1080
      %v1709 = vpop.f32.mrf.mxu0
      %v1710 = vadd.f32 0.0, %v1709
      %v1711 = vpop.f32.mrf.mxu0
      %v1712 = vadd.f32 0.0, %v1711
      %1713 = vmatmul.bf16.gmra.mxu0 %v1081
      %v1714 = vpop.f32.mrf.mxu0
      %v1715 = vadd.f32 0.0, %v1714
      %v1716 = vpop.f32.mrf.mxu0
      %v1717 = vadd.f32 0.0, %v1716
      %1718 = vmatmul.bf16.gmra.mxu0 %v1082
      %v1719 = vpop.f32.mrf.mxu0
      %v1720 = vadd.f32 0.0, %v1719
      %v1721 = vpop.f32.mrf.mxu0
      %v1722 = vadd.f32 0.0, %v1721
      %1723 = vmatmul.bf16.gmra.mxu0 %v1083
      %v1724 = vpop.f32.mrf.mxu0
      %v1725 = vadd.f32 0.0, %v1724
      %v1726 = vpop.f32.mrf.mxu0
      %v1727 = vadd.f32 0.0, %v1726
      %1728 = vmatmul.bf16.gmra.mxu0 %v1084
      %v1729 = vpop.f32.mrf.mxu0
      %v1730 = vadd.f32 0.0, %v1729
      %v1731 = vpop.f32.mrf.mxu0
      %v1732 = vadd.f32 0.0, %v1731
      %1733 = vmatmul.bf16.gmra.mxu0 %v1085
      %v1734 = vpop.f32.mrf.mxu0
      %v1735 = vadd.f32 0.0, %v1734
      %v1736 = vpop.f32.mrf.mxu0
      %v1737 = vadd.f32 0.0, %v1736
      %1738 = vmatmul.bf16.gmra.mxu0 %v1086
      %v1739 = vpop.f32.mrf.mxu0
      %v1740 = vadd.f32 0.0, %v1739
      %v1741 = vpop.f32.mrf.mxu0
      %v1742 = vadd.f32 0.0, %v1741
      %1743 = vmatmul.bf16.gmra.mxu0 %v1087
      %v1744 = vpop.f32.mrf.mxu0
      %v1745 = vadd.f32 0.0, %v1744
      %v1746 = vpop.f32.mrf.mxu0
      %v1747 = vadd.f32 0.0, %v1746
      %1748 = vmatmul.bf16.gmra.mxu0 %v1088
      %v1749 = vpop.f32.mrf.mxu0
      %v1750 = vadd.f32 0.0, %v1749
      %v1751 = vpop.f32.mrf.mxu0
      %v1752 = vadd.f32 0.0, %v1751
      %1753 = vmatmul.bf16.gmra.mxu0 %v1089
      %v1754 = vpop.f32.mrf.mxu0
      %v1755 = vadd.f32 0.0, %v1754
      %v1756 = vpop.f32.mrf.mxu0
      %v1757 = vadd.f32 0.0, %v1756
      %1758 = vmatmul.bf16.gmra.mxu0 %v1090
      %v1759 = vpop.f32.mrf.mxu0
      %v1760 = vadd.f32 0.0, %v1759
      %v1761 = vpop.f32.mrf.mxu0
      %v1762 = vadd.f32 0.0, %v1761
      %1763 = vmatmul.bf16.gmra.mxu0 %v1091
      %v1764 = vpop.f32.mrf.mxu0
      %v1765 = vadd.f32 0.0, %v1764
      %v1766 = vpop.f32.mrf.mxu0
      %v1767 = vadd.f32 0.0, %v1766
      %1768 = vmatmul.bf16.gmra.mxu0 %v1092
      %v1769 = vpop.f32.mrf.mxu0
      %v1770 = vadd.f32 0.0, %v1769
      %v1771 = vpop.f32.mrf.mxu0
      %v1772 = vadd.f32 0.0, %v1771
      %1773 = vmatmul.bf16.gmra.mxu0 %v1093
      %v1774 = vpop.f32.mrf.mxu0
      %v1775 = vadd.f32 0.0, %v1774
      %v1776 = vpop.f32.mrf.mxu0
      %v1777 = vadd.f32 0.0, %v1776
      %1778 = vmatmul.bf16.gmra.mxu0 %v1094
      %v1779 = vpop.f32.mrf.mxu0
      %v1780 = vadd.f32 0.0, %v1779
      %v1781 = vpop.f32.mrf.mxu0
      %v1782 = vadd.f32 0.0, %v1781
      %1783 = vmatmul.bf16.gmra.mxu0 %v1485
      %v1784 = vpop.f32.mrf.mxu0
      %v1785 = vadd.f32 0.0, %v1784
      %v1786 = vpop.f32.mrf.mxu0
      %v1787 = vadd.f32 0.0, %v1786
      %1788 = vdwg.mxu0
      %1789 = vmatpush.bf16.msra.mxu0 %v1667
      %1790 = vmatpush.bf16.msra.mxu0 %v1666
      %1791 = vmatpush.bf16.msra.mxu0 %v1665
      %1792 = vmatpush.bf16.msra.mxu0 %v1664
      %1793 = vmatpush.bf16.msra.mxu0 %v1663
      %1794 = vmatpush.bf16.msra.mxu0 %v1662
      %1795 = vmatpush.bf16.msra.mxu0 %v1661
      %1796 = vmatpush.bf16.msra.mxu0 %v1660
      %1797 = vmatmul.bf16.gmra.mxu0 %v1183
      %v1798 = vpop.f32.mrf.mxu0
      %v1799 = vadd.f32 %v1710, %v1798
      %v1800 = vpop.f32.mrf.mxu0
      %v1801 = vadd.f32 %v1712, %v1800
      %1802 = vmatmul.bf16.gmra.mxu0 %v1195
      %v1803 = vpop.f32.mrf.mxu0
      %v1804 = vadd.f32 %v1715, %v1803
      %v1805 = vpop.f32.mrf.mxu0
      %v1806 = vadd.f32 %v1717, %v1805
      %1807 = vmatmul.bf16.gmra.mxu0 %v1207
      %v1808 = vpop.f32.mrf.mxu0
      %v1809 = vadd.f32 %v1720, %v1808
      %v1810 = vpop.f32.mrf.mxu0
      %v1811 = vadd.f32 %v1722, %v1810
      %1812 = vmatmul.bf16.gmra.mxu0 %v1219
      %v1813 = vpop.f32.mrf.mxu0
      %v1814 = vadd.f32 %v1725, %v1813
      %v1815 = vpop.f32.mrf.mxu0
      %v1816 = vadd.f32 %v1727, %v1815
      %1817 = vmatmul.bf16.gmra.mxu0 %v1231
      %v1818 = vpop.f32.mrf.mxu0
      %v1819 = vadd.f32 %v1730, %v1818
      %v1820 = vpop.f32.mrf.mxu0
      %v1821 = vadd.f32 %v1732, %v1820
      %1822 = vmatmul.bf16.gmra.mxu0 %v1243
      %v1823 = vpop.f32.mrf.mxu0
      %v1824 = vadd.f32 %v1735, %v1823
      %v1825 = vpop.f32.mrf.mxu0
      %v1826 = vadd.f32 %v1737, %v1825
      %1827 = vmatmul.bf16.gmra.mxu0 %v1255
      %v1828 = vpop.f32.mrf.mxu0
      %v1829 = vadd.f32 %v1740, %v1828
      %v1830 = vpop.f32.mrf.mxu0
      %v1831 = vadd.f32 %v1742, %v1830
      %1832 = vmatmul.bf16.gmra.mxu0 %v1267
      %v1833 = vpop.f32.mrf.mxu0
      %v1834 = vadd.f32 %v1745, %v1833
      %v1835 = vpop.f32.mrf.mxu0
      %v1836 = vadd.f32 %v1747, %v1835
      %1837 = vmatmul.bf16.gmra.mxu0 %v1279
      %v1838 = vpop.f32.mrf.mxu0
      %v1839 = vadd.f32 %v1750, %v1838
      %v1840 = vpop.f32.mrf.mxu0
      %v1841 = vadd.f32 %v1752, %v1840
      %1842 = vmatmul.bf16.gmra.mxu0 %v1291
      %v1843 = vpop.f32.mrf.mxu0
      %v1844 = vadd.f32 %v1755, %v1843
      %v1845 = vpop.f32.mrf.mxu0
      %v1846 = vadd.f32 %v1757, %v1845
      %1847 = vmatmul.bf16.gmra.mxu0 %v1303
      %v1848 = vpop.f32.mrf.mxu0
      %v1849 = vadd.f32 %v1760, %v1848
      %v1850 = vpop.f32.mrf.mxu0
      %v1851 = vadd.f32 %v1762, %v1850
      %1852 = vmatmul.bf16.gmra.mxu0 %v1315
      %v1853 = vpop.f32.mrf.mxu0
      %v1854 = vadd.f32 %v1765, %v1853
      %v1855 = vpop.f32.mrf.mxu0
      %v1856 = vadd.f32 %v1767, %v1855
      %1857 = vmatmul.bf16.gmra.mxu0 %v1327
      %v1858 = vpop.f32.mrf.mxu0
      %v1859 = vadd.f32 %v1770, %v1858
      %v1860 = vpop.f32.mrf.mxu0
      %v1861 = vadd.f32 %v1772, %v1860
      %1862 = vmatmul.bf16.gmra.mxu0 %v1339
      %v1863 = vpop.f32.mrf.mxu0
      %v1864 = vadd.f32 %v1775, %v1863
      %v1865 = vpop.f32.mrf.mxu0
      %v1866 = vadd.f32 %v1777, %v1865
      %1867 = vmatmul.bf16.gmra.mxu0 %v1351
      %v1868 = vpop.f32.mrf.mxu0
      %v1869 = vadd.f32 %v1780, %v1868
      %v1870 = vpop.f32.mrf.mxu0
      %v1871 = vadd.f32 %v1782, %v1870
      %1872 = vmatmul.bf16.gmra.mxu0 %v1501
      %v1873 = vpop.f32.mrf.mxu0
      %v1874 = vadd.f32 %v1785, %v1873
      %v1875 = vpop.f32.mrf.mxu0
      %v1876 = vadd.f32 %v1787, %v1875
      %1877 = vdwg.mxu0
      %1878 = vmatpush.bf16.msra.mxu0 %v1675
      %1879 = vmatpush.bf16.msra.mxu0 %v1674
      %1880 = vmatpush.bf16.msra.mxu0 %v1673
      %1881 = vmatpush.bf16.msra.mxu0 %v1672
      %1882 = vmatpush.bf16.msra.mxu0 %v1671
      %1883 = vmatpush.bf16.msra.mxu0 %v1670
      %1884 = vmatpush.bf16.msra.mxu0 %v1669
      %1885 = vmatpush.bf16.msra.mxu0 %v1668
      %1886 = vmatmul.bf16.gmra.mxu0 %v1374
      %v1887 = vpop.f32.mrf.mxu0
      %v1888 = vadd.f32 %v1799, %v1887
      %v1889 = vpop.f32.mrf.mxu0
      %v1890 = vadd.f32 %v1801, %v1889
      %1891 = vmatmul.bf16.gmra.mxu0 %v1377
      %v1892 = vpop.f32.mrf.mxu0
      %v1893 = vadd.f32 %v1804, %v1892
      %v1894 = vpop.f32.mrf.mxu0
      %v1895 = vadd.f32 %v1806, %v1894
      %1896 = vmatmul.bf16.gmra.mxu0 %v1380
      %v1897 = vpop.f32.mrf.mxu0
      %v1898 = vadd.f32 %v1809, %v1897
      %v1899 = vpop.f32.mrf.mxu0
      %v1900 = vadd.f32 %v1811, %v1899
      %1901 = vmatmul.bf16.gmra.mxu0 %v1383
      %v1902 = vpop.f32.mrf.mxu0
      %v1903 = vadd.f32 %v1814, %v1902
      %v1904 = vpop.f32.mrf.mxu0
      %v1905 = vadd.f32 %v1816, %v1904
      %1906 = vmatmul.bf16.gmra.mxu0 %v1386
      %v1907 = vpop.f32.mrf.mxu0
      %v1908 = vadd.f32 %v1819, %v1907
      %v1909 = vpop.f32.mrf.mxu0
      %v1910 = vadd.f32 %v1821, %v1909
      %1911 = vmatmul.bf16.gmra.mxu0 %v1389
      %v1912 = vpop.f32.mrf.mxu0
      %v1913 = vadd.f32 %v1824, %v1912
      %v1914 = vpop.f32.mrf.mxu0
      %v1915 = vadd.f32 %v1826, %v1914
      %1916 = vmatmul.bf16.gmra.mxu0 %v1392
      %v1917 = vpop.f32.mrf.mxu0
      %v1918 = vadd.f32 %v1829, %v1917
      %v1919 = vpop.f32.mrf.mxu0
      %v1920 = vadd.f32 %v1831, %v1919
      %1921 = vmatmul.bf16.gmra.mxu0 %v1395
      %v1922 = vpop.f32.mrf.mxu0
      %v1923 = vadd.f32 %v1834, %v1922
      %v1924 = vpop.f32.mrf.mxu0
      %v1925 = vadd.f32 %v1836, %v1924
      %1926 = vmatmul.bf16.gmra.mxu0 %v1398
      %v1927 = vpop.f32.mrf.mxu0
      %v1928 = vadd.f32 %v1839, %v1927
      %v1929 = vpop.f32.mrf.mxu0
      %v1930 = vadd.f32 %v1841, %v1929
      %1931 = vmatmul.bf16.gmra.mxu0 %v1401
      %v1932 = vpop.f32.mrf.mxu0
      %v1933 = vadd.f32 %v1844, %v1932
      %v1934 = vpop.f32.mrf.mxu0
      %v1935 = vadd.f32 %v1846, %v1934
      %1936 = vmatmul.bf16.gmra.mxu0 %v1404
      %v1937 = vpop.f32.mrf.mxu0
      %v1938 = vadd.f32 %v1849, %v1937
      %v1939 = vpop.f32.mrf.mxu0
      %v1940 = vadd.f32 %v1851, %v1939
      %1941 = vmatmul.bf16.gmra.mxu0 %v1407
      %v1942 = vpop.f32.mrf.mxu0
      %v1943 = vadd.f32 %v1854, %v1942
      %v1944 = vpop.f32.mrf.mxu0
      %v1945 = vadd.f32 %v1856, %v1944
      %1946 = vmatmul.bf16.gmra.mxu0 %v1410
      %v1947 = vpop.f32.mrf.mxu0
      %v1948 = vadd.f32 %v1859, %v1947
      %v1949 = vpop.f32.mrf.mxu0
      %v1950 = vadd.f32 %v1861, %v1949
      %1951 = vmatmul.bf16.gmra.mxu0 %v1413
      %v1952 = vpop.f32.mrf.mxu0
      %v1953 = vadd.f32 %v1864, %v1952
      %v1954 = vpop.f32.mrf.mxu0
      %v1955 = vadd.f32 %v1866, %v1954
      %1956 = vmatmul.bf16.gmra.mxu0 %v1416
      %v1957 = vpop.f32.mrf.mxu0
      %v1958 = vadd.f32 %v1869, %v1957
      %v1959 = vpop.f32.mrf.mxu0
      %v1960 = vadd.f32 %v1871, %v1959
      %1961 = vmatmul.bf16.gmra.mxu0 %v1505
      %v1962 = vpop.f32.mrf.mxu0
      %v1963 = vadd.f32 %v1874, %v1962
      %v1964 = vpop.f32.mrf.mxu0
      %v1965 = vadd.f32 %v1876, %v1964
      %1966 = vdwg.mxu0
      %v2015 = vunpack.c.l.b16 %v1433
      %v2016 = vunpack.c.l.b16 %v1434
      %v2017 = vunpack.c.l.b16 %v1435
      %v2018 = vunpack.c.l.b16 %v1436
      %v2019 = vunpack.c.l.b16 %v1437
      %v2020 = vunpack.c.l.b16 %v1438
      %v2021 = vunpack.c.l.b16 %v1439
      %v2022 = vunpack.c.l.b16 %v1440
      %v2023 = vunpack.c.l.b16 %v1441
      %v2024 = vunpack.c.l.b16 %v1442
      %v2025 = vunpack.c.l.b16 %v1443
      %v2026 = vunpack.c.l.b16 %v1444
      %v2027 = vunpack.c.l.b16 %v1445
      %v2028 = vunpack.c.l.b16 %v1446
      %v2029 = vunpack.c.l.b16 %v1447
      %v2030 = vunpack.c.l.b16 %v1448
      %v2031 = vunpack.c.l.b16 %v1449
      %v2032 = vunpack.c.l.b16 %v1450
      %v2033 = vunpack.c.l.b16 %v1451
      %v2034 = vunpack.c.l.b16 %v1452
      %v2035 = vunpack.c.l.b16 %v1453
      %v2036 = vunpack.c.l.b16 %v1454
      %v2037 = vunpack.c.l.b16 %v1455
      %v2038 = vunpack.c.l.b16 %v1456
      %v2039 = vunpack.c.l.b16 %v1457
      %v2040 = vunpack.c.l.b16 %v1458
      %v2041 = vunpack.c.l.b16 %v1459
      %v2042 = vunpack.c.l.b16 %v1460
      %v2043 = vunpack.c.l.b16 %v1461
      %v2044 = vunpack.c.l.b16 %v1462
      %v2045 = vunpack.c.l.b16 %v1463
      %v2046 = vunpack.c.l.b16 %v1464
      %v2047 = vunpack.c.l.b16 %v1465
      %v2048 = vunpack.c.l.b16 %v1466
      %v2049 = vunpack.c.l.b16 %v1467
      %v2050 = vunpack.c.l.b16 %v1468
      %v2051 = vunpack.c.l.b16 %v1469
      %v2052 = vunpack.c.l.b16 %v1470
      %v2053 = vunpack.c.l.b16 %v1471
      %v2054 = vunpack.c.l.b16 %v1472
      %v2055 = vunpack.c.l.b16 %v1473
      %v2056 = vunpack.c.l.b16 %v1474
      %v2057 = vunpack.c.l.b16 %v1475
      %v2058 = vunpack.c.l.b16 %v1476
      %v2059 = vunpack.c.l.b16 %v1477
      %v2060 = vunpack.c.l.b16 %v1478
      %v2061 = vunpack.c.l.b16 %v1479
      %v2062 = vunpack.c.l.b16 %v1480
      %v2063 = vpack.c.b16 %v2016, %v2015
      %v2064 = vpack.c.b16 %v2018, %v2017
      %v2065 = vpack.c.b16 %v2020, %v2019
      %v2066 = vpack.c.b16 %v2022, %v2021
      %v2067 = vpack.c.b16 %v2024, %v2023
      %v2068 = vpack.c.b16 %v2026, %v2025
      %v2069 = vpack.c.b16 %v2028, %v2027
      %v2070 = vpack.c.b16 %v2030, %v2029
      %v2071 = vpack.c.b16 %v2032, %v2031
      %v2072 = vpack.c.b16 %v2034, %v2033
      %v2073 = vpack.c.b16 %v2036, %v2035
      %v2074 = vpack.c.b16 %v2038, %v2037
      %v2075 = vpack.c.b16 %v2040, %v2039
      %v2076 = vpack.c.b16 %v2042, %v2041
      %v2077 = vpack.c.b16 %v2044, %v2043
      %v2078 = vpack.c.b16 %v2046, %v2045
      %v2079 = vpack.c.b16 %v2048, %v2047
      %v2080 = vpack.c.b16 %v2050, %v2049
      %v2081 = vpack.c.b16 %v2052, %v2051
      %v2082 = vpack.c.b16 %v2054, %v2053
      %v2083 = vpack.c.b16 %v2056, %v2055
      %v2084 = vpack.c.b16 %v2058, %v2057
      %v2085 = vpack.c.b16 %v2060, %v2059
      %v2086 = vpack.c.b16 %v2062, %v2061
      %2111 = vmatpush.bf16.msra.mxu0 %v2070
      %2112 = vmatpush.bf16.msra.mxu0 %v2069
      %2113 = vmatpush.bf16.msra.mxu0 %v2068
      %2114 = vmatpush.bf16.msra.mxu0 %v2067
      %2115 = vmatpush.bf16.msra.mxu0 %v2066
      %2116 = vmatpush.bf16.msra.mxu0 %v2065
      %2117 = vmatpush.bf16.msra.mxu0 %v2064
      %2118 = vmatpush.bf16.msra.mxu0 %v2063
      %2119 = vmatmul.bf16.gmra.mxu0 %v1079
      %v2120 = vpop.f32.mrf.mxu0
      %v2121 = vadd.f32 %v1888, %v2120
      %v2122 = vpop.f32.mrf.mxu0
      %v2123 = vadd.f32 %v1890, %v2122
      %2124 = vmatmul.bf16.gmra.mxu0 %v1080
      %v2125 = vpop.f32.mrf.mxu0
      %v2126 = vadd.f32 %v1893, %v2125
      %v2127 = vpop.f32.mrf.mxu0
      %v2128 = vadd.f32 %v1895, %v2127
      %2129 = vmatmul.bf16.gmra.mxu0 %v1081
      %v2130 = vpop.f32.mrf.mxu0
      %v2131 = vadd.f32 %v1898, %v2130
      %v2132 = vpop.f32.mrf.mxu0
      %v2133 = vadd.f32 %v1900, %v2132
      %2134 = vmatmul.bf16.gmra.mxu0 %v1082
      %v2135 = vpop.f32.mrf.mxu0
      %v2136 = vadd.f32 %v1903, %v2135
      %v2137 = vpop.f32.mrf.mxu0
      %v2138 = vadd.f32 %v1905, %v2137
      %2139 = vmatmul.bf16.gmra.mxu0 %v1083
      %v2140 = vpop.f32.mrf.mxu0
      %v2141 = vadd.f32 %v1908, %v2140
      %v2142 = vpop.f32.mrf.mxu0
      %v2143 = vadd.f32 %v1910, %v2142
      %2144 = vmatmul.bf16.gmra.mxu0 %v1084
      %v2145 = vpop.f32.mrf.mxu0
      %v2146 = vadd.f32 %v1913, %v2145
      %v2147 = vpop.f32.mrf.mxu0
      %v2148 = vadd.f32 %v1915, %v2147
      %2149 = vmatmul.bf16.gmra.mxu0 %v1085
      %v2150 = vpop.f32.mrf.mxu0
      %v2151 = vadd.f32 %v1918, %v2150
      %v2152 = vpop.f32.mrf.mxu0
      %v2153 = vadd.f32 %v1920, %v2152
      %2154 = vmatmul.bf16.gmra.mxu0 %v1086
      %v2155 = vpop.f32.mrf.mxu0
      %v2156 = vadd.f32 %v1923, %v2155
      %v2157 = vpop.f32.mrf.mxu0
      %v2158 = vadd.f32 %v1925, %v2157
      %2159 = vmatmul.bf16.gmra.mxu0 %v1087
      %v2160 = vpop.f32.mrf.mxu0
      %v2161 = vadd.f32 %v1928, %v2160
      %v2162 = vpop.f32.mrf.mxu0
      %v2163 = vadd.f32 %v1930, %v2162
      %2164 = vmatmul.bf16.gmra.mxu0 %v1088
      %v2165 = vpop.f32.mrf.mxu0
      %v2166 = vadd.f32 %v1933, %v2165
      %v2167 = vpop.f32.mrf.mxu0
      %v2168 = vadd.f32 %v1935, %v2167
      %2169 = vmatmul.bf16.gmra.mxu0 %v1089
      %v2170 = vpop.f32.mrf.mxu0
      %v2171 = vadd.f32 %v1938, %v2170
      %v2172 = vpop.f32.mrf.mxu0
      %v2173 = vadd.f32 %v1940, %v2172
      %2174 = vmatmul.bf16.gmra.mxu0 %v1090
      %v2175 = vpop.f32.mrf.mxu0
      %v2176 = vadd.f32 %v1943, %v2175
      %v2177 = vpop.f32.mrf.mxu0
      %v2178 = vadd.f32 %v1945, %v2177
      %2179 = vmatmul.bf16.gmra.mxu0 %v1091
      %v2180 = vpop.f32.mrf.mxu0
      %v2181 = vadd.f32 %v1948, %v2180
      %v2182 = vpop.f32.mrf.mxu0
      %v2183 = vadd.f32 %v1950, %v2182
      %2184 = vmatmul.bf16.gmra.mxu0 %v1092
      %v2185 = vpop.f32.mrf.mxu0
      %v2186 = vadd.f32 %v1953, %v2185
      %v2187 = vpop.f32.mrf.mxu0
      %v2188 = vadd.f32 %v1955, %v2187
      %2189 = vmatmul.bf16.gmra.mxu0 %v1093
      %v2190 = vpop.f32.mrf.mxu0
      %v2191 = vadd.f32 %v1958, %v2190
      %v2192 = vpop.f32.mrf.mxu0
      %v2193 = vadd.f32 %v1960, %v2192
      %2194 = vmatmul.bf16.gmra.mxu0 %v1094
      %v2195 = vpop.f32.mrf.mxu0
      %v2196 = vadd.f32 %v1963, %v2195
      %v2197 = vpop.f32.mrf.mxu0
      %v2198 = vadd.f32 %v1965, %v2197
      %2199 = vdwg.mxu0
      %2200 = vmatpush.bf16.msra.mxu0 %v2078
      %2201 = vmatpush.bf16.msra.mxu0 %v2077
      %2202 = vmatpush.bf16.msra.mxu0 %v2076
      %2203 = vmatpush.bf16.msra.mxu0 %v2075
      %2204 = vmatpush.bf16.msra.mxu0 %v2074
      %2205 = vmatpush.bf16.msra.mxu0 %v2073
      %2206 = vmatpush.bf16.msra.mxu0 %v2072
      %2207 = vmatpush.bf16.msra.mxu0 %v2071
      %2208 = vmatmul.bf16.gmra.mxu0 %v1171
      %v2209 = vpop.f32.mrf.mxu0
      %v2210 = vadd.f32 %v2121, %v2209
      %v2211 = vpop.f32.mrf.mxu0
      %v2212 = vadd.f32 %v2123, %v2211
      %2213 = vmatmul.bf16.gmra.mxu0 %v1183
      %v2214 = vpop.f32.mrf.mxu0
      %v2215 = vadd.f32 %v2126, %v2214
      %v2216 = vpop.f32.mrf.mxu0
      %v2217 = vadd.f32 %v2128, %v2216
      %2218 = vmatmul.bf16.gmra.mxu0 %v1195
      %v2219 = vpop.f32.mrf.mxu0
      %v2220 = vadd.f32 %v2131, %v2219
      %v2221 = vpop.f32.mrf.mxu0
      %v2222 = vadd.f32 %v2133, %v2221
      %2223 = vmatmul.bf16.gmra.mxu0 %v1207
      %v2224 = vpop.f32.mrf.mxu0
      %v2225 = vadd.f32 %v2136, %v2224
      %v2226 = vpop.f32.mrf.mxu0
      %v2227 = vadd.f32 %v2138, %v2226
      %2228 = vmatmul.bf16.gmra.mxu0 %v1219
      %v2229 = vpop.f32.mrf.mxu0
      %v2230 = vadd.f32 %v2141, %v2229
      %v2231 = vpop.f32.mrf.mxu0
      %v2232 = vadd.f32 %v2143, %v2231
      %2233 = vmatmul.bf16.gmra.mxu0 %v1231
      %v2234 = vpop.f32.mrf.mxu0
      %v2235 = vadd.f32 %v2146, %v2234
      %v2236 = vpop.f32.mrf.mxu0
      %v2237 = vadd.f32 %v2148, %v2236
      %2238 = vmatmul.bf16.gmra.mxu0 %v1243
      %v2239 = vpop.f32.mrf.mxu0
      %v2240 = vadd.f32 %v2151, %v2239
      %v2241 = vpop.f32.mrf.mxu0
      %v2242 = vadd.f32 %v2153, %v2241
      %2243 = vmatmul.bf16.gmra.mxu0 %v1255
      %v2244 = vpop.f32.mrf.mxu0
      %v2245 = vadd.f32 %v2156, %v2244
      %v2246 = vpop.f32.mrf.mxu0
      %v2247 = vadd.f32 %v2158, %v2246
      %2248 = vmatmul.bf16.gmra.mxu0 %v1267
      %v2249 = vpop.f32.mrf.mxu0
      %v2250 = vadd.f32 %v2161, %v2249
      %v2251 = vpop.f32.mrf.mxu0
      %v2252 = vadd.f32 %v2163, %v2251
      %2253 = vmatmul.bf16.gmra.mxu0 %v1279
      %v2254 = vpop.f32.mrf.mxu0
      %v2255 = vadd.f32 %v2166, %v2254
      %v2256 = vpop.f32.mrf.mxu0
      %v2257 = vadd.f32 %v2168, %v2256
      %2258 = vmatmul.bf16.gmra.mxu0 %v1291
      %v2259 = vpop.f32.mrf.mxu0
      %v2260 = vadd.f32 %v2171, %v2259
      %v2261 = vpop.f32.mrf.mxu0
      %v2262 = vadd.f32 %v2173, %v2261
      %2263 = vmatmul.bf16.gmra.mxu0 %v1303
      %v2264 = vpop.f32.mrf.mxu0
      %v2265 = vadd.f32 %v2176, %v2264
      %v2266 = vpop.f32.mrf.mxu0
      %v2267 = vadd.f32 %v2178, %v2266
      %2268 = vmatmul.bf16.gmra.mxu0 %v1315
      %v2269 = vpop.f32.mrf.mxu0
      %v2270 = vadd.f32 %v2181, %v2269
      %v2271 = vpop.f32.mrf.mxu0
      %v2272 = vadd.f32 %v2183, %v2271
      %2273 = vmatmul.bf16.gmra.mxu0 %v1327
      %v2274 = vpop.f32.mrf.mxu0
      %v2275 = vadd.f32 %v2186, %v2274
      %v2276 = vpop.f32.mrf.mxu0
      %v2277 = vadd.f32 %v2188, %v2276
      %2278 = vmatmul.bf16.gmra.mxu0 %v1339
      %v2279 = vpop.f32.mrf.mxu0
      %v2280 = vadd.f32 %v2191, %v2279
      %v2281 = vpop.f32.mrf.mxu0
      %v2282 = vadd.f32 %v2193, %v2281
      %2283 = vmatmul.bf16.gmra.mxu0 %v1351
      %v2284 = vpop.f32.mrf.mxu0
      %v2285 = vadd.f32 %v2196, %v2284
      %v2286 = vpop.f32.mrf.mxu0
      %v2287 = vadd.f32 %v2198, %v2286
      %2288 = vdwg.mxu0
      %2289 = vmatpush.bf16.msra.mxu0 %v2086
      %2290 = vmatpush.bf16.msra.mxu0 %v2085
      %2291 = vmatpush.bf16.msra.mxu0 %v2084
      %2292 = vmatpush.bf16.msra.mxu0 %v2083
      %2293 = vmatpush.bf16.msra.mxu0 %v2082
      %2294 = vmatpush.bf16.msra.mxu0 %v2081
      %2295 = vmatpush.bf16.msra.mxu0 %v2080
      %2296 = vmatpush.bf16.msra.mxu0 %v2079
      %2297 = vmatmul.bf16.gmra.mxu0 %v1371
      %v2298 = vpop.f32.mrf.mxu0
      %v2299 = vadd.f32 %v2210, %v2298
      %v2300 = vpop.f32.mrf.mxu0
      %v2301 = vadd.f32 %v2212, %v2300
      %2302 = vmatmul.bf16.gmra.mxu0 %v1374
      %v2303 = vpop.f32.mrf.mxu0
      %v2304 = vadd.f32 %v2215, %v2303
      %v2305 = vpop.f32.mrf.mxu0
      %v2306 = vadd.f32 %v2217, %v2305
      %2307 = vmatmul.bf16.gmra.mxu0 %v1377
      %v2308 = vpop.f32.mrf.mxu0
      %v2309 = vadd.f32 %v2220, %v2308
      %v2310 = vpop.f32.mrf.mxu0
      %v2311 = vadd.f32 %v2222, %v2310
      %2312 = vmatmul.bf16.gmra.mxu0 %v1380
      %v2313 = vpop.f32.mrf.mxu0
      %v2314 = vadd.f32 %v2225, %v2313
      %v2315 = vpop.f32.mrf.mxu0
      %v2316 = vadd.f32 %v2227, %v2315
      %2317 = vmatmul.bf16.gmra.mxu0 %v1383
      %v2318 = vpop.f32.mrf.mxu0
      %v2319 = vadd.f32 %v2230, %v2318
      %v2320 = vpop.f32.mrf.mxu0
      %v2321 = vadd.f32 %v2232, %v2320
      %2322 = vmatmul.bf16.gmra.mxu0 %v1386
      %v2323 = vpop.f32.mrf.mxu0
      %v2324 = vadd.f32 %v2235, %v2323
      %v2325 = vpop.f32.mrf.mxu0
      %v2326 = vadd.f32 %v2237, %v2325
      %2327 = vmatmul.bf16.gmra.mxu0 %v1389
      %v2328 = vpop.f32.mrf.mxu0
      %v2329 = vadd.f32 %v2240, %v2328
      %v2330 = vpop.f32.mrf.mxu0
      %v2331 = vadd.f32 %v2242, %v2330
      %2332 = vmatmul.bf16.gmra.mxu0 %v1392
      %v2333 = vpop.f32.mrf.mxu0
      %v2334 = vadd.f32 %v2245, %v2333
      %v2335 = vpop.f32.mrf.mxu0
      %v2336 = vadd.f32 %v2247, %v2335
      %2337 = vmatmul.bf16.gmra.mxu0 %v1395
      %v2338 = vpop.f32.mrf.mxu0
      %v2339 = vadd.f32 %v2250, %v2338
      %v2340 = vpop.f32.mrf.mxu0
      %v2341 = vadd.f32 %v2252, %v2340
      %2342 = vmatmul.bf16.gmra.mxu0 %v1398
      %v2343 = vpop.f32.mrf.mxu0
      %v2344 = vadd.f32 %v2255, %v2343
      %v2345 = vpop.f32.mrf.mxu0
      %v2346 = vadd.f32 %v2257, %v2345
      %2347 = vmatmul.bf16.gmra.mxu0 %v1401
      %v2348 = vpop.f32.mrf.mxu0
      %v2349 = vadd.f32 %v2260, %v2348
      %v2350 = vpop.f32.mrf.mxu0
      %v2351 = vadd.f32 %v2262, %v2350
      %2352 = vmatmul.bf16.gmra.mxu0 %v1404
      %v2353 = vpop.f32.mrf.mxu0
      %v2354 = vadd.f32 %v2265, %v2353
      %v2355 = vpop.f32.mrf.mxu0
      %v2356 = vadd.f32 %v2267, %v2355
      %2357 = vmatmul.bf16.gmra.mxu0 %v1407
      %v2358 = vpop.f32.mrf.mxu0
      %v2359 = vadd.f32 %v2270, %v2358
      %v2360 = vpop.f32.mrf.mxu0
      %v2361 = vadd.f32 %v2272, %v2360
      %2362 = vmatmul.bf16.gmra.mxu0 %v1410
      %v2363 = vpop.f32.mrf.mxu0
      %v2364 = vadd.f32 %v2275, %v2363
      %v2365 = vpop.f32.mrf.mxu0
      %v2366 = vadd.f32 %v2277, %v2365
      %2367 = vmatmul.bf16.gmra.mxu0 %v1413
      %v2368 = vpop.f32.mrf.mxu0
      %v2369 = vadd.f32 %v2280, %v2368
      %v2370 = vpop.f32.mrf.mxu0
      %v2371 = vadd.f32 %v2282, %v2370
      %2372 = vmatmul.bf16.gmra.mxu0 %v1416
      %v2373 = vpop.f32.mrf.mxu0
      %v2374 = vadd.f32 %v2285, %v2373
      %v2375 = vpop.f32.mrf.mxu0
      %v2376 = vadd.f32 %v2287, %v2375
      %2377 = vdwg.mxu0
      %v2380 = vunpack.c.l.b16 %v1012
      %v2381 = vunpack.c.l.b16 %v1013
      %v2382 = vpack.c.b16 %v2381, %v2380
      %v2385 = vunpack.c.l.b16 %v1014
      %v2386 = vpack.c.b16 %v2385, %v2385
      %v2388 = vshrl.u32 %v2382, 16
      %v2390 = vshll.u32 %v2382, 16
      %v2392 = vrot.slane %v2390, 1
      %v2393 = vor.u32 %v2388, %v2392
      %v2395 = vshll.u32 %v2386, 16
      %v2397 = vrot.slane %v2395, 1
      %v2398 = vsel %vm1159, %v2393, %v2397
      %v2400 = vrot.slane %v2382, 1
      %v2401 = vrot.slane %v2386, 1
      %v2402 = vsel %vm1368, %v2400, %v2401
      %s2404 = scalar_lea.vmem %s3, 384
      %v2405 = vld [vmem:[%s2404] sm:$0xf]
      %v2406 = vld [vmem:[%s2404 + $0x4] sm:$0xf]
      %v2407 = vld [vmem:[%s2404 + $0x8] sm:$0xf]
      %v2408 = vld [vmem:[%s2404 + $0xc] sm:$0xf]
      %v2409 = vld [vmem:[%s2404 + $0x10] sm:$0xf]
      %v2410 = vld [vmem:[%s2404 + $0x14] sm:$0xf]
      %v2411 = vld [vmem:[%s2404 + $0x18] sm:$0xf]
      %v2412 = vld [vmem:[%s2404 + $0x1c] sm:$0xf]
      %v2413 = vld [vmem:[%s2404 + $0x20] sm:$0xf]
      %v2414 = vld [vmem:[%s2404 + $0x24] sm:$0xf]
      %v2415 = vld [vmem:[%s2404 + $0x28] sm:$0xf]
      %v2416 = vld [vmem:[%s2404 + $0x2c] sm:$0xf]
      %v2417 = vld [vmem:[%s2404 + $0x30] sm:$0xf]
      %v2418 = vld [vmem:[%s2404 + $0x34] sm:$0xf]
      %v2419 = vld [vmem:[%s2404 + $0x38] sm:$0xf]
      %v2420 = vld [vmem:[%s2404 + $0x3c] sm:$0xf]
      %v2421 = vld [vmem:[%s2404 + $0x40] sm:$0xf]
      %v2422 = vld [vmem:[%s2404 + $0x44] sm:$0xf]
      %v2423 = vld [vmem:[%s2404 + $0x48] sm:$0xf]
      %v2424 = vld [vmem:[%s2404 + $0x4c] sm:$0xf]
      %v2425 = vld [vmem:[%s2404 + $0x50] sm:$0xf]
      %v2426 = vld [vmem:[%s2404 + $0x54] sm:$0xf]
      %v2427 = vld [vmem:[%s2404 + $0x58] sm:$0xf]
      %v2428 = vld [vmem:[%s2404 + $0x5c] sm:$0xf]
      %v2429 = vld [vmem:[%s2404 + $0x60] sm:$0xf]
      %v2430 = vld [vmem:[%s2404 + $0x64] sm:$0xf]
      %v2431 = vld [vmem:[%s2404 + $0x68] sm:$0xf]
      %v2432 = vld [vmem:[%s2404 + $0x6c] sm:$0xf]
      %v2433 = vld [vmem:[%s2404 + $0x70] sm:$0xf]
      %v2434 = vld [vmem:[%s2404 + $0x74] sm:$0xf]
      %v2435 = vld [vmem:[%s2404 + $0x78] sm:$0xf]
      %v2436 = vld [vmem:[%s2404 + $0x7c] sm:$0xf]
      %v2437 = vld [vmem:[%s2404 + $0x80] sm:$0xf]
      %v2438 = vld [vmem:[%s2404 + $0x84] sm:$0xf]
      %v2439 = vld [vmem:[%s2404 + $0x88] sm:$0xf]
      %v2440 = vld [vmem:[%s2404 + $0x8c] sm:$0xf]
      %v2441 = vld [vmem:[%s2404 + $0x90] sm:$0xf]
      %v2442 = vld [vmem:[%s2404 + $0x94] sm:$0xf]
      %v2443 = vld [vmem:[%s2404 + $0x98] sm:$0xf]
      %v2444 = vld [vmem:[%s2404 + $0x9c] sm:$0xf]
      %v2445 = vld [vmem:[%s2404 + $0xa0] sm:$0xf]
      %v2446 = vld [vmem:[%s2404 + $0xa4] sm:$0xf]
      %v2447 = vld [vmem:[%s2404 + $0xa8] sm:$0xf]
      %v2448 = vld [vmem:[%s2404 + $0xac] sm:$0xf]
      %v2449 = vld [vmem:[%s2404 + $0xb0] sm:$0xf]
      %v2450 = vld [vmem:[%s2404 + $0xb4] sm:$0xf]
      %v2451 = vld [vmem:[%s2404 + $0xb8] sm:$0xf]
      %v2452 = vld [vmem:[%s2404 + $0xbc] sm:$0xf]
      %v2501 = vunpack.c.l.b16 %v2405
      %v2502 = vunpack.c.l.b16 %v2406
      %v2503 = vunpack.c.l.b16 %v2407
      %v2504 = vunpack.c.l.b16 %v2408
      %v2505 = vunpack.c.l.b16 %v2409
      %v2506 = vunpack.c.l.b16 %v2410
      %v2507 = vunpack.c.l.b16 %v2411
      %v2508 = vunpack.c.l.b16 %v2412
      %v2509 = vunpack.c.l.b16 %v2413
      %v2510 = vunpack.c.l.b16 %v2414
      %v2511 = vunpack.c.l.b16 %v2415
      %v2512 = vunpack.c.l.b16 %v2416
      %v2513 = vunpack.c.l.b16 %v2417
      %v2514 = vunpack.c.l.b16 %v2418
      %v2515 = vunpack.c.l.b16 %v2419
      %v2516 = vunpack.c.l.b16 %v2420
      %v2517 = vunpack.c.l.b16 %v2421
      %v2518 = vunpack.c.l.b16 %v2422
      %v2519 = vunpack.c.l.b16 %v2423
      %v2520 = vunpack.c.l.b16 %v2424
      %v2521 = vunpack.c.l.b16 %v2425
      %v2522 = vunpack.c.l.b16 %v2426
      %v2523 = vunpack.c.l.b16 %v2427
      %v2524 = vunpack.c.l.b16 %v2428
      %v2525 = vunpack.c.l.b16 %v2429
      %v2526 = vunpack.c.l.b16 %v2430
      %v2527 = vunpack.c.l.b16 %v2431
      %v2528 = vunpack.c.l.b16 %v2432
      %v2529 = vunpack.c.l.b16 %v2433
      %v2530 = vunpack.c.l.b16 %v2434
      %v2531 = vunpack.c.l.b16 %v2435
      %v2532 = vunpack.c.l.b16 %v2436
      %v2533 = vunpack.c.l.b16 %v2437
      %v2534 = vunpack.c.l.b16 %v2438
      %v2535 = vunpack.c.l.b16 %v2439
      %v2536 = vunpack.c.l.b16 %v2440
      %v2537 = vunpack.c.l.b16 %v2441
      %v2538 = vunpack.c.l.b16 %v2442
      %v2539 = vunpack.c.l.b16 %v2443
      %v2540 = vunpack.c.l.b16 %v2444
      %v2541 = vunpack.c.l.b16 %v2445
      %v2542 = vunpack.c.l.b16 %v2446
      %v2543 = vunpack.c.l.b16 %v2447
      %v2544 = vunpack.c.l.b16 %v2448
      %v2545 = vunpack.c.l.b16 %v2449
      %v2546 = vunpack.c.l.b16 %v2450
      %v2547 = vunpack.c.l.b16 %v2451
      %v2548 = vunpack.c.l.b16 %v2452
      %v2549 = vpack.c.b16 %v2502, %v2501
      %v2550 = vpack.c.b16 %v2504, %v2503
      %v2551 = vpack.c.b16 %v2506, %v2505
      %v2552 = vpack.c.b16 %v2508, %v2507
      %v2553 = vpack.c.b16 %v2510, %v2509
      %v2554 = vpack.c.b16 %v2512, %v2511
      %v2555 = vpack.c.b16 %v2514, %v2513
      %v2556 = vpack.c.b16 %v2516, %v2515
      %v2557 = vpack.c.b16 %v2518, %v2517
      %v2558 = vpack.c.b16 %v2520, %v2519
      %v2559 = vpack.c.b16 %v2522, %v2521
      %v2560 = vpack.c.b16 %v2524, %v2523
      %v2561 = vpack.c.b16 %v2526, %v2525
      %v2562 = vpack.c.b16 %v2528, %v2527
      %v2563 = vpack.c.b16 %v2530, %v2529
      %v2564 = vpack.c.b16 %v2532, %v2531
      %v2565 = vpack.c.b16 %v2534, %v2533
      %v2566 = vpack.c.b16 %v2536, %v2535
      %v2567 = vpack.c.b16 %v2538, %v2537
      %v2568 = vpack.c.b16 %v2540, %v2539
      %v2569 = vpack.c.b16 %v2542, %v2541
      %v2570 = vpack.c.b16 %v2544, %v2543
      %v2571 = vpack.c.b16 %v2546, %v2545
      %v2572 = vpack.c.b16 %v2548, %v2547
      %2597 = vmatpush.bf16.msra.mxu0 %v2556
      %2598 = vmatpush.bf16.msra.mxu0 %v2555
      %2599 = vmatpush.bf16.msra.mxu0 %v2554
      %2600 = vmatpush.bf16.msra.mxu0 %v2553
      %2601 = vmatpush.bf16.msra.mxu0 %v2552
      %2602 = vmatpush.bf16.msra.mxu0 %v2551
      %2603 = vmatpush.bf16.msra.mxu0 %v2550
      %2604 = vmatpush.bf16.msra.mxu0 %v2549
      %2605 = vmatmul.bf16.gmra.mxu0 %v1081
      %v2606 = vpop.f32.mrf.mxu0
      %v2607 = vadd.f32 0.0, %v2606
      %v2608 = vpop.f32.mrf.mxu0
      %v2609 = vadd.f32 0.0, %v2608
      %2610 = vmatmul.bf16.gmra.mxu0 %v1082
      %v2611 = vpop.f32.mrf.mxu0
      %v2612 = vadd.f32 0.0, %v2611
      %v2613 = vpop.f32.mrf.mxu0
      %v2614 = vadd.f32 0.0, %v2613
      %2615 = vmatmul.bf16.gmra.mxu0 %v1083
      %v2616 = vpop.f32.mrf.mxu0
      %v2617 = vadd.f32 0.0, %v2616
      %v2618 = vpop.f32.mrf.mxu0
      %v2619 = vadd.f32 0.0, %v2618
      %2620 = vmatmul.bf16.gmra.mxu0 %v1084
      %v2621 = vpop.f32.mrf.mxu0
      %v2622 = vadd.f32 0.0, %v2621
      %v2623 = vpop.f32.mrf.mxu0
      %v2624 = vadd.f32 0.0, %v2623
      %2625 = vmatmul.bf16.gmra.mxu0 %v1085
      %v2626 = vpop.f32.mrf.mxu0
      %v2627 = vadd.f32 0.0, %v2626
      %v2628 = vpop.f32.mrf.mxu0
      %v2629 = vadd.f32 0.0, %v2628
      %2630 = vmatmul.bf16.gmra.mxu0 %v1086
      %v2631 = vpop.f32.mrf.mxu0
      %v2632 = vadd.f32 0.0, %v2631
      %v2633 = vpop.f32.mrf.mxu0
      %v2634 = vadd.f32 0.0, %v2633
      %2635 = vmatmul.bf16.gmra.mxu0 %v1087
      %v2636 = vpop.f32.mrf.mxu0
      %v2637 = vadd.f32 0.0, %v2636
      %v2638 = vpop.f32.mrf.mxu0
      %v2639 = vadd.f32 0.0, %v2638
      %2640 = vmatmul.bf16.gmra.mxu0 %v1088
      %v2641 = vpop.f32.mrf.mxu0
      %v2642 = vadd.f32 0.0, %v2641
      %v2643 = vpop.f32.mrf.mxu0
      %v2644 = vadd.f32 0.0, %v2643
      %2645 = vmatmul.bf16.gmra.mxu0 %v1089
      %v2646 = vpop.f32.mrf.mxu0
      %v2647 = vadd.f32 0.0, %v2646
      %v2648 = vpop.f32.mrf.mxu0
      %v2649 = vadd.f32 0.0, %v2648
      %2650 = vmatmul.bf16.gmra.mxu0 %v1090
      %v2651 = vpop.f32.mrf.mxu0
      %v2652 = vadd.f32 0.0, %v2651
      %v2653 = vpop.f32.mrf.mxu0
      %v2654 = vadd.f32 0.0, %v2653
      %2655 = vmatmul.bf16.gmra.mxu0 %v1091
      %v2656 = vpop.f32.mrf.mxu0
      %v2657 = vadd.f32 0.0, %v2656
      %v2658 = vpop.f32.mrf.mxu0
      %v2659 = vadd.f32 0.0, %v2658
      %2660 = vmatmul.bf16.gmra.mxu0 %v1092
      %v2661 = vpop.f32.mrf.mxu0
      %v2662 = vadd.f32 0.0, %v2661
      %v2663 = vpop.f32.mrf.mxu0
      %v2664 = vadd.f32 0.0, %v2663
      %2665 = vmatmul.bf16.gmra.mxu0 %v1093
      %v2666 = vpop.f32.mrf.mxu0
      %v2667 = vadd.f32 0.0, %v2666
      %v2668 = vpop.f32.mrf.mxu0
      %v2669 = vadd.f32 0.0, %v2668
      %2670 = vmatmul.bf16.gmra.mxu0 %v1094
      %v2671 = vpop.f32.mrf.mxu0
      %v2672 = vadd.f32 0.0, %v2671
      %v2673 = vpop.f32.mrf.mxu0
      %v2674 = vadd.f32 0.0, %v2673
      %2675 = vmatmul.bf16.gmra.mxu0 %v1485
      %v2676 = vpop.f32.mrf.mxu0
      %v2677 = vadd.f32 0.0, %v2676
      %v2678 = vpop.f32.mrf.mxu0
      %v2679 = vadd.f32 0.0, %v2678
      %2680 = vmatmul.bf16.gmra.mxu0 %v2382
      %v2681 = vpop.f32.mrf.mxu0
      %v2682 = vadd.f32 0.0, %v2681
      %v2683 = vpop.f32.mrf.mxu0
      %v2684 = vadd.f32 0.0, %v2683
      %2685 = vdwg.mxu0
      %2686 = vmatpush.bf16.msra.mxu0 %v2564
      %2687 = vmatpush.bf16.msra.mxu0 %v2563
      %2688 = vmatpush.bf16.msra.mxu0 %v2562
      %2689 = vmatpush.bf16.msra.mxu0 %v2561
      %2690 = vmatpush.bf16.msra.mxu0 %v2560
      %2691 = vmatpush.bf16.msra.mxu0 %v2559
      %2692 = vmatpush.bf16.msra.mxu0 %v2558
      %2693 = vmatpush.bf16.msra.mxu0 %v2557
      %2694 = vmatmul.bf16.gmra.mxu0 %v1195
      %v2695 = vpop.f32.mrf.mxu0
      %v2696 = vadd.f32 %v2607, %v2695
      %v2697 = vpop.f32.mrf.mxu0
      %v2698 = vadd.f32 %v2609, %v2697
      %2699 = vmatmul.bf16.gmra.mxu0 %v1207
      %v2700 = vpop.f32.mrf.mxu0
      %v2701 = vadd.f32 %v2612, %v2700
      %v2702 = vpop.f32.mrf.mxu0
      %v2703 = vadd.f32 %v2614, %v2702
      %2704 = vmatmul.bf16.gmra.mxu0 %v1219
      %v2705 = vpop.f32.mrf.mxu0
      %v2706 = vadd.f32 %v2617, %v2705
      %v2707 = vpop.f32.mrf.mxu0
      %v2708 = vadd.f32 %v2619, %v2707
      %2709 = vmatmul.bf16.gmra.mxu0 %v1231
      %v2710 = vpop.f32.mrf.mxu0
      %v2711 = vadd.f32 %v2622, %v2710
      %v2712 = vpop.f32.mrf.mxu0
      %v2713 = vadd.f32 %v2624, %v2712
      %2714 = vmatmul.bf16.gmra.mxu0 %v1243
      %v2715 = vpop.f32.mrf.mxu0
      %v2716 = vadd.f32 %v2627, %v2715
      %v2717 = vpop.f32.mrf.mxu0
      %v2718 = vadd.f32 %v2629, %v2717
      %2719 = vmatmul.bf16.gmra.mxu0 %v1255
      %v2720 = vpop.f32.mrf.mxu0
      %v2721 = vadd.f32 %v2632, %v2720
      %v2722 = vpop.f32.mrf.mxu0
      %v2723 = vadd.f32 %v2634, %v2722
      %2724 = vmatmul.bf16.gmra.mxu0 %v1267
      %v2725 = vpop.f32.mrf.mxu0
      %v2726 = vadd.f32 %v2637, %v2725
      %v2727 = vpop.f32.mrf.mxu0
      %v2728 = vadd.f32 %v2639, %v2727
      %2729 = vmatmul.bf16.gmra.mxu0 %v1279
      %v2730 = vpop.f32.mrf.mxu0
      %v2731 = vadd.f32 %v2642, %v2730
      %v2732 = vpop.f32.mrf.mxu0
      %v2733 = vadd.f32 %v2644, %v2732
      %2734 = vmatmul.bf16.gmra.mxu0 %v1291
      %v2735 = vpop.f32.mrf.mxu0
      %v2736 = vadd.f32 %v2647, %v2735
      %v2737 = vpop.f32.mrf.mxu0
      %v2738 = vadd.f32 %v2649, %v2737
      %2739 = vmatmul.bf16.gmra.mxu0 %v1303
      %v2740 = vpop.f32.mrf.mxu0
      %v2741 = vadd.f32 %v2652, %v2740
      %v2742 = vpop.f32.mrf.mxu0
      %v2743 = vadd.f32 %v2654, %v2742
      %2744 = vmatmul.bf16.gmra.mxu0 %v1315
      %v2745 = vpop.f32.mrf.mxu0
      %v2746 = vadd.f32 %v2657, %v2745
      %v2747 = vpop.f32.mrf.mxu0
      %v2748 = vadd.f32 %v2659, %v2747
      %2749 = vmatmul.bf16.gmra.mxu0 %v1327
      %v2750 = vpop.f32.mrf.mxu0
      %v2751 = vadd.f32 %v2662, %v2750
      %v2752 = vpop.f32.mrf.mxu0
      %v2753 = vadd.f32 %v2664, %v2752
      %2754 = vmatmul.bf16.gmra.mxu0 %v1339
      %v2755 = vpop.f32.mrf.mxu0
      %v2756 = vadd.f32 %v2667, %v2755
      %v2757 = vpop.f32.mrf.mxu0
      %v2758 = vadd.f32 %v2669, %v2757
      %2759 = vmatmul.bf16.gmra.mxu0 %v1351
      %v2760 = vpop.f32.mrf.mxu0
      %v2761 = vadd.f32 %v2672, %v2760
      %v2762 = vpop.f32.mrf.mxu0
      %v2763 = vadd.f32 %v2674, %v2762
      %2764 = vmatmul.bf16.gmra.mxu0 %v1501
      %v2765 = vpop.f32.mrf.mxu0
      %v2766 = vadd.f32 %v2677, %v2765
      %v2767 = vpop.f32.mrf.mxu0
      %v2768 = vadd.f32 %v2679, %v2767
      %2769 = vmatmul.bf16.gmra.mxu0 %v2398
      %v2770 = vpop.f32.mrf.mxu0
      %v2771 = vadd.f32 %v2682, %v2770
      %v2772 = vpop.f32.mrf.mxu0
      %v2773 = vadd.f32 %v2684, %v2772
      %2774 = vdwg.mxu0
      %2775 = vmatpush.bf16.msra.mxu0 %v2572
      %2776 = vmatpush.bf16.msra.mxu0 %v2571
      %2777 = vmatpush.bf16.msra.mxu0 %v2570
      %2778 = vmatpush.bf16.msra.mxu0 %v2569
      %2779 = vmatpush.bf16.msra.mxu0 %v2568
      %2780 = vmatpush.bf16.msra.mxu0 %v2567
      %2781 = vmatpush.bf16.msra.mxu0 %v2566
      %2782 = vmatpush.bf16.msra.mxu0 %v2565
      %2783 = vmatmul.bf16.gmra.mxu0 %v1377
      %v2784 = vpop.f32.mrf.mxu0
      %v2785 = vadd.f32 %v2696, %v2784
      %v2786 = vpop.f32.mrf.mxu0
      %v2787 = vadd.f32 %v2698, %v2786
      %2788 = vmatmul.bf16.gmra.mxu0 %v1380
      %v2789 = vpop.f32.mrf.mxu0
      %v2790 = vadd.f32 %v2701, %v2789
      %v2791 = vpop.f32.mrf.mxu0
      %v2792 = vadd.f32 %v2703, %v2791
      %2793 = vmatmul.bf16.gmra.mxu0 %v1383
      %v2794 = vpop.f32.mrf.mxu0
      %v2795 = vadd.f32 %v2706, %v2794
      %v2796 = vpop.f32.mrf.mxu0
      %v2797 = vadd.f32 %v2708, %v2796
      %2798 = vmatmul.bf16.gmra.mxu0 %v1386
      %v2799 = vpop.f32.mrf.mxu0
      %v2800 = vadd.f32 %v2711, %v2799
      %v2801 = vpop.f32.mrf.mxu0
      %v2802 = vadd.f32 %v2713, %v2801
      %2803 = vmatmul.bf16.gmra.mxu0 %v1389
      %v2804 = vpop.f32.mrf.mxu0
      %v2805 = vadd.f32 %v2716, %v2804
      %v2806 = vpop.f32.mrf.mxu0
      %v2807 = vadd.f32 %v2718, %v2806
      %2808 = vmatmul.bf16.gmra.mxu0 %v1392
      %v2809 = vpop.f32.mrf.mxu0
      %v2810 = vadd.f32 %v2721, %v2809
      %v2811 = vpop.f32.mrf.mxu0
      %v2812 = vadd.f32 %v2723, %v2811
      %2813 = vmatmul.bf16.gmra.mxu0 %v1395
      %v2814 = vpop.f32.mrf.mxu0
      %v2815 = vadd.f32 %v2726, %v2814
      %v2816 = vpop.f32.mrf.mxu0
      %v2817 = vadd.f32 %v2728, %v2816
      %2818 = vmatmul.bf16.gmra.mxu0 %v1398
      %v2819 = vpop.f32.mrf.mxu0
      %v2820 = vadd.f32 %v2731, %v2819
      %v2821 = vpop.f32.mrf.mxu0
      %v2822 = vadd.f32 %v2733, %v2821
      %2823 = vmatmul.bf16.gmra.mxu0 %v1401
      %v2824 = vpop.f32.mrf.mxu0
      %v2825 = vadd.f32 %v2736, %v2824
      %v2826 = vpop.f32.mrf.mxu0
      %v2827 = vadd.f32 %v2738, %v2826
      %2828 = vmatmul.bf16.gmra.mxu0 %v1404
      %v2829 = vpop.f32.mrf.mxu0
      %v2830 = vadd.f32 %v2741, %v2829
      %v2831 = vpop.f32.mrf.mxu0
      %v2832 = vadd.f32 %v2743, %v2831
      %2833 = vmatmul.bf16.gmra.mxu0 %v1407
      %v2834 = vpop.f32.mrf.mxu0
      %v2835 = vadd.f32 %v2746, %v2834
      %v2836 = vpop.f32.mrf.mxu0
      %v2837 = vadd.f32 %v2748, %v2836
      %2838 = vmatmul.bf16.gmra.mxu0 %v1410
      %v2839 = vpop.f32.mrf.mxu0
      %v2840 = vadd.f32 %v2751, %v2839
      %v2841 = vpop.f32.mrf.mxu0
      %v2842 = vadd.f32 %v2753, %v2841
      %2843 = vmatmul.bf16.gmra.mxu0 %v1413
      %v2844 = vpop.f32.mrf.mxu0
      %v2845 = vadd.f32 %v2756, %v2844
      %v2846 = vpop.f32.mrf.mxu0
      %v2847 = vadd.f32 %v2758, %v2846
      %2848 = vmatmul.bf16.gmra.mxu0 %v1416
      %v2849 = vpop.f32.mrf.mxu0
      %v2850 = vadd.f32 %v2761, %v2849
      %v2851 = vpop.f32.mrf.mxu0
      %v2852 = vadd.f32 %v2763, %v2851
      %2853 = vmatmul.bf16.gmra.mxu0 %v1505
      %v2854 = vpop.f32.mrf.mxu0
      %v2855 = vadd.f32 %v2766, %v2854
      %v2856 = vpop.f32.mrf.mxu0
      %v2857 = vadd.f32 %v2768, %v2856
      %2858 = vmatmul.bf16.gmra.mxu0 %v2402
      %v2859 = vpop.f32.mrf.mxu0
      %v2860 = vadd.f32 %v2771, %v2859
      %v2861 = vpop.f32.mrf.mxu0
      %v2862 = vadd.f32 %v2773, %v2861
      %2863 = vdwg.mxu0
      %v2864 = vadd.f32 %v2299, %v2785
      %v2865 = vadd.f32 %v2301, %v2787
      %v2866 = vadd.f32 %v2304, %v2790
      %v2867 = vadd.f32 %v2306, %v2792
      %v2868 = vadd.f32 %v2309, %v2795
      %v2869 = vadd.f32 %v2311, %v2797
      %v2870 = vadd.f32 %v2314, %v2800
      %v2871 = vadd.f32 %v2316, %v2802
      %v2872 = vadd.f32 %v2319, %v2805
      %v2873 = vadd.f32 %v2321, %v2807
      %v2874 = vadd.f32 %v2324, %v2810
      %v2875 = vadd.f32 %v2326, %v2812
      %v2876 = vadd.f32 %v2329, %v2815
      %v2877 = vadd.f32 %v2331, %v2817
      %v2878 = vadd.f32 %v2334, %v2820
      %v2879 = vadd.f32 %v2336, %v2822
      %v2880 = vadd.f32 %v2339, %v2825
      %v2881 = vadd.f32 %v2341, %v2827
      %v2882 = vadd.f32 %v2344, %v2830
      %v2883 = vadd.f32 %v2346, %v2832
      %v2884 = vadd.f32 %v2349, %v2835
      %v2885 = vadd.f32 %v2351, %v2837
      %v2886 = vadd.f32 %v2354, %v2840
      %v2887 = vadd.f32 %v2356, %v2842
      %v2888 = vadd.f32 %v2359, %v2845
      %v2889 = vadd.f32 %v2361, %v2847
      %v2890 = vadd.f32 %v2364, %v2850
      %v2891 = vadd.f32 %v2366, %v2852
      %v2892 = vadd.f32 %v2369, %v2855
      %v2893 = vadd.f32 %v2371, %v2857
      %v2894 = vadd.f32 %v2374, %v2860
      %v2895 = vadd.f32 %v2376, %v2862
      %v2896 = vpack.c.bf16 %v2864, %v2864
      %v2897 = vpack.c.bf16 %v2865, %v2865
      %v2898 = vpack.c.bf16 %v2866, %v2866
      %v2899 = vpack.c.bf16 %v2867, %v2867
      %v2900 = vpack.c.bf16 %v2868, %v2868
      %v2901 = vpack.c.bf16 %v2869, %v2869
      %v2902 = vpack.c.bf16 %v2870, %v2870
      %v2903 = vpack.c.bf16 %v2871, %v2871
      %v2904 = vpack.c.bf16 %v2872, %v2872
      %v2905 = vpack.c.bf16 %v2873, %v2873
      %v2906 = vpack.c.bf16 %v2874, %v2874
      %v2907 = vpack.c.bf16 %v2875, %v2875
      %v2908 = vpack.c.bf16 %v2876, %v2876
      %v2909 = vpack.c.bf16 %v2877, %v2877
      %v2910 = vpack.c.bf16 %v2878, %v2878
      %v2911 = vpack.c.bf16 %v2879, %v2879
      %v2912 = vpack.c.bf16 %v2880, %v2880
      %v2913 = vpack.c.bf16 %v2881, %v2881
      %v2914 = vpack.c.bf16 %v2882, %v2882
      %v2915 = vpack.c.bf16 %v2883, %v2883
      %v2916 = vpack.c.bf16 %v2884, %v2884
      %v2917 = vpack.c.bf16 %v2885, %v2885
      %v2918 = vpack.c.bf16 %v2886, %v2886
      %v2919 = vpack.c.bf16 %v2887, %v2887
      %v2920 = vpack.c.bf16 %v2888, %v2888
      %v2921 = vpack.c.bf16 %v2889, %v2889
      %v2922 = vpack.c.bf16 %v2890, %v2890
      %v2923 = vpack.c.bf16 %v2891, %v2891
      %v2924 = vpack.c.bf16 %v2892, %v2892
      %v2925 = vpack.c.bf16 %v2893, %v2893
      %v2926 = vpack.c.bf16 %v2894, %v2894
      %v2927 = vpack.c.bf16 %v2895, %v2895
      %2928 = vst [vmem:[%s254] sm:$0xf] %v2896
      %2929 = vst [vmem:[%s254 + $0x4] sm:$0xf] %v2897
      %2930 = vst [vmem:[%s254 + $0x8] sm:$0xf] %v2898
      %2931 = vst [vmem:[%s254 + $0xc] sm:$0xf] %v2899
      %2932 = vst [vmem:[%s254 + $0x10] sm:$0xf] %v2900
      %2933 = vst [vmem:[%s254 + $0x14] sm:$0xf] %v2901
      %2934 = vst [vmem:[%s254 + $0x18] sm:$0xf] %v2902
      %2935 = vst [vmem:[%s254 + $0x1c] sm:$0xf] %v2903
      %2936 = vst [vmem:[%s254 + $0x20] sm:$0xf] %v2904
      %2937 = vst [vmem:[%s254 + $0x24] sm:$0xf] %v2905
      %2938 = vst [vmem:[%s254 + $0x28] sm:$0xf] %v2906
      %2939 = vst [vmem:[%s254 + $0x2c] sm:$0xf] %v2907
      %2940 = vst [vmem:[%s254 + $0x30] sm:$0xf] %v2908
      %2941 = vst [vmem:[%s254 + $0x34] sm:$0xf] %v2909
      %2942 = vst [vmem:[%s254 + $0x38] sm:$0xf] %v2910
      %2943 = vst [vmem:[%s254 + $0x3c] sm:$0xf] %v2911
      %2944 = vst [vmem:[%s254 + $0x40] sm:$0xf] %v2912
      %2945 = vst [vmem:[%s254 + $0x44] sm:$0xf] %v2913
      %2946 = vst [vmem:[%s254 + $0x48] sm:$0xf] %v2914
      %2947 = vst [vmem:[%s254 + $0x4c] sm:$0xf] %v2915
      %2948 = vst [vmem:[%s254 + $0x50] sm:$0xf] %v2916
      %2949 = vst [vmem:[%s254 + $0x54] sm:$0xf] %v2917
      %2950 = vst [vmem:[%s254 + $0x58] sm:$0xf] %v2918
      %2951 = vst [vmem:[%s254 + $0x5c] sm:$0xf] %v2919
      %2952 = vst [vmem:[%s254 + $0x60] sm:$0xf] %v2920
      %2953 = vst [vmem:[%s254 + $0x64] sm:$0xf] %v2921
      %2954 = vst [vmem:[%s254 + $0x68] sm:$0xf] %v2922
      %2955 = vst [vmem:[%s254 + $0x6c] sm:$0xf] %v2923
      %2956 = vst [vmem:[%s254 + $0x70] sm:$0xf] %v2924
      %2957 = vst [vmem:[%s254 + $0x74] sm:$0xf] %v2925
      %2958 = vst [vmem:[%s254 + $0x78] sm:$0xf] %v2926
      %2959 = vst [vmem:[%s254 + $0x7c] sm:$0xf] %v2927
      %v2960 = vld [vmem:[%s259] sm:$0x3]
      %v2961 = vadd.f32 %v2864, %v2865
      %v2962 = vadd.f32 %v2961, %v2866
      %v2963 = vadd.f32 %v2962, %v2867
      %v2964 = vadd.f32 %v2963, %v2868
      %v2965 = vadd.f32 %v2964, %v2869
      %v2966 = vadd.f32 %v2965, %v2870
      %v2967 = vadd.f32 %v2966, %v2871
      %v2968 = vadd.f32 %v2967, %v2872
      %v2969 = vadd.f32 %v2968, %v2873
      %v2970 = vadd.f32 %v2969, %v2874
      %v2971 = vadd.f32 %v2970, %v2875
      %v2972 = vadd.f32 %v2971, %v2876
      %v2973 = vadd.f32 %v2972, %v2877
      %v2974 = vadd.f32 %v2973, %v2878
      %v2975 = vadd.f32 %v2974, %v2879
      %v2976 = vadd.f32 %v2975, %v2880
      %v2977 = vadd.f32 %v2976, %v2881
      %v2978 = vadd.f32 %v2977, %v2882
      %v2979 = vadd.f32 %v2978, %v2883
      %v2980 = vadd.f32 %v2979, %v2884
      %v2981 = vadd.f32 %v2980, %v2885
      %v2982 = vadd.f32 %v2981, %v2886
      %v2983 = vadd.f32 %v2982, %v2887
      %v2984 = vadd.f32 %v2983, %v2888
      %v2985 = vadd.f32 %v2984, %v2889
      %v2986 = vadd.f32 %v2985, %v2890
      %v2987 = vadd.f32 %v2986, %v2891
      %v2988 = vadd.f32 %v2987, %v2892
      %v2989 = vadd.f32 %v2988, %v2893
      %v2990 = vadd.f32 %v2989, %v2894
      %v2991 = vadd.f32 %v2990, %v2895
      %v2992 = vrot.slane %v2991, 4
      %v2993 = vadd.f32 %v2991, %v2992
      %v2994 = vrot.slane %v2993, 2
      %v2995 = vadd.f32 %v2993, %v2994
      %v2996 = vrot.slane %v2995, 1
      %v2997 = vadd.f32 %v2995, %v2996
      %v2998 = vmul.f32 %v2864, %v2864
      %v2999 = vmul.f32 %v2865, %v2865
      %v3000 = vmul.f32 %v2866, %v2866
      %v3001 = vmul.f32 %v2867, %v2867
      %v3002 = vmul.f32 %v2868, %v2868
      %v3003 = vmul.f32 %v2869, %v2869
      %v3004 = vmul.f32 %v2870, %v2870
      %v3005 = vmul.f32 %v2871, %v2871
      %v3006 = vmul.f32 %v2872, %v2872
      %v3007 = vmul.f32 %v2873, %v2873
      %v3008 = vmul.f32 %v2874, %v2874
      %v3009 = vmul.f32 %v2875, %v2875
      %v3010 = vmul.f32 %v2876, %v2876
      %v3011 = vmul.f32 %v2877, %v2877
      %v3012 = vmul.f32 %v2878, %v2878
      %v3013 = vmul.f32 %v2879, %v2879
      %v3014 = vmul.f32 %v2880, %v2880
      %v3015 = vmul.f32 %v2881, %v2881
      %v3016 = vmul.f32 %v2882, %v2882
      %v3017 = vmul.f32 %v2883, %v2883
      %v3018 = vmul.f32 %v2884, %v2884
      %v3019 = vmul.f32 %v2885, %v2885
      %v3020 = vmul.f32 %v2886, %v2886
      %v3021 = vmul.f32 %v2887, %v2887
      %v3022 = vmul.f32 %v2888, %v2888
      %v3023 = vmul.f32 %v2889, %v2889
      %v3024 = vmul.f32 %v2890, %v2890
      %v3025 = vmul.f32 %v2891, %v2891
      %v3026 = vmul.f32 %v2892, %v2892
      %v3027 = vmul.f32 %v2893, %v2893
      %v3028 = vmul.f32 %v2894, %v2894
      %v3029 = vmul.f32 %v2895, %v2895
      %v3030 = vadd.f32 %v2998, %v2999
      %v3031 = vadd.f32 %v3030, %v3000
      %v3032 = vadd.f32 %v3031, %v3001
      %v3033 = vadd.f32 %v3032, %v3002
      %v3034 = vadd.f32 %v3033, %v3003
      %v3035 = vadd.f32 %v3034, %v3004
      %v3036 = vadd.f32 %v3035, %v3005
      %v3037 = vadd.f32 %v3036, %v3006
      %v3038 = vadd.f32 %v3037, %v3007
      %v3039 = vadd.f32 %v3038, %v3008
      %v3040 = vadd.f32 %v3039, %v3009
      %v3041 = vadd.f32 %v3040, %v3010
      %v3042 = vadd.f32 %v3041, %v3011
      %v3043 = vadd.f32 %v3042, %v3012
      %v3044 = vadd.f32 %v3043, %v3013
      %v3045 = vadd.f32 %v3044, %v3014
      %v3046 = vadd.f32 %v3045, %v3015
      %v3047 = vadd.f32 %v3046, %v3016
      %v3048 = vadd.f32 %v3047, %v3017
      %v3049 = vadd.f32 %v3048, %v3018
      %v3050 = vadd.f32 %v3049, %v3019
      %v3051 = vadd.f32 %v3050, %v3020
      %v3052 = vadd.f32 %v3051, %v3021
      %v3053 = vadd.f32 %v3052, %v3022
      %v3054 = vadd.f32 %v3053, %v3023
      %v3055 = vadd.f32 %v3054, %v3024
      %v3056 = vadd.f32 %v3055, %v3025
      %v3057 = vadd.f32 %v3056, %v3026
      %v3058 = vadd.f32 %v3057, %v3027
      %v3059 = vadd.f32 %v3058, %v3028
      %v3060 = vadd.f32 %v3059, %v3029
      %v3061 = vrot.slane %v3060, 4
      %v3062 = vadd.f32 %v3060, %v3061
      %v3063 = vrot.slane %v3062, 2
      %v3064 = vadd.f32 %v3062, %v3063
      %v3065 = vrot.slane %v3064, 1
      %v3066 = vadd.f32 %v3064, %v3065
      %vm3067 = vcmask 1040384
      %v3068 = vsel %vm3067, %v2997, %v3066
      %v3069 = vadd.f32 %v2960, %v3068
      %3070 = vst [vmem:[%s259] sm:$0x3] %v3069
      %s3071 = sadd.s32 %s21, %s22
      %p3072 = scmp.lt.s32.totalorder %s3071, 1
      %s3073 = scalar_select %p3072, %s3071, 1
      %s3074 = smul.addr %s3073, 32
      %s3075 = smul.addr %s3074, 4
      %s3076 = scalar_lea.vmem %s4, %s3075
      %p3077 = scmp.lt.s32.totalorder %s21, 1
      %s3078 = scalar_select %p3077, %s21, 1
      %s3079 = smul.addr %s3078, 2
      %s3080 = scalar_lea.vmem %s5, %s3079
      // Predicated region
      $region41: #{basic_block_forward.4} parent=35 // pred_check
        %p3081 = pneg %p140
      $region42: #{basic_block_forward.4} parent=35 // pred_check_branch
        %3083 = sbr.rel (%p3081) target = $region44
      $region43: #{basic_block_forward.4} parent=35 // pred_region
        %s3084 = sadd.s32 %s21, %s22
      $region44: #{basic_block_forward.4} parent=35 // pred_fallthru
        _
      // Predicated region
      $region45: #{basic_block_forward.4} parent=35 // pred_check
        %p3085 = pneg %p166
      $region46: #{basic_block_forward.4} parent=35 // pred_check_branch
        %3087 = sbr.rel (%p3085) target = $region48
      $region47: #{basic_block_forward.4} parent=35 // pred_region
        _
      $region48: #{basic_block_forward.4} parent=35 // pred_fallthru
        _
    $region36: #{basic_block_forward.4} parent=5 // pred_fallthru
      _
    %p3088 = scmp.le.s32.totalorder 2, %s12
    // Predicated region
    $region49: #{basic_block_forward.4} parent=5 // pred_check
      %p3089 = pneg %p3088
    $region50: #{basic_block_forward.4} parent=5 // pred_check_branch
      %3091 = sbr.rel (%p3089) target = $region52
    $region51: #{basic_block_forward.4} parent=5 // pred_region
      %s3092 = ssub.s32 %s12, 2
      // Predicated region
      $region53: #{basic_block_forward.4} parent=51 // pred_check
        %p3093 = pneg %p146
      $region54: #{basic_block_forward.4} parent=51 // pred_check_branch
        %3095 = sbr.rel (%p3093) target = $region56
      $region55: #{basic_block_forward.4} parent=51 // pred_region
        %s3096 = sadd.s32 %s23, %s24
        %p3097 = scmp.lt.s32.totalorder %s3096, 1
        %s3098 = scalar_select %p3097, %s3096, 1
        %s3099 = smul.addr %s3098, 32
        %s3100 = smul.addr %s3099, 4
        %s3101 = scalar_lea.vmem %s4, %s3100
      $region56: #{basic_block_forward.4} parent=51 // pred_fallthru
        _
      // Predicated region
      $region57: #{basic_block_forward.4} parent=51 // pred_check
        %p3102 = pneg %p172
      $region58: #{basic_block_forward.4} parent=51 // pred_check_branch
        %3104 = sbr.rel (%p3102) target = $region60
      $region59: #{basic_block_forward.4} parent=51 // pred_region
        %p3105 = scmp.lt.s32.totalorder %s23, 1
        %s3106 = scalar_select %p3105, %s23, 1
        %s3107 = smul.addr %s3106, 2
        %s3108 = scalar_lea.vmem %s5, %s3107
      $region60: #{basic_block_forward.4} parent=51 // pred_fallthru
        _
    $region52: #{basic_block_forward.4} parent=5 // pred_fallthru
      _
  $region6: #{basic_block_forward.4} parent=0 // loop_footer
    %s16 = sadd.s32 1, %s12
  $region7: #{basic_block_forward.4} parent=0 // loop_footer_branch
    %11 = sbr.rel target = $region3
  $region8: #{basic_block_forward.4} parent=0 // loop_exit
    _

</llo_original>
